<compile_context>
chip_gen: v7x
topology: tpu7x:2x2x1
jax: 0.10.0
libtpu: 0.0.40
codegen_flags: <defaults>
</compile_context>

<pallas_src>
import functools
import math

import jax
import jax.numpy as jnp
from jax import lax
from jax.experimental import pallas as pl
from jax.experimental.pallas import tpu as pltpu

LANE = 128                     # lane width; packing target for rows & modes
                               # TODO(synk): 256-wide packing would fill the
                               # 2x256x256 MXU on v6e/v7x; 128 kept for v5e.
MAX_ROW_TILE = 1024            # row-tile cap for the pointwise matmul kernels
MODE_GROUP_TILE = 8            # packed mode-groups per specmix grid step
VMEM_LIMIT = 32 * 1024 * 1024  # safe scoped-VMEM budget on v5e/v6e/v7x


def _round_up(n, m):
    return ((n + m - 1) // m) * m


def _pick_tile(n):
    """Row tile: big (amortize per-step overhead) but >=2 balanced steps so
    both v7x TensorCores get work on small problems."""
    if n <= 16:
        return n
    if n >= 2 * MAX_ROW_TILE:
        return MAX_ROW_TILE
    return min(n, _round_up((n + 1) // 2, 16))


def _fold(x2d, fold):
    """(N, C) -> (ceil(N/fold), fold*C): pack `fold` rows into 128 lanes."""
    n, c = x2d.shape
    pad = (-n) % fold
    if pad:
        x2d = jnp.pad(x2d, ((0, pad), (0, 0)))
    return x2d.reshape(-1, fold * c)


def _unfold(xf, n_rows, c):
    return xf.reshape(-1, c)[:n_rows]


# ----------------------------------------------------------------------------
# In-kernel helpers
# ----------------------------------------------------------------------------
_SQRT_2_OVER_PI = 0.7978845608028654


def _gelu(x):
    # tanh-approximate GELU: transcendental goes to the EUP slot.
    # TODO(synk): PyTorch F.gelu defaults to exact erf; tanh approx differs
    # by <~1e-3 per element (acceptable for bf16-matmul inference).
    return 0.5 * x * (1.0 + jnp.tanh(_SQRT_2_OVER_PI * (x + 0.044715 * x * x * x)))


def _sigmoid(x):
    # exp on the EUP, divide replaced by EUP approx reciprocal.
    return pl.reciprocal(1.0 + jnp.exp(-x), approx=True)


# ----------------------------------------------------------------------------
# Pallas kernels (row-tiled pointwise path; activations are folded bf16)
# ----------------------------------------------------------------------------
def _lift_kernel(x_ref, wf_ref, wg_ref, b_ref, o_ref, *, X, Y, T):
    # o = [x_raw, gx, gy, gt] @ W + b, with the coordinate grid generated
    # in-kernel from the flattened row index (no HBM grid materialization).
    tile = x_ref.shape[0]
    base = pl.program_id(0) * tile
    rid = (base + lax.broadcasted_iota(jnp.int32, (tile, 1), 0)).astype(jnp.float32)
    # decode (b, xi, yi, ti) from rid = ((b*X + xi)*Y + yi)*T + ti.
    # Exact while B*X*Y*T < 2^24 (asserted at trace time in the wrapper).
    # TODO(synk): switch to an integer decode for >16.7M-row grids.
    q1 = jnp.floor(rid / float(T))
    ti = rid - q1 * float(T)
    q2 = jnp.floor(q1 / float(Y))
    yi = q1 - q2 * float(Y)
    q3 = jnp.floor(q2 / float(X))
    xi = q2 - q3 * float(X)
    sx = 1.0 / (X - 1) if X > 1 else 0.0
    sy = 1.0 / (Y - 1) if Y > 1 else 0.0
    st = 1.0 / (T - 1) if T > 1 else 0.0

    feat = jnp.dot(x_ref[...], wf_ref[...], preferred_element_type=jnp.float32)
    grid_c = ((xi * sx) * wg_ref[0:1, :] + (yi * sy) * wg_ref[1:2, :]
              + (ti * st) * wg_ref[2:3, :])
    o_ref[...] = (feat + grid_c + b_ref[...]).astype(o_ref.dtype)


def _mix_kernel(s_ref, x_ref, w1_ref, b1_ref, w2_ref, b2_ref, ww_ref, bw_ref,
                o_ref, *, sigmoid):
    # o = act( mlp2(gelu(mlp1(spectral))) + W(x) )   [folded layout, bf16 I/O]
    s = s_ref[...]
    x = x_ref[...]
    h = _gelu(jnp.dot(s, w1_ref[...], preferred_element_type=jnp.float32)
              + b1_ref[...])
    y = (jnp.dot(h.astype(jnp.bfloat16), w2_ref[...],
                 preferred_element_type=jnp.float32) + b2_ref[...])
    y = y + jnp.dot(x, ww_ref[...], preferred_element_type=jnp.float32) + bw_ref[...]
    y = _sigmoid(y) if sigmoid else _gelu(y)
    o_ref[...] = y.astype(o_ref.dtype)


def _mix_skip_fused_kernel(s_ref, x_ref, w1_ref, b1_ref, w2_ref, b2_ref,
                           ww_ref, bw_ref, wsk_ref, bsk_ref, o_ref):
    # Layer 1 + layer 2 fused (the reference's conv2/mlp2 branch is dead):
    #   y = gelu(mlp2(gelu(mlp1(s))) + w1(x));  o = gelu(y + w2(y))
    s = s_ref[...]
    x = x_ref[...]
    h = _gelu(jnp.dot(s, w1_ref[...], preferred_element_type=jnp.float32)
              + b1_ref[...])
    y = (jnp.dot(h.astype(jnp.bfloat16), w2_ref[...],
                 preferred_element_type=jnp.float32) + b2_ref[...])
    y = _gelu(y + jnp.dot(x, ww_ref[...], preferred_element_type=jnp.float32)
              + bw_ref[...])
    z = (jnp.dot(y.astype(jnp.bfloat16), wsk_ref[...],
                 preferred_element_type=jnp.float32) + bsk_ref[...])
    o_ref[...] = _gelu(y + z).astype(o_ref.dtype)


def _proj_kernel(x_ref, w1_ref, b1_ref, w2_ref, b2_ref, o_ref):
    # q: conv1x1 -> gelu -> conv1x1 (width -> 4*width -> 1), folded layout,
    # so the output carries FOLD live lanes per row instead of 1.
    h = _gelu(jnp.dot(x_ref[...], w1_ref[...], preferred_element_type=jnp.float32)
              + b1_ref[...])
    o_ref[...] = (jnp.dot(h.astype(jnp.bfloat16), w2_ref[...],
                          preferred_element_type=jnp.float32) + b2_ref[...])


# ----------------------------------------------------------------------------
# Pallas kernel (spectral per-mode complex channel mix, Gauss 3-matmul)
# ----------------------------------------------------------------------------
def _specmix_kernel(ar_ref, ai_ref, wr_ref, wi_ref, or_ref, oi_ref):
    # Per packed mode-group g: (B, P*C) @ block-diag (P*C, P*C) complex
    # matmul via Gauss's trick (3 bf16 MXU matmuls, f32 accumulation).
    ar = ar_ref[0]              # (GT, B, PC) bf16
    ai = ai_ref[0]
    wr = wr_ref[0]              # (GT, PC, PC) bf16 block-diagonal
    wi = wi_ref[0]
    k1 = jnp.einsum('gbr,gro->gbo', ar, wr, preferred_element_type=jnp.float32)
    k2 = jnp.einsum('gbr,gro->gbo', ai, wi, preferred_element_type=jnp.float32)
    k3 = jnp.einsum('gbr,gro->gbo', ar + ai, wr + wi,
                    preferred_element_type=jnp.float32)
    or_ref[0] = k1 - k2
    oi_ref[0] = k3 - k1 - k2


# ----------------------------------------------------------------------------
# Pallas wrappers
# ----------------------------------------------------------------------------
def _rows_call(kernel, row_args, full_args, out_cols, out_dtype):
    """Row-tiled pointwise kernel over flattened spatial rows (cdiv grid,
    ragged tail handled by Pallas block masking)."""
    n = row_args[0].shape[0]
    tile = _pick_tile(n)
    grid = (pl.cdiv(n, tile),)
    in_specs = [pl.BlockSpec((tile, a.shape[1]), lambda i: (i, 0))
                for a in row_args]
    in_specs += [pl.BlockSpec(a.shape, lambda i: (0, 0)) for a in full_args]
    out_specs = pl.BlockSpec((tile, out_cols), lambda i: (i, 0))
    return pl.pallas_call(
        kernel,
        grid=grid,
        in_specs=in_specs,
        out_specs=out_specs,
        out_shape=jax.ShapeDtypeStruct((n, out_cols), out_dtype),
        compiler_params=pltpu.CompilerParams(
            dimension_semantics=("parallel",),
            vmem_limit_bytes=VMEM_LIMIT),
    )(*row_args, *full_args)


def _specmix_call(ar, ai, wr, wi):
    """One gridded call for all 4 corners: grid = (corner, mode_group_tile)."""
    K, G, B, PC = ar.shape
    gt = math.gcd(G, MODE_GROUP_TILE)   # keep the group axis evenly tiled
    grid = (K, G // gt)
    a_spec = pl.BlockSpec((1, gt, B, PC), lambda c, g: (c, g, 0, 0))
    w_spec = pl.BlockSpec((1, gt, PC, PC), lambda c, g: (c, g, 0, 0))
    o_spec = pl.BlockSpec((1, gt, B, PC), lambda c, g: (c, g, 0, 0))
    return pl.pallas_call(
        _specmix_kernel,
        grid=grid,
        in_specs=[a_spec, a_spec, w_spec, w_spec],
        out_specs=(o_spec, o_spec),
        out_shape=(jax.ShapeDtypeStruct((K, G, B, PC), jnp.float32),
                   jax.ShapeDtypeStruct((K, G, B, PC), jnp.float32)),
        compiler_params=pltpu.CompilerParams(
            dimension_semantics=("parallel", "parallel"),
            vmem_limit_bytes=VMEM_LIMIT),
    )(ar, ai, wr, wi)


def spectral_conv3d(xf, spatial, width, wr, wi, modes):
    """SpectralConv3d: rfftn -> gridded Pallas mode-group complex MXU matmul
    -> irfftn.

    xf: folded bf16 activations (ceil(N/FOLD), FOLD*width).
    wr/wi: (4, G, P*C, P*C) bf16 block-diagonal corner weights (P modes per
    128-lane group, built at init).
    """
    B, X, Y, Tp = spatial
    C = width
    fold = LANE // C
    P = fold
    N = B * X * Y * Tp
    m1, m2, m3 = modes
    M = m1 * m2 * m3
    Mp = _round_up(M, P)
    G = Mp // P
    Zr = Tp // 2 + 1
    assert 2 * m1 <= X and 2 * m2 <= Y and m3 <= Zr, "modes too large for grid"

    # TODO(synk): FFT has no Pallas equivalent -> plain JAX (XLA) glue.
    x = _unfold(xf, N, C).astype(jnp.float32).reshape(B, X, Y, Tp, C)
    x_ft = jnp.fft.rfftn(x, axes=(1, 2, 3))                 # (B,X,Y,Zr,C) c64

    def corner(slx, sly):
        a = x_ft[:, slx, sly, :m3, :].reshape(B, M, C)       # (B, M, C)
        if Mp != M:
            a = jnp.pad(a, ((0, 0), (0, Mp - M), (0, 0)))
        a = a.reshape(B, G, P, C).transpose(1, 0, 2, 3)      # (G, B, P, C)
        return a.reshape(G, B, P * C)

    lo_x, hi_x = slice(0, m1), slice(X - m1, X)
    lo_y, hi_y = slice(0, m2), slice(Y - m2, Y)
    a_all = jnp.stack([corner(lo_x, lo_y), corner(hi_x, lo_y),
                       corner(lo_x, hi_y), corner(hi_x, hi_y)], 0)  # (4,G,B,PC)

    out_r, out_i = _specmix_call(jnp.real(a_all).astype(jnp.bfloat16),
                                 jnp.imag(a_all).astype(jnp.bfloat16),
                                 wr, wi)

    o = lax.complex(out_r, out_i)                            # (4, G, B, PC)
    o = (o.reshape(4, G, B, P, C).transpose(0, 2, 1, 3, 4)
          .reshape(4, B, Mp, C)[:, :, :M, :]
          .reshape(4, B, m1, m2, m3, C))

    # Assemble out_ft with one zeros buffer + in-place slice updates
    # (XLA fuses these; no nested-concatenate intermediates).
    out_ft = jnp.zeros((B, X, Y, Zr, C), jnp.complex64)
    out_ft = out_ft.at[:, :m1, :m2, :m3, :].set(o[0])
    out_ft = out_ft.at[:, X - m1:, :m2, :m3, :].set(o[1])
    out_ft = out_ft.at[:, :m1, Y - m2:, :m3, :].set(o[2])
    out_ft = out_ft.at[:, X - m1:, Y - m2:, :m3, :].set(o[3])

    y = jnp.fft.irfftn(out_ft, s=(X, Y, Tp), axes=(1, 2, 3))
    return _fold(y.astype(jnp.bfloat16).reshape(N, C), fold)


# ----------------------------------------------------------------------------
# Parameters (deterministic synthetic init; logical shapes follow the PyTorch
# module, then re-laid-out for the folded / mode-packed kernels).
# ----------------------------------------------------------------------------
def init_params(key, width, modes, in_features=10):
    C = width
    assert C <= LANE and LANE % C == 0, "width must divide 128 for row folding"
    fold = LANE // C
    P = fold
    m1, m2, m3 = modes
    M = m1 * m2 * m3
    Mp = _round_up(M, P)
    G = Mp // P

    def nxt():
        nonlocal key
        key, sub = jax.random.split(key)
        return sub

    def u(shape, bound):
        return jax.random.uniform(nxt(), shape, jnp.float32, -bound, bound)

    eye_f = jnp.eye(fold, dtype=jnp.float32)

    def fold_w(w):
        # (cin, cout) -> block-diagonal (fold*cin, fold*cout), bf16 for MXU.
        cin, cout = w.shape
        out = jnp.einsum('pq,io->piqo', eye_f, w).reshape(fold * cin, fold * cout)
        return out.astype(jnp.bfloat16)

    def fold_b(b):
        return jnp.tile(b, (1, fold))                        # f32

    eye_p = jnp.eye(P, dtype=jnp.float32)

    def pack_spec(w):
        # (4, M, C, C) -> (4, G, P*C, P*C) block-diag over P packed modes.
        w = jnp.pad(w, ((0, 0), (0, Mp - M), (0, 0), (0, 0)))
        w = w.reshape(4, G, P, C, C)
        out = jnp.einsum('kgpio,pq->kgpiqo', w, eye_p)
        return out.reshape(4, G, P * C, P * C).astype(jnp.bfloat16)

    p = {}

    # lift: nn.Linear(10, width).  Rows 0..6 hit the raw input features,
    # rows 7..9 hit the (x, y, t) coordinate grid generated in-kernel.
    bp = 1.0 / (in_features ** 0.5)
    w_p = u((in_features, C), bp)
    p["p_wf"] = w_p[:in_features - 3]                        # (7, C) f32
    p["p_wg"] = w_p[in_features - 3:]                        # (3, C) f32
    p["p_b"] = u((1, C), bp)

    scale = 1.0 / (C * C)                                    # SpectralConv3d scale
    bw = 1.0 / (C ** 0.5)
    for l in range(4):
        if l == 2:
            # conv2 / mlp2 are dead in the reference forward; only w2 is used.
            p["w2_w"] = fold_w(u((C, C), bw))
            p["w2_b"] = fold_b(u((1, C), bw))
            continue
        wr = scale * jax.random.uniform(nxt(), (4, M, C, C), jnp.float32)
        wi = scale * jax.random.uniform(nxt(), (4, M, C, C), jnp.float32)
        p[f"spec{l}_wr"] = pack_spec(wr)
        p[f"spec{l}_wi"] = pack_spec(wi)
        p[f"mlp{l}_w1"] = fold_w(u((C, C), bw))
        p[f"mlp{l}_b1"] = fold_b(u((1, C), bw))
        p[f"mlp{l}_w2"] = fold_w(u((C, C), bw))
        p[f"mlp{l}_b2"] = fold_b(u((1, C), bw))
        p[f"w{l}_w"] = fold_w(u((C, C), bw))
        p[f"w{l}_b"] = fold_b(u((1, C), bw))

    # projection q: MLP(width, 1, 4*width)
    p["q_w1"] = fold_w(u((C, 4 * C), bw))
    p["q_b1"] = fold_b(u((1, 4 * C), bw))
    bq = 1.0 / ((4 * C) ** 0.5)
    p["q_w2"] = fold_w(u((4 * C, 1), bq))
    p["q_b2"] = fold_b(u((1, 1), bq))
    return p


# ----------------------------------------------------------------------------
# FNO3d forward
# ----------------------------------------------------------------------------
def fno3d_forward(x_raw, params, modes, width, padding=6):
    B, X, Y, T, fin = x_raw.shape
    C = width
    fold = LANE // C
    CF = fold * C
    assert fin == params["p_wf"].shape[0]
    # float row-index decode in the lift is exact only below 2^24 rows.
    assert B * X * Y * T < 2 ** 24, "grid too large for float row decode"

    # lift (coordinate grid generated inside the kernel), bf16 output
    N0 = B * X * Y * T
    lift = functools.partial(_lift_kernel, X=X, Y=Y, T=T)
    x2d = _rows_call(lift, [x_raw.reshape(N0, fin)],
                     [params["p_wf"], params["p_wg"], params["p_b"]],
                     C, jnp.bfloat16)                        # (N0, C) bf16
    x = x2d.reshape(B, X, Y, T, C)

    # F.pad([0, padding]) on the channel-first tensor == pad the t axis (right)
    x = jnp.pad(x, ((0, 0), (0, 0), (0, 0), (0, padding), (0, 0)))
    Tp = T + padding
    N = B * X * Y * Tp
    spatial = (B, X, Y, Tp)
    xf = _fold(x.reshape(N, C), fold)                        # (Nf, CF) bf16

    def spec(layer, xf_in):
        return spectral_conv3d(xf_in, spatial, C,
                               params[f"spec{layer}_wr"],
                               params[f"spec{layer}_wi"], modes)

    # layer 0: x = gelu(mlp0(conv0(x)) + w0(x))
    s = spec(0, xf)
    xf = _rows_call(functools.partial(_mix_kernel, sigmoid=False),
                    [s, xf],
                    [params["mlp0_w1"], params["mlp0_b1"],
                     params["mlp0_w2"], params["mlp0_b2"],
                     params["w0_w"], params["w0_b"]],
                    CF, jnp.bfloat16)

    # layers 1 + 2 fused: y = gelu(mlp1(conv1(x)) + w1(x)); x = gelu(y + w2(y))
    # (the reference computes mlp2(conv2(.)) but discards it).
    s = spec(1, xf)
    xf = _rows_call(_mix_skip_fused_kernel,
                    [s, xf],
                    [params["mlp1_w1"], params["mlp1_b1"],
                     params["mlp1_w2"], params["mlp1_b2"],
                     params["w1_w"], params["w1_b"],
                     params["w2_w"], params["w2_b"]],
                    CF, jnp.bfloat16)

    # layer 3: x = sigmoid(mlp3(conv3(x)) + w3(x))
    s = spec(3, xf)
    xf = _rows_call(functools.partial(_mix_kernel, sigmoid=True),
                    [s, xf],
                    [params["mlp3_w1"], params["mlp3_b1"],
                     params["mlp3_w2"], params["mlp3_b2"],
                     params["w3_w"], params["w3_b"]],
                    CF, jnp.bfloat16)

    # drop temporal padding, re-fold over the unpadded grid, project with q
    x = _unfold(xf, N, C).reshape(B, X, Y, Tp, C)[:, :, :, :T, :]
    xf0 = _fold(x.reshape(N0, C), fold)
    out = _rows_call(_proj_kernel, [xf0],
                     [params["q_w1"], params["q_b1"],
                      params["q_w2"], params["q_b2"]],
                     fold, jnp.float32)                      # (N0/fold, fold)
    # torch permutes (B,1,X,Y,T) -> (B,X,Y,T,1); channels-last already matches
    return out.reshape(-1)[:N0].reshape(B, X, Y, T, 1)


# ----------------------------------------------------------------------------
if __name__ == "__main__":
    key = jax.random.PRNGKey(0)
    k_in, k_par = jax.random.split(key)

    # Small shapes consistent with the module: self.p = nn.Linear(10, width),
    # so the raw input carries 7 channels and the 3-channel grid is appended.
    B, X, Y, T = 2, 8, 8, 8
    width = 16
    modes = (4, 4, 4)

    x = jax.random.normal(k_in, (B, X, Y, T, 7), dtype=jnp.float32)
    params = init_params(k_par, width, modes)

    fwd = jax.jit(functools.partial(fno3d_forward, modes=modes, width=width))
    out = fwd(x, params)
    out = jax.block_until_ready(out)
    assert out.shape == (B, X, Y, T, 1), out.shape
    assert out.dtype == jnp.float32
    print("KERNEL_OK")
</pallas_src>

<mosaic_0001>
module attributes {stable_mosaic.version = 11 : i64} {
  func.func @_lift_kernel(%arg0: i32, %arg1: memref<512x7xf32, #tpu.memory_space<vmem>>, %arg2: memref<7x16xf32, #tpu.memory_space<vmem>>, %arg3: memref<3x16xf32, #tpu.memory_space<vmem>>, %arg4: memref<1x16xf32, #tpu.memory_space<vmem>>, %arg5: memref<512x16xbf16, #tpu.memory_space<vmem>>) attributes {dimension_semantics = [#tpu.dimension_semantics<parallel>], iteration_bounds = array<i64: 2>, scalar_prefetch = 0 : i64, scratch_operands = 0 : i64, tpu.core_type = #tpu.core_type<tc>, window_params = [{transform_indices = @transform_0, window_bounds = array<i64: 512, 7>}, {pipeline_mode = #tpu.pipeline_mode<synchronous>, transform_indices = @transform_1, window_bounds = array<i64: 7, 16>}, {pipeline_mode = #tpu.pipeline_mode<synchronous>, transform_indices = @transform_2, window_bounds = array<i64: 3, 16>}, {pipeline_mode = #tpu.pipeline_mode<synchronous>, transform_indices = @transform_3, window_bounds = array<i64: 1, 16>}, {transform_indices = @transform_4, window_bounds = array<i64: 512, 16>}]} {
    %c512_i32 = arith.constant 512 : i32
    %0 = arith.muli %arg0, %c512_i32 : i32
    %1 = tpu.iota {dimensions = array<i32: 0>} : vector<512x1xi32>
    %2 = vector.broadcast %0 : i32 to vector<512x1xi32>
    %3 = arith.addi %2, %1 : vector<512x1xi32>
    %4 = arith.sitofp %3 : vector<512x1xi32> to vector<512x1xf32>
    %cst = arith.constant 8.000000e+00 : f32
    %5 = vector.broadcast %cst : f32 to vector<512x1xf32>
    %6 = arith.divf %4, %5 : vector<512x1xf32>
    %7 = math.floor %6 : vector<512x1xf32>
    %cst_0 = arith.constant 8.000000e+00 : f32
    %8 = vector.broadcast %cst_0 : f32 to vector<512x1xf32>
    %9 = arith.mulf %7, %8 : vector<512x1xf32>
    %10 = arith.subf %4, %9 : vector<512x1xf32>
    %cst_1 = arith.constant 8.000000e+00 : f32
    %11 = vector.broadcast %cst_1 : f32 to vector<512x1xf32>
    %12 = arith.divf %7, %11 : vector<512x1xf32>
    %13 = math.floor %12 : vector<512x1xf32>
    %cst_2 = arith.constant 8.000000e+00 : f32
    %14 = vector.broadcast %cst_2 : f32 to vector<512x1xf32>
    %15 = arith.mulf %13, %14 : vector<512x1xf32>
    %16 = arith.subf %7, %15 : vector<512x1xf32>
    %cst_3 = arith.constant 8.000000e+00 : f32
    %17 = vector.broadcast %cst_3 : f32 to vector<512x1xf32>
    %18 = arith.divf %13, %17 : vector<512x1xf32>
    %19 = math.floor %18 : vector<512x1xf32>
    %cst_4 = arith.constant 8.000000e+00 : f32
    %20 = vector.broadcast %cst_4 : f32 to vector<512x1xf32>
    %21 = arith.mulf %19, %20 : vector<512x1xf32>
    %22 = arith.subf %13, %21 : vector<512x1xf32>
    %c0 = arith.constant 0 : index
    %c0_5 = arith.constant 0 : index
    %23 = vector.load %arg1[%c0, %c0_5] : memref<512x7xf32, #tpu.memory_space<vmem>>, vector<512x7xf32>
    %c0_6 = arith.constant 0 : index
    %c0_7 = arith.constant 0 : index
    %24 = vector.load %arg2[%c0_6, %c0_7] : memref<7x16xf32, #tpu.memory_space<vmem>>, vector<7x16xf32>
    %cst_8 = arith.constant dense<0.000000e+00> : vector<512x16xf32>
    %25 = tpu.matmul %23, %24, %cst_8 {dimension_numbers = #tpu.dot_dimension_numbers<[1], [0], [0], [1], [0, 0, 1, 1], [], []>} : vector<512x7xf32>, vector<7x16xf32>, vector<512x16xf32> -> vector<512x16xf32>
    %cst_9 = arith.constant 0.142857149 : f32
    %26 = vector.broadcast %cst_9 : f32 to vector<512x1xf32>
    %27 = arith.mulf %22, %26 : vector<512x1xf32>
    %c0_10 = arith.constant 0 : index
    %c0_11 = arith.constant 0 : index
    %28 = vector.load %arg3[%c0_10, %c0_11] : memref<3x16xf32, #tpu.memory_space<vmem>>, vector<1x16xf32>
    %29 = vector.broadcast %27 : vector<512x1xf32> to vector<512x16xf32>
    %30 = vector.broadcast %28 : vector<1x16xf32> to vector<512x16xf32>
    %31 = arith.mulf %29, %30 : vector<512x16xf32>
    %cst_12 = arith.constant 0.142857149 : f32
    %32 = vector.broadcast %cst_12 : f32 to vector<512x1xf32>
    %33 = arith.mulf %16, %32 : vector<512x1xf32>
    %c1 = arith.constant 1 : index
    %c0_13 = arith.constant 0 : index
    %34 = vector.load %arg3[%c1, %c0_13] : memref<3x16xf32, #tpu.memory_space<vmem>>, vector<1x16xf32>
    %35 = vector.broadcast %33 : vector<512x1xf32> to vector<512x16xf32>
    %36 = vector.broadcast %34 : vector<1x16xf32> to vector<512x16xf32>
    %37 = arith.mulf %35, %36 : vector<512x16xf32>
    %38 = arith.addf %31, %37 : vector<512x16xf32>
    %cst_14 = arith.constant 0.142857149 : f32
    %39 = vector.broadcast %cst_14 : f32 to vector<512x1xf32>
    %40 = arith.mulf %10, %39 : vector<512x1xf32>
    %c2 = arith.constant 2 : index
    %c0_15 = arith.constant 0 : index
    %41 = vector.load %arg3[%c2, %c0_15] : memref<3x16xf32, #tpu.memory_space<vmem>>, vector<1x16xf32>
    %42 = vector.broadcast %40 : vector<512x1xf32> to vector<512x16xf32>
    %43 = vector.broadcast %41 : vector<1x16xf32> to vector<512x16xf32>
    %44 = arith.mulf %42, %43 : vector<512x16xf32>
    %45 = arith.addf %38, %44 : vector<512x16xf32>
    %46 = arith.addf %25, %45 : vector<512x16xf32>
    %c0_16 = arith.constant 0 : index
    %c0_17 = arith.constant 0 : index
    %47 = vector.load %arg4[%c0_16, %c0_17] : memref<1x16xf32, #tpu.memory_space<vmem>>, vector<1x16xf32>
    %48 = vector.broadcast %47 : vector<1x16xf32> to vector<512x16xf32>
    %49 = arith.addf %46, %48 : vector<512x16xf32>
    %50 = arith.truncf %49 : vector<512x16xf32> to vector<512x16xbf16>
    %c0_18 = arith.constant 0 : index
    %c0_19 = arith.constant 0 : index
    %51 = vector.load %arg5[%c0_18, %c0_19] : memref<512x16xbf16, #tpu.memory_space<vmem>>, vector<512x16xbf16>
    tpu.vector_store %arg5[%c0_18, %c0_19], %50 {strides = array<i32>} : memref<512x16xbf16, #tpu.memory_space<vmem>>, vector<512x16xbf16>,
    return
  }
  func.func @transform_0(%arg0: i32) -> (i32, i32) {
    %c0_i32 = arith.constant 0 : i32
    %c0_i32_0 = arith.constant 0 : i32
    return %arg0, %c0_i32 : i32, i32
  }
  func.func @transform_1(%arg0: i32) -> (i32, i32) {
    %c0_i32 = arith.constant 0 : i32
    %c0_i32_0 = arith.constant 0 : i32
    %c0_i32_1 = arith.constant 0 : i32
    return %c0_i32, %c0_i32_0 : i32, i32
  }
  func.func @transform_2(%arg0: i32) -> (i32, i32) {
    %c0_i32 = arith.constant 0 : i32
    %c0_i32_0 = arith.constant 0 : i32
    %c0_i32_1 = arith.constant 0 : i32
    return %c0_i32, %c0_i32_0 : i32, i32
  }
  func.func @transform_3(%arg0: i32) -> (i32, i32) {
    %c0_i32 = arith.constant 0 : i32
    %c0_i32_0 = arith.constant 0 : i32
    %c0_i32_1 = arith.constant 0 : i32
    return %c0_i32, %c0_i32_0 : i32, i32
  }
  func.func @transform_4(%arg0: i32) -> (i32, i32) {
    %c0_i32 = arith.constant 0 : i32
    %c0_i32_0 = arith.constant 0 : i32
    return %arg0, %c0_i32 : i32, i32
  }
}

module attributes {stable_mosaic.version = 11 : i64} {
  func.func @_specmix_kernel(%arg0: i32, %arg1: i32, %arg2: memref<1x8x2x128xbf16, #tpu.memory_space<vmem>>, %arg3: memref<1x8x2x128xbf16, #tpu.memory_space<vmem>>, %arg4: memref<1x8x128x128xbf16, #tpu.memory_space<vmem>>, %arg5: memref<1x8x128x128xbf16, #tpu.memory_space<vmem>>, %arg6: memref<1x8x2x128xf32, #tpu.memory_space<vmem>>, %arg7: memref<1x8x2x128xf32, #tpu.memory_space<vmem>>) attributes {dimension_semantics = [#tpu.dimension_semantics<parallel>, #tpu.dimension_semantics<parallel>], iteration_bounds = array<i64: 4, 1>, scalar_prefetch = 0 : i64, scratch_operands = 0 : i64, tpu.core_type = #tpu.core_type<tc>, window_params = [{transform_indices = @transform_0, window_bounds = array<i64: 1, 8, 2, 128>}, {transform_indices = @transform_1, window_bounds = array<i64: 1, 8, 2, 128>}, {transform_indices = @transform_2, window_bounds = array<i64: 1, 8, 128, 128>}, {transform_indices = @transform_3, window_bounds = array<i64: 1, 8, 128, 128>}, {transform_indices = @transform_4, window_bounds = array<i64: 1, 8, 2, 128>}, {transform_indices = @transform_5, window_bounds = array<i64: 1, 8, 2, 128>}]} {
    %c0 = arith.constant 0 : index
    %c0_0 = arith.constant 0 : index
    %c0_1 = arith.constant 0 : index
    %c0_2 = arith.constant 0 : index
    %0 = vector.load %arg2[%c0, %c0_0, %c0_1, %c0_2] : memref<1x8x2x128xbf16, #tpu.memory_space<vmem>>, vector<1x8x2x128xbf16>
    %1 = vector.shape_cast %0 : vector<1x8x2x128xbf16> to vector<8x2x128xbf16>
    %c0_3 = arith.constant 0 : index
    %c0_4 = arith.constant 0 : index
    %c0_5 = arith.constant 0 : index
    %c0_6 = arith.constant 0 : index
    %2 = vector.load %arg3[%c0_3, %c0_4, %c0_5, %c0_6] : memref<1x8x2x128xbf16, #tpu.memory_space<vmem>>, vector<1x8x2x128xbf16>
    %3 = vector.shape_cast %2 : vector<1x8x2x128xbf16> to vector<8x2x128xbf16>
    %c0_7 = arith.constant 0 : index
    %c0_8 = arith.constant 0 : index
    %c0_9 = arith.constant 0 : index
    %c0_10 = arith.constant 0 : index
    %4 = vector.load %arg4[%c0_7, %c0_8, %c0_9, %c0_10] : memref<1x8x128x128xbf16, #tpu.memory_space<vmem>>, vector<1x8x128x128xbf16>
    %5 = vector.shape_cast %4 : vector<1x8x128x128xbf16> to vector<8x128x128xbf16>
    %c0_11 = arith.constant 0 : index
    %c0_12 = arith.constant 0 : index
    %c0_13 = arith.constant 0 : index
    %c0_14 = arith.constant 0 : index
    %6 = vector.load %arg5[%c0_11, %c0_12, %c0_13, %c0_14] : memref<1x8x128x128xbf16, #tpu.memory_space<vmem>>, vector<1x8x128x128xbf16>
    %7 = vector.shape_cast %6 : vector<1x8x128x128xbf16> to vector<8x128x128xbf16>
    "tpu.trace_start"() <{level = 10 : i32, message = "gbr,gro->gbo"}> : () -> ()
    %cst = arith.constant dense<0.000000e+00> : vector<8x2x128xf32>
    %8 = tpu.matmul %1, %5, %cst {dimension_numbers = #tpu.dot_dimension_numbers<[2], [1], [1], [2], [0, 0, 0, 1, 1, 2], [0], [0]>} : vector<8x2x128xbf16>, vector<8x128x128xbf16>, vector<8x2x128xf32> -> vector<8x2x128xf32>
    %cst_15 = arith.constant dense<0.000000e+00> : vector<8x2x128xf32>
    %9 = tpu.matmul %3, %7, %cst_15 {dimension_numbers = #tpu.dot_dimension_numbers<[2], [1], [1], [2], [0, 0, 0, 1, 1, 2], [0], [0]>} : vector<8x2x128xbf16>, vector<8x128x128xbf16>, vector<8x2x128xf32> -> vector<8x2x128xf32>
    "tpu.trace_stop"() : () -> ()
    %10 = arith.addf %1, %3 : vector<8x2x128xbf16>
    %11 = arith.addf %5, %7 : vector<8x128x128xbf16>
    "tpu.trace_start"() <{level = 10 : i32, message = "gbr,gro->gbo"}> : () -> ()
    %cst_16 = arith.constant dense<0.000000e+00> : vector<8x2x128xf32>
    %12 = tpu.matmul %10, %11, %cst_16 {dimension_numbers = #tpu.dot_dimension_numbers<[2], [1], [1], [2], [0, 0, 0, 1, 1, 2], [0], [0]>} : vector<8x2x128xbf16>, vector<8x128x128xbf16>, vector<8x2x128xf32> -> vector<8x2x128xf32>
    "tpu.trace_stop"() : () -> ()
    %13 = arith.subf %8, %9 : vector<8x2x128xf32>
    %c0_17 = arith.constant 0 : index
    %c0_18 = arith.constant 0 : index
    %c0_19 = arith.constant 0 : index
    %c0_20 = arith.constant 0 : index
    %14 = vector.load %arg6[%c0_17, %c0_18, %c0_19, %c0_20] : memref<1x8x2x128xf32, #tpu.memory_space<vmem>>, vector<1x8x2x128xf32>
    %15 = vector.shape_cast %14 : vector<1x8x2x128xf32> to vector<8x2x128xf32>
    %16 = vector.shape_cast %13 : vector<8x2x128xf32> to vector<1x8x2x128xf32>
    tpu.vector_store %arg6[%c0_17, %c0_18, %c0_19, %c0_20], %16 {strides = array<i32>} : memref<1x8x2x128xf32, #tpu.memory_space<vmem>>, vector<1x8x2x128xf32>,
    %17 = arith.subf %12, %8 : vector<8x2x128xf32>
    %18 = arith.subf %17, %9 : vector<8x2x128xf32>
    %c0_21 = arith.constant 0 : index
    %c0_22 = arith.constant 0 : index
    %c0_23 = arith.constant 0 : index
    %c0_24 = arith.constant 0 : index
    %19 = vector.load %arg7[%c0_21, %c0_22, %c0_23, %c0_24] : memref<1x8x2x128xf32, #tpu.memory_space<vmem>>, vector<1x8x2x128xf32>
    %20 = vector.shape_cast %19 : vector<1x8x2x128xf32> to vector<8x2x128xf32>
    %21 = vector.shape_cast %18 : vector<8x2x128xf32> to vector<1x8x2x128xf32>
    tpu.vector_store %arg7[%c0_21, %c0_22, %c0_23, %c0_24], %21 {strides = array<i32>} : memref<1x8x2x128xf32, #tpu.memory_space<vmem>>, vector<1x8x2x128xf32>,
    return
  }
  func.func @transform_0(%arg0: i32, %arg1: i32) -> (i32, i32, i32, i32) {
    %c0_i32 = arith.constant 0 : i32
    %c0_i32_0 = arith.constant 0 : i32
    %c0_i32_1 = arith.constant 0 : i32
    return %arg0, %arg1, %c0_i32, %c0_i32_0 : i32, i32, i32, i32
  }
  func.func @transform_1(%arg0: i32, %arg1: i32) -> (i32, i32, i32, i32) {
    %c0_i32 = arith.constant 0 : i32
    %c0_i32_0 = arith.constant 0 : i32
    %c0_i32_1 = arith.constant 0 : i32
    return %arg0, %arg1, %c0_i32, %c0_i32_0 : i32, i32, i32, i32
  }
  func.func @transform_2(%arg0: i32, %arg1: i32) -> (i32, i32, i32, i32) {
    %c0_i32 = arith.constant 0 : i32
    %c0_i32_0 = arith.constant 0 : i32
    %c0_i32_1 = arith.constant 0 : i32
    return %arg0, %arg1, %c0_i32, %c0_i32_0 : i32, i32, i32, i32
  }
  func.func @transform_3(%arg0: i32, %arg1: i32) -> (i32, i32, i32, i32) {
    %c0_i32 = arith.constant 0 : i32
    %c0_i32_0 = arith.constant 0 : i32
    %c0_i32_1 = arith.constant 0 : i32
    return %arg0, %arg1, %c0_i32, %c0_i32_0 : i32, i32, i32, i32
  }
  func.func @transform_4(%arg0: i32, %arg1: i32) -> (i32, i32, i32, i32) {
    %c0_i32 = arith.constant 0 : i32
    %c0_i32_0 = arith.constant 0 : i32
    %c0_i32_1 = arith.constant 0 : i32
    return %arg0, %arg1, %c0_i32, %c0_i32_0 : i32, i32, i32, i32
  }
  func.func @transform_5(%arg0: i32, %arg1: i32) -> (i32, i32, i32, i32) {
    %c0_i32 = arith.constant 0 : i32
    %c0_i32_0 = arith.constant 0 : i32
    %c0_i32_1 = arith.constant 0 : i32
    return %arg0, %arg1, %c0_i32, %c0_i32_0 : i32, i32, i32, i32
  }
}

module attributes {stable_mosaic.version = 11 : i64} {
  func.func @_mix_kernel(%arg0: i32, %arg1: memref<112x128xbf16, #tpu.memory_space<vmem>>, %arg2: memref<112x128xbf16, #tpu.memory_space<vmem>>, %arg3: memref<128x128xbf16, #tpu.memory_space<vmem>>, %arg4: memref<1x128xf32, #tpu.memory_space<vmem>>, %arg5: memref<128x128xbf16, #tpu.memory_space<vmem>>, %arg6: memref<1x128xf32, #tpu.memory_space<vmem>>, %arg7: memref<128x128xbf16, #tpu.memory_space<vmem>>, %arg8: memref<1x128xf32, #tpu.memory_space<vmem>>, %arg9: memref<112x128xbf16, #tpu.memory_space<vmem>>) attributes {dimension_semantics = [#tpu.dimension_semantics<parallel>], iteration_bounds = array<i64: 2>, scalar_prefetch = 0 : i64, scratch_operands = 0 : i64, tpu.core_type = #tpu.core_type<tc>, window_params = [{transform_indices = @transform_0, window_bounds = array<i64: 112, 128>}, {transform_indices = @transform_1, window_bounds = array<i64: 112, 128>}, {pipeline_mode = #tpu.pipeline_mode<synchronous>, transform_indices = @transform_2, window_bounds = array<i64: 128, 128>}, {pipeline_mode = #tpu.pipeline_mode<synchronous>, transform_indices = @transform_3, window_bounds = array<i64: 1, 128>}, {pipeline_mode = #tpu.pipeline_mode<synchronous>, transform_indices = @transform_4, window_bounds = array<i64: 128, 128>}, {pipeline_mode = #tpu.pipeline_mode<synchronous>, transform_indices = @transform_5, window_bounds = array<i64: 1, 128>}, {pipeline_mode = #tpu.pipeline_mode<synchronous>, transform_indices = @transform_6, window_bounds = array<i64: 128, 128>}, {pipeline_mode = #tpu.pipeline_mode<synchronous>, transform_indices = @transform_7, window_bounds = array<i64: 1, 128>}, {transform_indices = @transform_8, window_bounds = array<i64: 112, 128>}]} {
    %c0 = arith.constant 0 : index
    %c0_0 = arith.constant 0 : index
    %0 = vector.load %arg1[%c0, %c0_0] : memref<112x128xbf16, #tpu.memory_space<vmem>>, vector<112x128xbf16>
    %c0_1 = arith.constant 0 : index
    %c0_2 = arith.constant 0 : index
    %1 = vector.load %arg2[%c0_1, %c0_2] : memref<112x128xbf16, #tpu.memory_space<vmem>>, vector<112x128xbf16>
    %c0_3 = arith.constant 0 : index
    %c0_4 = arith.constant 0 : index
    %2 = vector.load %arg3[%c0_3, %c0_4] : memref<128x128xbf16, #tpu.memory_space<vmem>>, vector<128x128xbf16>
    %cst = arith.constant dense<0.000000e+00> : vector<112x128xf32>
    %3 = tpu.matmul %0, %2, %cst {dimension_numbers = #tpu.dot_dimension_numbers<[1], [0], [0], [1], [0, 0, 1, 1], [], []>} : vector<112x128xbf16>, vector<128x128xbf16>, vector<112x128xf32> -> vector<112x128xf32>
    %c0_5 = arith.constant 0 : index
    %c0_6 = arith.constant 0 : index
    %4 = vector.load %arg4[%c0_5, %c0_6] : memref<1x128xf32, #tpu.memory_space<vmem>>, vector<1x128xf32>
    %5 = vector.broadcast %4 : vector<1x128xf32> to vector<112x128xf32>
    %6 = arith.addf %3, %5 : vector<112x128xf32>
    %cst_7 = arith.constant 5.000000e-01 : f32
    %7 = vector.broadcast %cst_7 : f32 to vector<112x128xf32>
    %8 = arith.mulf %7, %6 : vector<112x128xf32>
    %cst_8 = arith.constant 4.471500e-02 : f32
    %9 = vector.broadcast %cst_8 : f32 to vector<112x128xf32>
    %10 = arith.mulf %9, %6 : vector<112x128xf32>
    %11 = arith.mulf %10, %6 : vector<112x128xf32>
    %12 = arith.mulf %11, %6 : vector<112x128xf32>
    %13 = arith.addf %6, %12 : vector<112x128xf32>
    %cst_9 = arith.constant 0.797884583 : f32
    %14 = vector.broadcast %cst_9 : f32 to vector<112x128xf32>
    %15 = arith.mulf %14, %13 : vector<112x128xf32>
    %16 = math.tanh %15 : vector<112x128xf32>
    %cst_10 = arith.constant 1.000000e+00 : f32
    %17 = vector.broadcast %cst_10 : f32 to vector<112x128xf32>
    %18 = arith.addf %17, %16 : vector<112x128xf32>
    %19 = arith.mulf %8, %18 : vector<112x128xf32>
    %20 = arith.truncf %19 : vector<112x128xf32> to vector<112x128xbf16>
    %c0_11 = arith.constant 0 : index
    %c0_12 = arith.constant 0 : index
    %21 = vector.load %arg5[%c0_11, %c0_12] : memref<128x128xbf16, #tpu.memory_space<vmem>>, vector<128x128xbf16>
    %cst_13 = arith.constant dense<0.000000e+00> : vector<112x128xf32>
    %22 = tpu.matmul %20, %21, %cst_13 {dimension_numbers = #tpu.dot_dimension_numbers<[1], [0], [0], [1], [0, 0, 1, 1], [], []>} : vector<112x128xbf16>, vector<128x128xbf16>, vector<112x128xf32> -> vector<112x128xf32>
    %c0_14 = arith.constant 0 : index
    %c0_15 = arith.constant 0 : index
    %23 = vector.load %arg6[%c0_14, %c0_15] : memref<1x128xf32, #tpu.memory_space<vmem>>, vector<1x128xf32>
    %24 = vector.broadcast %23 : vector<1x128xf32> to vector<112x128xf32>
    %25 = arith.addf %22, %24 : vector<112x128xf32>
    %c0_16 = arith.constant 0 : index
    %c0_17 = arith.constant 0 : index
    %26 = vector.load %arg7[%c0_16, %c0_17] : memref<128x128xbf16, #tpu.memory_space<vmem>>, vector<128x128xbf16>
    %cst_18 = arith.constant dense<0.000000e+00> : vector<112x128xf32>
    %27 = tpu.matmul %1, %26, %cst_18 {dimension_numbers = #tpu.dot_dimension_numbers<[1], [0], [0], [1], [0, 0, 1, 1], [], []>} : vector<112x128xbf16>, vector<128x128xbf16>, vector<112x128xf32> -> vector<112x128xf32>
    %28 = arith.addf %25, %27 : vector<112x128xf32>
    %c0_19 = arith.constant 0 : index
    %c0_20 = arith.constant 0 : index
    %29 = vector.load %arg8[%c0_19, %c0_20] : memref<1x128xf32, #tpu.memory_space<vmem>>, vector<1x128xf32>
    %30 = vector.broadcast %29 : vector<1x128xf32> to vector<112x128xf32>
    %31 = arith.addf %28, %30 : vector<112x128xf32>
    %cst_21 = arith.constant 5.000000e-01 : f32
    %32 = vector.broadcast %cst_21 : f32 to vector<112x128xf32>
    %33 = arith.mulf %32, %31 : vector<112x128xf32>
    %cst_22 = arith.constant 4.471500e-02 : f32
    %34 = vector.broadcast %cst_22 : f32 to vector<112x128xf32>
    %35 = arith.mulf %34, %31 : vector<112x128xf32>
    %36 = arith.mulf %35, %31 : vector<112x128xf32>
    %37 = arith.mulf %36, %31 : vector<112x128xf32>
    %38 = arith.addf %31, %37 : vector<112x128xf32>
    %cst_23 = arith.constant 0.797884583 : f32
    %39 = vector.broadcast %cst_23 : f32 to vector<112x128xf32>
    %40 = arith.mulf %39, %38 : vector<112x128xf32>
    %41 = math.tanh %40 : vector<112x128xf32>
    %cst_24 = arith.constant 1.000000e+00 : f32
    %42 = vector.broadcast %cst_24 : f32 to vector<112x128xf32>
    %43 = arith.addf %42, %41 : vector<112x128xf32>
    %44 = arith.mulf %33, %43 : vector<112x128xf32>
    %45 = arith.truncf %44 : vector<112x128xf32> to vector<112x128xbf16>
    %c0_25 = arith.constant 0 : index
    %c0_26 = arith.constant 0 : index
    %46 = vector.load %arg9[%c0_25, %c0_26] : memref<112x128xbf16, #tpu.memory_space<vmem>>, vector<112x128xbf16>
    tpu.vector_store %arg9[%c0_25, %c0_26], %45 {strides = array<i32>} : memref<112x128xbf16, #tpu.memory_space<vmem>>, vector<112x128xbf16>,
    return
  }
  func.func @transform_0(%arg0: i32) -> (i32, i32) {
    %c0_i32 = arith.constant 0 : i32
    %c0_i32_0 = arith.constant 0 : i32
    return %arg0, %c0_i32 : i32, i32
  }
  func.func @transform_1(%arg0: i32) -> (i32, i32) {
    %c0_i32 = arith.constant 0 : i32
    %c0_i32_0 = arith.constant 0 : i32
    return %arg0, %c0_i32 : i32, i32
  }
  func.func @transform_2(%arg0: i32) -> (i32, i32) {
    %c0_i32 = arith.constant 0 : i32
    %c0_i32_0 = arith.constant 0 : i32
    %c0_i32_1 = arith.constant 0 : i32
    return %c0_i32, %c0_i32_0 : i32, i32
  }
  func.func @transform_3(%arg0: i32) -> (i32, i32) {
    %c0_i32 = arith.constant 0 : i32
    %c0_i32_0 = arith.constant 0 : i32
    %c0_i32_1 = arith.constant 0 : i32
    return %c0_i32, %c0_i32_0 : i32, i32
  }
  func.func @transform_4(%arg0: i32) -> (i32, i32) {
    %c0_i32 = arith.constant 0 : i32
    %c0_i32_0 = arith.constant 0 : i32
    %c0_i32_1 = arith.constant 0 : i32
    return %c0_i32, %c0_i32_0 : i32, i32
  }
  func.func @transform_5(%arg0: i32) -> (i32, i32) {
    %c0_i32 = arith.constant 0 : i32
    %c0_i32_0 = arith.constant 0 : i32
    %c0_i32_1 = arith.constant 0 : i32
    return %c0_i32, %c0_i32_0 : i32, i32
  }
  func.func @transform_6(%arg0: i32) -> (i32, i32) {
    %c0_i32 = arith.constant 0 : i32
    %c0_i32_0 = arith.constant 0 : i32
    %c0_i32_1 = arith.constant 0 : i32
    return %c0_i32, %c0_i32_0 : i32, i32
  }
  func.func @transform_7(%arg0: i32) -> (i32, i32) {
    %c0_i32 = arith.constant 0 : i32
    %c0_i32_0 = arith.constant 0 : i32
    %c0_i32_1 = arith.constant 0 : i32
    return %c0_i32, %c0_i32_0 : i32, i32
  }
  func.func @transform_8(%arg0: i32) -> (i32, i32) {
    %c0_i32 = arith.constant 0 : i32
    %c0_i32_0 = arith.constant 0 : i32
    return %arg0, %c0_i32 : i32, i32
  }
}

module attributes {stable_mosaic.version = 11 : i64} {
  func.func @_mix_skip_fused_kernel(%arg0: i32, %arg1: memref<112x128xbf16, #tpu.memory_space<vmem>>, %arg2: memref<112x128xbf16, #tpu.memory_space<vmem>>, %arg3: memref<128x128xbf16, #tpu.memory_space<vmem>>, %arg4: memref<1x128xf32, #tpu.memory_space<vmem>>, %arg5: memref<128x128xbf16, #tpu.memory_space<vmem>>, %arg6: memref<1x128xf32, #tpu.memory_space<vmem>>, %arg7: memref<128x128xbf16, #tpu.memory_space<vmem>>, %arg8: memref<1x128xf32, #tpu.memory_space<vmem>>, %arg9: memref<128x128xbf16, #tpu.memory_space<vmem>>, %arg10: memref<1x128xf32, #tpu.memory_space<vmem>>, %arg11: memref<112x128xbf16, #tpu.memory_space<vmem>>) attributes {dimension_semantics = [#tpu.dimension_semantics<parallel>], iteration_bounds = array<i64: 2>, scalar_prefetch = 0 : i64, scratch_operands = 0 : i64, tpu.core_type = #tpu.core_type<tc>, window_params = [{transform_indices = @transform_0, window_bounds = array<i64: 112, 128>}, {transform_indices = @transform_1, window_bounds = array<i64: 112, 128>}, {pipeline_mode = #tpu.pipeline_mode<synchronous>, transform_indices = @transform_2, window_bounds = array<i64: 128, 128>}, {pipeline_mode = #tpu.pipeline_mode<synchronous>, transform_indices = @transform_3, window_bounds = array<i64: 1, 128>}, {pipeline_mode = #tpu.pipeline_mode<synchronous>, transform_indices = @transform_4, window_bounds = array<i64: 128, 128>}, {pipeline_mode = #tpu.pipeline_mode<synchronous>, transform_indices = @transform_5, window_bounds = array<i64: 1, 128>}, {pipeline_mode = #tpu.pipeline_mode<synchronous>, transform_indices = @transform_6, window_bounds = array<i64: 128, 128>}, {pipeline_mode = #tpu.pipeline_mode<synchronous>, transform_indices = @transform_7, window_bounds = array<i64: 1, 128>}, {pipeline_mode = #tpu.pipeline_mode<synchronous>, transform_indices = @transform_8, window_bounds = array<i64: 128, 128>}, {pipeline_mode = #tpu.pipeline_mode<synchronous>, transform_indices = @transform_9, window_bounds = array<i64: 1, 128>}, {transform_indices = @transform_10, window_bounds = array<i64: 112, 128>}]} {
    %c0 = arith.constant 0 : index
    %c0_0 = arith.constant 0 : index
    %0 = vector.load %arg1[%c0, %c0_0] : memref<112x128xbf16, #tpu.memory_space<vmem>>, vector<112x128xbf16>
    %c0_1 = arith.constant 0 : index
    %c0_2 = arith.constant 0 : index
    %1 = vector.load %arg2[%c0_1, %c0_2] : memref<112x128xbf16, #tpu.memory_space<vmem>>, vector<112x128xbf16>
    %c0_3 = arith.constant 0 : index
    %c0_4 = arith.constant 0 : index
    %2 = vector.load %arg3[%c0_3, %c0_4] : memref<128x128xbf16, #tpu.memory_space<vmem>>, vector<128x128xbf16>
    %cst = arith.constant dense<0.000000e+00> : vector<112x128xf32>
    %3 = tpu.matmul %0, %2, %cst {dimension_numbers = #tpu.dot_dimension_numbers<[1], [0], [0], [1], [0, 0, 1, 1], [], []>} : vector<112x128xbf16>, vector<128x128xbf16>, vector<112x128xf32> -> vector<112x128xf32>
    %c0_5 = arith.constant 0 : index
    %c0_6 = arith.constant 0 : index
    %4 = vector.load %arg4[%c0_5, %c0_6] : memref<1x128xf32, #tpu.memory_space<vmem>>, vector<1x128xf32>
    %5 = vector.broadcast %4 : vector<1x128xf32> to vector<112x128xf32>
    %6 = arith.addf %3, %5 : vector<112x128xf32>
    %cst_7 = arith.constant 5.000000e-01 : f32
    %7 = vector.broadcast %cst_7 : f32 to vector<112x128xf32>
    %8 = arith.mulf %7, %6 : vector<112x128xf32>
    %cst_8 = arith.constant 4.471500e-02 : f32
    %9 = vector.broadcast %cst_8 : f32 to vector<112x128xf32>
    %10 = arith.mulf %9, %6 : vector<112x128xf32>
    %11 = arith.mulf %10, %6 : vector<112x128xf32>
    %12 = arith.mulf %11, %6 : vector<112x128xf32>
    %13 = arith.addf %6, %12 : vector<112x128xf32>
    %cst_9 = arith.constant 0.797884583 : f32
    %14 = vector.broadcast %cst_9 : f32 to vector<112x128xf32>
    %15 = arith.mulf %14, %13 : vector<112x128xf32>
    %16 = math.tanh %15 : vector<112x128xf32>
    %cst_10 = arith.constant 1.000000e+00 : f32
    %17 = vector.broadcast %cst_10 : f32 to vector<112x128xf32>
    %18 = arith.addf %17, %16 : vector<112x128xf32>
    %19 = arith.mulf %8, %18 : vector<112x128xf32>
    %20 = arith.truncf %19 : vector<112x128xf32> to vector<112x128xbf16>
    %c0_11 = arith.constant 0 : index
    %c0_12 = arith.constant 0 : index
    %21 = vector.load %arg5[%c0_11, %c0_12] : memref<128x128xbf16, #tpu.memory_space<vmem>>, vector<128x128xbf16>
    %cst_13 = arith.constant dense<0.000000e+00> : vector<112x128xf32>
    %22 = tpu.matmul %20, %21, %cst_13 {dimension_numbers = #tpu.dot_dimension_numbers<[1], [0], [0], [1], [0, 0, 1, 1], [], []>} : vector<112x128xbf16>, vector<128x128xbf16>, vector<112x128xf32> -> vector<112x128xf32>
    %c0_14 = arith.constant 0 : index
    %c0_15 = arith.constant 0 : index
    %23 = vector.load %arg6[%c0_14, %c0_15] : memref<1x128xf32, #tpu.memory_space<vmem>>, vector<1x128xf32>
    %24 = vector.broadcast %23 : vector<1x128xf32> to vector<112x128xf32>
    %25 = arith.addf %22, %24 : vector<112x128xf32>
    %c0_16 = arith.constant 0 : index
    %c0_17 = arith.constant 0 : index
    %26 = vector.load %arg7[%c0_16, %c0_17] : memref<128x128xbf16, #tpu.memory_space<vmem>>, vector<128x128xbf16>
    %cst_18 = arith.constant dense<0.000000e+00> : vector<112x128xf32>
    %27 = tpu.matmul %1, %26, %cst_18 {dimension_numbers = #tpu.dot_dimension_numbers<[1], [0], [0], [1], [0, 0, 1, 1], [], []>} : vector<112x128xbf16>, vector<128x128xbf16>, vector<112x128xf32> -> vector<112x128xf32>
    %28 = arith.addf %25, %27 : vector<112x128xf32>
    %c0_19 = arith.constant 0 : index
    %c0_20 = arith.constant 0 : index
    %29 = vector.load %arg8[%c0_19, %c0_20] : memref<1x128xf32, #tpu.memory_space<vmem>>, vector<1x128xf32>
    %30 = vector.broadcast %29 : vector<1x128xf32> to vector<112x128xf32>
    %31 = arith.addf %28, %30 : vector<112x128xf32>
    %cst_21 = arith.constant 5.000000e-01 : f32
    %32 = vector.broadcast %cst_21 : f32 to vector<112x128xf32>
    %33 = arith.mulf %32, %31 : vector<112x128xf32>
    %cst_22 = arith.constant 4.471500e-02 : f32
    %34 = vector.broadcast %cst_22 : f32 to vector<112x128xf32>
    %35 = arith.mulf %34, %31 : vector<112x128xf32>
    %36 = arith.mulf %35, %31 : vector<112x128xf32>
    %37 = arith.mulf %36, %31 : vector<112x128xf32>
    %38 = arith.addf %31, %37 : vector<112x128xf32>
    %cst_23 = arith.constant 0.797884583 : f32
    %39 = vector.broadcast %cst_23 : f32 to vector<112x128xf32>
    %40 = arith.mulf %39, %38 : vector<112x128xf32>
    %41 = math.tanh %40 : vector<112x128xf32>
    %cst_24 = arith.constant 1.000000e+00 : f32
    %42 = vector.broadcast %cst_24 : f32 to vector<112x128xf32>
    %43 = arith.addf %42, %41 : vector<112x128xf32>
    %44 = arith.mulf %33, %43 : vector<112x128xf32>
    %45 = arith.truncf %44 : vector<112x128xf32> to vector<112x128xbf16>
    %c0_25 = arith.constant 0 : index
    %c0_26 = arith.constant 0 : index
    %46 = vector.load %arg9[%c0_25, %c0_26] : memref<128x128xbf16, #tpu.memory_space<vmem>>, vector<128x128xbf16>
    %cst_27 = arith.constant dense<0.000000e+00> : vector<112x128xf32>
    %47 = tpu.matmul %45, %46, %cst_27 {dimension_numbers = #tpu.dot_dimension_numbers<[1], [0], [0], [1], [0, 0, 1, 1], [], []>} : vector<112x128xbf16>, vector<128x128xbf16>, vector<112x128xf32> -> vector<112x128xf32>
    %c0_28 = arith.constant 0 : index
    %c0_29 = arith.constant 0 : index
    %48 = vector.load %arg10[%c0_28, %c0_29] : memref<1x128xf32, #tpu.memory_space<vmem>>, vector<1x128xf32>
    %49 = vector.broadcast %48 : vector<1x128xf32> to vector<112x128xf32>
    %50 = arith.addf %47, %49 : vector<112x128xf32>
    %51 = arith.addf %44, %50 : vector<112x128xf32>
    %cst_30 = arith.constant 5.000000e-01 : f32
    %52 = vector.broadcast %cst_30 : f32 to vector<112x128xf32>
    %53 = arith.mulf %52, %51 : vector<112x128xf32>
    %cst_31 = arith.constant 4.471500e-02 : f32
    %54 = vector.broadcast %cst_31 : f32 to vector<112x128xf32>
    %55 = arith.mulf %54, %51 : vector<112x128xf32>
    %56 = arith.mulf %55, %51 : vector<112x128xf32>
    %57 = arith.mulf %56, %51 : vector<112x128xf32>
    %58 = arith.addf %51, %57 : vector<112x128xf32>
    %cst_32 = arith.constant 0.797884583 : f32
    %59 = vector.broadcast %cst_32 : f32 to vector<112x128xf32>
    %60 = arith.mulf %59, %58 : vector<112x128xf32>
    %61 = math.tanh %60 : vector<112x128xf32>
    %cst_33 = arith.constant 1.000000e+00 : f32
    %62 = vector.broadcast %cst_33 : f32 to vector<112x128xf32>
    %63 = arith.addf %62, %61 : vector<112x128xf32>
    %64 = arith.mulf %53, %63 : vector<112x128xf32>
    %65 = arith.truncf %64 : vector<112x128xf32> to vector<112x128xbf16>
    %c0_34 = arith.constant 0 : index
    %c0_35 = arith.constant 0 : index
    %66 = vector.load %arg11[%c0_34, %c0_35] : memref<112x128xbf16, #tpu.memory_space<vmem>>, vector<112x128xbf16>
    tpu.vector_store %arg11[%c0_34, %c0_35], %65 {strides = array<i32>} : memref<112x128xbf16, #tpu.memory_space<vmem>>, vector<112x128xbf16>,
    return
  }
  func.func @transform_0(%arg0: i32) -> (i32, i32) {
    %c0_i32 = arith.constant 0 : i32
    %c0_i32_0 = arith.constant 0 : i32
    return %arg0, %c0_i32 : i32, i32
  }
  func.func @transform_1(%arg0: i32) -> (i32, i32) {
    %c0_i32 = arith.constant 0 : i32
    %c0_i32_0 = arith.constant 0 : i32
    return %arg0, %c0_i32 : i32, i32
  }
  func.func @transform_2(%arg0: i32) -> (i32, i32) {
    %c0_i32 = arith.constant 0 : i32
    %c0_i32_0 = arith.constant 0 : i32
    %c0_i32_1 = arith.constant 0 : i32
    return %c0_i32, %c0_i32_0 : i32, i32
  }
  func.func @transform_3(%arg0: i32) -> (i32, i32) {
    %c0_i32 = arith.constant 0 : i32
    %c0_i32_0 = arith.constant 0 : i32
    %c0_i32_1 = arith.constant 0 : i32
    return %c0_i32, %c0_i32_0 : i32, i32
  }
  func.func @transform_4(%arg0: i32) -> (i32, i32) {
    %c0_i32 = arith.constant 0 : i32
    %c0_i32_0 = arith.constant 0 : i32
    %c0_i32_1 = arith.constant 0 : i32
    return %c0_i32, %c0_i32_0 : i32, i32
  }
  func.func @transform_5(%arg0: i32) -> (i32, i32) {
    %c0_i32 = arith.constant 0 : i32
    %c0_i32_0 = arith.constant 0 : i32
    %c0_i32_1 = arith.constant 0 : i32
    return %c0_i32, %c0_i32_0 : i32, i32
  }
  func.func @transform_6(%arg0: i32) -> (i32, i32) {
    %c0_i32 = arith.constant 0 : i32
    %c0_i32_0 = arith.constant 0 : i32
    %c0_i32_1 = arith.constant 0 : i32
    return %c0_i32, %c0_i32_0 : i32, i32
  }
  func.func @transform_7(%arg0: i32) -> (i32, i32) {
    %c0_i32 = arith.constant 0 : i32
    %c0_i32_0 = arith.constant 0 : i32
    %c0_i32_1 = arith.constant 0 : i32
    return %c0_i32, %c0_i32_0 : i32, i32
  }
  func.func @transform_8(%arg0: i32) -> (i32, i32) {
    %c0_i32 = arith.constant 0 : i32
    %c0_i32_0 = arith.constant 0 : i32
    %c0_i32_1 = arith.constant 0 : i32
    return %c0_i32, %c0_i32_0 : i32, i32
  }
  func.func @transform_9(%arg0: i32) -> (i32, i32) {
    %c0_i32 = arith.constant 0 : i32
    %c0_i32_0 = arith.constant 0 : i32
    %c0_i32_1 = arith.constant 0 : i32
    return %c0_i32, %c0_i32_0 : i32, i32
  }
  func.func @transform_10(%arg0: i32) -> (i32, i32) {
    %c0_i32 = arith.constant 0 : i32
    %c0_i32_0 = arith.constant 0 : i32
    return %arg0, %c0_i32 : i32, i32
  }
}

module attributes {stable_mosaic.version = 11 : i64} {
  func.func @_mix_kernel(%arg0: i32, %arg1: memref<112x128xbf16, #tpu.memory_space<vmem>>, %arg2: memref<112x128xbf16, #tpu.memory_space<vmem>>, %arg3: memref<128x128xbf16, #tpu.memory_space<vmem>>, %arg4: memref<1x128xf32, #tpu.memory_space<vmem>>, %arg5: memref<128x128xbf16, #tpu.memory_space<vmem>>, %arg6: memref<1x128xf32, #tpu.memory_space<vmem>>, %arg7: memref<128x128xbf16, #tpu.memory_space<vmem>>, %arg8: memref<1x128xf32, #tpu.memory_space<vmem>>, %arg9: memref<112x128xbf16, #tpu.memory_space<vmem>>) attributes {dimension_semantics = [#tpu.dimension_semantics<parallel>], iteration_bounds = array<i64: 2>, scalar_prefetch = 0 : i64, scratch_operands = 0 : i64, tpu.core_type = #tpu.core_type<tc>, window_params = [{transform_indices = @transform_0, window_bounds = array<i64: 112, 128>}, {transform_indices = @transform_1, window_bounds = array<i64: 112, 128>}, {pipeline_mode = #tpu.pipeline_mode<synchronous>, transform_indices = @transform_2, window_bounds = array<i64: 128, 128>}, {pipeline_mode = #tpu.pipeline_mode<synchronous>, transform_indices = @transform_3, window_bounds = array<i64: 1, 128>}, {pipeline_mode = #tpu.pipeline_mode<synchronous>, transform_indices = @transform_4, window_bounds = array<i64: 128, 128>}, {pipeline_mode = #tpu.pipeline_mode<synchronous>, transform_indices = @transform_5, window_bounds = array<i64: 1, 128>}, {pipeline_mode = #tpu.pipeline_mode<synchronous>, transform_indices = @transform_6, window_bounds = array<i64: 128, 128>}, {pipeline_mode = #tpu.pipeline_mode<synchronous>, transform_indices = @transform_7, window_bounds = array<i64: 1, 128>}, {transform_indices = @transform_8, window_bounds = array<i64: 112, 128>}]} {
    %c0 = arith.constant 0 : index
    %c0_0 = arith.constant 0 : index
    %0 = vector.load %arg1[%c0, %c0_0] : memref<112x128xbf16, #tpu.memory_space<vmem>>, vector<112x128xbf16>
    %c0_1 = arith.constant 0 : index
    %c0_2 = arith.constant 0 : index
    %1 = vector.load %arg2[%c0_1, %c0_2] : memref<112x128xbf16, #tpu.memory_space<vmem>>, vector<112x128xbf16>
    %c0_3 = arith.constant 0 : index
    %c0_4 = arith.constant 0 : index
    %2 = vector.load %arg3[%c0_3, %c0_4] : memref<128x128xbf16, #tpu.memory_space<vmem>>, vector<128x128xbf16>
    %cst = arith.constant dense<0.000000e+00> : vector<112x128xf32>
    %3 = tpu.matmul %0, %2, %cst {dimension_numbers = #tpu.dot_dimension_numbers<[1], [0], [0], [1], [0, 0, 1, 1], [], []>} : vector<112x128xbf16>, vector<128x128xbf16>, vector<112x128xf32> -> vector<112x128xf32>
    %c0_5 = arith.constant 0 : index
    %c0_6 = arith.constant 0 : index
    %4 = vector.load %arg4[%c0_5, %c0_6] : memref<1x128xf32, #tpu.memory_space<vmem>>, vector<1x128xf32>
    %5 = vector.broadcast %4 : vector<1x128xf32> to vector<112x128xf32>
    %6 = arith.addf %3, %5 : vector<112x128xf32>
    %cst_7 = arith.constant 5.000000e-01 : f32
    %7 = vector.broadcast %cst_7 : f32 to vector<112x128xf32>
    %8 = arith.mulf %7, %6 : vector<112x128xf32>
    %cst_8 = arith.constant 4.471500e-02 : f32
    %9 = vector.broadcast %cst_8 : f32 to vector<112x128xf32>
    %10 = arith.mulf %9, %6 : vector<112x128xf32>
    %11 = arith.mulf %10, %6 : vector<112x128xf32>
    %12 = arith.mulf %11, %6 : vector<112x128xf32>
    %13 = arith.addf %6, %12 : vector<112x128xf32>
    %cst_9 = arith.constant 0.797884583 : f32
    %14 = vector.broadcast %cst_9 : f32 to vector<112x128xf32>
    %15 = arith.mulf %14, %13 : vector<112x128xf32>
    %16 = math.tanh %15 : vector<112x128xf32>
    %cst_10 = arith.constant 1.000000e+00 : f32
    %17 = vector.broadcast %cst_10 : f32 to vector<112x128xf32>
    %18 = arith.addf %17, %16 : vector<112x128xf32>
    %19 = arith.mulf %8, %18 : vector<112x128xf32>
    %20 = arith.truncf %19 : vector<112x128xf32> to vector<112x128xbf16>
    %c0_11 = arith.constant 0 : index
    %c0_12 = arith.constant 0 : index
    %21 = vector.load %arg5[%c0_11, %c0_12] : memref<128x128xbf16, #tpu.memory_space<vmem>>, vector<128x128xbf16>
    %cst_13 = arith.constant dense<0.000000e+00> : vector<112x128xf32>
    %22 = tpu.matmul %20, %21, %cst_13 {dimension_numbers = #tpu.dot_dimension_numbers<[1], [0], [0], [1], [0, 0, 1, 1], [], []>} : vector<112x128xbf16>, vector<128x128xbf16>, vector<112x128xf32> -> vector<112x128xf32>
    %c0_14 = arith.constant 0 : index
    %c0_15 = arith.constant 0 : index
    %23 = vector.load %arg6[%c0_14, %c0_15] : memref<1x128xf32, #tpu.memory_space<vmem>>, vector<1x128xf32>
    %24 = vector.broadcast %23 : vector<1x128xf32> to vector<112x128xf32>
    %25 = arith.addf %22, %24 : vector<112x128xf32>
    %c0_16 = arith.constant 0 : index
    %c0_17 = arith.constant 0 : index
    %26 = vector.load %arg7[%c0_16, %c0_17] : memref<128x128xbf16, #tpu.memory_space<vmem>>, vector<128x128xbf16>
    %cst_18 = arith.constant dense<0.000000e+00> : vector<112x128xf32>
    %27 = tpu.matmul %1, %26, %cst_18 {dimension_numbers = #tpu.dot_dimension_numbers<[1], [0], [0], [1], [0, 0, 1, 1], [], []>} : vector<112x128xbf16>, vector<128x128xbf16>, vector<112x128xf32> -> vector<112x128xf32>
    %28 = arith.addf %25, %27 : vector<112x128xf32>
    %c0_19 = arith.constant 0 : index
    %c0_20 = arith.constant 0 : index
    %29 = vector.load %arg8[%c0_19, %c0_20] : memref<1x128xf32, #tpu.memory_space<vmem>>, vector<1x128xf32>
    %30 = vector.broadcast %29 : vector<1x128xf32> to vector<112x128xf32>
    %31 = arith.addf %28, %30 : vector<112x128xf32>
    %cst_21 = arith.constant 0.000000e+00 : f32
    %32 = vector.broadcast %cst_21 : f32 to vector<112x128xf32>
    %33 = arith.subf %32, %31 : vector<112x128xf32>
    %34 = math.exp %33 : vector<112x128xf32>
    %cst_22 = arith.constant 1.000000e+00 : f32
    %35 = vector.broadcast %cst_22 : f32 to vector<112x128xf32>
    %36 = arith.addf %35, %34 : vector<112x128xf32>
    %37 = tpu.reciprocal %36 {approx = true} : vector<112x128xf32> -> vector<112x128xf32>
    %38 = arith.truncf %37 : vector<112x128xf32> to vector<112x128xbf16>
    %c0_23 = arith.constant 0 : index
    %c0_24 = arith.constant 0 : index
    %39 = vector.load %arg9[%c0_23, %c0_24] : memref<112x128xbf16, #tpu.memory_space<vmem>>, vector<112x128xbf16>
    tpu.vector_store %arg9[%c0_23, %c0_24], %38 {strides = array<i32>} : memref<112x128xbf16, #tpu.memory_space<vmem>>, vector<112x128xbf16>,
    return
  }
  func.func @transform_0(%arg0: i32) -> (i32, i32) {
    %c0_i32 = arith.constant 0 : i32
    %c0_i32_0 = arith.constant 0 : i32
    return %arg0, %c0_i32 : i32, i32
  }
  func.func @transform_1(%arg0: i32) -> (i32, i32) {
    %c0_i32 = arith.constant 0 : i32
    %c0_i32_0 = arith.constant 0 : i32
    return %arg0, %c0_i32 : i32, i32
  }
  func.func @transform_2(%arg0: i32) -> (i32, i32) {
    %c0_i32 = arith.constant 0 : i32
    %c0_i32_0 = arith.constant 0 : i32
    %c0_i32_1 = arith.constant 0 : i32
    return %c0_i32, %c0_i32_0 : i32, i32
  }
  func.func @transform_3(%arg0: i32) -> (i32, i32) {
    %c0_i32 = arith.constant 0 : i32
    %c0_i32_0 = arith.constant 0 : i32
    %c0_i32_1 = arith.constant 0 : i32
    return %c0_i32, %c0_i32_0 : i32, i32
  }
  func.func @transform_4(%arg0: i32) -> (i32, i32) {
    %c0_i32 = arith.constant 0 : i32
    %c0_i32_0 = arith.constant 0 : i32
    %c0_i32_1 = arith.constant 0 : i32
    return %c0_i32, %c0_i32_0 : i32, i32
  }
  func.func @transform_5(%arg0: i32) -> (i32, i32) {
    %c0_i32 = arith.constant 0 : i32
    %c0_i32_0 = arith.constant 0 : i32
    %c0_i32_1 = arith.constant 0 : i32
    return %c0_i32, %c0_i32_0 : i32, i32
  }
  func.func @transform_6(%arg0: i32) -> (i32, i32) {
    %c0_i32 = arith.constant 0 : i32
    %c0_i32_0 = arith.constant 0 : i32
    %c0_i32_1 = arith.constant 0 : i32
    return %c0_i32, %c0_i32_0 : i32, i32
  }
  func.func @transform_7(%arg0: i32) -> (i32, i32) {
    %c0_i32 = arith.constant 0 : i32
    %c0_i32_0 = arith.constant 0 : i32
    %c0_i32_1 = arith.constant 0 : i32
    return %c0_i32, %c0_i32_0 : i32, i32
  }
  func.func @transform_8(%arg0: i32) -> (i32, i32) {
    %c0_i32 = arith.constant 0 : i32
    %c0_i32_0 = arith.constant 0 : i32
    return %arg0, %c0_i32 : i32, i32
  }
}

module attributes {stable_mosaic.version = 11 : i64} {
  func.func @_proj_kernel(%arg0: i32, %arg1: memref<64x128xbf16, #tpu.memory_space<vmem>>, %arg2: memref<128x512xbf16, #tpu.memory_space<vmem>>, %arg3: memref<1x512xf32, #tpu.memory_space<vmem>>, %arg4: memref<512x8xbf16, #tpu.memory_space<vmem>>, %arg5: memref<1x8xf32, #tpu.memory_space<vmem>>, %arg6: memref<64x8xf32, #tpu.memory_space<vmem>>) attributes {dimension_semantics = [#tpu.dimension_semantics<parallel>], iteration_bounds = array<i64: 2>, scalar_prefetch = 0 : i64, scratch_operands = 0 : i64, tpu.core_type = #tpu.core_type<tc>, window_params = [{transform_indices = @transform_0, window_bounds = array<i64: 64, 128>}, {pipeline_mode = #tpu.pipeline_mode<synchronous>, transform_indices = @transform_1, window_bounds = array<i64: 128, 512>}, {pipeline_mode = #tpu.pipeline_mode<synchronous>, transform_indices = @transform_2, window_bounds = array<i64: 1, 512>}, {pipeline_mode = #tpu.pipeline_mode<synchronous>, transform_indices = @transform_3, window_bounds = array<i64: 512, 8>}, {pipeline_mode = #tpu.pipeline_mode<synchronous>, transform_indices = @transform_4, window_bounds = array<i64: 1, 8>}, {transform_indices = @transform_5, window_bounds = array<i64: 64, 8>}]} {
    %c0 = arith.constant 0 : index
    %c0_0 = arith.constant 0 : index
    %0 = vector.load %arg1[%c0, %c0_0] : memref<64x128xbf16, #tpu.memory_space<vmem>>, vector<64x128xbf16>
    %c0_1 = arith.constant 0 : index
    %c0_2 = arith.constant 0 : index
    %1 = vector.load %arg2[%c0_1, %c0_2] : memref<128x512xbf16, #tpu.memory_space<vmem>>, vector<128x512xbf16>
    %cst = arith.constant dense<0.000000e+00> : vector<64x512xf32>
    %2 = tpu.matmul %0, %1, %cst {dimension_numbers = #tpu.dot_dimension_numbers<[1], [0], [0], [1], [0, 0, 1, 1], [], []>} : vector<64x128xbf16>, vector<128x512xbf16>, vector<64x512xf32> -> vector<64x512xf32>
    %c0_3 = arith.constant 0 : index
    %c0_4 = arith.constant 0 : index
    %3 = vector.load %arg3[%c0_3, %c0_4] : memref<1x512xf32, #tpu.memory_space<vmem>>, vector<1x512xf32>
    %4 = vector.broadcast %3 : vector<1x512xf32> to vector<64x512xf32>
    %5 = arith.addf %2, %4 : vector<64x512xf32>
    %cst_5 = arith.constant 5.000000e-01 : f32
    %6 = vector.broadcast %cst_5 : f32 to vector<64x512xf32>
    %7 = arith.mulf %6, %5 : vector<64x512xf32>
    %cst_6 = arith.constant 4.471500e-02 : f32
    %8 = vector.broadcast %cst_6 : f32 to vector<64x512xf32>
    %9 = arith.mulf %8, %5 : vector<64x512xf32>
    %10 = arith.mulf %9, %5 : vector<64x512xf32>
    %11 = arith.mulf %10, %5 : vector<64x512xf32>
    %12 = arith.addf %5, %11 : vector<64x512xf32>
    %cst_7 = arith.constant 0.797884583 : f32
    %13 = vector.broadcast %cst_7 : f32 to vector<64x512xf32>
    %14 = arith.mulf %13, %12 : vector<64x512xf32>
    %15 = math.tanh %14 : vector<64x512xf32>
    %cst_8 = arith.constant 1.000000e+00 : f32
    %16 = vector.broadcast %cst_8 : f32 to vector<64x512xf32>
    %17 = arith.addf %16, %15 : vector<64x512xf32>
    %18 = arith.mulf %7, %17 : vector<64x512xf32>
    %19 = arith.truncf %18 : vector<64x512xf32> to vector<64x512xbf16>
    %c0_9 = arith.constant 0 : index
    %c0_10 = arith.constant 0 : index
    %20 = vector.load %arg4[%c0_9, %c0_10] : memref<512x8xbf16, #tpu.memory_space<vmem>>, vector<512x8xbf16>
    %cst_11 = arith.constant dense<0.000000e+00> : vector<64x8xf32>
    %21 = tpu.matmul %19, %20, %cst_11 {dimension_numbers = #tpu.dot_dimension_numbers<[1], [0], [0], [1], [0, 0, 1, 1], [], []>} : vector<64x512xbf16>, vector<512x8xbf16>, vector<64x8xf32> -> vector<64x8xf32>
    %c0_12 = arith.constant 0 : index
    %c0_13 = arith.constant 0 : index
    %22 = vector.load %arg5[%c0_12, %c0_13] : memref<1x8xf32, #tpu.memory_space<vmem>>, vector<1x8xf32>
    %23 = vector.broadcast %22 : vector<1x8xf32> to vector<64x8xf32>
    %24 = arith.addf %21, %23 : vector<64x8xf32>
    %c0_14 = arith.constant 0 : index
    %c0_15 = arith.constant 0 : index
    %25 = vector.load %arg6[%c0_14, %c0_15] : memref<64x8xf32, #tpu.memory_space<vmem>>, vector<64x8xf32>
    tpu.vector_store %arg6[%c0_14, %c0_15], %24 {strides = array<i32>} : memref<64x8xf32, #tpu.memory_space<vmem>>, vector<64x8xf32>,
    return
  }
  func.func @transform_0(%arg0: i32) -> (i32, i32) {
    %c0_i32 = arith.constant 0 : i32
    %c0_i32_0 = arith.constant 0 : i32
    return %arg0, %c0_i32 : i32, i32
  }
  func.func @transform_1(%arg0: i32) -> (i32, i32) {
    %c0_i32 = arith.constant 0 : i32
    %c0_i32_0 = arith.constant 0 : i32
    %c0_i32_1 = arith.constant 0 : i32
    return %c0_i32, %c0_i32_0 : i32, i32
  }
  func.func @transform_2(%arg0: i32) -> (i32, i32) {
    %c0_i32 = arith.constant 0 : i32
    %c0_i32_0 = arith.constant 0 : i32
    %c0_i32_1 = arith.constant 0 : i32
    return %c0_i32, %c0_i32_0 : i32, i32
  }
  func.func @transform_3(%arg0: i32) -> (i32, i32) {
    %c0_i32 = arith.constant 0 : i32
    %c0_i32_0 = arith.constant 0 : i32
    %c0_i32_1 = arith.constant 0 : i32
    return %c0_i32, %c0_i32_0 : i32, i32
  }
  func.func @transform_4(%arg0: i32) -> (i32, i32) {
    %c0_i32 = arith.constant 0 : i32
    %c0_i32_0 = arith.constant 0 : i32
    %c0_i32_1 = arith.constant 0 : i32
    return %c0_i32, %c0_i32_0 : i32, i32
  }
  func.func @transform_5(%arg0: i32) -> (i32, i32) {
    %c0_i32 = arith.constant 0 : i32
    %c0_i32_0 = arith.constant 0 : i32
    return %arg0, %c0_i32 : i32, i32
  }
}

</mosaic_0001>

<llo_original>
// kernel: fno3d_forward.8
$region0: #{fno3d_forward.8}
  #allocation0 [shape = 'u32[]', space=smem, size = 0x4, offset = 0x4, fixed_abs, tag = 'smem constant byte address 0x4 - core index']
  #allocation1 [shape = 'u32[144,128]{1,0:T(1,128)}', space=vmem, size = 0x12000, scoped, tag = 'internal scratch']
  %s0 = inlined_call_operand.vmem [shape: f32[1024,7], index: 0, kind: input, shape index: {}]
  %s1 = inlined_call_operand.vmem [shape: f32[7,16], index: 1, kind: input, shape index: {}]
  %s2 = inlined_call_operand.vmem [shape: f32[3,16], index: 2, kind: input, shape index: {}]
  %s3 = inlined_call_operand.vmem [shape: f32[1,16], index: 3, kind: input, shape index: {}]
  %s4 = inlined_call_operand.vmem [shape: bf16[1024,16], index: 4, kind: output, shape index: {}]
  %s5 = sld [smem:[#allocation0]]
  $region49: #{fno3d_forward.8} parent=0
    _
  %s7 = ssub.s32 1, %s5
  %s8 = scalar_select 0, %s7, %s5
  loop: start=0, step=1, limit=4
  $region2: #{fno3d_forward.8} parent=0 // loop_pre_header
    _
  $region3: #{fno3d_forward.8} parent=0 // loop_header
    %s10 = sphi 0, %s14
    %p11 = scmp.ge.s32.totalorder %s10, 4
    %s20 = sphi 0, %s22
    %s23 = sphi 0, %s20
    %s24 = sphi 0, %s23
    %s40 = sphi 0, %s24
    %s44 = sphi 0, %s44
    %s46 = sphi 0, %s44
    %s47 = sphi 0, %s46
    %s61 = sphi 0, %s47
    %s65 = sphi 0, %s65
    %s67 = sphi 0, %s65
    %s68 = sphi 0, %s67
    %s82 = sphi 0, %s68
    %s86 = sphi 0, %s86
    %s88 = sphi 0, %s86
    %s89 = sphi 0, %s88
    %s103 = sphi 0, %s89
    %s109 = sphi 0, %s111
    %s112 = sphi 0, %s109
    %s113 = sphi 0, %s112
    %s129 = sphi 0, %s113
  $region4: #{fno3d_forward.8} parent=0 // loop_header_branch
    %13 = sbr.rel (%p11) target = $region8
  $region5: #{fno3d_forward.8} parent=0 // loop_body
    %s15 = ssub.s32 %s10, 1
    %s16 = ssub.s32 %s10, 2
    %s17 = sadd.s32 %s10, 1
    %s18 = ssub.s32 %s10, %s17
    %p19 = scmp.eq.s32.totalorder %s18, 0
    %s21 = sadd.s32 %s20, 1
    %s22 = scalar_select %p19, %s20, %s21
    %p25 = pneg %p19
    %p26 = scmp.eq.s32.totalorder %s10, 1
    %p27 = por %p25, %p26
    %p28 = scmp.ne.s32.totalorder %s20, %s23
    %p29 = scmp.eq.s32.totalorder %s10, 0
    %p30 = por %p28, %p29
    %p31 = scmp.ne.s32.totalorder %s20, %s23
    %p32 = scmp.eq.s32.totalorder %s15, 1
    %p33 = por %p31, %p32
    %p34 = scmp.ne.s32.totalorder %s23, %s24
    %p35 = scmp.eq.s32.totalorder %s15, 0
    %p36 = por %p34, %p35
    %p37 = scmp.ne.s32.totalorder %s23, %s24
    %p38 = scmp.eq.s32.totalorder %s16, 1
    %p39 = por %p37, %p38
    %p41 = scmp.ne.s32.totalorder %s24, %s40
    %p42 = scmp.eq.s32.totalorder %s16, 0
    %p43 = por %p41, %p42
    %s45 = sadd.s32 %s44, 1
    %p48 = scmp.eq.s32.totalorder %s10, 1
    %p49 = scmp.ne.s32.totalorder %s44, %s46
    %p50 = scmp.eq.s32.totalorder %s10, 0
    %p51 = por %p49, %p50
    %p52 = scmp.ne.s32.totalorder %s44, %s46
    %p53 = scmp.eq.s32.totalorder %s15, 1
    %p54 = por %p52, %p53
    %p55 = scmp.ne.s32.totalorder %s46, %s47
    %p56 = scmp.eq.s32.totalorder %s15, 0
    %p57 = por %p55, %p56
    %p58 = scmp.ne.s32.totalorder %s46, %s47
    %p59 = scmp.eq.s32.totalorder %s16, 1
    %p60 = por %p58, %p59
    %p62 = scmp.ne.s32.totalorder %s47, %s61
    %p63 = scmp.eq.s32.totalorder %s16, 0
    %p64 = por %p62, %p63
    %s66 = sadd.s32 %s65, 1
    %p69 = scmp.eq.s32.totalorder %s10, 1
    %p70 = scmp.ne.s32.totalorder %s65, %s67
    %p71 = scmp.eq.s32.totalorder %s10, 0
    %p72 = por %p70, %p71
    %p73 = scmp.ne.s32.totalorder %s65, %s67
    %p74 = scmp.eq.s32.totalorder %s15, 1
    %p75 = por %p73, %p74
    %p76 = scmp.ne.s32.totalorder %s67, %s68
    %p77 = scmp.eq.s32.totalorder %s15, 0
    %p78 = por %p76, %p77
    %p79 = scmp.ne.s32.totalorder %s67, %s68
    %p80 = scmp.eq.s32.totalorder %s16, 1
    %p81 = por %p79, %p80
    %p83 = scmp.ne.s32.totalorder %s68, %s82
    %p84 = scmp.eq.s32.totalorder %s16, 0
    %p85 = por %p83, %p84
    %s87 = sadd.s32 %s86, 1
    %p90 = scmp.eq.s32.totalorder %s10, 1
    %p91 = scmp.ne.s32.totalorder %s86, %s88
    %p92 = scmp.eq.s32.totalorder %s10, 0
    %p93 = por %p91, %p92
    %p94 = scmp.ne.s32.totalorder %s86, %s88
    %p95 = scmp.eq.s32.totalorder %s15, 1
    %p96 = por %p94, %p95
    %p97 = scmp.ne.s32.totalorder %s88, %s89
    %p98 = scmp.eq.s32.totalorder %s15, 0
    %p99 = por %p97, %p98
    %p100 = scmp.ne.s32.totalorder %s88, %s89
    %p101 = scmp.eq.s32.totalorder %s16, 1
    %p102 = por %p100, %p101
    %p104 = scmp.ne.s32.totalorder %s89, %s103
    %p105 = scmp.eq.s32.totalorder %s16, 0
    %p106 = por %p104, %p105
    %s107 = ssub.s32 %s10, %s17
    %p108 = scmp.eq.s32.totalorder %s107, 0
    %s110 = sadd.s32 %s109, 1
    %s111 = scalar_select %p108, %s109, %s110
    %p114 = pneg %p108
    %p115 = scmp.eq.s32.totalorder %s10, 1
    %p116 = por %p114, %p115
    %p117 = scmp.ne.s32.totalorder %s109, %s112
    %p118 = scmp.eq.s32.totalorder %s10, 0
    %p119 = por %p117, %p118
    %p120 = scmp.ne.s32.totalorder %s109, %s112
    %p121 = scmp.eq.s32.totalorder %s15, 1
    %p122 = por %p120, %p121
    %p123 = scmp.ne.s32.totalorder %s112, %s113
    %p124 = scmp.eq.s32.totalorder %s15, 0
    %p125 = por %p123, %p124
    %p126 = scmp.ne.s32.totalorder %s112, %s113
    %p127 = scmp.eq.s32.totalorder %s16, 1
    %p128 = por %p126, %p127
    %p130 = scmp.ne.s32.totalorder %s113, %s129
    %p131 = scmp.eq.s32.totalorder %s16, 0
    %p132 = por %p130, %p131
    %p133 = scmp.le.s32.totalorder 1, %s10
    %p134 = scmp.lt.s32.totalorder %s10, 3
    %p135 = pnand %p133, %p134
    %p136 = pneg %p135
    // Predicated region
    $region9: #{fno3d_forward.8} parent=5 // pred_check
      _
    $region10: #{fno3d_forward.8} parent=5 // pred_check_branch
      %138 = sbr.rel (%p135) target = $region12
    $region11: #{fno3d_forward.8} parent=5 // pred_region
      %s139 = ssub.s32 %s10, 1
      // Predicated region
      $region13: #{fno3d_forward.8} parent=11 // pred_check
        %p140 = pneg %p57
      $region14: #{fno3d_forward.8} parent=11 // pred_check_branch
        %142 = sbr.rel (%p140) target = $region16
      $region15: #{fno3d_forward.8} parent=11 // pred_region
        _
      $region16: #{fno3d_forward.8} parent=11 // pred_fallthru
        _
      // Predicated region
      $region17: #{fno3d_forward.8} parent=11 // pred_check
        %p143 = pneg %p78
      $region18: #{fno3d_forward.8} parent=11 // pred_check_branch
        %145 = sbr.rel (%p143) target = $region20
      $region19: #{fno3d_forward.8} parent=11 // pred_region
        _
      $region20: #{fno3d_forward.8} parent=11 // pred_fallthru
        _
      // Predicated region
      $region21: #{fno3d_forward.8} parent=11 // pred_check
        %p146 = pneg %p99
      $region22: #{fno3d_forward.8} parent=11 // pred_check_branch
        %148 = sbr.rel (%p146) target = $region24
      $region23: #{fno3d_forward.8} parent=11 // pred_region
        _
      $region24: #{fno3d_forward.8} parent=11 // pred_fallthru
        _
    $region12: #{fno3d_forward.8} parent=5 // pred_fallthru
      _
    %p149 = scmp.lt.s32.totalorder %s10, 2
    // Predicated region
    $region25: #{fno3d_forward.8} parent=5 // pred_check
      %p150 = pneg %p149
    $region26: #{fno3d_forward.8} parent=5 // pred_check_branch
      %152 = sbr.rel (%p150) target = $region28
    $region27: #{fno3d_forward.8} parent=5 // pred_region
      // Predicated region
      $region29: #{fno3d_forward.8} parent=27 // pred_check
        %p153 = pneg %p30
      $region30: #{fno3d_forward.8} parent=27 // pred_check_branch
        %155 = sbr.rel (%p153) target = $region32
      $region31: #{fno3d_forward.8} parent=27 // pred_region
        %s156 = smul.u32 64, %s10
        %p157 = scmp.lt.s32.totalorder %s156, 127
        %s158 = scalar_select %p157, %s156, 127
        %s159 = smul.addr %s158, 8
        %s160 = scalar_lea.vmem %s0, %s159
        %s161 = smul.u32 64, %s10
      $region32: #{fno3d_forward.8} parent=27 // pred_fallthru
        _
    $region28: #{fno3d_forward.8} parent=5 // pred_fallthru
      _
    %p162 = scmp.le.s32.totalorder 1, %s10
    %p163 = scmp.lt.s32.totalorder %s10, 3
    %p164 = pnand %p162, %p163
    %p165 = pneg %p164
    // Predicated region
    $region33: #{fno3d_forward.8} parent=5 // pred_check
      _
    $region34: #{fno3d_forward.8} parent=5 // pred_check_branch
      %167 = sbr.rel (%p164) target = $region36
    $region35: #{fno3d_forward.8} parent=5 // pred_region
      %s168 = ssub.s32 %s10, 1
      %s169 = smul.u32 64, %s15
      %p170 = scmp.lt.s32.totalorder %s169, 127
      %s171 = scalar_select %p170, %s169, 127
      %s172 = smul.addr %s171, 8
      %s173 = scalar_lea.vmem %s0, %s172
      %p174 = pneg %p36
      %p175 = pneg %p33
      %p176 = pneg %p57
      %p177 = pneg %p54
      %p178 = pneg %p78
      %p179 = pneg %p75
      %p180 = pneg %p99
      %p181 = pneg %p96
      %p182 = pneg %p125
      %p183 = pneg %p122
      %s184 = smul.u32 64, %s15
      %p185 = scmp.lt.s32.totalorder %s184, 127
      %s186 = scalar_select %p185, %s184, 127
      %s187 = smul.addr %s186, 4
      %s188 = scalar_lea.vmem %s4, %s187
      %s189 = smul.u32 64, %s15
      %p190 = scmp.lt.s32.totalorder %s189, 127
      %s191 = scalar_select %p190, %s189, 127
      %s192 = smul.addr %s191, 8
      %s193 = scalar_lea.vmem %s0, %s192
      %s194 = smul.u32 64, %s15
      %s195 = smul.u32 64, %s15
      %p196 = scmp.lt.s32.totalorder %s195, 127
      %s197 = scalar_select %p196, %s195, 127
      %s198 = smul.addr %s197, 4
      %s199 = scalar_lea.vmem %s4, %s198
      %s200 = smul.u32 64, %s15
      %s201 = smul.u32 %s15, 512
      %v202 = vlaneseq
      %v203 = vshrl.u32 %v202, 7
      %v204 = vadd.s32 %v203, 8
      %v205 = vadd.s32 %v203, 16
      %v206 = vadd.s32 %v203, 24
      %v207 = vadd.s32 %v203, 32
      %v208 = vadd.s32 %v203, 40
      %v209 = vadd.s32 %v203, 48
      %v210 = vadd.s32 %v203, 56
      %v211 = vadd.s32 %v203, 64
      %v212 = vadd.s32 %v203, 72
      %v213 = vadd.s32 %v203, 80
      %v214 = vadd.s32 %v203, 88
      %v215 = vadd.s32 %v203, 96
      %v216 = vadd.s32 %v203, 104
      %v217 = vadd.s32 %v203, 112
      %v218 = vadd.s32 %v203, 120
      %v219 = vadd.s32 %v203, 128
      %v220 = vadd.s32 %v203, 136
      %v221 = vadd.s32 %v203, 144
      %v222 = vadd.s32 %v203, 152
      %v223 = vadd.s32 %v203, 160
      %v224 = vadd.s32 %v203, 168
      %v225 = vadd.s32 %v203, 176
      %v226 = vadd.s32 %v203, 184
      %v227 = vadd.s32 %v203, 192
      %v228 = vadd.s32 %v203, 200
      %v229 = vadd.s32 %v203, 208
      %v230 = vadd.s32 %v203, 216
      %v231 = vadd.s32 %v203, 224
      %v232 = vadd.s32 %v203, 232
      %v233 = vadd.s32 %v203, 240
      %v234 = vadd.s32 %v203, 248
      %v235 = vadd.s32 %v203, 256
      %v236 = vadd.s32 %v203, 264
      %v237 = vadd.s32 %v203, 272
      %v238 = vadd.s32 %v203, 280
      %v239 = vadd.s32 %v203, 288
      %v240 = vadd.s32 %v203, 296
      %v241 = vadd.s32 %v203, 304
      %v242 = vadd.s32 %v203, 312
      %v243 = vadd.s32 %v203, 320
      %v244 = vadd.s32 %v203, 328
      %v245 = vadd.s32 %v203, 336
      %v246 = vadd.s32 %v203, 344
      %v247 = vadd.s32 %v203, 352
      %v248 = vadd.s32 %v203, 360
      %v249 = vadd.s32 %v203, 368
      %v250 = vadd.s32 %v203, 376
      %v251 = vadd.s32 %v203, 384
      %v252 = vadd.s32 %v203, 392
      %v253 = vadd.s32 %v203, 400
      %v254 = vadd.s32 %v203, 408
      %v255 = vadd.s32 %v203, 416
      %v256 = vadd.s32 %v203, 424
      %v257 = vadd.s32 %v203, 432
      %v258 = vadd.s32 %v203, 440
      %v259 = vadd.s32 %v203, 448
      %v260 = vadd.s32 %v203, 456
      %v261 = vadd.s32 %v203, 464
      %v262 = vadd.s32 %v203, 472
      %v263 = vadd.s32 %v203, 480
      %v264 = vadd.s32 %v203, 488
      %v265 = vadd.s32 %v203, 496
      %v266 = vadd.s32 %v203, 504
      %v267 = vstv %s201
      %v268 = vadd.s32 %v267, %v203
      %v269 = vadd.s32 %v267, %v204
      %v270 = vadd.s32 %v267, %v205
      %v271 = vadd.s32 %v267, %v206
      %v272 = vadd.s32 %v267, %v207
      %v273 = vadd.s32 %v267, %v208
      %v274 = vadd.s32 %v267, %v209
      %v275 = vadd.s32 %v267, %v210
      %v276 = vadd.s32 %v267, %v211
      %v277 = vadd.s32 %v267, %v212
      %v278 = vadd.s32 %v267, %v213
      %v279 = vadd.s32 %v267, %v214
      %v280 = vadd.s32 %v267, %v215
      %v281 = vadd.s32 %v267, %v216
      %v282 = vadd.s32 %v267, %v217
      %v283 = vadd.s32 %v267, %v218
      %v284 = vadd.s32 %v267, %v219
      %v285 = vadd.s32 %v267, %v220
      %v286 = vadd.s32 %v267, %v221
      %v287 = vadd.s32 %v267, %v222
      %v288 = vadd.s32 %v267, %v223
      %v289 = vadd.s32 %v267, %v224
      %v290 = vadd.s32 %v267, %v225
      %v291 = vadd.s32 %v267, %v226
      %v292 = vadd.s32 %v267, %v227
      %v293 = vadd.s32 %v267, %v228
      %v294 = vadd.s32 %v267, %v229
      %v295 = vadd.s32 %v267, %v230
      %v296 = vadd.s32 %v267, %v231
      %v297 = vadd.s32 %v267, %v232
      %v298 = vadd.s32 %v267, %v233
      %v299 = vadd.s32 %v267, %v234
      %v300 = vadd.s32 %v267, %v235
      %v301 = vadd.s32 %v267, %v236
      %v302 = vadd.s32 %v267, %v237
      %v303 = vadd.s32 %v267, %v238
      %v304 = vadd.s32 %v267, %v239
      %v305 = vadd.s32 %v267, %v240
      %v306 = vadd.s32 %v267, %v241
      %v307 = vadd.s32 %v267, %v242
      %v308 = vadd.s32 %v267, %v243
      %v309 = vadd.s32 %v267, %v244
      %v310 = vadd.s32 %v267, %v245
      %v311 = vadd.s32 %v267, %v246
      %v312 = vadd.s32 %v267, %v247
      %v313 = vadd.s32 %v267, %v248
      %v314 = vadd.s32 %v267, %v249
      %v315 = vadd.s32 %v267, %v250
      %v316 = vadd.s32 %v267, %v251
      %v317 = vadd.s32 %v267, %v252
      %v318 = vadd.s32 %v267, %v253
      %v319 = vadd.s32 %v267, %v254
      %v320 = vadd.s32 %v267, %v255
      %v321 = vadd.s32 %v267, %v256
      %v322 = vadd.s32 %v267, %v257
      %v323 = vadd.s32 %v267, %v258
      %v324 = vadd.s32 %v267, %v259
      %v325 = vadd.s32 %v267, %v260
      %v326 = vadd.s32 %v267, %v261
      %v327 = vadd.s32 %v267, %v262
      %v328 = vadd.s32 %v267, %v263
      %v329 = vadd.s32 %v267, %v264
      %v330 = vadd.s32 %v267, %v265
      %v331 = vadd.s32 %v267, %v266
      %v332 = vcvt.s32.f32 %v268
      %v333 = vcvt.s32.f32 %v269
      %v334 = vcvt.s32.f32 %v270
      %v335 = vcvt.s32.f32 %v271
      %v336 = vcvt.s32.f32 %v272
      %v337 = vcvt.s32.f32 %v273
      %v338 = vcvt.s32.f32 %v274
      %v339 = vcvt.s32.f32 %v275
      %v340 = vcvt.s32.f32 %v276
      %v341 = vcvt.s32.f32 %v277
      %v342 = vcvt.s32.f32 %v278
      %v343 = vcvt.s32.f32 %v279
      %v344 = vcvt.s32.f32 %v280
      %v345 = vcvt.s32.f32 %v281
      %v346 = vcvt.s32.f32 %v282
      %v347 = vcvt.s32.f32 %v283
      %v348 = vcvt.s32.f32 %v284
      %v349 = vcvt.s32.f32 %v285
      %v350 = vcvt.s32.f32 %v286
      %v351 = vcvt.s32.f32 %v287
      %v352 = vcvt.s32.f32 %v288
      %v353 = vcvt.s32.f32 %v289
      %v354 = vcvt.s32.f32 %v290
      %v355 = vcvt.s32.f32 %v291
      %v356 = vcvt.s32.f32 %v292
      %v357 = vcvt.s32.f32 %v293
      %v358 = vcvt.s32.f32 %v294
      %v359 = vcvt.s32.f32 %v295
      %v360 = vcvt.s32.f32 %v296
      %v361 = vcvt.s32.f32 %v297
      %v362 = vcvt.s32.f32 %v298
      %v363 = vcvt.s32.f32 %v299
      %v364 = vcvt.s32.f32 %v300
      %v365 = vcvt.s32.f32 %v301
      %v366 = vcvt.s32.f32 %v302
      %v367 = vcvt.s32.f32 %v303
      %v368 = vcvt.s32.f32 %v304
      %v369 = vcvt.s32.f32 %v305
      %v370 = vcvt.s32.f32 %v306
      %v371 = vcvt.s32.f32 %v307
      %v372 = vcvt.s32.f32 %v308
      %v373 = vcvt.s32.f32 %v309
      %v374 = vcvt.s32.f32 %v310
      %v375 = vcvt.s32.f32 %v311
      %v376 = vcvt.s32.f32 %v312
      %v377 = vcvt.s32.f32 %v313
      %v378 = vcvt.s32.f32 %v314
      %v379 = vcvt.s32.f32 %v315
      %v380 = vcvt.s32.f32 %v316
      %v381 = vcvt.s32.f32 %v317
      %v382 = vcvt.s32.f32 %v318
      %v383 = vcvt.s32.f32 %v319
      %v384 = vcvt.s32.f32 %v320
      %v385 = vcvt.s32.f32 %v321
      %v386 = vcvt.s32.f32 %v322
      %v387 = vcvt.s32.f32 %v323
      %v388 = vcvt.s32.f32 %v324
      %v389 = vcvt.s32.f32 %v325
      %v390 = vcvt.s32.f32 %v326
      %v391 = vcvt.s32.f32 %v327
      %v392 = vcvt.s32.f32 %v328
      %v393 = vcvt.s32.f32 %v329
      %v394 = vcvt.s32.f32 %v330
      %v395 = vcvt.s32.f32 %v331
      %v396 = vrcp.pop 8.0
      %v397 = vmul.f32 %v332, %v396
      %v398 = vmul.f32 %v333, %v396
      %v399 = vmul.f32 %v334, %v396
      %v400 = vmul.f32 %v335, %v396
      %v401 = vmul.f32 %v336, %v396
      %v402 = vmul.f32 %v337, %v396
      %v403 = vmul.f32 %v338, %v396
      %v404 = vmul.f32 %v339, %v396
      %v405 = vmul.f32 %v340, %v396
      %v406 = vmul.f32 %v341, %v396
      %v407 = vmul.f32 %v342, %v396
      %v408 = vmul.f32 %v343, %v396
      %v409 = vmul.f32 %v344, %v396
      %v410 = vmul.f32 %v345, %v396
      %v411 = vmul.f32 %v346, %v396
      %v412 = vmul.f32 %v347, %v396
      %v413 = vmul.f32 %v348, %v396
      %v414 = vmul.f32 %v349, %v396
      %v415 = vmul.f32 %v350, %v396
      %v416 = vmul.f32 %v351, %v396
      %v417 = vmul.f32 %v352, %v396
      %v418 = vmul.f32 %v353, %v396
      %v419 = vmul.f32 %v354, %v396
      %v420 = vmul.f32 %v355, %v396
      %v421 = vmul.f32 %v356, %v396
      %v422 = vmul.f32 %v357, %v396
      %v423 = vmul.f32 %v358, %v396
      %v424 = vmul.f32 %v359, %v396
      %v425 = vmul.f32 %v360, %v396
      %v426 = vmul.f32 %v361, %v396
      %v427 = vmul.f32 %v362, %v396
      %v428 = vmul.f32 %v363, %v396
      %v429 = vmul.f32 %v364, %v396
      %v430 = vmul.f32 %v365, %v396
      %v431 = vmul.f32 %v366, %v396
      %v432 = vmul.f32 %v367, %v396
      %v433 = vmul.f32 %v368, %v396
      %v434 = vmul.f32 %v369, %v396
      %v435 = vmul.f32 %v370, %v396
      %v436 = vmul.f32 %v371, %v396
      %v437 = vmul.f32 %v372, %v396
      %v438 = vmul.f32 %v373, %v396
      %v439 = vmul.f32 %v374, %v396
      %v440 = vmul.f32 %v375, %v396
      %v441 = vmul.f32 %v376, %v396
      %v442 = vmul.f32 %v377, %v396
      %v443 = vmul.f32 %v378, %v396
      %v444 = vmul.f32 %v379, %v396
      %v445 = vmul.f32 %v380, %v396
      %v446 = vmul.f32 %v381, %v396
      %v447 = vmul.f32 %v382, %v396
      %v448 = vmul.f32 %v383, %v396
      %v449 = vmul.f32 %v384, %v396
      %v450 = vmul.f32 %v385, %v396
      %v451 = vmul.f32 %v386, %v396
      %v452 = vmul.f32 %v387, %v396
      %v453 = vmul.f32 %v388, %v396
      %v454 = vmul.f32 %v389, %v396
      %v455 = vmul.f32 %v390, %v396
      %v456 = vmul.f32 %v391, %v396
      %v457 = vmul.f32 %v392, %v396
      %v458 = vmul.f32 %v393, %v396
      %v459 = vmul.f32 %v394, %v396
      %v460 = vmul.f32 %v395, %v396
      %v461 = vfloor.f32 %v397
      %v462 = vfloor.f32 %v398
      %v463 = vfloor.f32 %v399
      %v464 = vfloor.f32 %v400
      %v465 = vfloor.f32 %v401
      %v466 = vfloor.f32 %v402
      %v467 = vfloor.f32 %v403
      %v468 = vfloor.f32 %v404
      %v469 = vfloor.f32 %v405
      %v470 = vfloor.f32 %v406
      %v471 = vfloor.f32 %v407
      %v472 = vfloor.f32 %v408
      %v473 = vfloor.f32 %v409
      %v474 = vfloor.f32 %v410
      %v475 = vfloor.f32 %v411
      %v476 = vfloor.f32 %v412
      %v477 = vfloor.f32 %v413
      %v478 = vfloor.f32 %v414
      %v479 = vfloor.f32 %v415
      %v480 = vfloor.f32 %v416
      %v481 = vfloor.f32 %v417
      %v482 = vfloor.f32 %v418
      %v483 = vfloor.f32 %v419
      %v484 = vfloor.f32 %v420
      %v485 = vfloor.f32 %v421
      %v486 = vfloor.f32 %v422
      %v487 = vfloor.f32 %v423
      %v488 = vfloor.f32 %v424
      %v489 = vfloor.f32 %v425
      %v490 = vfloor.f32 %v426
      %v491 = vfloor.f32 %v427
      %v492 = vfloor.f32 %v428
      %v493 = vfloor.f32 %v429
      %v494 = vfloor.f32 %v430
      %v495 = vfloor.f32 %v431
      %v496 = vfloor.f32 %v432
      %v497 = vfloor.f32 %v433
      %v498 = vfloor.f32 %v434
      %v499 = vfloor.f32 %v435
      %v500 = vfloor.f32 %v436
      %v501 = vfloor.f32 %v437
      %v502 = vfloor.f32 %v438
      %v503 = vfloor.f32 %v439
      %v504 = vfloor.f32 %v440
      %v505 = vfloor.f32 %v441
      %v506 = vfloor.f32 %v442
      %v507 = vfloor.f32 %v443
      %v508 = vfloor.f32 %v444
      %v509 = vfloor.f32 %v445
      %v510 = vfloor.f32 %v446
      %v511 = vfloor.f32 %v447
      %v512 = vfloor.f32 %v448
      %v513 = vfloor.f32 %v449
      %v514 = vfloor.f32 %v450
      %v515 = vfloor.f32 %v451
      %v516 = vfloor.f32 %v452
      %v517 = vfloor.f32 %v453
      %v518 = vfloor.f32 %v454
      %v519 = vfloor.f32 %v455
      %v520 = vfloor.f32 %v456
      %v521 = vfloor.f32 %v457
      %v522 = vfloor.f32 %v458
      %v523 = vfloor.f32 %v459
      %v524 = vfloor.f32 %v460
      %v525 = vmul.f32 %v461, 8.0
      %v526 = vmul.f32 %v462, 8.0
      %v527 = vmul.f32 %v463, 8.0
      %v528 = vmul.f32 %v464, 8.0
      %v529 = vmul.f32 %v465, 8.0
      %v530 = vmul.f32 %v466, 8.0
      %v531 = vmul.f32 %v467, 8.0
      %v532 = vmul.f32 %v468, 8.0
      %v533 = vmul.f32 %v469, 8.0
      %v534 = vmul.f32 %v470, 8.0
      %v535 = vmul.f32 %v471, 8.0
      %v536 = vmul.f32 %v472, 8.0
      %v537 = vmul.f32 %v473, 8.0
      %v538 = vmul.f32 %v474, 8.0
      %v539 = vmul.f32 %v475, 8.0
      %v540 = vmul.f32 %v476, 8.0
      %v541 = vmul.f32 %v477, 8.0
      %v542 = vmul.f32 %v478, 8.0
      %v543 = vmul.f32 %v479, 8.0
      %v544 = vmul.f32 %v480, 8.0
      %v545 = vmul.f32 %v481, 8.0
      %v546 = vmul.f32 %v482, 8.0
      %v547 = vmul.f32 %v483, 8.0
      %v548 = vmul.f32 %v484, 8.0
      %v549 = vmul.f32 %v485, 8.0
      %v550 = vmul.f32 %v486, 8.0
      %v551 = vmul.f32 %v487, 8.0
      %v552 = vmul.f32 %v488, 8.0
      %v553 = vmul.f32 %v489, 8.0
      %v554 = vmul.f32 %v490, 8.0
      %v555 = vmul.f32 %v491, 8.0
      %v556 = vmul.f32 %v492, 8.0
      %v557 = vmul.f32 %v493, 8.0
      %v558 = vmul.f32 %v494, 8.0
      %v559 = vmul.f32 %v495, 8.0
      %v560 = vmul.f32 %v496, 8.0
      %v561 = vmul.f32 %v497, 8.0
      %v562 = vmul.f32 %v498, 8.0
      %v563 = vmul.f32 %v499, 8.0
      %v564 = vmul.f32 %v500, 8.0
      %v565 = vmul.f32 %v501, 8.0
      %v566 = vmul.f32 %v502, 8.0
      %v567 = vmul.f32 %v503, 8.0
      %v568 = vmul.f32 %v504, 8.0
      %v569 = vmul.f32 %v505, 8.0
      %v570 = vmul.f32 %v506, 8.0
      %v571 = vmul.f32 %v507, 8.0
      %v572 = vmul.f32 %v508, 8.0
      %v573 = vmul.f32 %v509, 8.0
      %v574 = vmul.f32 %v510, 8.0
      %v575 = vmul.f32 %v511, 8.0
      %v576 = vmul.f32 %v512, 8.0
      %v577 = vmul.f32 %v513, 8.0
      %v578 = vmul.f32 %v514, 8.0
      %v579 = vmul.f32 %v515, 8.0
      %v580 = vmul.f32 %v516, 8.0
      %v581 = vmul.f32 %v517, 8.0
      %v582 = vmul.f32 %v518, 8.0
      %v583 = vmul.f32 %v519, 8.0
      %v584 = vmul.f32 %v520, 8.0
      %v585 = vmul.f32 %v521, 8.0
      %v586 = vmul.f32 %v522, 8.0
      %v587 = vmul.f32 %v523, 8.0
      %v588 = vmul.f32 %v524, 8.0
      %v589 = vsub.f32 %v332, %v525
      %v590 = vsub.f32 %v333, %v526
      %v591 = vsub.f32 %v334, %v527
      %v592 = vsub.f32 %v335, %v528
      %v593 = vsub.f32 %v336, %v529
      %v594 = vsub.f32 %v337, %v530
      %v595 = vsub.f32 %v338, %v531
      %v596 = vsub.f32 %v339, %v532
      %v597 = vsub.f32 %v340, %v533
      %v598 = vsub.f32 %v341, %v534
      %v599 = vsub.f32 %v342, %v535
      %v600 = vsub.f32 %v343, %v536
      %v601 = vsub.f32 %v344, %v537
      %v602 = vsub.f32 %v345, %v538
      %v603 = vsub.f32 %v346, %v539
      %v604 = vsub.f32 %v347, %v540
      %v605 = vsub.f32 %v348, %v541
      %v606 = vsub.f32 %v349, %v542
      %v607 = vsub.f32 %v350, %v543
      %v608 = vsub.f32 %v351, %v544
      %v609 = vsub.f32 %v352, %v545
      %v610 = vsub.f32 %v353, %v546
      %v611 = vsub.f32 %v354, %v547
      %v612 = vsub.f32 %v355, %v548
      %v613 = vsub.f32 %v356, %v549
      %v614 = vsub.f32 %v357, %v550
      %v615 = vsub.f32 %v358, %v551
      %v616 = vsub.f32 %v359, %v552
      %v617 = vsub.f32 %v360, %v553
      %v618 = vsub.f32 %v361, %v554
      %v619 = vsub.f32 %v362, %v555
      %v620 = vsub.f32 %v363, %v556
      %v621 = vsub.f32 %v364, %v557
      %v622 = vsub.f32 %v365, %v558
      %v623 = vsub.f32 %v366, %v559
      %v624 = vsub.f32 %v367, %v560
      %v625 = vsub.f32 %v368, %v561
      %v626 = vsub.f32 %v369, %v562
      %v627 = vsub.f32 %v370, %v563
      %v628 = vsub.f32 %v371, %v564
      %v629 = vsub.f32 %v372, %v565
      %v630 = vsub.f32 %v373, %v566
      %v631 = vsub.f32 %v374, %v567
      %v632 = vsub.f32 %v375, %v568
      %v633 = vsub.f32 %v376, %v569
      %v634 = vsub.f32 %v377, %v570
      %v635 = vsub.f32 %v378, %v571
      %v636 = vsub.f32 %v379, %v572
      %v637 = vsub.f32 %v380, %v573
      %v638 = vsub.f32 %v381, %v574
      %v639 = vsub.f32 %v382, %v575
      %v640 = vsub.f32 %v383, %v576
      %v641 = vsub.f32 %v384, %v577
      %v642 = vsub.f32 %v385, %v578
      %v643 = vsub.f32 %v386, %v579
      %v644 = vsub.f32 %v387, %v580
      %v645 = vsub.f32 %v388, %v581
      %v646 = vsub.f32 %v389, %v582
      %v647 = vsub.f32 %v390, %v583
      %v648 = vsub.f32 %v391, %v584
      %v649 = vsub.f32 %v392, %v585
      %v650 = vsub.f32 %v393, %v586
      %v651 = vsub.f32 %v394, %v587
      %v652 = vsub.f32 %v395, %v588
      %v653 = vmul.f32 %v461, %v396
      %v654 = vmul.f32 %v462, %v396
      %v655 = vmul.f32 %v463, %v396
      %v656 = vmul.f32 %v464, %v396
      %v657 = vmul.f32 %v465, %v396
      %v658 = vmul.f32 %v466, %v396
      %v659 = vmul.f32 %v467, %v396
      %v660 = vmul.f32 %v468, %v396
      %v661 = vmul.f32 %v469, %v396
      %v662 = vmul.f32 %v470, %v396
      %v663 = vmul.f32 %v471, %v396
      %v664 = vmul.f32 %v472, %v396
      %v665 = vmul.f32 %v473, %v396
      %v666 = vmul.f32 %v474, %v396
      %v667 = vmul.f32 %v475, %v396
      %v668 = vmul.f32 %v476, %v396
      %v669 = vmul.f32 %v477, %v396
      %v670 = vmul.f32 %v478, %v396
      %v671 = vmul.f32 %v479, %v396
      %v672 = vmul.f32 %v480, %v396
      %v673 = vmul.f32 %v481, %v396
      %v674 = vmul.f32 %v482, %v396
      %v675 = vmul.f32 %v483, %v396
      %v676 = vmul.f32 %v484, %v396
      %v677 = vmul.f32 %v485, %v396
      %v678 = vmul.f32 %v486, %v396
      %v679 = vmul.f32 %v487, %v396
      %v680 = vmul.f32 %v488, %v396
      %v681 = vmul.f32 %v489, %v396
      %v682 = vmul.f32 %v490, %v396
      %v683 = vmul.f32 %v491, %v396
      %v684 = vmul.f32 %v492, %v396
      %v685 = vmul.f32 %v493, %v396
      %v686 = vmul.f32 %v494, %v396
      %v687 = vmul.f32 %v495, %v396
      %v688 = vmul.f32 %v496, %v396
      %v689 = vmul.f32 %v497, %v396
      %v690 = vmul.f32 %v498, %v396
      %v691 = vmul.f32 %v499, %v396
      %v692 = vmul.f32 %v500, %v396
      %v693 = vmul.f32 %v501, %v396
      %v694 = vmul.f32 %v502, %v396
      %v695 = vmul.f32 %v503, %v396
      %v696 = vmul.f32 %v504, %v396
      %v697 = vmul.f32 %v505, %v396
      %v698 = vmul.f32 %v506, %v396
      %v699 = vmul.f32 %v507, %v396
      %v700 = vmul.f32 %v508, %v396
      %v701 = vmul.f32 %v509, %v396
      %v702 = vmul.f32 %v510, %v396
      %v703 = vmul.f32 %v511, %v396
      %v704 = vmul.f32 %v512, %v396
      %v705 = vmul.f32 %v513, %v396
      %v706 = vmul.f32 %v514, %v396
      %v707 = vmul.f32 %v515, %v396
      %v708 = vmul.f32 %v516, %v396
      %v709 = vmul.f32 %v517, %v396
      %v710 = vmul.f32 %v518, %v396
      %v711 = vmul.f32 %v519, %v396
      %v712 = vmul.f32 %v520, %v396
      %v713 = vmul.f32 %v521, %v396
      %v714 = vmul.f32 %v522, %v396
      %v715 = vmul.f32 %v523, %v396
      %v716 = vmul.f32 %v524, %v396
      %v717 = vfloor.f32 %v653
      %v718 = vfloor.f32 %v654
      %v719 = vfloor.f32 %v655
      %v720 = vfloor.f32 %v656
      %v721 = vfloor.f32 %v657
      %v722 = vfloor.f32 %v658
      %v723 = vfloor.f32 %v659
      %v724 = vfloor.f32 %v660
      %v725 = vfloor.f32 %v661
      %v726 = vfloor.f32 %v662
      %v727 = vfloor.f32 %v663
      %v728 = vfloor.f32 %v664
      %v729 = vfloor.f32 %v665
      %v730 = vfloor.f32 %v666
      %v731 = vfloor.f32 %v667
      %v732 = vfloor.f32 %v668
      %v733 = vfloor.f32 %v669
      %v734 = vfloor.f32 %v670
      %v735 = vfloor.f32 %v671
      %v736 = vfloor.f32 %v672
      %v737 = vfloor.f32 %v673
      %v738 = vfloor.f32 %v674
      %v739 = vfloor.f32 %v675
      %v740 = vfloor.f32 %v676
      %v741 = vfloor.f32 %v677
      %v742 = vfloor.f32 %v678
      %v743 = vfloor.f32 %v679
      %v744 = vfloor.f32 %v680
      %v745 = vfloor.f32 %v681
      %v746 = vfloor.f32 %v682
      %v747 = vfloor.f32 %v683
      %v748 = vfloor.f32 %v684
      %v749 = vfloor.f32 %v685
      %v750 = vfloor.f32 %v686
      %v751 = vfloor.f32 %v687
      %v752 = vfloor.f32 %v688
      %v753 = vfloor.f32 %v689
      %v754 = vfloor.f32 %v690
      %v755 = vfloor.f32 %v691
      %v756 = vfloor.f32 %v692
      %v757 = vfloor.f32 %v693
      %v758 = vfloor.f32 %v694
      %v759 = vfloor.f32 %v695
      %v760 = vfloor.f32 %v696
      %v761 = vfloor.f32 %v697
      %v762 = vfloor.f32 %v698
      %v763 = vfloor.f32 %v699
      %v764 = vfloor.f32 %v700
      %v765 = vfloor.f32 %v701
      %v766 = vfloor.f32 %v702
      %v767 = vfloor.f32 %v703
      %v768 = vfloor.f32 %v704
      %v769 = vfloor.f32 %v705
      %v770 = vfloor.f32 %v706
      %v771 = vfloor.f32 %v707
      %v772 = vfloor.f32 %v708
      %v773 = vfloor.f32 %v709
      %v774 = vfloor.f32 %v710
      %v775 = vfloor.f32 %v711
      %v776 = vfloor.f32 %v712
      %v777 = vfloor.f32 %v713
      %v778 = vfloor.f32 %v714
      %v779 = vfloor.f32 %v715
      %v780 = vfloor.f32 %v716
      %v781 = vmul.f32 %v717, 8.0
      %v782 = vmul.f32 %v718, 8.0
      %v783 = vmul.f32 %v719, 8.0
      %v784 = vmul.f32 %v720, 8.0
      %v785 = vmul.f32 %v721, 8.0
      %v786 = vmul.f32 %v722, 8.0
      %v787 = vmul.f32 %v723, 8.0
      %v788 = vmul.f32 %v724, 8.0
      %v789 = vmul.f32 %v725, 8.0
      %v790 = vmul.f32 %v726, 8.0
      %v791 = vmul.f32 %v727, 8.0
      %v792 = vmul.f32 %v728, 8.0
      %v793 = vmul.f32 %v729, 8.0
      %v794 = vmul.f32 %v730, 8.0
      %v795 = vmul.f32 %v731, 8.0
      %v796 = vmul.f32 %v732, 8.0
      %v797 = vmul.f32 %v733, 8.0
      %v798 = vmul.f32 %v734, 8.0
      %v799 = vmul.f32 %v735, 8.0
      %v800 = vmul.f32 %v736, 8.0
      %v801 = vmul.f32 %v737, 8.0
      %v802 = vmul.f32 %v738, 8.0
      %v803 = vmul.f32 %v739, 8.0
      %v804 = vmul.f32 %v740, 8.0
      %v805 = vmul.f32 %v741, 8.0
      %v806 = vmul.f32 %v742, 8.0
      %v807 = vmul.f32 %v743, 8.0
      %v808 = vmul.f32 %v744, 8.0
      %v809 = vmul.f32 %v745, 8.0
      %v810 = vmul.f32 %v746, 8.0
      %v811 = vmul.f32 %v747, 8.0
      %v812 = vmul.f32 %v748, 8.0
      %v813 = vmul.f32 %v749, 8.0
      %v814 = vmul.f32 %v750, 8.0
      %v815 = vmul.f32 %v751, 8.0
      %v816 = vmul.f32 %v752, 8.0
      %v817 = vmul.f32 %v753, 8.0
      %v818 = vmul.f32 %v754, 8.0
      %v819 = vmul.f32 %v755, 8.0
      %v820 = vmul.f32 %v756, 8.0
      %v821 = vmul.f32 %v757, 8.0
      %v822 = vmul.f32 %v758, 8.0
      %v823 = vmul.f32 %v759, 8.0
      %v824 = vmul.f32 %v760, 8.0
      %v825 = vmul.f32 %v761, 8.0
      %v826 = vmul.f32 %v762, 8.0
      %v827 = vmul.f32 %v763, 8.0
      %v828 = vmul.f32 %v764, 8.0
      %v829 = vmul.f32 %v765, 8.0
      %v830 = vmul.f32 %v766, 8.0
      %v831 = vmul.f32 %v767, 8.0
      %v832 = vmul.f32 %v768, 8.0
      %v833 = vmul.f32 %v769, 8.0
      %v834 = vmul.f32 %v770, 8.0
      %v835 = vmul.f32 %v771, 8.0
      %v836 = vmul.f32 %v772, 8.0
      %v837 = vmul.f32 %v773, 8.0
      %v838 = vmul.f32 %v774, 8.0
      %v839 = vmul.f32 %v775, 8.0
      %v840 = vmul.f32 %v776, 8.0
      %v841 = vmul.f32 %v777, 8.0
      %v842 = vmul.f32 %v778, 8.0
      %v843 = vmul.f32 %v779, 8.0
      %v844 = vmul.f32 %v780, 8.0
      %v845 = vsub.f32 %v461, %v781
      %v846 = vsub.f32 %v462, %v782
      %v847 = vsub.f32 %v463, %v783
      %v848 = vsub.f32 %v464, %v784
      %v849 = vsub.f32 %v465, %v785
      %v850 = vsub.f32 %v466, %v786
      %v851 = vsub.f32 %v467, %v787
      %v852 = vsub.f32 %v468, %v788
      %v853 = vsub.f32 %v469, %v789
      %v854 = vsub.f32 %v470, %v790
      %v855 = vsub.f32 %v471, %v791
      %v856 = vsub.f32 %v472, %v792
      %v857 = vsub.f32 %v473, %v793
      %v858 = vsub.f32 %v474, %v794
      %v859 = vsub.f32 %v475, %v795
      %v860 = vsub.f32 %v476, %v796
      %v861 = vsub.f32 %v477, %v797
      %v862 = vsub.f32 %v478, %v798
      %v863 = vsub.f32 %v479, %v799
      %v864 = vsub.f32 %v480, %v800
      %v865 = vsub.f32 %v481, %v801
      %v866 = vsub.f32 %v482, %v802
      %v867 = vsub.f32 %v483, %v803
      %v868 = vsub.f32 %v484, %v804
      %v869 = vsub.f32 %v485, %v805
      %v870 = vsub.f32 %v486, %v806
      %v871 = vsub.f32 %v487, %v807
      %v872 = vsub.f32 %v488, %v808
      %v873 = vsub.f32 %v489, %v809
      %v874 = vsub.f32 %v490, %v810
      %v875 = vsub.f32 %v491, %v811
      %v876 = vsub.f32 %v492, %v812
      %v877 = vsub.f32 %v493, %v813
      %v878 = vsub.f32 %v494, %v814
      %v879 = vsub.f32 %v495, %v815
      %v880 = vsub.f32 %v496, %v816
      %v881 = vsub.f32 %v497, %v817
      %v882 = vsub.f32 %v498, %v818
      %v883 = vsub.f32 %v499, %v819
      %v884 = vsub.f32 %v500, %v820
      %v885 = vsub.f32 %v501, %v821
      %v886 = vsub.f32 %v502, %v822
      %v887 = vsub.f32 %v503, %v823
      %v888 = vsub.f32 %v504, %v824
      %v889 = vsub.f32 %v505, %v825
      %v890 = vsub.f32 %v506, %v826
      %v891 = vsub.f32 %v507, %v827
      %v892 = vsub.f32 %v508, %v828
      %v893 = vsub.f32 %v509, %v829
      %v894 = vsub.f32 %v510, %v830
      %v895 = vsub.f32 %v511, %v831
      %v896 = vsub.f32 %v512, %v832
      %v897 = vsub.f32 %v513, %v833
      %v898 = vsub.f32 %v514, %v834
      %v899 = vsub.f32 %v515, %v835
      %v900 = vsub.f32 %v516, %v836
      %v901 = vsub.f32 %v517, %v837
      %v902 = vsub.f32 %v518, %v838
      %v903 = vsub.f32 %v519, %v839
      %v904 = vsub.f32 %v520, %v840
      %v905 = vsub.f32 %v521, %v841
      %v906 = vsub.f32 %v522, %v842
      %v907 = vsub.f32 %v523, %v843
      %v908 = vsub.f32 %v524, %v844
      %v909 = vmul.f32 %v717, %v396
      %v910 = vmul.f32 %v718, %v396
      %v911 = vmul.f32 %v719, %v396
      %v912 = vmul.f32 %v720, %v396
      %v913 = vmul.f32 %v721, %v396
      %v914 = vmul.f32 %v722, %v396
      %v915 = vmul.f32 %v723, %v396
      %v916 = vmul.f32 %v724, %v396
      %v917 = vmul.f32 %v725, %v396
      %v918 = vmul.f32 %v726, %v396
      %v919 = vmul.f32 %v727, %v396
      %v920 = vmul.f32 %v728, %v396
      %v921 = vmul.f32 %v729, %v396
      %v922 = vmul.f32 %v730, %v396
      %v923 = vmul.f32 %v731, %v396
      %v924 = vmul.f32 %v732, %v396
      %v925 = vmul.f32 %v733, %v396
      %v926 = vmul.f32 %v734, %v396
      %v927 = vmul.f32 %v735, %v396
      %v928 = vmul.f32 %v736, %v396
      %v929 = vmul.f32 %v737, %v396
      %v930 = vmul.f32 %v738, %v396
      %v931 = vmul.f32 %v739, %v396
      %v932 = vmul.f32 %v740, %v396
      %v933 = vmul.f32 %v741, %v396
      %v934 = vmul.f32 %v742, %v396
      %v935 = vmul.f32 %v743, %v396
      %v936 = vmul.f32 %v744, %v396
      %v937 = vmul.f32 %v745, %v396
      %v938 = vmul.f32 %v746, %v396
      %v939 = vmul.f32 %v747, %v396
      %v940 = vmul.f32 %v748, %v396
      %v941 = vmul.f32 %v749, %v396
      %v942 = vmul.f32 %v750, %v396
      %v943 = vmul.f32 %v751, %v396
      %v944 = vmul.f32 %v752, %v396
      %v945 = vmul.f32 %v753, %v396
      %v946 = vmul.f32 %v754, %v396
      %v947 = vmul.f32 %v755, %v396
      %v948 = vmul.f32 %v756, %v396
      %v949 = vmul.f32 %v757, %v396
      %v950 = vmul.f32 %v758, %v396
      %v951 = vmul.f32 %v759, %v396
      %v952 = vmul.f32 %v760, %v396
      %v953 = vmul.f32 %v761, %v396
      %v954 = vmul.f32 %v762, %v396
      %v955 = vmul.f32 %v763, %v396
      %v956 = vmul.f32 %v764, %v396
      %v957 = vmul.f32 %v765, %v396
      %v958 = vmul.f32 %v766, %v396
      %v959 = vmul.f32 %v767, %v396
      %v960 = vmul.f32 %v768, %v396
      %v961 = vmul.f32 %v769, %v396
      %v962 = vmul.f32 %v770, %v396
      %v963 = vmul.f32 %v771, %v396
      %v964 = vmul.f32 %v772, %v396
      %v965 = vmul.f32 %v773, %v396
      %v966 = vmul.f32 %v774, %v396
      %v967 = vmul.f32 %v775, %v396
      %v968 = vmul.f32 %v776, %v396
      %v969 = vmul.f32 %v777, %v396
      %v970 = vmul.f32 %v778, %v396
      %v971 = vmul.f32 %v779, %v396
      %v972 = vmul.f32 %v780, %v396
      %v973 = vfloor.f32 %v909
      %v974 = vfloor.f32 %v910
      %v975 = vfloor.f32 %v911
      %v976 = vfloor.f32 %v912
      %v977 = vfloor.f32 %v913
      %v978 = vfloor.f32 %v914
      %v979 = vfloor.f32 %v915
      %v980 = vfloor.f32 %v916
      %v981 = vfloor.f32 %v917
      %v982 = vfloor.f32 %v918
      %v983 = vfloor.f32 %v919
      %v984 = vfloor.f32 %v920
      %v985 = vfloor.f32 %v921
      %v986 = vfloor.f32 %v922
      %v987 = vfloor.f32 %v923
      %v988 = vfloor.f32 %v924
      %v989 = vfloor.f32 %v925
      %v990 = vfloor.f32 %v926
      %v991 = vfloor.f32 %v927
      %v992 = vfloor.f32 %v928
      %v993 = vfloor.f32 %v929
      %v994 = vfloor.f32 %v930
      %v995 = vfloor.f32 %v931
      %v996 = vfloor.f32 %v932
      %v997 = vfloor.f32 %v933
      %v998 = vfloor.f32 %v934
      %v999 = vfloor.f32 %v935
      %v1000 = vfloor.f32 %v936
      %v1001 = vfloor.f32 %v937
      %v1002 = vfloor.f32 %v938
      %v1003 = vfloor.f32 %v939
      %v1004 = vfloor.f32 %v940
      %v1005 = vfloor.f32 %v941
      %v1006 = vfloor.f32 %v942
      %v1007 = vfloor.f32 %v943
      %v1008 = vfloor.f32 %v944
      %v1009 = vfloor.f32 %v945
      %v1010 = vfloor.f32 %v946
      %v1011 = vfloor.f32 %v947
      %v1012 = vfloor.f32 %v948
      %v1013 = vfloor.f32 %v949
      %v1014 = vfloor.f32 %v950
      %v1015 = vfloor.f32 %v951
      %v1016 = vfloor.f32 %v952
      %v1017 = vfloor.f32 %v953
      %v1018 = vfloor.f32 %v954
      %v1019 = vfloor.f32 %v955
      %v1020 = vfloor.f32 %v956
      %v1021 = vfloor.f32 %v957
      %v1022 = vfloor.f32 %v958
      %v1023 = vfloor.f32 %v959
      %v1024 = vfloor.f32 %v960
      %v1025 = vfloor.f32 %v961
      %v1026 = vfloor.f32 %v962
      %v1027 = vfloor.f32 %v963
      %v1028 = vfloor.f32 %v964
      %v1029 = vfloor.f32 %v965
      %v1030 = vfloor.f32 %v966
      %v1031 = vfloor.f32 %v967
      %v1032 = vfloor.f32 %v968
      %v1033 = vfloor.f32 %v969
      %v1034 = vfloor.f32 %v970
      %v1035 = vfloor.f32 %v971
      %v1036 = vfloor.f32 %v972
      %v1037 = vmul.f32 %v973, 8.0
      %v1038 = vmul.f32 %v974, 8.0
      %v1039 = vmul.f32 %v975, 8.0
      %v1040 = vmul.f32 %v976, 8.0
      %v1041 = vmul.f32 %v977, 8.0
      %v1042 = vmul.f32 %v978, 8.0
      %v1043 = vmul.f32 %v979, 8.0
      %v1044 = vmul.f32 %v980, 8.0
      %v1045 = vmul.f32 %v981, 8.0
      %v1046 = vmul.f32 %v982, 8.0
      %v1047 = vmul.f32 %v983, 8.0
      %v1048 = vmul.f32 %v984, 8.0
      %v1049 = vmul.f32 %v985, 8.0
      %v1050 = vmul.f32 %v986, 8.0
      %v1051 = vmul.f32 %v987, 8.0
      %v1052 = vmul.f32 %v988, 8.0
      %v1053 = vmul.f32 %v989, 8.0
      %v1054 = vmul.f32 %v990, 8.0
      %v1055 = vmul.f32 %v991, 8.0
      %v1056 = vmul.f32 %v992, 8.0
      %v1057 = vmul.f32 %v993, 8.0
      %v1058 = vmul.f32 %v994, 8.0
      %v1059 = vmul.f32 %v995, 8.0
      %v1060 = vmul.f32 %v996, 8.0
      %v1061 = vmul.f32 %v997, 8.0
      %v1062 = vmul.f32 %v998, 8.0
      %v1063 = vmul.f32 %v999, 8.0
      %v1064 = vmul.f32 %v1000, 8.0
      %v1065 = vmul.f32 %v1001, 8.0
      %v1066 = vmul.f32 %v1002, 8.0
      %v1067 = vmul.f32 %v1003, 8.0
      %v1068 = vmul.f32 %v1004, 8.0
      %v1069 = vmul.f32 %v1005, 8.0
      %v1070 = vmul.f32 %v1006, 8.0
      %v1071 = vmul.f32 %v1007, 8.0
      %v1072 = vmul.f32 %v1008, 8.0
      %v1073 = vmul.f32 %v1009, 8.0
      %v1074 = vmul.f32 %v1010, 8.0
      %v1075 = vmul.f32 %v1011, 8.0
      %v1076 = vmul.f32 %v1012, 8.0
      %v1077 = vmul.f32 %v1013, 8.0
      %v1078 = vmul.f32 %v1014, 8.0
      %v1079 = vmul.f32 %v1015, 8.0
      %v1080 = vmul.f32 %v1016, 8.0
      %v1081 = vmul.f32 %v1017, 8.0
      %v1082 = vmul.f32 %v1018, 8.0
      %v1083 = vmul.f32 %v1019, 8.0
      %v1084 = vmul.f32 %v1020, 8.0
      %v1085 = vmul.f32 %v1021, 8.0
      %v1086 = vmul.f32 %v1022, 8.0
      %v1087 = vmul.f32 %v1023, 8.0
      %v1088 = vmul.f32 %v1024, 8.0
      %v1089 = vmul.f32 %v1025, 8.0
      %v1090 = vmul.f32 %v1026, 8.0
      %v1091 = vmul.f32 %v1027, 8.0
      %v1092 = vmul.f32 %v1028, 8.0
      %v1093 = vmul.f32 %v1029, 8.0
      %v1094 = vmul.f32 %v1030, 8.0
      %v1095 = vmul.f32 %v1031, 8.0
      %v1096 = vmul.f32 %v1032, 8.0
      %v1097 = vmul.f32 %v1033, 8.0
      %v1098 = vmul.f32 %v1034, 8.0
      %v1099 = vmul.f32 %v1035, 8.0
      %v1100 = vmul.f32 %v1036, 8.0
      %v1101 = vsub.f32 %v717, %v1037
      %v1102 = vsub.f32 %v718, %v1038
      %v1103 = vsub.f32 %v719, %v1039
      %v1104 = vsub.f32 %v720, %v1040
      %v1105 = vsub.f32 %v721, %v1041
      %v1106 = vsub.f32 %v722, %v1042
      %v1107 = vsub.f32 %v723, %v1043
      %v1108 = vsub.f32 %v724, %v1044
      %v1109 = vsub.f32 %v725, %v1045
      %v1110 = vsub.f32 %v726, %v1046
      %v1111 = vsub.f32 %v727, %v1047
      %v1112 = vsub.f32 %v728, %v1048
      %v1113 = vsub.f32 %v729, %v1049
      %v1114 = vsub.f32 %v730, %v1050
      %v1115 = vsub.f32 %v731, %v1051
      %v1116 = vsub.f32 %v732, %v1052
      %v1117 = vsub.f32 %v733, %v1053
      %v1118 = vsub.f32 %v734, %v1054
      %v1119 = vsub.f32 %v735, %v1055
      %v1120 = vsub.f32 %v736, %v1056
      %v1121 = vsub.f32 %v737, %v1057
      %v1122 = vsub.f32 %v738, %v1058
      %v1123 = vsub.f32 %v739, %v1059
      %v1124 = vsub.f32 %v740, %v1060
      %v1125 = vsub.f32 %v741, %v1061
      %v1126 = vsub.f32 %v742, %v1062
      %v1127 = vsub.f32 %v743, %v1063
      %v1128 = vsub.f32 %v744, %v1064
      %v1129 = vsub.f32 %v745, %v1065
      %v1130 = vsub.f32 %v746, %v1066
      %v1131 = vsub.f32 %v747, %v1067
      %v1132 = vsub.f32 %v748, %v1068
      %v1133 = vsub.f32 %v749, %v1069
      %v1134 = vsub.f32 %v750, %v1070
      %v1135 = vsub.f32 %v751, %v1071
      %v1136 = vsub.f32 %v752, %v1072
      %v1137 = vsub.f32 %v753, %v1073
      %v1138 = vsub.f32 %v754, %v1074
      %v1139 = vsub.f32 %v755, %v1075
      %v1140 = vsub.f32 %v756, %v1076
      %v1141 = vsub.f32 %v757, %v1077
      %v1142 = vsub.f32 %v758, %v1078
      %v1143 = vsub.f32 %v759, %v1079
      %v1144 = vsub.f32 %v760, %v1080
      %v1145 = vsub.f32 %v761, %v1081
      %v1146 = vsub.f32 %v762, %v1082
      %v1147 = vsub.f32 %v763, %v1083
      %v1148 = vsub.f32 %v764, %v1084
      %v1149 = vsub.f32 %v765, %v1085
      %v1150 = vsub.f32 %v766, %v1086
      %v1151 = vsub.f32 %v767, %v1087
      %v1152 = vsub.f32 %v768, %v1088
      %v1153 = vsub.f32 %v769, %v1089
      %v1154 = vsub.f32 %v770, %v1090
      %v1155 = vsub.f32 %v771, %v1091
      %v1156 = vsub.f32 %v772, %v1092
      %v1157 = vsub.f32 %v773, %v1093
      %v1158 = vsub.f32 %v774, %v1094
      %v1159 = vsub.f32 %v775, %v1095
      %v1160 = vsub.f32 %v776, %v1096
      %v1161 = vsub.f32 %v777, %v1097
      %v1162 = vsub.f32 %v778, %v1098
      %v1163 = vsub.f32 %v779, %v1099
      %v1164 = vsub.f32 %v780, %v1100
      %v1165 = vld [vmem:[%s193] sm:$0xff]
      %v1166 = vld [vmem:[%s193 + $0x8] sm:$0xff]
      %v1167 = vld [vmem:[%s193 + $0x10] sm:$0xff]
      %v1168 = vld [vmem:[%s193 + $0x18] sm:$0xff]
      %v1169 = vld [vmem:[%s193 + $0x20] sm:$0xff]
      %v1170 = vld [vmem:[%s193 + $0x28] sm:$0xff]
      %v1171 = vld [vmem:[%s193 + $0x30] sm:$0xff]
      %v1172 = vld [vmem:[%s193 + $0x38] sm:$0xff]
      %v1173 = vld [vmem:[%s193 + $0x40] sm:$0xff]
      %v1174 = vld [vmem:[%s193 + $0x48] sm:$0xff]
      %v1175 = vld [vmem:[%s193 + $0x50] sm:$0xff]
      %v1176 = vld [vmem:[%s193 + $0x58] sm:$0xff]
      %v1177 = vld [vmem:[%s193 + $0x60] sm:$0xff]
      %v1178 = vld [vmem:[%s193 + $0x68] sm:$0xff]
      %v1179 = vld [vmem:[%s193 + $0x70] sm:$0xff]
      %v1180 = vld [vmem:[%s193 + $0x78] sm:$0xff]
      %v1181 = vld [vmem:[%s193 + $0x80] sm:$0xff]
      %v1182 = vld [vmem:[%s193 + $0x88] sm:$0xff]
      %v1183 = vld [vmem:[%s193 + $0x90] sm:$0xff]
      %v1184 = vld [vmem:[%s193 + $0x98] sm:$0xff]
      %v1185 = vld [vmem:[%s193 + $0xa0] sm:$0xff]
      %v1186 = vld [vmem:[%s193 + $0xa8] sm:$0xff]
      %v1187 = vld [vmem:[%s193 + $0xb0] sm:$0xff]
      %v1188 = vld [vmem:[%s193 + $0xb8] sm:$0xff]
      %v1189 = vld [vmem:[%s193 + $0xc0] sm:$0xff]
      %v1190 = vld [vmem:[%s193 + $0xc8] sm:$0xff]
      %v1191 = vld [vmem:[%s193 + $0xd0] sm:$0xff]
      %v1192 = vld [vmem:[%s193 + $0xd8] sm:$0xff]
      %v1193 = vld [vmem:[%s193 + $0xe0] sm:$0xff]
      %v1194 = vld [vmem:[%s193 + $0xe8] sm:$0xff]
      %v1195 = vld [vmem:[%s193 + $0xf0] sm:$0xff]
      %v1196 = vld [vmem:[%s193 + $0xf8] sm:$0xff]
      %v1197 = vld [vmem:[%s193 + $0x100] sm:$0xff]
      %v1198 = vld [vmem:[%s193 + $0x108] sm:$0xff]
      %v1199 = vld [vmem:[%s193 + $0x110] sm:$0xff]
      %v1200 = vld [vmem:[%s193 + $0x118] sm:$0xff]
      %v1201 = vld [vmem:[%s193 + $0x120] sm:$0xff]
      %v1202 = vld [vmem:[%s193 + $0x128] sm:$0xff]
      %v1203 = vld [vmem:[%s193 + $0x130] sm:$0xff]
      %v1204 = vld [vmem:[%s193 + $0x138] sm:$0xff]
      %v1205 = vld [vmem:[%s193 + $0x140] sm:$0xff]
      %v1206 = vld [vmem:[%s193 + $0x148] sm:$0xff]
      %v1207 = vld [vmem:[%s193 + $0x150] sm:$0xff]
      %v1208 = vld [vmem:[%s193 + $0x158] sm:$0xff]
      %v1209 = vld [vmem:[%s193 + $0x160] sm:$0xff]
      %v1210 = vld [vmem:[%s193 + $0x168] sm:$0xff]
      %v1211 = vld [vmem:[%s193 + $0x170] sm:$0xff]
      %v1212 = vld [vmem:[%s193 + $0x178] sm:$0xff]
      %v1213 = vld [vmem:[%s193 + $0x180] sm:$0xff]
      %v1214 = vld [vmem:[%s193 + $0x188] sm:$0xff]
      %v1215 = vld [vmem:[%s193 + $0x190] sm:$0xff]
      %v1216 = vld [vmem:[%s193 + $0x198] sm:$0xff]
      %v1217 = vld [vmem:[%s193 + $0x1a0] sm:$0xff]
      %v1218 = vld [vmem:[%s193 + $0x1a8] sm:$0xff]
      %v1219 = vld [vmem:[%s193 + $0x1b0] sm:$0xff]
      %v1220 = vld [vmem:[%s193 + $0x1b8] sm:$0xff]
      %v1221 = vld [vmem:[%s193 + $0x1c0] sm:$0xff]
      %v1222 = vld [vmem:[%s193 + $0x1c8] sm:$0xff]
      %v1223 = vld [vmem:[%s193 + $0x1d0] sm:$0xff]
      %v1224 = vld [vmem:[%s193 + $0x1d8] sm:$0xff]
      %v1225 = vld [vmem:[%s193 + $0x1e0] sm:$0xff]
      %v1226 = vld [vmem:[%s193 + $0x1e8] sm:$0xff]
      %v1227 = vld [vmem:[%s193 + $0x1f0] sm:$0xff]
      %v1228 = vld [vmem:[%s193 + $0x1f8] sm:$0xff]
      %v1229 = vld [vmem:[%s1] sm:$0x7f]
      %v1230 = vmul.f32 %v1101, 0.14285715
      %v1231 = vmul.f32 %v1102, 0.14285715
      %v1232 = vmul.f32 %v1103, 0.14285715
      %v1233 = vmul.f32 %v1104, 0.14285715
      %v1234 = vmul.f32 %v1105, 0.14285715
      %v1235 = vmul.f32 %v1106, 0.14285715
      %v1236 = vmul.f32 %v1107, 0.14285715
      %v1237 = vmul.f32 %v1108, 0.14285715
      %v1238 = vmul.f32 %v1109, 0.14285715
      %v1239 = vmul.f32 %v1110, 0.14285715
      %v1240 = vmul.f32 %v1111, 0.14285715
      %v1241 = vmul.f32 %v1112, 0.14285715
      %v1242 = vmul.f32 %v1113, 0.14285715
      %v1243 = vmul.f32 %v1114, 0.14285715
      %v1244 = vmul.f32 %v1115, 0.14285715
      %v1245 = vmul.f32 %v1116, 0.14285715
      %v1246 = vmul.f32 %v1117, 0.14285715
      %v1247 = vmul.f32 %v1118, 0.14285715
      %v1248 = vmul.f32 %v1119, 0.14285715
      %v1249 = vmul.f32 %v1120, 0.14285715
      %v1250 = vmul.f32 %v1121, 0.14285715
      %v1251 = vmul.f32 %v1122, 0.14285715
      %v1252 = vmul.f32 %v1123, 0.14285715
      %v1253 = vmul.f32 %v1124, 0.14285715
      %v1254 = vmul.f32 %v1125, 0.14285715
      %v1255 = vmul.f32 %v1126, 0.14285715
      %v1256 = vmul.f32 %v1127, 0.14285715
      %v1257 = vmul.f32 %v1128, 0.14285715
      %v1258 = vmul.f32 %v1129, 0.14285715
      %v1259 = vmul.f32 %v1130, 0.14285715
      %v1260 = vmul.f32 %v1131, 0.14285715
      %v1261 = vmul.f32 %v1132, 0.14285715
      %v1262 = vmul.f32 %v1133, 0.14285715
      %v1263 = vmul.f32 %v1134, 0.14285715
      %v1264 = vmul.f32 %v1135, 0.14285715
      %v1265 = vmul.f32 %v1136, 0.14285715
      %v1266 = vmul.f32 %v1137, 0.14285715
      %v1267 = vmul.f32 %v1138, 0.14285715
      %v1268 = vmul.f32 %v1139, 0.14285715
      %v1269 = vmul.f32 %v1140, 0.14285715
      %v1270 = vmul.f32 %v1141, 0.14285715
      %v1271 = vmul.f32 %v1142, 0.14285715
      %v1272 = vmul.f32 %v1143, 0.14285715
      %v1273 = vmul.f32 %v1144, 0.14285715
      %v1274 = vmul.f32 %v1145, 0.14285715
      %v1275 = vmul.f32 %v1146, 0.14285715
      %v1276 = vmul.f32 %v1147, 0.14285715
      %v1277 = vmul.f32 %v1148, 0.14285715
      %v1278 = vmul.f32 %v1149, 0.14285715
      %v1279 = vmul.f32 %v1150, 0.14285715
      %v1280 = vmul.f32 %v1151, 0.14285715
      %v1281 = vmul.f32 %v1152, 0.14285715
      %v1282 = vmul.f32 %v1153, 0.14285715
      %v1283 = vmul.f32 %v1154, 0.14285715
      %v1284 = vmul.f32 %v1155, 0.14285715
      %v1285 = vmul.f32 %v1156, 0.14285715
      %v1286 = vmul.f32 %v1157, 0.14285715
      %v1287 = vmul.f32 %v1158, 0.14285715
      %v1288 = vmul.f32 %v1159, 0.14285715
      %v1289 = vmul.f32 %v1160, 0.14285715
      %v1290 = vmul.f32 %v1161, 0.14285715
      %v1291 = vmul.f32 %v1162, 0.14285715
      %v1292 = vmul.f32 %v1163, 0.14285715
      %v1293 = vmul.f32 %v1164, 0.14285715
      %v1294 = vld [vmem:[%s2] sm:$0x1]
      %v1295 = vlaneseq
      %v1296 = vshrl.u32 %v1295, 7
      %v1297 = vsub.s32 0, %v1296
      %v1298 = vrot.slane %v1294, %v1297
      %v1299 = vmul.f32 %v1230, %v1298
      %v1300 = vmul.f32 %v1231, %v1298
      %v1301 = vmul.f32 %v1232, %v1298
      %v1302 = vmul.f32 %v1233, %v1298
      %v1303 = vmul.f32 %v1234, %v1298
      %v1304 = vmul.f32 %v1235, %v1298
      %v1305 = vmul.f32 %v1236, %v1298
      %v1306 = vmul.f32 %v1237, %v1298
      %v1307 = vmul.f32 %v1238, %v1298
      %v1308 = vmul.f32 %v1239, %v1298
      %v1309 = vmul.f32 %v1240, %v1298
      %v1310 = vmul.f32 %v1241, %v1298
      %v1311 = vmul.f32 %v1242, %v1298
      %v1312 = vmul.f32 %v1243, %v1298
      %v1313 = vmul.f32 %v1244, %v1298
      %v1314 = vmul.f32 %v1245, %v1298
      %v1315 = vmul.f32 %v1246, %v1298
      %v1316 = vmul.f32 %v1247, %v1298
      %v1317 = vmul.f32 %v1248, %v1298
      %v1318 = vmul.f32 %v1249, %v1298
      %v1319 = vmul.f32 %v1250, %v1298
      %v1320 = vmul.f32 %v1251, %v1298
      %v1321 = vmul.f32 %v1252, %v1298
      %v1322 = vmul.f32 %v1253, %v1298
      %v1323 = vmul.f32 %v1254, %v1298
      %v1324 = vmul.f32 %v1255, %v1298
      %v1325 = vmul.f32 %v1256, %v1298
      %v1326 = vmul.f32 %v1257, %v1298
      %v1327 = vmul.f32 %v1258, %v1298
      %v1328 = vmul.f32 %v1259, %v1298
      %v1329 = vmul.f32 %v1260, %v1298
      %v1330 = vmul.f32 %v1261, %v1298
      %v1331 = vmul.f32 %v1262, %v1298
      %v1332 = vmul.f32 %v1263, %v1298
      %v1333 = vmul.f32 %v1264, %v1298
      %v1334 = vmul.f32 %v1265, %v1298
      %v1335 = vmul.f32 %v1266, %v1298
      %v1336 = vmul.f32 %v1267, %v1298
      %v1337 = vmul.f32 %v1268, %v1298
      %v1338 = vmul.f32 %v1269, %v1298
      %v1339 = vmul.f32 %v1270, %v1298
      %v1340 = vmul.f32 %v1271, %v1298
      %v1341 = vmul.f32 %v1272, %v1298
      %v1342 = vmul.f32 %v1273, %v1298
      %v1343 = vmul.f32 %v1274, %v1298
      %v1344 = vmul.f32 %v1275, %v1298
      %v1345 = vmul.f32 %v1276, %v1298
      %v1346 = vmul.f32 %v1277, %v1298
      %v1347 = vmul.f32 %v1278, %v1298
      %v1348 = vmul.f32 %v1279, %v1298
      %v1349 = vmul.f32 %v1280, %v1298
      %v1350 = vmul.f32 %v1281, %v1298
      %v1351 = vmul.f32 %v1282, %v1298
      %v1352 = vmul.f32 %v1283, %v1298
      %v1353 = vmul.f32 %v1284, %v1298
      %v1354 = vmul.f32 %v1285, %v1298
      %v1355 = vmul.f32 %v1286, %v1298
      %v1356 = vmul.f32 %v1287, %v1298
      %v1357 = vmul.f32 %v1288, %v1298
      %v1358 = vmul.f32 %v1289, %v1298
      %v1359 = vmul.f32 %v1290, %v1298
      %v1360 = vmul.f32 %v1291, %v1298
      %v1361 = vmul.f32 %v1292, %v1298
      %v1362 = vmul.f32 %v1293, %v1298
      %v1363 = vmul.f32 %v845, 0.14285715
      %v1364 = vmul.f32 %v846, 0.14285715
      %v1365 = vmul.f32 %v847, 0.14285715
      %v1366 = vmul.f32 %v848, 0.14285715
      %v1367 = vmul.f32 %v849, 0.14285715
      %v1368 = vmul.f32 %v850, 0.14285715
      %v1369 = vmul.f32 %v851, 0.14285715
      %v1370 = vmul.f32 %v852, 0.14285715
      %v1371 = vmul.f32 %v853, 0.14285715
      %v1372 = vmul.f32 %v854, 0.14285715
      %v1373 = vmul.f32 %v855, 0.14285715
      %v1374 = vmul.f32 %v856, 0.14285715
      %v1375 = vmul.f32 %v857, 0.14285715
      %v1376 = vmul.f32 %v858, 0.14285715
      %v1377 = vmul.f32 %v859, 0.14285715
      %v1378 = vmul.f32 %v860, 0.14285715
      %v1379 = vmul.f32 %v861, 0.14285715
      %v1380 = vmul.f32 %v862, 0.14285715
      %v1381 = vmul.f32 %v863, 0.14285715
      %v1382 = vmul.f32 %v864, 0.14285715
      %v1383 = vmul.f32 %v865, 0.14285715
      %v1384 = vmul.f32 %v866, 0.14285715
      %v1385 = vmul.f32 %v867, 0.14285715
      %v1386 = vmul.f32 %v868, 0.14285715
      %v1387 = vmul.f32 %v869, 0.14285715
      %v1388 = vmul.f32 %v870, 0.14285715
      %v1389 = vmul.f32 %v871, 0.14285715
      %v1390 = vmul.f32 %v872, 0.14285715
      %v1391 = vmul.f32 %v873, 0.14285715
      %v1392 = vmul.f32 %v874, 0.14285715
      %v1393 = vmul.f32 %v875, 0.14285715
      %v1394 = vmul.f32 %v876, 0.14285715
      %v1395 = vmul.f32 %v877, 0.14285715
      %v1396 = vmul.f32 %v878, 0.14285715
      %v1397 = vmul.f32 %v879, 0.14285715
      %v1398 = vmul.f32 %v880, 0.14285715
      %v1399 = vmul.f32 %v881, 0.14285715
      %v1400 = vmul.f32 %v882, 0.14285715
      %v1401 = vmul.f32 %v883, 0.14285715
      %v1402 = vmul.f32 %v884, 0.14285715
      %v1403 = vmul.f32 %v885, 0.14285715
      %v1404 = vmul.f32 %v886, 0.14285715
      %v1405 = vmul.f32 %v887, 0.14285715
      %v1406 = vmul.f32 %v888, 0.14285715
      %v1407 = vmul.f32 %v889, 0.14285715
      %v1408 = vmul.f32 %v890, 0.14285715
      %v1409 = vmul.f32 %v891, 0.14285715
      %v1410 = vmul.f32 %v892, 0.14285715
      %v1411 = vmul.f32 %v893, 0.14285715
      %v1412 = vmul.f32 %v894, 0.14285715
      %v1413 = vmul.f32 %v895, 0.14285715
      %v1414 = vmul.f32 %v896, 0.14285715
      %v1415 = vmul.f32 %v897, 0.14285715
      %v1416 = vmul.f32 %v898, 0.14285715
      %v1417 = vmul.f32 %v899, 0.14285715
      %v1418 = vmul.f32 %v900, 0.14285715
      %v1419 = vmul.f32 %v901, 0.14285715
      %v1420 = vmul.f32 %v902, 0.14285715
      %v1421 = vmul.f32 %v903, 0.14285715
      %v1422 = vmul.f32 %v904, 0.14285715
      %v1423 = vmul.f32 %v905, 0.14285715
      %v1424 = vmul.f32 %v906, 0.14285715
      %v1425 = vmul.f32 %v907, 0.14285715
      %v1426 = vmul.f32 %v908, 0.14285715
      %v1427 = vld [vmem:[%s2 + $0x1] sm:$0x1]
      %v1428 = vlaneseq
      %v1429 = vshrl.u32 %v1428, 7
      %v1430 = vsub.s32 0, %v1429
      %v1431 = vrot.slane %v1427, %v1430
      %v1432 = vmul.f32 %v1363, %v1431
      %v1433 = vmul.f32 %v1364, %v1431
      %v1434 = vmul.f32 %v1365, %v1431
      %v1435 = vmul.f32 %v1366, %v1431
      %v1436 = vmul.f32 %v1367, %v1431
      %v1437 = vmul.f32 %v1368, %v1431
      %v1438 = vmul.f32 %v1369, %v1431
      %v1439 = vmul.f32 %v1370, %v1431
      %v1440 = vmul.f32 %v1371, %v1431
      %v1441 = vmul.f32 %v1372, %v1431
      %v1442 = vmul.f32 %v1373, %v1431
      %v1443 = vmul.f32 %v1374, %v1431
      %v1444 = vmul.f32 %v1375, %v1431
      %v1445 = vmul.f32 %v1376, %v1431
      %v1446 = vmul.f32 %v1377, %v1431
      %v1447 = vmul.f32 %v1378, %v1431
      %v1448 = vmul.f32 %v1379, %v1431
      %v1449 = vmul.f32 %v1380, %v1431
      %v1450 = vmul.f32 %v1381, %v1431
      %v1451 = vmul.f32 %v1382, %v1431
      %v1452 = vmul.f32 %v1383, %v1431
      %v1453 = vmul.f32 %v1384, %v1431
      %v1454 = vmul.f32 %v1385, %v1431
      %v1455 = vmul.f32 %v1386, %v1431
      %v1456 = vmul.f32 %v1387, %v1431
      %v1457 = vmul.f32 %v1388, %v1431
      %v1458 = vmul.f32 %v1389, %v1431
      %v1459 = vmul.f32 %v1390, %v1431
      %v1460 = vmul.f32 %v1391, %v1431
      %v1461 = vmul.f32 %v1392, %v1431
      %v1462 = vmul.f32 %v1393, %v1431
      %v1463 = vmul.f32 %v1394, %v1431
      %v1464 = vmul.f32 %v1395, %v1431
      %v1465 = vmul.f32 %v1396, %v1431
      %v1466 = vmul.f32 %v1397, %v1431
      %v1467 = vmul.f32 %v1398, %v1431
      %v1468 = vmul.f32 %v1399, %v1431
      %v1469 = vmul.f32 %v1400, %v1431
      %v1470 = vmul.f32 %v1401, %v1431
      %v1471 = vmul.f32 %v1402, %v1431
      %v1472 = vmul.f32 %v1403, %v1431
      %v1473 = vmul.f32 %v1404, %v1431
      %v1474 = vmul.f32 %v1405, %v1431
      %v1475 = vmul.f32 %v1406, %v1431
      %v1476 = vmul.f32 %v1407, %v1431
      %v1477 = vmul.f32 %v1408, %v1431
      %v1478 = vmul.f32 %v1409, %v1431
      %v1479 = vmul.f32 %v1410, %v1431
      %v1480 = vmul.f32 %v1411, %v1431
      %v1481 = vmul.f32 %v1412, %v1431
      %v1482 = vmul.f32 %v1413, %v1431
      %v1483 = vmul.f32 %v1414, %v1431
      %v1484 = vmul.f32 %v1415, %v1431
      %v1485 = vmul.f32 %v1416, %v1431
      %v1486 = vmul.f32 %v1417, %v1431
      %v1487 = vmul.f32 %v1418, %v1431
      %v1488 = vmul.f32 %v1419, %v1431
      %v1489 = vmul.f32 %v1420, %v1431
      %v1490 = vmul.f32 %v1421, %v1431
      %v1491 = vmul.f32 %v1422, %v1431
      %v1492 = vmul.f32 %v1423, %v1431
      %v1493 = vmul.f32 %v1424, %v1431
      %v1494 = vmul.f32 %v1425, %v1431
      %v1495 = vmul.f32 %v1426, %v1431
      %v1496 = vadd.f32 %v1299, %v1432
      %v1497 = vadd.f32 %v1300, %v1433
      %v1498 = vadd.f32 %v1301, %v1434
      %v1499 = vadd.f32 %v1302, %v1435
      %v1500 = vadd.f32 %v1303, %v1436
      %v1501 = vadd.f32 %v1304, %v1437
      %v1502 = vadd.f32 %v1305, %v1438
      %v1503 = vadd.f32 %v1306, %v1439
      %v1504 = vadd.f32 %v1307, %v1440
      %v1505 = vadd.f32 %v1308, %v1441
      %v1506 = vadd.f32 %v1309, %v1442
      %v1507 = vadd.f32 %v1310, %v1443
      %v1508 = vadd.f32 %v1311, %v1444
      %v1509 = vadd.f32 %v1312, %v1445
      %v1510 = vadd.f32 %v1313, %v1446
      %v1511 = vadd.f32 %v1314, %v1447
      %v1512 = vadd.f32 %v1315, %v1448
      %v1513 = vadd.f32 %v1316, %v1449
      %v1514 = vadd.f32 %v1317, %v1450
      %v1515 = vadd.f32 %v1318, %v1451
      %v1516 = vadd.f32 %v1319, %v1452
      %v1517 = vadd.f32 %v1320, %v1453
      %v1518 = vadd.f32 %v1321, %v1454
      %v1519 = vadd.f32 %v1322, %v1455
      %v1520 = vadd.f32 %v1323, %v1456
      %v1521 = vadd.f32 %v1324, %v1457
      %v1522 = vadd.f32 %v1325, %v1458
      %v1523 = vadd.f32 %v1326, %v1459
      %v1524 = vadd.f32 %v1327, %v1460
      %v1525 = vadd.f32 %v1328, %v1461
      %v1526 = vadd.f32 %v1329, %v1462
      %v1527 = vadd.f32 %v1330, %v1463
      %v1528 = vadd.f32 %v1331, %v1464
      %v1529 = vadd.f32 %v1332, %v1465
      %v1530 = vadd.f32 %v1333, %v1466
      %v1531 = vadd.f32 %v1334, %v1467
      %v1532 = vadd.f32 %v1335, %v1468
      %v1533 = vadd.f32 %v1336, %v1469
      %v1534 = vadd.f32 %v1337, %v1470
      %v1535 = vadd.f32 %v1338, %v1471
      %v1536 = vadd.f32 %v1339, %v1472
      %v1537 = vadd.f32 %v1340, %v1473
      %v1538 = vadd.f32 %v1341, %v1474
      %v1539 = vadd.f32 %v1342, %v1475
      %v1540 = vadd.f32 %v1343, %v1476
      %v1541 = vadd.f32 %v1344, %v1477
      %v1542 = vadd.f32 %v1345, %v1478
      %v1543 = vadd.f32 %v1346, %v1479
      %v1544 = vadd.f32 %v1347, %v1480
      %v1545 = vadd.f32 %v1348, %v1481
      %v1546 = vadd.f32 %v1349, %v1482
      %v1547 = vadd.f32 %v1350, %v1483
      %v1548 = vadd.f32 %v1351, %v1484
      %v1549 = vadd.f32 %v1352, %v1485
      %v1550 = vadd.f32 %v1353, %v1486
      %v1551 = vadd.f32 %v1354, %v1487
      %v1552 = vadd.f32 %v1355, %v1488
      %v1553 = vadd.f32 %v1356, %v1489
      %v1554 = vadd.f32 %v1357, %v1490
      %v1555 = vadd.f32 %v1358, %v1491
      %v1556 = vadd.f32 %v1359, %v1492
      %v1557 = vadd.f32 %v1360, %v1493
      %v1558 = vadd.f32 %v1361, %v1494
      %v1559 = vadd.f32 %v1362, %v1495
      %v1560 = vmul.f32 %v589, 0.14285715
      %v1561 = vmul.f32 %v590, 0.14285715
      %v1562 = vmul.f32 %v591, 0.14285715
      %v1563 = vmul.f32 %v592, 0.14285715
      %v1564 = vmul.f32 %v593, 0.14285715
      %v1565 = vmul.f32 %v594, 0.14285715
      %v1566 = vmul.f32 %v595, 0.14285715
      %v1567 = vmul.f32 %v596, 0.14285715
      %v1568 = vmul.f32 %v597, 0.14285715
      %v1569 = vmul.f32 %v598, 0.14285715
      %v1570 = vmul.f32 %v599, 0.14285715
      %v1571 = vmul.f32 %v600, 0.14285715
      %v1572 = vmul.f32 %v601, 0.14285715
      %v1573 = vmul.f32 %v602, 0.14285715
      %v1574 = vmul.f32 %v603, 0.14285715
      %v1575 = vmul.f32 %v604, 0.14285715
      %v1576 = vmul.f32 %v605, 0.14285715
      %v1577 = vmul.f32 %v606, 0.14285715
      %v1578 = vmul.f32 %v607, 0.14285715
      %v1579 = vmul.f32 %v608, 0.14285715
      %v1580 = vmul.f32 %v609, 0.14285715
      %v1581 = vmul.f32 %v610, 0.14285715
      %v1582 = vmul.f32 %v611, 0.14285715
      %v1583 = vmul.f32 %v612, 0.14285715
      %v1584 = vmul.f32 %v613, 0.14285715
      %v1585 = vmul.f32 %v614, 0.14285715
      %v1586 = vmul.f32 %v615, 0.14285715
      %v1587 = vmul.f32 %v616, 0.14285715
      %v1588 = vmul.f32 %v617, 0.14285715
      %v1589 = vmul.f32 %v618, 0.14285715
      %v1590 = vmul.f32 %v619, 0.14285715
      %v1591 = vmul.f32 %v620, 0.14285715
      %v1592 = vmul.f32 %v621, 0.14285715
      %v1593 = vmul.f32 %v622, 0.14285715
      %v1594 = vmul.f32 %v623, 0.14285715
      %v1595 = vmul.f32 %v624, 0.14285715
      %v1596 = vmul.f32 %v625, 0.14285715
      %v1597 = vmul.f32 %v626, 0.14285715
      %v1598 = vmul.f32 %v627, 0.14285715
      %v1599 = vmul.f32 %v628, 0.14285715
      %v1600 = vmul.f32 %v629, 0.14285715
      %v1601 = vmul.f32 %v630, 0.14285715
      %v1602 = vmul.f32 %v631, 0.14285715
      %v1603 = vmul.f32 %v632, 0.14285715
      %v1604 = vmul.f32 %v633, 0.14285715
      %v1605 = vmul.f32 %v634, 0.14285715
      %v1606 = vmul.f32 %v635, 0.14285715
      %v1607 = vmul.f32 %v636, 0.14285715
      %v1608 = vmul.f32 %v637, 0.14285715
      %v1609 = vmul.f32 %v638, 0.14285715
      %v1610 = vmul.f32 %v639, 0.14285715
      %v1611 = vmul.f32 %v640, 0.14285715
      %v1612 = vmul.f32 %v641, 0.14285715
      %v1613 = vmul.f32 %v642, 0.14285715
      %v1614 = vmul.f32 %v643, 0.14285715
      %v1615 = vmul.f32 %v644, 0.14285715
      %v1616 = vmul.f32 %v645, 0.14285715
      %v1617 = vmul.f32 %v646, 0.14285715
      %v1618 = vmul.f32 %v647, 0.14285715
      %v1619 = vmul.f32 %v648, 0.14285715
      %v1620 = vmul.f32 %v649, 0.14285715
      %v1621 = vmul.f32 %v650, 0.14285715
      %v1622 = vmul.f32 %v651, 0.14285715
      %v1623 = vmul.f32 %v652, 0.14285715
      %v1624 = vld [vmem:[%s2 + $0x2] sm:$0x1]
      %v1625 = vlaneseq
      %v1626 = vshrl.u32 %v1625, 7
      %v1627 = vsub.s32 0, %v1626
      %v1628 = vrot.slane %v1624, %v1627
      %v1629 = vmul.f32 %v1560, %v1628
      %v1630 = vmul.f32 %v1561, %v1628
      %v1631 = vmul.f32 %v1562, %v1628
      %v1632 = vmul.f32 %v1563, %v1628
      %v1633 = vmul.f32 %v1564, %v1628
      %v1634 = vmul.f32 %v1565, %v1628
      %v1635 = vmul.f32 %v1566, %v1628
      %v1636 = vmul.f32 %v1567, %v1628
      %v1637 = vmul.f32 %v1568, %v1628
      %v1638 = vmul.f32 %v1569, %v1628
      %v1639 = vmul.f32 %v1570, %v1628
      %v1640 = vmul.f32 %v1571, %v1628
      %v1641 = vmul.f32 %v1572, %v1628
      %v1642 = vmul.f32 %v1573, %v1628
      %v1643 = vmul.f32 %v1574, %v1628
      %v1644 = vmul.f32 %v1575, %v1628
      %v1645 = vmul.f32 %v1576, %v1628
      %v1646 = vmul.f32 %v1577, %v1628
      %v1647 = vmul.f32 %v1578, %v1628
      %v1648 = vmul.f32 %v1579, %v1628
      %v1649 = vmul.f32 %v1580, %v1628
      %v1650 = vmul.f32 %v1581, %v1628
      %v1651 = vmul.f32 %v1582, %v1628
      %v1652 = vmul.f32 %v1583, %v1628
      %v1653 = vmul.f32 %v1584, %v1628
      %v1654 = vmul.f32 %v1585, %v1628
      %v1655 = vmul.f32 %v1586, %v1628
      %v1656 = vmul.f32 %v1587, %v1628
      %v1657 = vmul.f32 %v1588, %v1628
      %v1658 = vmul.f32 %v1589, %v1628
      %v1659 = vmul.f32 %v1590, %v1628
      %v1660 = vmul.f32 %v1591, %v1628
      %v1661 = vmul.f32 %v1592, %v1628
      %v1662 = vmul.f32 %v1593, %v1628
      %v1663 = vmul.f32 %v1594, %v1628
      %v1664 = vmul.f32 %v1595, %v1628
      %v1665 = vmul.f32 %v1596, %v1628
      %v1666 = vmul.f32 %v1597, %v1628
      %v1667 = vmul.f32 %v1598, %v1628
      %v1668 = vmul.f32 %v1599, %v1628
      %v1669 = vmul.f32 %v1600, %v1628
      %v1670 = vmul.f32 %v1601, %v1628
      %v1671 = vmul.f32 %v1602, %v1628
      %v1672 = vmul.f32 %v1603, %v1628
      %v1673 = vmul.f32 %v1604, %v1628
      %v1674 = vmul.f32 %v1605, %v1628
      %v1675 = vmul.f32 %v1606, %v1628
      %v1676 = vmul.f32 %v1607, %v1628
      %v1677 = vmul.f32 %v1608, %v1628
      %v1678 = vmul.f32 %v1609, %v1628
      %v1679 = vmul.f32 %v1610, %v1628
      %v1680 = vmul.f32 %v1611, %v1628
      %v1681 = vmul.f32 %v1612, %v1628
      %v1682 = vmul.f32 %v1613, %v1628
      %v1683 = vmul.f32 %v1614, %v1628
      %v1684 = vmul.f32 %v1615, %v1628
      %v1685 = vmul.f32 %v1616, %v1628
      %v1686 = vmul.f32 %v1617, %v1628
      %v1687 = vmul.f32 %v1618, %v1628
      %v1688 = vmul.f32 %v1619, %v1628
      %v1689 = vmul.f32 %v1620, %v1628
      %v1690 = vmul.f32 %v1621, %v1628
      %v1691 = vmul.f32 %v1622, %v1628
      %v1692 = vmul.f32 %v1623, %v1628
      %v1693 = vadd.f32 %v1496, %v1629
      %v1694 = vadd.f32 %v1497, %v1630
      %v1695 = vadd.f32 %v1498, %v1631
      %v1696 = vadd.f32 %v1499, %v1632
      %v1697 = vadd.f32 %v1500, %v1633
      %v1698 = vadd.f32 %v1501, %v1634
      %v1699 = vadd.f32 %v1502, %v1635
      %v1700 = vadd.f32 %v1503, %v1636
      %v1701 = vadd.f32 %v1504, %v1637
      %v1702 = vadd.f32 %v1505, %v1638
      %v1703 = vadd.f32 %v1506, %v1639
      %v1704 = vadd.f32 %v1507, %v1640
      %v1705 = vadd.f32 %v1508, %v1641
      %v1706 = vadd.f32 %v1509, %v1642
      %v1707 = vadd.f32 %v1510, %v1643
      %v1708 = vadd.f32 %v1511, %v1644
      %v1709 = vadd.f32 %v1512, %v1645
      %v1710 = vadd.f32 %v1513, %v1646
      %v1711 = vadd.f32 %v1514, %v1647
      %v1712 = vadd.f32 %v1515, %v1648
      %v1713 = vadd.f32 %v1516, %v1649
      %v1714 = vadd.f32 %v1517, %v1650
      %v1715 = vadd.f32 %v1518, %v1651
      %v1716 = vadd.f32 %v1519, %v1652
      %v1717 = vadd.f32 %v1520, %v1653
      %v1718 = vadd.f32 %v1521, %v1654
      %v1719 = vadd.f32 %v1522, %v1655
      %v1720 = vadd.f32 %v1523, %v1656
      %v1721 = vadd.f32 %v1524, %v1657
      %v1722 = vadd.f32 %v1525, %v1658
      %v1723 = vadd.f32 %v1526, %v1659
      %v1724 = vadd.f32 %v1527, %v1660
      %v1725 = vadd.f32 %v1528, %v1661
      %v1726 = vadd.f32 %v1529, %v1662
      %v1727 = vadd.f32 %v1530, %v1663
      %v1728 = vadd.f32 %v1531, %v1664
      %v1729 = vadd.f32 %v1532, %v1665
      %v1730 = vadd.f32 %v1533, %v1666
      %v1731 = vadd.f32 %v1534, %v1667
      %v1732 = vadd.f32 %v1535, %v1668
      %v1733 = vadd.f32 %v1536, %v1669
      %v1734 = vadd.f32 %v1537, %v1670
      %v1735 = vadd.f32 %v1538, %v1671
      %v1736 = vadd.f32 %v1539, %v1672
      %v1737 = vadd.f32 %v1540, %v1673
      %v1738 = vadd.f32 %v1541, %v1674
      %v1739 = vadd.f32 %v1542, %v1675
      %v1740 = vadd.f32 %v1543, %v1676
      %v1741 = vadd.f32 %v1544, %v1677
      %v1742 = vadd.f32 %v1545, %v1678
      %v1743 = vadd.f32 %v1546, %v1679
      %v1744 = vadd.f32 %v1547, %v1680
      %v1745 = vadd.f32 %v1548, %v1681
      %v1746 = vadd.f32 %v1549, %v1682
      %v1747 = vadd.f32 %v1550, %v1683
      %v1748 = vadd.f32 %v1551, %v1684
      %v1749 = vadd.f32 %v1552, %v1685
      %v1750 = vadd.f32 %v1553, %v1686
      %v1751 = vadd.f32 %v1554, %v1687
      %v1752 = vadd.f32 %v1555, %v1688
      %v1753 = vadd.f32 %v1556, %v1689
      %v1754 = vadd.f32 %v1557, %v1690
      %v1755 = vadd.f32 %v1558, %v1691
      %v1756 = vadd.f32 %v1559, %v1692
      %vm1757 = vcmask 56320
      %v1759 = vsel %vm1757, %v1165, 0
      %v1762 = vsel %vm1757, %v1166, 0
      %v1765 = vsel %vm1757, %v1167, 0
      %v1768 = vsel %vm1757, %v1168, 0
      %v1771 = vsel %vm1757, %v1169, 0
      %v1774 = vsel %vm1757, %v1170, 0
      %v1777 = vsel %vm1757, %v1171, 0
      %v1780 = vsel %vm1757, %v1172, 0
      %v1783 = vsel %vm1757, %v1173, 0
      %v1786 = vsel %vm1757, %v1174, 0
      %v1789 = vsel %vm1757, %v1175, 0
      %v1792 = vsel %vm1757, %v1176, 0
      %v1795 = vsel %vm1757, %v1177, 0
      %v1798 = vsel %vm1757, %v1178, 0
      %v1801 = vsel %vm1757, %v1179, 0
      %v1804 = vsel %vm1757, %v1180, 0
      %v1807 = vsel %vm1757, %v1181, 0
      %v1810 = vsel %vm1757, %v1182, 0
      %v1813 = vsel %vm1757, %v1183, 0
      %v1816 = vsel %vm1757, %v1184, 0
      %v1819 = vsel %vm1757, %v1185, 0
      %v1822 = vsel %vm1757, %v1186, 0
      %v1825 = vsel %vm1757, %v1187, 0
      %v1828 = vsel %vm1757, %v1188, 0
      %v1831 = vsel %vm1757, %v1189, 0
      %v1834 = vsel %vm1757, %v1190, 0
      %v1837 = vsel %vm1757, %v1191, 0
      %v1840 = vsel %vm1757, %v1192, 0
      %v1843 = vsel %vm1757, %v1193, 0
      %v1846 = vsel %vm1757, %v1194, 0
      %v1849 = vsel %vm1757, %v1195, 0
      %v1852 = vsel %vm1757, %v1196, 0
      %v1855 = vsel %vm1757, %v1197, 0
      %v1858 = vsel %vm1757, %v1198, 0
      %v1861 = vsel %vm1757, %v1199, 0
      %v1864 = vsel %vm1757, %v1200, 0
      %v1867 = vsel %vm1757, %v1201, 0
      %v1870 = vsel %vm1757, %v1202, 0
      %v1873 = vsel %vm1757, %v1203, 0
      %v1876 = vsel %vm1757, %v1204, 0
      %v1879 = vsel %vm1757, %v1205, 0
      %v1882 = vsel %vm1757, %v1206, 0
      %v1885 = vsel %vm1757, %v1207, 0
      %v1888 = vsel %vm1757, %v1208, 0
      %v1891 = vsel %vm1757, %v1209, 0
      %v1894 = vsel %vm1757, %v1210, 0
      %v1897 = vsel %vm1757, %v1211, 0
      %v1900 = vsel %vm1757, %v1212, 0
      %v1903 = vsel %vm1757, %v1213, 0
      %v1906 = vsel %vm1757, %v1214, 0
      %v1909 = vsel %vm1757, %v1215, 0
      %v1912 = vsel %vm1757, %v1216, 0
      %v1915 = vsel %vm1757, %v1217, 0
      %v1918 = vsel %vm1757, %v1218, 0
      %v1921 = vsel %vm1757, %v1219, 0
      %v1924 = vsel %vm1757, %v1220, 0
      %v1927 = vsel %vm1757, %v1221, 0
      %v1930 = vsel %vm1757, %v1222, 0
      %v1933 = vsel %vm1757, %v1223, 0
      %v1936 = vsel %vm1757, %v1224, 0
      %v1939 = vsel %vm1757, %v1225, 0
      %v1942 = vsel %vm1757, %v1226, 0
      %v1945 = vsel %vm1757, %v1227, 0
      %v1948 = vsel %vm1757, %v1228, 0
      %vm1950 = vcmask 1046528
      %v1952 = vsel %vm1950, %v1229, 0
      %1954 = vmatprep.subr.mxu0 0.0
      %1955 = vmatpush1.msra.mxu0 %v1952
      %1956 = vmatprep.subr.mxu0 0.0
      %1957 = vmatpush1.msra.mxu0 0.0
      %1958 = vmatprep.subr.mxu0 0.0
      %1959 = vmatpush1.msra.mxu0 0.0
      %1960 = vmatprep.subr.mxu0 0.0
      %1961 = vmatpush1.msra.mxu0 0.0
      %1962 = vmatprep.subr.mxu0 0.0
      %1963 = vmatpush1.msra.mxu0 0.0
      %1964 = vmatprep.subr.mxu0 0.0
      %1965 = vmatpush1.msra.mxu0 0.0
      %1966 = vmatprep.subr.mxu0 0.0
      %1967 = vmatpush1.msra.mxu0 0.0
      %1968 = vmatprep.subr.mxu0 0.0
      %1969 = vmatpush1.msra.mxu0 0.0
      %1970 = vmatprep.subr.mxu0 0.0
      %1971 = vmatpush1.msra.mxu0 0.0
      %1972 = vmatprep.subr.mxu0 0.0
      %1973 = vmatpush1.msra.mxu0 0.0
      %1974 = vmatprep.subr.mxu0 0.0
      %1975 = vmatpush1.msra.mxu0 0.0
      %1976 = vmatprep.subr.mxu0 0.0
      %1977 = vmatpush1.msra.mxu0 0.0
      %1978 = vmatprep.subr.mxu0 0.0
      %1979 = vmatpush1.msra.mxu0 0.0
      %1980 = vmatprep.subr.mxu0 0.0
      %1981 = vmatpush1.msra.mxu0 0.0
      %1982 = vmatprep.subr.mxu0 0.0
      %1983 = vmatpush1.msra.mxu0 0.0
      %1984 = vmatprep.subr.mxu0 0.0
      %1985 = vmatpush1.msra.mxu0 0.0
      %1986 = vmatprep.subr.mxu0 0.0
      %1987 = vmatpush1.msra.mxu0 0.0
      %1988 = vmatprep.subr.mxu0 0.0
      %1989 = vmatpush1.msra.mxu0 0.0
      %1990 = vmatprep.subr.mxu0 0.0
      %1991 = vmatpush1.msra.mxu0 0.0
      %1992 = vmatprep.subr.mxu0 0.0
      %1993 = vmatpush1.msra.mxu0 0.0
      %1994 = vmatprep.subr.mxu0 0.0
      %1995 = vmatpush1.msra.mxu0 0.0
      %1996 = vmatprep.subr.mxu0 0.0
      %1997 = vmatpush1.msra.mxu0 0.0
      %1998 = vmatprep.subr.mxu0 0.0
      %1999 = vmatpush1.msra.mxu0 0.0
      %2000 = vmatprep.subr.mxu0 0.0
      %2001 = vmatpush1.msra.mxu0 0.0
      %2002 = vmatprep.subr.mxu0 0.0
      %2003 = vmatpush1.msra.mxu0 0.0
      %2004 = vmatprep.subr.mxu0 0.0
      %2005 = vmatpush1.msra.mxu0 0.0
      %2006 = vmatprep.subr.mxu0 0.0
      %2007 = vmatpush1.msra.mxu0 0.0
      %2008 = vmatprep.subr.mxu0 0.0
      %2009 = vmatpush1.msra.mxu0 0.0
      %2010 = vmatprep.subr.mxu0 0.0
      %2011 = vmatpush1.msra.mxu0 0.0
      %2012 = vmatprep.subr.mxu0 0.0
      %2013 = vmatpush1.msra.mxu0 0.0
      %2014 = vmatprep.subr.mxu0 0.0
      %2015 = vmatpush1.msra.mxu0 0.0
      %2016 = vmatprep.subr.mxu0 0.0
      %2017 = vmatpush1.msra.mxu0 0.0
      %2018 = vmatprep.mubr.f32.mxu0 0.0
      %2019 = vmatmul.mubr.f32.gmra.mrb[0].mxu0 %v1759
      %v2020 = vpop.f32.mrb[0].mxu0
      %v2021 = vadd.f32 %v1693, %v2020
      %v2022 = vpop.f32.mrb[0].mxu0
      %2023 = vmatprep.mubr.f32.mxu0 0.0
      %2024 = vmatmul.mubr.f32.gmra.mrb[0].mxu0 %v1762
      %v2025 = vpop.f32.mrb[0].mxu0
      %v2026 = vadd.f32 %v1694, %v2025
      %v2027 = vpop.f32.mrb[0].mxu0
      %2028 = vmatprep.mubr.f32.mxu0 0.0
      %2029 = vmatmul.mubr.f32.gmra.mrb[0].mxu0 %v1765
      %v2030 = vpop.f32.mrb[0].mxu0
      %v2031 = vadd.f32 %v1695, %v2030
      %v2032 = vpop.f32.mrb[0].mxu0
      %2033 = vmatprep.mubr.f32.mxu0 0.0
      %2034 = vmatmul.mubr.f32.gmra.mrb[0].mxu0 %v1768
      %v2035 = vpop.f32.mrb[0].mxu0
      %v2036 = vadd.f32 %v1696, %v2035
      %v2037 = vpop.f32.mrb[0].mxu0
      %2038 = vmatprep.mubr.f32.mxu0 0.0
      %2039 = vmatmul.mubr.f32.gmra.mrb[0].mxu0 %v1771
      %v2040 = vpop.f32.mrb[0].mxu0
      %v2041 = vadd.f32 %v1697, %v2040
      %v2042 = vpop.f32.mrb[0].mxu0
      %2043 = vmatprep.mubr.f32.mxu0 0.0
      %2044 = vmatmul.mubr.f32.gmra.mrb[0].mxu0 %v1774
      %v2045 = vpop.f32.mrb[0].mxu0
      %v2046 = vadd.f32 %v1698, %v2045
      %v2047 = vpop.f32.mrb[0].mxu0
      %2048 = vmatprep.mubr.f32.mxu0 0.0
      %2049 = vmatmul.mubr.f32.gmra.mrb[0].mxu0 %v1777
      %v2050 = vpop.f32.mrb[0].mxu0
      %v2051 = vadd.f32 %v1699, %v2050
      %v2052 = vpop.f32.mrb[0].mxu0
      %2053 = vmatprep.mubr.f32.mxu0 0.0
      %2054 = vmatmul.mubr.f32.gmra.mrb[0].mxu0 %v1780
      %v2055 = vpop.f32.mrb[0].mxu0
      %v2056 = vadd.f32 %v1700, %v2055
      %v2057 = vpop.f32.mrb[0].mxu0
      %2058 = vmatprep.mubr.f32.mxu0 0.0
      %2059 = vmatmul.mubr.f32.gmra.mrb[0].mxu0 %v1783
      %v2060 = vpop.f32.mrb[0].mxu0
      %v2061 = vadd.f32 %v1701, %v2060
      %v2062 = vpop.f32.mrb[0].mxu0
      %2063 = vmatprep.mubr.f32.mxu0 0.0
      %2064 = vmatmul.mubr.f32.gmra.mrb[0].mxu0 %v1786
      %v2065 = vpop.f32.mrb[0].mxu0
      %v2066 = vadd.f32 %v1702, %v2065
      %v2067 = vpop.f32.mrb[0].mxu0
      %2068 = vmatprep.mubr.f32.mxu0 0.0
      %2069 = vmatmul.mubr.f32.gmra.mrb[0].mxu0 %v1789
      %v2070 = vpop.f32.mrb[0].mxu0
      %v2071 = vadd.f32 %v1703, %v2070
      %v2072 = vpop.f32.mrb[0].mxu0
      %2073 = vmatprep.mubr.f32.mxu0 0.0
      %2074 = vmatmul.mubr.f32.gmra.mrb[0].mxu0 %v1792
      %v2075 = vpop.f32.mrb[0].mxu0
      %v2076 = vadd.f32 %v1704, %v2075
      %v2077 = vpop.f32.mrb[0].mxu0
      %2078 = vmatprep.mubr.f32.mxu0 0.0
      %2079 = vmatmul.mubr.f32.gmra.mrb[0].mxu0 %v1795
      %v2080 = vpop.f32.mrb[0].mxu0
      %v2081 = vadd.f32 %v1705, %v2080
      %v2082 = vpop.f32.mrb[0].mxu0
      %2083 = vmatprep.mubr.f32.mxu0 0.0
      %2084 = vmatmul.mubr.f32.gmra.mrb[0].mxu0 %v1798
      %v2085 = vpop.f32.mrb[0].mxu0
      %v2086 = vadd.f32 %v1706, %v2085
      %v2087 = vpop.f32.mrb[0].mxu0
      %2088 = vmatprep.mubr.f32.mxu0 0.0
      %2089 = vmatmul.mubr.f32.gmra.mrb[0].mxu0 %v1801
      %v2090 = vpop.f32.mrb[0].mxu0
      %v2091 = vadd.f32 %v1707, %v2090
      %v2092 = vpop.f32.mrb[0].mxu0
      %2093 = vmatprep.mubr.f32.mxu0 0.0
      %2094 = vmatmul.mubr.f32.gmra.mrb[0].mxu0 %v1804
      %v2095 = vpop.f32.mrb[0].mxu0
      %v2096 = vadd.f32 %v1708, %v2095
      %v2097 = vpop.f32.mrb[0].mxu0
      %2098 = vmatprep.mubr.f32.mxu0 0.0
      %2099 = vmatmul.mubr.f32.gmra.mrb[0].mxu0 %v1807
      %v2100 = vpop.f32.mrb[0].mxu0
      %v2101 = vadd.f32 %v1709, %v2100
      %v2102 = vpop.f32.mrb[0].mxu0
      %2103 = vmatprep.mubr.f32.mxu0 0.0
      %2104 = vmatmul.mubr.f32.gmra.mrb[0].mxu0 %v1810
      %v2105 = vpop.f32.mrb[0].mxu0
      %v2106 = vadd.f32 %v1710, %v2105
      %v2107 = vpop.f32.mrb[0].mxu0
      %2108 = vmatprep.mubr.f32.mxu0 0.0
      %2109 = vmatmul.mubr.f32.gmra.mrb[0].mxu0 %v1813
      %v2110 = vpop.f32.mrb[0].mxu0
      %v2111 = vadd.f32 %v1711, %v2110
      %v2112 = vpop.f32.mrb[0].mxu0
      %2113 = vmatprep.mubr.f32.mxu0 0.0
      %2114 = vmatmul.mubr.f32.gmra.mrb[0].mxu0 %v1816
      %v2115 = vpop.f32.mrb[0].mxu0
      %v2116 = vadd.f32 %v1712, %v2115
      %v2117 = vpop.f32.mrb[0].mxu0
      %2118 = vmatprep.mubr.f32.mxu0 0.0
      %2119 = vmatmul.mubr.f32.gmra.mrb[0].mxu0 %v1819
      %v2120 = vpop.f32.mrb[0].mxu0
      %v2121 = vadd.f32 %v1713, %v2120
      %v2122 = vpop.f32.mrb[0].mxu0
      %2123 = vmatprep.mubr.f32.mxu0 0.0
      %2124 = vmatmul.mubr.f32.gmra.mrb[0].mxu0 %v1822
      %v2125 = vpop.f32.mrb[0].mxu0
      %v2126 = vadd.f32 %v1714, %v2125
      %v2127 = vpop.f32.mrb[0].mxu0
      %2128 = vmatprep.mubr.f32.mxu0 0.0
      %2129 = vmatmul.mubr.f32.gmra.mrb[0].mxu0 %v1825
      %v2130 = vpop.f32.mrb[0].mxu0
      %v2131 = vadd.f32 %v1715, %v2130
      %v2132 = vpop.f32.mrb[0].mxu0
      %2133 = vmatprep.mubr.f32.mxu0 0.0
      %2134 = vmatmul.mubr.f32.gmra.mrb[0].mxu0 %v1828
      %v2135 = vpop.f32.mrb[0].mxu0
      %v2136 = vadd.f32 %v1716, %v2135
      %v2137 = vpop.f32.mrb[0].mxu0
      %2138 = vmatprep.mubr.f32.mxu0 0.0
      %2139 = vmatmul.mubr.f32.gmra.mrb[0].mxu0 %v1831
      %v2140 = vpop.f32.mrb[0].mxu0
      %v2141 = vadd.f32 %v1717, %v2140
      %v2142 = vpop.f32.mrb[0].mxu0
      %2143 = vmatprep.mubr.f32.mxu0 0.0
      %2144 = vmatmul.mubr.f32.gmra.mrb[0].mxu0 %v1834
      %v2145 = vpop.f32.mrb[0].mxu0
      %v2146 = vadd.f32 %v1718, %v2145
      %v2147 = vpop.f32.mrb[0].mxu0
      %2148 = vmatprep.mubr.f32.mxu0 0.0
      %2149 = vmatmul.mubr.f32.gmra.mrb[0].mxu0 %v1837
      %v2150 = vpop.f32.mrb[0].mxu0
      %v2151 = vadd.f32 %v1719, %v2150
      %v2152 = vpop.f32.mrb[0].mxu0
      %2153 = vmatprep.mubr.f32.mxu0 0.0
      %2154 = vmatmul.mubr.f32.gmra.mrb[0].mxu0 %v1840
      %v2155 = vpop.f32.mrb[0].mxu0
      %v2156 = vadd.f32 %v1720, %v2155
      %v2157 = vpop.f32.mrb[0].mxu0
      %2158 = vmatprep.mubr.f32.mxu0 0.0
      %2159 = vmatmul.mubr.f32.gmra.mrb[0].mxu0 %v1843
      %v2160 = vpop.f32.mrb[0].mxu0
      %v2161 = vadd.f32 %v1721, %v2160
      %v2162 = vpop.f32.mrb[0].mxu0
      %2163 = vmatprep.mubr.f32.mxu0 0.0
      %2164 = vmatmul.mubr.f32.gmra.mrb[0].mxu0 %v1846
      %v2165 = vpop.f32.mrb[0].mxu0
      %v2166 = vadd.f32 %v1722, %v2165
      %v2167 = vpop.f32.mrb[0].mxu0
      %2168 = vmatprep.mubr.f32.mxu0 0.0
      %2169 = vmatmul.mubr.f32.gmra.mrb[0].mxu0 %v1849
      %v2170 = vpop.f32.mrb[0].mxu0
      %v2171 = vadd.f32 %v1723, %v2170
      %v2172 = vpop.f32.mrb[0].mxu0
      %2173 = vmatprep.mubr.f32.mxu0 0.0
      %2174 = vmatmul.mubr.f32.gmra.mrb[0].mxu0 %v1852
      %v2175 = vpop.f32.mrb[0].mxu0
      %v2176 = vadd.f32 %v1724, %v2175
      %v2177 = vpop.f32.mrb[0].mxu0
      %2178 = vmatprep.mubr.f32.mxu0 0.0
      %2179 = vmatmul.mubr.f32.gmra.mrb[0].mxu0 %v1855
      %v2180 = vpop.f32.mrb[0].mxu0
      %v2181 = vadd.f32 %v1725, %v2180
      %v2182 = vpop.f32.mrb[0].mxu0
      %2183 = vmatprep.mubr.f32.mxu0 0.0
      %2184 = vmatmul.mubr.f32.gmra.mrb[0].mxu0 %v1858
      %v2185 = vpop.f32.mrb[0].mxu0
      %v2186 = vadd.f32 %v1726, %v2185
      %v2187 = vpop.f32.mrb[0].mxu0
      %2188 = vmatprep.mubr.f32.mxu0 0.0
      %2189 = vmatmul.mubr.f32.gmra.mrb[0].mxu0 %v1861
      %v2190 = vpop.f32.mrb[0].mxu0
      %v2191 = vadd.f32 %v1727, %v2190
      %v2192 = vpop.f32.mrb[0].mxu0
      %2193 = vmatprep.mubr.f32.mxu0 0.0
      %2194 = vmatmul.mubr.f32.gmra.mrb[0].mxu0 %v1864
      %v2195 = vpop.f32.mrb[0].mxu0
      %v2196 = vadd.f32 %v1728, %v2195
      %v2197 = vpop.f32.mrb[0].mxu0
      %2198 = vmatprep.mubr.f32.mxu0 0.0
      %2199 = vmatmul.mubr.f32.gmra.mrb[0].mxu0 %v1867
      %v2200 = vpop.f32.mrb[0].mxu0
      %v2201 = vadd.f32 %v1729, %v2200
      %v2202 = vpop.f32.mrb[0].mxu0
      %2203 = vmatprep.mubr.f32.mxu0 0.0
      %2204 = vmatmul.mubr.f32.gmra.mrb[0].mxu0 %v1870
      %v2205 = vpop.f32.mrb[0].mxu0
      %v2206 = vadd.f32 %v1730, %v2205
      %v2207 = vpop.f32.mrb[0].mxu0
      %2208 = vmatprep.mubr.f32.mxu0 0.0
      %2209 = vmatmul.mubr.f32.gmra.mrb[0].mxu0 %v1873
      %v2210 = vpop.f32.mrb[0].mxu0
      %v2211 = vadd.f32 %v1731, %v2210
      %v2212 = vpop.f32.mrb[0].mxu0
      %2213 = vmatprep.mubr.f32.mxu0 0.0
      %2214 = vmatmul.mubr.f32.gmra.mrb[0].mxu0 %v1876
      %v2215 = vpop.f32.mrb[0].mxu0
      %v2216 = vadd.f32 %v1732, %v2215
      %v2217 = vpop.f32.mrb[0].mxu0
      %2218 = vmatprep.mubr.f32.mxu0 0.0
      %2219 = vmatmul.mubr.f32.gmra.mrb[0].mxu0 %v1879
      %v2220 = vpop.f32.mrb[0].mxu0
      %v2221 = vadd.f32 %v1733, %v2220
      %v2222 = vpop.f32.mrb[0].mxu0
      %2223 = vmatprep.mubr.f32.mxu0 0.0
      %2224 = vmatmul.mubr.f32.gmra.mrb[0].mxu0 %v1882
      %v2225 = vpop.f32.mrb[0].mxu0
      %v2226 = vadd.f32 %v1734, %v2225
      %v2227 = vpop.f32.mrb[0].mxu0
      %2228 = vmatprep.mubr.f32.mxu0 0.0
      %2229 = vmatmul.mubr.f32.gmra.mrb[0].mxu0 %v1885
      %v2230 = vpop.f32.mrb[0].mxu0
      %v2231 = vadd.f32 %v1735, %v2230
      %v2232 = vpop.f32.mrb[0].mxu0
      %2233 = vmatprep.mubr.f32.mxu0 0.0
      %2234 = vmatmul.mubr.f32.gmra.mrb[0].mxu0 %v1888
      %v2235 = vpop.f32.mrb[0].mxu0
      %v2236 = vadd.f32 %v1736, %v2235
      %v2237 = vpop.f32.mrb[0].mxu0
      %2238 = vmatprep.mubr.f32.mxu0 0.0
      %2239 = vmatmul.mubr.f32.gmra.mrb[0].mxu0 %v1891
      %v2240 = vpop.f32.mrb[0].mxu0
      %v2241 = vadd.f32 %v1737, %v2240
      %v2242 = vpop.f32.mrb[0].mxu0
      %2243 = vmatprep.mubr.f32.mxu0 0.0
      %2244 = vmatmul.mubr.f32.gmra.mrb[0].mxu0 %v1894
      %v2245 = vpop.f32.mrb[0].mxu0
      %v2246 = vadd.f32 %v1738, %v2245
      %v2247 = vpop.f32.mrb[0].mxu0
      %2248 = vmatprep.mubr.f32.mxu0 0.0
      %2249 = vmatmul.mubr.f32.gmra.mrb[0].mxu0 %v1897
      %v2250 = vpop.f32.mrb[0].mxu0
      %v2251 = vadd.f32 %v1739, %v2250
      %v2252 = vpop.f32.mrb[0].mxu0
      %2253 = vmatprep.mubr.f32.mxu0 0.0
      %2254 = vmatmul.mubr.f32.gmra.mrb[0].mxu0 %v1900
      %v2255 = vpop.f32.mrb[0].mxu0
      %v2256 = vadd.f32 %v1740, %v2255
      %v2257 = vpop.f32.mrb[0].mxu0
      %2258 = vmatprep.mubr.f32.mxu0 0.0
      %2259 = vmatmul.mubr.f32.gmra.mrb[0].mxu0 %v1903
      %v2260 = vpop.f32.mrb[0].mxu0
      %v2261 = vadd.f32 %v1741, %v2260
      %v2262 = vpop.f32.mrb[0].mxu0
      %2263 = vmatprep.mubr.f32.mxu0 0.0
      %2264 = vmatmul.mubr.f32.gmra.mrb[0].mxu0 %v1906
      %v2265 = vpop.f32.mrb[0].mxu0
      %v2266 = vadd.f32 %v1742, %v2265
      %v2267 = vpop.f32.mrb[0].mxu0
      %2268 = vmatprep.mubr.f32.mxu0 0.0
      %2269 = vmatmul.mubr.f32.gmra.mrb[0].mxu0 %v1909
      %v2270 = vpop.f32.mrb[0].mxu0
      %v2271 = vadd.f32 %v1743, %v2270
      %v2272 = vpop.f32.mrb[0].mxu0
      %2273 = vmatprep.mubr.f32.mxu0 0.0
      %2274 = vmatmul.mubr.f32.gmra.mrb[0].mxu0 %v1912
      %v2275 = vpop.f32.mrb[0].mxu0
      %v2276 = vadd.f32 %v1744, %v2275
      %v2277 = vpop.f32.mrb[0].mxu0
      %2278 = vmatprep.mubr.f32.mxu0 0.0
      %2279 = vmatmul.mubr.f32.gmra.mrb[0].mxu0 %v1915
      %v2280 = vpop.f32.mrb[0].mxu0
      %v2281 = vadd.f32 %v1745, %v2280
      %v2282 = vpop.f32.mrb[0].mxu0
      %2283 = vmatprep.mubr.f32.mxu0 0.0
      %2284 = vmatmul.mubr.f32.gmra.mrb[0].mxu0 %v1918
      %v2285 = vpop.f32.mrb[0].mxu0
      %v2286 = vadd.f32 %v1746, %v2285
      %v2287 = vpop.f32.mrb[0].mxu0
      %2288 = vmatprep.mubr.f32.mxu0 0.0
      %2289 = vmatmul.mubr.f32.gmra.mrb[0].mxu0 %v1921
      %v2290 = vpop.f32.mrb[0].mxu0
      %v2291 = vadd.f32 %v1747, %v2290
      %v2292 = vpop.f32.mrb[0].mxu0
      %2293 = vmatprep.mubr.f32.mxu0 0.0
      %2294 = vmatmul.mubr.f32.gmra.mrb[0].mxu0 %v1924
      %v2295 = vpop.f32.mrb[0].mxu0
      %v2296 = vadd.f32 %v1748, %v2295
      %v2297 = vpop.f32.mrb[0].mxu0
      %2298 = vmatprep.mubr.f32.mxu0 0.0
      %2299 = vmatmul.mubr.f32.gmra.mrb[0].mxu0 %v1927
      %v2300 = vpop.f32.mrb[0].mxu0
      %v2301 = vadd.f32 %v1749, %v2300
      %v2302 = vpop.f32.mrb[0].mxu0
      %2303 = vmatprep.mubr.f32.mxu0 0.0
      %2304 = vmatmul.mubr.f32.gmra.mrb[0].mxu0 %v1930
      %v2305 = vpop.f32.mrb[0].mxu0
      %v2306 = vadd.f32 %v1750, %v2305
      %v2307 = vpop.f32.mrb[0].mxu0
      %2308 = vmatprep.mubr.f32.mxu0 0.0
      %2309 = vmatmul.mubr.f32.gmra.mrb[0].mxu0 %v1933
      %v2310 = vpop.f32.mrb[0].mxu0
      %v2311 = vadd.f32 %v1751, %v2310
      %v2312 = vpop.f32.mrb[0].mxu0
      %2313 = vmatprep.mubr.f32.mxu0 0.0
      %2314 = vmatmul.mubr.f32.gmra.mrb[0].mxu0 %v1936
      %v2315 = vpop.f32.mrb[0].mxu0
      %v2316 = vadd.f32 %v1752, %v2315
      %v2317 = vpop.f32.mrb[0].mxu0
      %2318 = vmatprep.mubr.f32.mxu0 0.0
      %2319 = vmatmul.mubr.f32.gmra.mrb[0].mxu0 %v1939
      %v2320 = vpop.f32.mrb[0].mxu0
      %v2321 = vadd.f32 %v1753, %v2320
      %v2322 = vpop.f32.mrb[0].mxu0
      %2323 = vmatprep.mubr.f32.mxu0 0.0
      %2324 = vmatmul.mubr.f32.gmra.mrb[0].mxu0 %v1942
      %v2325 = vpop.f32.mrb[0].mxu0
      %v2326 = vadd.f32 %v1754, %v2325
      %v2327 = vpop.f32.mrb[0].mxu0
      %2328 = vmatprep.mubr.f32.mxu0 0.0
      %2329 = vmatmul.mubr.f32.gmra.mrb[0].mxu0 %v1945
      %v2330 = vpop.f32.mrb[0].mxu0
      %v2331 = vadd.f32 %v1755, %v2330
      %v2332 = vpop.f32.mrb[0].mxu0
      %2333 = vmatprep.mubr.f32.mxu0 0.0
      %2334 = vmatmul.mubr.f32.gmra.mrb[0].mxu0 %v1948
      %v2335 = vpop.f32.mrb[0].mxu0
      %v2336 = vadd.f32 %v1756, %v2335
      %v2337 = vpop.f32.mrb[0].mxu0
      %2338 = vdwg.mxu0
      %v2339 = vld [vmem:[%s3] sm:$0x1]
      %v2341 = vlaneseq
      %v2342 = vshrl.u32 %v2341, 7
      %v2343 = vsub.s32 0, %v2342
      %v2344 = vrot.slane %v2339, %v2343
      %v2346 = vadd.f32 %v2021, %v2344
      %v2347 = vadd.f32 %v2026, %v2344
      %v2348 = vadd.f32 %v2031, %v2344
      %v2349 = vadd.f32 %v2036, %v2344
      %v2350 = vadd.f32 %v2041, %v2344
      %v2351 = vadd.f32 %v2046, %v2344
      %v2352 = vadd.f32 %v2051, %v2344
      %v2353 = vadd.f32 %v2056, %v2344
      %v2354 = vadd.f32 %v2061, %v2344
      %v2355 = vadd.f32 %v2066, %v2344
      %v2356 = vadd.f32 %v2071, %v2344
      %v2357 = vadd.f32 %v2076, %v2344
      %v2358 = vadd.f32 %v2081, %v2344
      %v2359 = vadd.f32 %v2086, %v2344
      %v2360 = vadd.f32 %v2091, %v2344
      %v2361 = vadd.f32 %v2096, %v2344
      %v2362 = vadd.f32 %v2101, %v2344
      %v2363 = vadd.f32 %v2106, %v2344
      %v2364 = vadd.f32 %v2111, %v2344
      %v2365 = vadd.f32 %v2116, %v2344
      %v2366 = vadd.f32 %v2121, %v2344
      %v2367 = vadd.f32 %v2126, %v2344
      %v2368 = vadd.f32 %v2131, %v2344
      %v2369 = vadd.f32 %v2136, %v2344
      %v2370 = vadd.f32 %v2141, %v2344
      %v2371 = vadd.f32 %v2146, %v2344
      %v2372 = vadd.f32 %v2151, %v2344
      %v2373 = vadd.f32 %v2156, %v2344
      %v2374 = vadd.f32 %v2161, %v2344
      %v2375 = vadd.f32 %v2166, %v2344
      %v2376 = vadd.f32 %v2171, %v2344
      %v2377 = vadd.f32 %v2176, %v2344
      %v2378 = vadd.f32 %v2181, %v2344
      %v2379 = vadd.f32 %v2186, %v2344
      %v2380 = vadd.f32 %v2191, %v2344
      %v2381 = vadd.f32 %v2196, %v2344
      %v2382 = vadd.f32 %v2201, %v2344
      %v2383 = vadd.f32 %v2206, %v2344
      %v2384 = vadd.f32 %v2211, %v2344
      %v2385 = vadd.f32 %v2216, %v2344
      %v2386 = vadd.f32 %v2221, %v2344
      %v2387 = vadd.f32 %v2226, %v2344
      %v2388 = vadd.f32 %v2231, %v2344
      %v2389 = vadd.f32 %v2236, %v2344
      %v2390 = vadd.f32 %v2241, %v2344
      %v2391 = vadd.f32 %v2246, %v2344
      %v2392 = vadd.f32 %v2251, %v2344
      %v2393 = vadd.f32 %v2256, %v2344
      %v2394 = vadd.f32 %v2261, %v2344
      %v2395 = vadd.f32 %v2266, %v2344
      %v2396 = vadd.f32 %v2271, %v2344
      %v2397 = vadd.f32 %v2276, %v2344
      %v2398 = vadd.f32 %v2281, %v2344
      %v2399 = vadd.f32 %v2286, %v2344
      %v2400 = vadd.f32 %v2291, %v2344
      %v2401 = vadd.f32 %v2296, %v2344
      %v2402 = vadd.f32 %v2301, %v2344
      %v2403 = vadd.f32 %v2306, %v2344
      %v2404 = vadd.f32 %v2311, %v2344
      %v2405 = vadd.f32 %v2316, %v2344
      %v2406 = vadd.f32 %v2321, %v2344
      %v2407 = vadd.f32 %v2326, %v2344
      %v2408 = vadd.f32 %v2331, %v2344
      %v2409 = vadd.f32 %v2336, %v2344
      %v2410 = vpack.c.bf16 %v2347, %v2346
      %v2411 = vpack.c.bf16 %v2349, %v2348
      %v2412 = vpack.c.bf16 %v2351, %v2350
      %v2413 = vpack.c.bf16 %v2353, %v2352
      %v2414 = vpack.c.bf16 %v2355, %v2354
      %v2415 = vpack.c.bf16 %v2357, %v2356
      %v2416 = vpack.c.bf16 %v2359, %v2358
      %v2417 = vpack.c.bf16 %v2361, %v2360
      %v2418 = vpack.c.bf16 %v2363, %v2362
      %v2419 = vpack.c.bf16 %v2365, %v2364
      %v2420 = vpack.c.bf16 %v2367, %v2366
      %v2421 = vpack.c.bf16 %v2369, %v2368
      %v2422 = vpack.c.bf16 %v2371, %v2370
      %v2423 = vpack.c.bf16 %v2373, %v2372
      %v2424 = vpack.c.bf16 %v2375, %v2374
      %v2425 = vpack.c.bf16 %v2377, %v2376
      %v2426 = vpack.c.bf16 %v2379, %v2378
      %v2427 = vpack.c.bf16 %v2381, %v2380
      %v2428 = vpack.c.bf16 %v2383, %v2382
      %v2429 = vpack.c.bf16 %v2385, %v2384
      %v2430 = vpack.c.bf16 %v2387, %v2386
      %v2431 = vpack.c.bf16 %v2389, %v2388
      %v2432 = vpack.c.bf16 %v2391, %v2390
      %v2433 = vpack.c.bf16 %v2393, %v2392
      %v2434 = vpack.c.bf16 %v2395, %v2394
      %v2435 = vpack.c.bf16 %v2397, %v2396
      %v2436 = vpack.c.bf16 %v2399, %v2398
      %v2437 = vpack.c.bf16 %v2401, %v2400
      %v2438 = vpack.c.bf16 %v2403, %v2402
      %v2439 = vpack.c.bf16 %v2405, %v2404
      %v2440 = vpack.c.bf16 %v2407, %v2406
      %v2441 = vpack.c.bf16 %v2409, %v2408
      %v2474 = vunpack.c.l.b16 %v2410
      %v2475 = vunpack.c.h.b16 %v2410
      %v2476 = vunpack.c.l.b16 %v2411
      %v2477 = vunpack.c.h.b16 %v2411
      %v2478 = vunpack.c.l.b16 %v2412
      %v2479 = vunpack.c.h.b16 %v2412
      %v2480 = vunpack.c.l.b16 %v2413
      %v2481 = vunpack.c.h.b16 %v2413
      %v2482 = vunpack.c.l.b16 %v2414
      %v2483 = vunpack.c.h.b16 %v2414
      %v2484 = vunpack.c.l.b16 %v2415
      %v2485 = vunpack.c.h.b16 %v2415
      %v2486 = vunpack.c.l.b16 %v2416
      %v2487 = vunpack.c.h.b16 %v2416
      %v2488 = vunpack.c.l.b16 %v2417
      %v2489 = vunpack.c.h.b16 %v2417
      %v2490 = vunpack.c.l.b16 %v2418
      %v2491 = vunpack.c.h.b16 %v2418
      %v2492 = vunpack.c.l.b16 %v2419
      %v2493 = vunpack.c.h.b16 %v2419
      %v2494 = vunpack.c.l.b16 %v2420
      %v2495 = vunpack.c.h.b16 %v2420
      %v2496 = vunpack.c.l.b16 %v2421
      %v2497 = vunpack.c.h.b16 %v2421
      %v2498 = vunpack.c.l.b16 %v2422
      %v2499 = vunpack.c.h.b16 %v2422
      %v2500 = vunpack.c.l.b16 %v2423
      %v2501 = vunpack.c.h.b16 %v2423
      %v2502 = vunpack.c.l.b16 %v2424
      %v2503 = vunpack.c.h.b16 %v2424
      %v2504 = vunpack.c.l.b16 %v2425
      %v2505 = vunpack.c.h.b16 %v2425
      %v2506 = vunpack.c.l.b16 %v2426
      %v2507 = vunpack.c.h.b16 %v2426
      %v2508 = vunpack.c.l.b16 %v2427
      %v2509 = vunpack.c.h.b16 %v2427
      %v2510 = vunpack.c.l.b16 %v2428
      %v2511 = vunpack.c.h.b16 %v2428
      %v2512 = vunpack.c.l.b16 %v2429
      %v2513 = vunpack.c.h.b16 %v2429
      %v2514 = vunpack.c.l.b16 %v2430
      %v2515 = vunpack.c.h.b16 %v2430
      %v2516 = vunpack.c.l.b16 %v2431
      %v2517 = vunpack.c.h.b16 %v2431
      %v2518 = vunpack.c.l.b16 %v2432
      %v2519 = vunpack.c.h.b16 %v2432
      %v2520 = vunpack.c.l.b16 %v2433
      %v2521 = vunpack.c.h.b16 %v2433
      %v2522 = vunpack.c.l.b16 %v2434
      %v2523 = vunpack.c.h.b16 %v2434
      %v2524 = vunpack.c.l.b16 %v2435
      %v2525 = vunpack.c.h.b16 %v2435
      %v2526 = vunpack.c.l.b16 %v2436
      %v2527 = vunpack.c.h.b16 %v2436
      %v2528 = vunpack.c.l.b16 %v2437
      %v2529 = vunpack.c.h.b16 %v2437
      %v2530 = vunpack.c.l.b16 %v2438
      %v2531 = vunpack.c.h.b16 %v2438
      %v2532 = vunpack.c.l.b16 %v2439
      %v2533 = vunpack.c.h.b16 %v2439
      %v2534 = vunpack.c.l.b16 %v2440
      %v2535 = vunpack.c.h.b16 %v2440
      %v2536 = vunpack.c.l.b16 %v2441
      %v2537 = vunpack.c.h.b16 %v2441
      %v2538 = vpack.c.b16 %v2474, %v2474
      %v2539 = vpack.c.b16 %v2475, %v2475
      %v2540 = vpack.c.b16 %v2476, %v2476
      %v2541 = vpack.c.b16 %v2477, %v2477
      %v2542 = vpack.c.b16 %v2478, %v2478
      %v2543 = vpack.c.b16 %v2479, %v2479
      %v2544 = vpack.c.b16 %v2480, %v2480
      %v2545 = vpack.c.b16 %v2481, %v2481
      %v2546 = vpack.c.b16 %v2482, %v2482
      %v2547 = vpack.c.b16 %v2483, %v2483
      %v2548 = vpack.c.b16 %v2484, %v2484
      %v2549 = vpack.c.b16 %v2485, %v2485
      %v2550 = vpack.c.b16 %v2486, %v2486
      %v2551 = vpack.c.b16 %v2487, %v2487
      %v2552 = vpack.c.b16 %v2488, %v2488
      %v2553 = vpack.c.b16 %v2489, %v2489
      %v2554 = vpack.c.b16 %v2490, %v2490
      %v2555 = vpack.c.b16 %v2491, %v2491
      %v2556 = vpack.c.b16 %v2492, %v2492
      %v2557 = vpack.c.b16 %v2493, %v2493
      %v2558 = vpack.c.b16 %v2494, %v2494
      %v2559 = vpack.c.b16 %v2495, %v2495
      %v2560 = vpack.c.b16 %v2496, %v2496
      %v2561 = vpack.c.b16 %v2497, %v2497
      %v2562 = vpack.c.b16 %v2498, %v2498
      %v2563 = vpack.c.b16 %v2499, %v2499
      %v2564 = vpack.c.b16 %v2500, %v2500
      %v2565 = vpack.c.b16 %v2501, %v2501
      %v2566 = vpack.c.b16 %v2502, %v2502
      %v2567 = vpack.c.b16 %v2503, %v2503
      %v2568 = vpack.c.b16 %v2504, %v2504
      %v2569 = vpack.c.b16 %v2505, %v2505
      %v2570 = vpack.c.b16 %v2506, %v2506
      %v2571 = vpack.c.b16 %v2507, %v2507
      %v2572 = vpack.c.b16 %v2508, %v2508
      %v2573 = vpack.c.b16 %v2509, %v2509
      %v2574 = vpack.c.b16 %v2510, %v2510
      %v2575 = vpack.c.b16 %v2511, %v2511
      %v2576 = vpack.c.b16 %v2512, %v2512
      %v2577 = vpack.c.b16 %v2513, %v2513
      %v2578 = vpack.c.b16 %v2514, %v2514
      %v2579 = vpack.c.b16 %v2515, %v2515
      %v2580 = vpack.c.b16 %v2516, %v2516
      %v2581 = vpack.c.b16 %v2517, %v2517
      %v2582 = vpack.c.b16 %v2518, %v2518
      %v2583 = vpack.c.b16 %v2519, %v2519
      %v2584 = vpack.c.b16 %v2520, %v2520
      %v2585 = vpack.c.b16 %v2521, %v2521
      %v2586 = vpack.c.b16 %v2522, %v2522
      %v2587 = vpack.c.b16 %v2523, %v2523
      %v2588 = vpack.c.b16 %v2524, %v2524
      %v2589 = vpack.c.b16 %v2525, %v2525
      %v2590 = vpack.c.b16 %v2526, %v2526
      %v2591 = vpack.c.b16 %v2527, %v2527
      %v2592 = vpack.c.b16 %v2528, %v2528
      %v2593 = vpack.c.b16 %v2529, %v2529
      %v2594 = vpack.c.b16 %v2530, %v2530
      %v2595 = vpack.c.b16 %v2531, %v2531
      %v2596 = vpack.c.b16 %v2532, %v2532
      %v2597 = vpack.c.b16 %v2533, %v2533
      %v2598 = vpack.c.b16 %v2534, %v2534
      %v2599 = vpack.c.b16 %v2535, %v2535
      %v2600 = vpack.c.b16 %v2536, %v2536
      %v2601 = vpack.c.b16 %v2537, %v2537
      %vm2666 = vcmask 125952
      %2667 = vst.msk [vmem:[%s199] sm:$0xf] %vm2666, %v2538
      %2668 = vst.msk [vmem:[%s199 + $0x4] sm:$0xf] %vm2666, %v2539
      %2669 = vst.msk [vmem:[%s199 + $0x8] sm:$0xf] %vm2666, %v2540
      %2670 = vst.msk [vmem:[%s199 + $0xc] sm:$0xf] %vm2666, %v2541
      %2671 = vst.msk [vmem:[%s199 + $0x10] sm:$0xf] %vm2666, %v2542
      %2672 = vst.msk [vmem:[%s199 + $0x14] sm:$0xf] %vm2666, %v2543
      %2673 = vst.msk [vmem:[%s199 + $0x18] sm:$0xf] %vm2666, %v2544
      %2674 = vst.msk [vmem:[%s199 + $0x1c] sm:$0xf] %vm2666, %v2545
      %2675 = vst.msk [vmem:[%s199 + $0x20] sm:$0xf] %vm2666, %v2546
      %2676 = vst.msk [vmem:[%s199 + $0x24] sm:$0xf] %vm2666, %v2547
      %2677 = vst.msk [vmem:[%s199 + $0x28] sm:$0xf] %vm2666, %v2548
      %2678 = vst.msk [vmem:[%s199 + $0x2c] sm:$0xf] %vm2666, %v2549
      %2679 = vst.msk [vmem:[%s199 + $0x30] sm:$0xf] %vm2666, %v2550
      %2680 = vst.msk [vmem:[%s199 + $0x34] sm:$0xf] %vm2666, %v2551
      %2681 = vst.msk [vmem:[%s199 + $0x38] sm:$0xf] %vm2666, %v2552
      %2682 = vst.msk [vmem:[%s199 + $0x3c] sm:$0xf] %vm2666, %v2553
      %2683 = vst.msk [vmem:[%s199 + $0x40] sm:$0xf] %vm2666, %v2554
      %2684 = vst.msk [vmem:[%s199 + $0x44] sm:$0xf] %vm2666, %v2555
      %2685 = vst.msk [vmem:[%s199 + $0x48] sm:$0xf] %vm2666, %v2556
      %2686 = vst.msk [vmem:[%s199 + $0x4c] sm:$0xf] %vm2666, %v2557
      %2687 = vst.msk [vmem:[%s199 + $0x50] sm:$0xf] %vm2666, %v2558
      %2688 = vst.msk [vmem:[%s199 + $0x54] sm:$0xf] %vm2666, %v2559
      %2689 = vst.msk [vmem:[%s199 + $0x58] sm:$0xf] %vm2666, %v2560
      %2690 = vst.msk [vmem:[%s199 + $0x5c] sm:$0xf] %vm2666, %v2561
      %2691 = vst.msk [vmem:[%s199 + $0x60] sm:$0xf] %vm2666, %v2562
      %2692 = vst.msk [vmem:[%s199 + $0x64] sm:$0xf] %vm2666, %v2563
      %2693 = vst.msk [vmem:[%s199 + $0x68] sm:$0xf] %vm2666, %v2564
      %2694 = vst.msk [vmem:[%s199 + $0x6c] sm:$0xf] %vm2666, %v2565
      %2695 = vst.msk [vmem:[%s199 + $0x70] sm:$0xf] %vm2666, %v2566
      %2696 = vst.msk [vmem:[%s199 + $0x74] sm:$0xf] %vm2666, %v2567
      %2697 = vst.msk [vmem:[%s199 + $0x78] sm:$0xf] %vm2666, %v2568
      %2698 = vst.msk [vmem:[%s199 + $0x7c] sm:$0xf] %vm2666, %v2569
      %2699 = vst.msk [vmem:[%s199 + $0x80] sm:$0xf] %vm2666, %v2570
      %2700 = vst.msk [vmem:[%s199 + $0x84] sm:$0xf] %vm2666, %v2571
      %2701 = vst.msk [vmem:[%s199 + $0x88] sm:$0xf] %vm2666, %v2572
      %2702 = vst.msk [vmem:[%s199 + $0x8c] sm:$0xf] %vm2666, %v2573
      %2703 = vst.msk [vmem:[%s199 + $0x90] sm:$0xf] %vm2666, %v2574
      %2704 = vst.msk [vmem:[%s199 + $0x94] sm:$0xf] %vm2666, %v2575
      %2705 = vst.msk [vmem:[%s199 + $0x98] sm:$0xf] %vm2666, %v2576
      %2706 = vst.msk [vmem:[%s199 + $0x9c] sm:$0xf] %vm2666, %v2577
      %2707 = vst.msk [vmem:[%s199 + $0xa0] sm:$0xf] %vm2666, %v2578
      %2708 = vst.msk [vmem:[%s199 + $0xa4] sm:$0xf] %vm2666, %v2579
      %2709 = vst.msk [vmem:[%s199 + $0xa8] sm:$0xf] %vm2666, %v2580
      %2710 = vst.msk [vmem:[%s199 + $0xac] sm:$0xf] %vm2666, %v2581
      %2711 = vst.msk [vmem:[%s199 + $0xb0] sm:$0xf] %vm2666, %v2582
      %2712 = vst.msk [vmem:[%s199 + $0xb4] sm:$0xf] %vm2666, %v2583
      %2713 = vst.msk [vmem:[%s199 + $0xb8] sm:$0xf] %vm2666, %v2584
      %2714 = vst.msk [vmem:[%s199 + $0xbc] sm:$0xf] %vm2666, %v2585
      %2715 = vst.msk [vmem:[%s199 + $0xc0] sm:$0xf] %vm2666, %v2586
      %2716 = vst.msk [vmem:[%s199 + $0xc4] sm:$0xf] %vm2666, %v2587
      %2717 = vst.msk [vmem:[%s199 + $0xc8] sm:$0xf] %vm2666, %v2588
      %2718 = vst.msk [vmem:[%s199 + $0xcc] sm:$0xf] %vm2666, %v2589
      %2719 = vst.msk [vmem:[%s199 + $0xd0] sm:$0xf] %vm2666, %v2590
      %2720 = vst.msk [vmem:[%s199 + $0xd4] sm:$0xf] %vm2666, %v2591
      %2721 = vst.msk [vmem:[%s199 + $0xd8] sm:$0xf] %vm2666, %v2592
      %2722 = vst.msk [vmem:[%s199 + $0xdc] sm:$0xf] %vm2666, %v2593
      %2723 = vst.msk [vmem:[%s199 + $0xe0] sm:$0xf] %vm2666, %v2594
      %2724 = vst.msk [vmem:[%s199 + $0xe4] sm:$0xf] %vm2666, %v2595
      %2725 = vst.msk [vmem:[%s199 + $0xe8] sm:$0xf] %vm2666, %v2596
      %2726 = vst.msk [vmem:[%s199 + $0xec] sm:$0xf] %vm2666, %v2597
      %2727 = vst.msk [vmem:[%s199 + $0xf0] sm:$0xf] %vm2666, %v2598
      %2728 = vst.msk [vmem:[%s199 + $0xf4] sm:$0xf] %vm2666, %v2599
      %2729 = vst.msk [vmem:[%s199 + $0xf8] sm:$0xf] %vm2666, %v2600
      %2730 = vst.msk [vmem:[%s199 + $0xfc] sm:$0xf] %vm2666, %v2601
      %s2731 = smul.u32 64, %s15
      %p2732 = scmp.lt.s32.totalorder %s2731, 127
      %s2733 = scalar_select %p2732, %s2731, 127
      %s2734 = smul.addr %s2733, 4
      %s2735 = scalar_lea.vmem %s4, %s2734
      // Predicated region
      $region37: #{fno3d_forward.8} parent=35 // pred_check
        %p2736 = pneg %p122
      $region38: #{fno3d_forward.8} parent=35 // pred_check_branch
        %2738 = sbr.rel (%p2736) target = $region40
      $region39: #{fno3d_forward.8} parent=35 // pred_region
        %s2739 = smul.u32 64, %s15
      $region40: #{fno3d_forward.8} parent=35 // pred_fallthru
        _
    $region36: #{fno3d_forward.8} parent=5 // pred_fallthru
      _
    %p2740 = scmp.le.s32.totalorder 2, %s10
    // Predicated region
    $region41: #{fno3d_forward.8} parent=5 // pred_check
      %p2741 = pneg %p2740
    $region42: #{fno3d_forward.8} parent=5 // pred_check_branch
      %2743 = sbr.rel (%p2741) target = $region44
    $region43: #{fno3d_forward.8} parent=5 // pred_region
      %s2744 = ssub.s32 %s10, 2
      // Predicated region
      $region45: #{fno3d_forward.8} parent=43 // pred_check
        %p2745 = pneg %p128
      $region46: #{fno3d_forward.8} parent=43 // pred_check_branch
        %2747 = sbr.rel (%p2745) target = $region48
      $region47: #{fno3d_forward.8} parent=43 // pred_region
        %s2748 = smul.u32 64, %s16
        %p2749 = scmp.lt.s32.totalorder %s2748, 127
        %s2750 = scalar_select %p2749, %s2748, 127
        %s2751 = smul.addr %s2750, 4
        %s2752 = scalar_lea.vmem %s4, %s2751
      $region48: #{fno3d_forward.8} parent=43 // pred_fallthru
        _
    $region44: #{fno3d_forward.8} parent=5 // pred_fallthru
      _
  $region6: #{fno3d_forward.8} parent=0 // loop_footer
    %s14 = sadd.s32 1, %s10
  $region7: #{fno3d_forward.8} parent=0 // loop_footer_branch
    %9 = sbr.rel target = $region3
  $region8: #{fno3d_forward.8} parent=0 // loop_exit
    _

// kernel: fno3d_forward.9
$region0: #{fno3d_forward.9}
  #allocation0 [shape = 'u32[]', space=smem, size = 0x4, offset = 0x4, fixed_abs, tag = 'smem constant byte address 0x4 - core index']
  #allocation1 [shape = 'u32[144,128]{1,0:T(1,128)}', space=vmem, size = 0x12000, scoped, tag = 'internal scratch']
  %s0 = inlined_call_operand.vmem [shape: bf16[4,8,2,128], index: 0, kind: input, shape index: {}]
  %s1 = inlined_call_operand.vmem [shape: bf16[4,8,2,128], index: 1, kind: input, shape index: {}]
  %s2 = inlined_call_operand.vmem [shape: bf16[4,8,128,128], index: 2, kind: input, shape index: {}]
  %s3 = inlined_call_operand.vmem [shape: bf16[4,8,128,128], index: 3, kind: input, shape index: {}]
  %s4 = inlined_call_operand.vmem [shape: f32[4,8,2,128], index: 4, kind: output, shape index: {0}]
  %s5 = inlined_call_operand.vmem [shape: f32[4,8,2,128], index: 5, kind: output, shape index: {1}]
  %6 = xla_tuple %s4, %s5
  %s7 = sld [smem:[#allocation0]]
  $region57: #{fno3d_forward.9} parent=0
    _
  %s9 = ssub.s32 1, %s7
  %s10 = scalar_select 0, %s9, %s7
  loop: start=0, step=1, limit=6
  $region2: #{fno3d_forward.9} parent=0 // loop_pre_header
    _
  $region3: #{fno3d_forward.9} parent=0 // loop_header
    %s12 = sphi 0, %s16
    %p13 = scmp.ge.s32.totalorder %s12, 6
    %s19 = sphi 0, %s31
    %s20 = sphi 0, %s27
    %s21 = sphi 0, %s19
    %s22 = sphi 0, %s20
    %s23 = sphi 0, %s21
    %s24 = sphi 0, %s22
    %s36 = sphi 0, %s38
    %s39 = sphi 0, %s36
    %s40 = sphi 0, %s39
    %s56 = sphi 0, %s40
    %s64 = sphi 0, %s66
    %s67 = sphi 0, %s64
    %s68 = sphi 0, %s67
    %s84 = sphi 0, %s68
    %s92 = sphi 0, %s94
    %s95 = sphi 0, %s92
    %s96 = sphi 0, %s95
    %s112 = sphi 0, %s96
    %s120 = sphi 0, %s122
    %s123 = sphi 0, %s120
    %s124 = sphi 0, %s123
    %s140 = sphi 0, %s124
    %s148 = sphi 0, %s150
    %s151 = sphi 0, %s148
    %s152 = sphi 0, %s151
    %s168 = sphi 0, %s152
    %s176 = sphi 0, %s178
    %s179 = sphi 0, %s176
    %s180 = sphi 0, %s179
    %s196 = sphi 0, %s180
  $region4: #{fno3d_forward.9} parent=0 // loop_header_branch
    %15 = sbr.rel (%p13) target = $region8
  $region5: #{fno3d_forward.9} parent=0 // loop_body
    %s17 = ssub.s32 %s12, 1
    %s18 = ssub.s32 %s12, 2
    %s25 = sadd.s32 1, %s20
    %p26 = scmp.ge.s32.totalorder %s25, 1
    %s27 = scalar_select %p26, 0, %s25
    %s28 = sadd.s32 1, %s19
    %s29 = scalar_select %p26, %s28, %s19
    %p30 = scmp.ge.s32.totalorder %s29, 4
    %s31 = scalar_select %p30, 0, %s29
    %s32 = ssub.s32 %s19, %s31
    %s33 = ssub.s32 %s20, %s27
    %s34 = sor.u32 %s32, %s33
    %p35 = scmp.eq.s32.totalorder %s34, 0
    %s37 = sadd.s32 %s36, 1
    %s38 = scalar_select %p35, %s36, %s37
    %p41 = pneg %p35
    %p42 = scmp.eq.s32.totalorder %s12, 3
    %p43 = por %p41, %p42
    %p44 = scmp.ne.s32.totalorder %s36, %s39
    %p45 = scmp.eq.s32.totalorder %s12, 0
    %p46 = por %p44, %p45
    %p47 = scmp.ne.s32.totalorder %s36, %s39
    %p48 = scmp.eq.s32.totalorder %s17, 3
    %p49 = por %p47, %p48
    %p50 = scmp.ne.s32.totalorder %s39, %s40
    %p51 = scmp.eq.s32.totalorder %s17, 0
    %p52 = por %p50, %p51
    %p53 = scmp.ne.s32.totalorder %s39, %s40
    %p54 = scmp.eq.s32.totalorder %s18, 3
    %p55 = por %p53, %p54
    %p57 = scmp.ne.s32.totalorder %s40, %s56
    %p58 = scmp.eq.s32.totalorder %s18, 0
    %p59 = por %p57, %p58
    %s60 = ssub.s32 %s19, %s31
    %s61 = ssub.s32 %s20, %s27
    %s62 = sor.u32 %s60, %s61
    %p63 = scmp.eq.s32.totalorder %s62, 0
    %s65 = sadd.s32 %s64, 1
    %s66 = scalar_select %p63, %s64, %s65
    %p69 = pneg %p63
    %p70 = scmp.eq.s32.totalorder %s12, 3
    %p71 = por %p69, %p70
    %p72 = scmp.ne.s32.totalorder %s64, %s67
    %p73 = scmp.eq.s32.totalorder %s12, 0
    %p74 = por %p72, %p73
    %p75 = scmp.ne.s32.totalorder %s64, %s67
    %p76 = scmp.eq.s32.totalorder %s17, 3
    %p77 = por %p75, %p76
    %p78 = scmp.ne.s32.totalorder %s67, %s68
    %p79 = scmp.eq.s32.totalorder %s17, 0
    %p80 = por %p78, %p79
    %p81 = scmp.ne.s32.totalorder %s67, %s68
    %p82 = scmp.eq.s32.totalorder %s18, 3
    %p83 = por %p81, %p82
    %p85 = scmp.ne.s32.totalorder %s68, %s84
    %p86 = scmp.eq.s32.totalorder %s18, 0
    %p87 = por %p85, %p86
    %s88 = ssub.s32 %s19, %s31
    %s89 = ssub.s32 %s20, %s27
    %s90 = sor.u32 %s88, %s89
    %p91 = scmp.eq.s32.totalorder %s90, 0
    %s93 = sadd.s32 %s92, 1
    %s94 = scalar_select %p91, %s92, %s93
    %p97 = pneg %p91
    %p98 = scmp.eq.s32.totalorder %s12, 3
    %p99 = por %p97, %p98
    %p100 = scmp.ne.s32.totalorder %s92, %s95
    %p101 = scmp.eq.s32.totalorder %s12, 0
    %p102 = por %p100, %p101
    %p103 = scmp.ne.s32.totalorder %s92, %s95
    %p104 = scmp.eq.s32.totalorder %s17, 3
    %p105 = por %p103, %p104
    %p106 = scmp.ne.s32.totalorder %s95, %s96
    %p107 = scmp.eq.s32.totalorder %s17, 0
    %p108 = por %p106, %p107
    %p109 = scmp.ne.s32.totalorder %s95, %s96
    %p110 = scmp.eq.s32.totalorder %s18, 3
    %p111 = por %p109, %p110
    %p113 = scmp.ne.s32.totalorder %s96, %s112
    %p114 = scmp.eq.s32.totalorder %s18, 0
    %p115 = por %p113, %p114
    %s116 = ssub.s32 %s19, %s31
    %s117 = ssub.s32 %s20, %s27
    %s118 = sor.u32 %s116, %s117
    %p119 = scmp.eq.s32.totalorder %s118, 0
    %s121 = sadd.s32 %s120, 1
    %s122 = scalar_select %p119, %s120, %s121
    %p125 = pneg %p119
    %p126 = scmp.eq.s32.totalorder %s12, 3
    %p127 = por %p125, %p126
    %p128 = scmp.ne.s32.totalorder %s120, %s123
    %p129 = scmp.eq.s32.totalorder %s12, 0
    %p130 = por %p128, %p129
    %p131 = scmp.ne.s32.totalorder %s120, %s123
    %p132 = scmp.eq.s32.totalorder %s17, 3
    %p133 = por %p131, %p132
    %p134 = scmp.ne.s32.totalorder %s123, %s124
    %p135 = scmp.eq.s32.totalorder %s17, 0
    %p136 = por %p134, %p135
    %p137 = scmp.ne.s32.totalorder %s123, %s124
    %p138 = scmp.eq.s32.totalorder %s18, 3
    %p139 = por %p137, %p138
    %p141 = scmp.ne.s32.totalorder %s124, %s140
    %p142 = scmp.eq.s32.totalorder %s18, 0
    %p143 = por %p141, %p142
    %s144 = ssub.s32 %s19, %s31
    %s145 = ssub.s32 %s20, %s27
    %s146 = sor.u32 %s144, %s145
    %p147 = scmp.eq.s32.totalorder %s146, 0
    %s149 = sadd.s32 %s148, 1
    %s150 = scalar_select %p147, %s148, %s149
    %p153 = pneg %p147
    %p154 = scmp.eq.s32.totalorder %s12, 3
    %p155 = por %p153, %p154
    %p156 = scmp.ne.s32.totalorder %s148, %s151
    %p157 = scmp.eq.s32.totalorder %s12, 0
    %p158 = por %p156, %p157
    %p159 = scmp.ne.s32.totalorder %s148, %s151
    %p160 = scmp.eq.s32.totalorder %s17, 3
    %p161 = por %p159, %p160
    %p162 = scmp.ne.s32.totalorder %s151, %s152
    %p163 = scmp.eq.s32.totalorder %s17, 0
    %p164 = por %p162, %p163
    %p165 = scmp.ne.s32.totalorder %s151, %s152
    %p166 = scmp.eq.s32.totalorder %s18, 3
    %p167 = por %p165, %p166
    %p169 = scmp.ne.s32.totalorder %s152, %s168
    %p170 = scmp.eq.s32.totalorder %s18, 0
    %p171 = por %p169, %p170
    %s172 = ssub.s32 %s19, %s31
    %s173 = ssub.s32 %s20, %s27
    %s174 = sor.u32 %s172, %s173
    %p175 = scmp.eq.s32.totalorder %s174, 0
    %s177 = sadd.s32 %s176, 1
    %s178 = scalar_select %p175, %s176, %s177
    %p181 = pneg %p175
    %p182 = scmp.eq.s32.totalorder %s12, 3
    %p183 = por %p181, %p182
    %p184 = scmp.ne.s32.totalorder %s176, %s179
    %p185 = scmp.eq.s32.totalorder %s12, 0
    %p186 = por %p184, %p185
    %p187 = scmp.ne.s32.totalorder %s176, %s179
    %p188 = scmp.eq.s32.totalorder %s17, 3
    %p189 = por %p187, %p188
    %p190 = scmp.ne.s32.totalorder %s179, %s180
    %p191 = scmp.eq.s32.totalorder %s17, 0
    %p192 = por %p190, %p191
    %p193 = scmp.ne.s32.totalorder %s179, %s180
    %p194 = scmp.eq.s32.totalorder %s18, 3
    %p195 = por %p193, %p194
    %p197 = scmp.ne.s32.totalorder %s180, %s196
    %p198 = scmp.eq.s32.totalorder %s18, 0
    %p199 = por %p197, %p198
    %p200 = scmp.le.s32.totalorder 1, %s12
    %p201 = scmp.lt.s32.totalorder %s12, 5
    %p202 = pnand %p200, %p201
    %p203 = pneg %p202
    // Predicated region
    $region9: #{fno3d_forward.9} parent=5 // pred_check
      _
    $region10: #{fno3d_forward.9} parent=5 // pred_check_branch
      %205 = sbr.rel (%p202) target = $region12
    $region11: #{fno3d_forward.9} parent=5 // pred_region
      %s206 = ssub.s32 %s12, 1
    $region12: #{fno3d_forward.9} parent=5 // pred_fallthru
      _
    %p207 = scmp.lt.s32.totalorder %s12, 4
    // Predicated region
    $region13: #{fno3d_forward.9} parent=5 // pred_check
      %p208 = pneg %p207
    $region14: #{fno3d_forward.9} parent=5 // pred_check_branch
      %210 = sbr.rel (%p208) target = $region16
    $region15: #{fno3d_forward.9} parent=5 // pred_region
      // Predicated region
      $region17: #{fno3d_forward.9} parent=15 // pred_check
        %p211 = pneg %p46
      $region18: #{fno3d_forward.9} parent=15 // pred_check_branch
        %213 = sbr.rel (%p211) target = $region20
      $region19: #{fno3d_forward.9} parent=15 // pred_region
        %s214 = smul.u32 8, %s20
        %p215 = scmp.lt.s32.totalorder %s19, 3
        %s216 = scalar_select %p215, %s19, 3
        %p217 = scmp.lt.s32.totalorder %s214, 7
        %s218 = scalar_select %p217, %s214, 7
        %s219 = smul.addr %s216, 8
        %s220 = sadd.s32 %s218, %s219
        %s221 = scalar_lea.vmem %s0, %s220
        %s222 = smul.u32 8, %s20
      $region20: #{fno3d_forward.9} parent=15 // pred_fallthru
        _
      // Predicated region
      $region21: #{fno3d_forward.9} parent=15 // pred_check
        %p223 = pneg %p74
      $region22: #{fno3d_forward.9} parent=15 // pred_check_branch
        %225 = sbr.rel (%p223) target = $region24
      $region23: #{fno3d_forward.9} parent=15 // pred_region
        %s226 = smul.u32 8, %s20
        %p227 = scmp.lt.s32.totalorder %s19, 3
        %s228 = scalar_select %p227, %s19, 3
        %p229 = scmp.lt.s32.totalorder %s226, 7
        %s230 = scalar_select %p229, %s226, 7
        %s231 = smul.addr %s228, 8
        %s232 = sadd.s32 %s230, %s231
        %s233 = scalar_lea.vmem %s1, %s232
        %s234 = smul.u32 8, %s20
      $region24: #{fno3d_forward.9} parent=15 // pred_fallthru
        _
      // Predicated region
      $region25: #{fno3d_forward.9} parent=15 // pred_check
        %p235 = pneg %p102
      $region26: #{fno3d_forward.9} parent=15 // pred_check_branch
        %237 = sbr.rel (%p235) target = $region28
      $region27: #{fno3d_forward.9} parent=15 // pred_region
        %s238 = smul.u32 8, %s20
        %p239 = scmp.lt.s32.totalorder %s19, 3
        %s240 = scalar_select %p239, %s19, 3
        %p241 = scmp.lt.s32.totalorder %s238, 7
        %s242 = scalar_select %p241, %s238, 7
        %s243 = smul.addr %s242, 16
        %s244 = smul.addr %s240, 128
        %s245 = sadd.s32 %s243, %s244
        %s246 = smul.addr %s245, 4
        %s247 = scalar_lea.vmem %s2, %s246
        %s248 = smul.u32 8, %s20
      $region28: #{fno3d_forward.9} parent=15 // pred_fallthru
        _
      // Predicated region
      $region29: #{fno3d_forward.9} parent=15 // pred_check
        %p249 = pneg %p130
      $region30: #{fno3d_forward.9} parent=15 // pred_check_branch
        %251 = sbr.rel (%p249) target = $region32
      $region31: #{fno3d_forward.9} parent=15 // pred_region
        %s252 = smul.u32 8, %s20
        %p253 = scmp.lt.s32.totalorder %s19, 3
        %s254 = scalar_select %p253, %s19, 3
        %p255 = scmp.lt.s32.totalorder %s252, 7
        %s256 = scalar_select %p255, %s252, 7
        %s257 = smul.addr %s256, 16
        %s258 = smul.addr %s254, 128
        %s259 = sadd.s32 %s257, %s258
        %s260 = smul.addr %s259, 4
        %s261 = scalar_lea.vmem %s3, %s260
        %s262 = smul.u32 8, %s20
      $region32: #{fno3d_forward.9} parent=15 // pred_fallthru
        _
    $region16: #{fno3d_forward.9} parent=5 // pred_fallthru
      _
    %p263 = scmp.le.s32.totalorder 1, %s12
    %p264 = scmp.lt.s32.totalorder %s12, 5
    %p265 = pnand %p263, %p264
    %p266 = pneg %p265
    // Predicated region
    $region33: #{fno3d_forward.9} parent=5 // pred_check
      _
    $region34: #{fno3d_forward.9} parent=5 // pred_check_branch
      %268 = sbr.rel (%p265) target = $region36
    $region35: #{fno3d_forward.9} parent=5 // pred_region
      %s269 = ssub.s32 %s12, 1
      %s270 = smul.u32 8, %s22
      %p271 = scmp.lt.s32.totalorder %s21, 3
      %s272 = scalar_select %p271, %s21, 3
      %p273 = scmp.lt.s32.totalorder %s270, 7
      %s274 = scalar_select %p273, %s270, 7
      %s275 = smul.addr %s272, 8
      %s276 = sadd.s32 %s274, %s275
      %s277 = scalar_lea.vmem %s0, %s276
      %p278 = pneg %p52
      %p279 = pneg %p49
      %s280 = smul.u32 8, %s22
      %p281 = scmp.lt.s32.totalorder %s21, 3
      %s282 = scalar_select %p281, %s21, 3
      %p283 = scmp.lt.s32.totalorder %s280, 7
      %s284 = scalar_select %p283, %s280, 7
      %s285 = smul.addr %s282, 8
      %s286 = sadd.s32 %s284, %s285
      %s287 = scalar_lea.vmem %s1, %s286
      %p288 = pneg %p80
      %p289 = pneg %p77
      %s290 = smul.u32 8, %s22
      %p291 = scmp.lt.s32.totalorder %s21, 3
      %s292 = scalar_select %p291, %s21, 3
      %p293 = scmp.lt.s32.totalorder %s290, 7
      %s294 = scalar_select %p293, %s290, 7
      %s295 = smul.addr %s294, 16
      %s296 = smul.addr %s292, 128
      %s297 = sadd.s32 %s295, %s296
      %s298 = smul.addr %s297, 4
      %s299 = scalar_lea.vmem %s2, %s298
      %p300 = pneg %p108
      %p301 = pneg %p105
      %s302 = smul.u32 8, %s22
      %p303 = scmp.lt.s32.totalorder %s21, 3
      %s304 = scalar_select %p303, %s21, 3
      %p305 = scmp.lt.s32.totalorder %s302, 7
      %s306 = scalar_select %p305, %s302, 7
      %s307 = smul.addr %s306, 16
      %s308 = smul.addr %s304, 128
      %s309 = sadd.s32 %s307, %s308
      %s310 = smul.addr %s309, 4
      %s311 = scalar_lea.vmem %s3, %s310
      %p312 = pneg %p136
      %p313 = pneg %p133
      %p314 = pneg %p164
      %p315 = pneg %p161
      %s316 = smul.u32 8, %s22
      %p317 = scmp.lt.s32.totalorder %s21, 3
      %s318 = scalar_select %p317, %s21, 3
      %p319 = scmp.lt.s32.totalorder %s316, 7
      %s320 = scalar_select %p319, %s316, 7
      %s321 = smul.addr %s318, 8
      %s322 = sadd.s32 %s320, %s321
      %s323 = smul.addr %s322, 2
      %s324 = scalar_lea.vmem %s4, %s323
      %p325 = pneg %p192
      %p326 = pneg %p189
      %s327 = smul.u32 8, %s22
      %p328 = scmp.lt.s32.totalorder %s21, 3
      %s329 = scalar_select %p328, %s21, 3
      %p330 = scmp.lt.s32.totalorder %s327, 7
      %s331 = scalar_select %p330, %s327, 7
      %s332 = smul.addr %s329, 8
      %s333 = sadd.s32 %s331, %s332
      %s334 = smul.addr %s333, 2
      %s335 = scalar_lea.vmem %s5, %s334
      %s336 = smul.u32 8, %s22
      %p337 = scmp.lt.s32.totalorder %s21, 3
      %s338 = scalar_select %p337, %s21, 3
      %p339 = scmp.lt.s32.totalorder %s336, 7
      %s340 = scalar_select %p339, %s336, 7
      %s341 = smul.addr %s338, 8
      %s342 = sadd.s32 %s340, %s341
      %s343 = scalar_lea.vmem %s0, %s342
      %s344 = smul.u32 8, %s22
      %s345 = smul.u32 8, %s22
      %p346 = scmp.lt.s32.totalorder %s21, 3
      %s347 = scalar_select %p346, %s21, 3
      %p348 = scmp.lt.s32.totalorder %s345, 7
      %s349 = scalar_select %p348, %s345, 7
      %s350 = smul.addr %s347, 8
      %s351 = sadd.s32 %s349, %s350
      %s352 = scalar_lea.vmem %s1, %s351
      %s353 = smul.u32 8, %s22
      %s354 = smul.u32 8, %s22
      %p355 = scmp.lt.s32.totalorder %s21, 3
      %s356 = scalar_select %p355, %s21, 3
      %p357 = scmp.lt.s32.totalorder %s354, 7
      %s358 = scalar_select %p357, %s354, 7
      %s359 = smul.addr %s358, 16
      %s360 = smul.addr %s356, 128
      %s361 = sadd.s32 %s359, %s360
      %s362 = smul.addr %s361, 4
      %s363 = scalar_lea.vmem %s2, %s362
      %s364 = smul.u32 8, %s22
      %s365 = smul.u32 8, %s22
      %p366 = scmp.lt.s32.totalorder %s21, 3
      %s367 = scalar_select %p366, %s21, 3
      %p368 = scmp.lt.s32.totalorder %s365, 7
      %s369 = scalar_select %p368, %s365, 7
      %s370 = smul.addr %s369, 16
      %s371 = smul.addr %s367, 128
      %s372 = sadd.s32 %s370, %s371
      %s373 = smul.addr %s372, 4
      %s374 = scalar_lea.vmem %s3, %s373
      %s375 = smul.u32 8, %s22
      %s376 = smul.u32 8, %s22
      %p377 = scmp.lt.s32.totalorder %s21, 3
      %s378 = scalar_select %p377, %s21, 3
      %p379 = scmp.lt.s32.totalorder %s376, 7
      %s380 = scalar_select %p379, %s376, 7
      %s381 = smul.addr %s378, 8
      %s382 = sadd.s32 %s380, %s381
      %s383 = smul.addr %s382, 2
      %s384 = scalar_lea.vmem %s4, %s383
      %s385 = smul.u32 8, %s22
      %s386 = smul.u32 8, %s22
      %p387 = scmp.lt.s32.totalorder %s21, 3
      %s388 = scalar_select %p387, %s21, 3
      %p389 = scmp.lt.s32.totalorder %s386, 7
      %s390 = scalar_select %p389, %s386, 7
      %s391 = smul.addr %s388, 8
      %s392 = sadd.s32 %s390, %s391
      %s393 = smul.addr %s392, 2
      %s394 = scalar_lea.vmem %s5, %s393
      %s395 = smul.u32 8, %s22
      %v397 = vld [vmem:[%s343] sm:$0x1]
      %v398 = vld [vmem:[%s343 + $0x1] sm:$0x1]
      %v399 = vld [vmem:[%s343 + $0x2] sm:$0x1]
      %v400 = vld [vmem:[%s343 + $0x3] sm:$0x1]
      %v401 = vld [vmem:[%s343 + $0x4] sm:$0x1]
      %v402 = vld [vmem:[%s343 + $0x5] sm:$0x1]
      %v403 = vld [vmem:[%s343 + $0x6] sm:$0x1]
      %v404 = vld [vmem:[%s343 + $0x7] sm:$0x1]
      %v405 = vld [vmem:[%s352] sm:$0x1]
      %v406 = vld [vmem:[%s352 + $0x1] sm:$0x1]
      %v407 = vld [vmem:[%s352 + $0x2] sm:$0x1]
      %v408 = vld [vmem:[%s352 + $0x3] sm:$0x1]
      %v409 = vld [vmem:[%s352 + $0x4] sm:$0x1]
      %v410 = vld [vmem:[%s352 + $0x5] sm:$0x1]
      %v411 = vld [vmem:[%s352 + $0x6] sm:$0x1]
      %v412 = vld [vmem:[%s352 + $0x7] sm:$0x1]
      %v413 = vld [vmem:[%s363] sm:$0xf]
      %v414 = vld [vmem:[%s363 + $0x4] sm:$0xf]
      %v415 = vld [vmem:[%s363 + $0x8] sm:$0xf]
      %v416 = vld [vmem:[%s363 + $0xc] sm:$0xf]
      %v417 = vld [vmem:[%s363 + $0x10] sm:$0xf]
      %v418 = vld [vmem:[%s363 + $0x14] sm:$0xf]
      %v419 = vld [vmem:[%s363 + $0x18] sm:$0xf]
      %v420 = vld [vmem:[%s363 + $0x1c] sm:$0xf]
      %v421 = vld [vmem:[%s363 + $0x20] sm:$0xf]
      %v422 = vld [vmem:[%s363 + $0x24] sm:$0xf]
      %v423 = vld [vmem:[%s363 + $0x28] sm:$0xf]
      %v424 = vld [vmem:[%s363 + $0x2c] sm:$0xf]
      %v425 = vld [vmem:[%s363 + $0x30] sm:$0xf]
      %v426 = vld [vmem:[%s363 + $0x34] sm:$0xf]
      %v427 = vld [vmem:[%s363 + $0x38] sm:$0xf]
      %v428 = vld [vmem:[%s363 + $0x3c] sm:$0xf]
      %v429 = vld [vmem:[%s363 + $0x40] sm:$0xf]
      %v430 = vld [vmem:[%s363 + $0x44] sm:$0xf]
      %v431 = vld [vmem:[%s363 + $0x48] sm:$0xf]
      %v432 = vld [vmem:[%s363 + $0x4c] sm:$0xf]
      %v433 = vld [vmem:[%s363 + $0x50] sm:$0xf]
      %v434 = vld [vmem:[%s363 + $0x54] sm:$0xf]
      %v435 = vld [vmem:[%s363 + $0x58] sm:$0xf]
      %v436 = vld [vmem:[%s363 + $0x5c] sm:$0xf]
      %v437 = vld [vmem:[%s363 + $0x60] sm:$0xf]
      %v438 = vld [vmem:[%s363 + $0x64] sm:$0xf]
      %v439 = vld [vmem:[%s363 + $0x68] sm:$0xf]
      %v440 = vld [vmem:[%s363 + $0x6c] sm:$0xf]
      %v441 = vld [vmem:[%s363 + $0x70] sm:$0xf]
      %v442 = vld [vmem:[%s363 + $0x74] sm:$0xf]
      %v443 = vld [vmem:[%s363 + $0x78] sm:$0xf]
      %v444 = vld [vmem:[%s363 + $0x7c] sm:$0xf]
      %v445 = vld [vmem:[%s363 + $0x80] sm:$0xf]
      %v446 = vld [vmem:[%s363 + $0x84] sm:$0xf]
      %v447 = vld [vmem:[%s363 + $0x88] sm:$0xf]
      %v448 = vld [vmem:[%s363 + $0x8c] sm:$0xf]
      %v449 = vld [vmem:[%s363 + $0x90] sm:$0xf]
      %v450 = vld [vmem:[%s363 + $0x94] sm:$0xf]
      %v451 = vld [vmem:[%s363 + $0x98] sm:$0xf]
      %v452 = vld [vmem:[%s363 + $0x9c] sm:$0xf]
      %v453 = vld [vmem:[%s363 + $0xa0] sm:$0xf]
      %v454 = vld [vmem:[%s363 + $0xa4] sm:$0xf]
      %v455 = vld [vmem:[%s363 + $0xa8] sm:$0xf]
      %v456 = vld [vmem:[%s363 + $0xac] sm:$0xf]
      %v457 = vld [vmem:[%s363 + $0xb0] sm:$0xf]
      %v458 = vld [vmem:[%s363 + $0xb4] sm:$0xf]
      %v459 = vld [vmem:[%s363 + $0xb8] sm:$0xf]
      %v460 = vld [vmem:[%s363 + $0xbc] sm:$0xf]
      %v461 = vld [vmem:[%s363 + $0xc0] sm:$0xf]
      %v462 = vld [vmem:[%s363 + $0xc4] sm:$0xf]
      %v463 = vld [vmem:[%s363 + $0xc8] sm:$0xf]
      %v464 = vld [vmem:[%s363 + $0xcc] sm:$0xf]
      %v465 = vld [vmem:[%s363 + $0xd0] sm:$0xf]
      %v466 = vld [vmem:[%s363 + $0xd4] sm:$0xf]
      %v467 = vld [vmem:[%s363 + $0xd8] sm:$0xf]
      %v468 = vld [vmem:[%s363 + $0xdc] sm:$0xf]
      %v469 = vld [vmem:[%s363 + $0xe0] sm:$0xf]
      %v470 = vld [vmem:[%s363 + $0xe4] sm:$0xf]
      %v471 = vld [vmem:[%s363 + $0xe8] sm:$0xf]
      %v472 = vld [vmem:[%s363 + $0xec] sm:$0xf]
      %v473 = vld [vmem:[%s363 + $0xf0] sm:$0xf]
      %v474 = vld [vmem:[%s363 + $0xf4] sm:$0xf]
      %v475 = vld [vmem:[%s363 + $0xf8] sm:$0xf]
      %v476 = vld [vmem:[%s363 + $0xfc] sm:$0xf]
      %v477 = vld [vmem:[%s363 + $0x100] sm:$0xf]
      %v478 = vld [vmem:[%s363 + $0x104] sm:$0xf]
      %v479 = vld [vmem:[%s363 + $0x108] sm:$0xf]
      %v480 = vld [vmem:[%s363 + $0x10c] sm:$0xf]
      %v481 = vld [vmem:[%s363 + $0x110] sm:$0xf]
      %v482 = vld [vmem:[%s363 + $0x114] sm:$0xf]
      %v483 = vld [vmem:[%s363 + $0x118] sm:$0xf]
      %v484 = vld [vmem:[%s363 + $0x11c] sm:$0xf]
      %v485 = vld [vmem:[%s363 + $0x120] sm:$0xf]
      %v486 = vld [vmem:[%s363 + $0x124] sm:$0xf]
      %v487 = vld [vmem:[%s363 + $0x128] sm:$0xf]
      %v488 = vld [vmem:[%s363 + $0x12c] sm:$0xf]
      %v489 = vld [vmem:[%s363 + $0x130] sm:$0xf]
      %v490 = vld [vmem:[%s363 + $0x134] sm:$0xf]
      %v491 = vld [vmem:[%s363 + $0x138] sm:$0xf]
      %v492 = vld [vmem:[%s363 + $0x13c] sm:$0xf]
      %v493 = vld [vmem:[%s363 + $0x140] sm:$0xf]
      %v494 = vld [vmem:[%s363 + $0x144] sm:$0xf]
      %v495 = vld [vmem:[%s363 + $0x148] sm:$0xf]
      %v496 = vld [vmem:[%s363 + $0x14c] sm:$0xf]
      %v497 = vld [vmem:[%s363 + $0x150] sm:$0xf]
      %v498 = vld [vmem:[%s363 + $0x154] sm:$0xf]
      %v499 = vld [vmem:[%s363 + $0x158] sm:$0xf]
      %v500 = vld [vmem:[%s363 + $0x15c] sm:$0xf]
      %v501 = vld [vmem:[%s363 + $0x160] sm:$0xf]
      %v502 = vld [vmem:[%s363 + $0x164] sm:$0xf]
      %v503 = vld [vmem:[%s363 + $0x168] sm:$0xf]
      %v504 = vld [vmem:[%s363 + $0x16c] sm:$0xf]
      %v505 = vld [vmem:[%s363 + $0x170] sm:$0xf]
      %v506 = vld [vmem:[%s363 + $0x174] sm:$0xf]
      %v507 = vld [vmem:[%s363 + $0x178] sm:$0xf]
      %v508 = vld [vmem:[%s363 + $0x17c] sm:$0xf]
      %v509 = vld [vmem:[%s363 + $0x180] sm:$0xf]
      %v510 = vld [vmem:[%s363 + $0x184] sm:$0xf]
      %v511 = vld [vmem:[%s363 + $0x188] sm:$0xf]
      %v512 = vld [vmem:[%s363 + $0x18c] sm:$0xf]
      %v513 = vld [vmem:[%s363 + $0x190] sm:$0xf]
      %v514 = vld [vmem:[%s363 + $0x194] sm:$0xf]
      %v515 = vld [vmem:[%s363 + $0x198] sm:$0xf]
      %v516 = vld [vmem:[%s363 + $0x19c] sm:$0xf]
      %v517 = vld [vmem:[%s363 + $0x1a0] sm:$0xf]
      %v518 = vld [vmem:[%s363 + $0x1a4] sm:$0xf]
      %v519 = vld [vmem:[%s363 + $0x1a8] sm:$0xf]
      %v520 = vld [vmem:[%s363 + $0x1ac] sm:$0xf]
      %v521 = vld [vmem:[%s363 + $0x1b0] sm:$0xf]
      %v522 = vld [vmem:[%s363 + $0x1b4] sm:$0xf]
      %v523 = vld [vmem:[%s363 + $0x1b8] sm:$0xf]
      %v524 = vld [vmem:[%s363 + $0x1bc] sm:$0xf]
      %v525 = vld [vmem:[%s363 + $0x1c0] sm:$0xf]
      %v526 = vld [vmem:[%s363 + $0x1c4] sm:$0xf]
      %v527 = vld [vmem:[%s363 + $0x1c8] sm:$0xf]
      %v528 = vld [vmem:[%s363 + $0x1cc] sm:$0xf]
      %v529 = vld [vmem:[%s363 + $0x1d0] sm:$0xf]
      %v530 = vld [vmem:[%s363 + $0x1d4] sm:$0xf]
      %v531 = vld [vmem:[%s363 + $0x1d8] sm:$0xf]
      %v532 = vld [vmem:[%s363 + $0x1dc] sm:$0xf]
      %v533 = vld [vmem:[%s363 + $0x1e0] sm:$0xf]
      %v534 = vld [vmem:[%s363 + $0x1e4] sm:$0xf]
      %v535 = vld [vmem:[%s363 + $0x1e8] sm:$0xf]
      %v536 = vld [vmem:[%s363 + $0x1ec] sm:$0xf]
      %v537 = vld [vmem:[%s363 + $0x1f0] sm:$0xf]
      %v538 = vld [vmem:[%s363 + $0x1f4] sm:$0xf]
      %v539 = vld [vmem:[%s363 + $0x1f8] sm:$0xf]
      %v540 = vld [vmem:[%s363 + $0x1fc] sm:$0xf]
      %v541 = vld [vmem:[%s374] sm:$0xf]
      %v542 = vld [vmem:[%s374 + $0x4] sm:$0xf]
      %v543 = vld [vmem:[%s374 + $0x8] sm:$0xf]
      %v544 = vld [vmem:[%s374 + $0xc] sm:$0xf]
      %v545 = vld [vmem:[%s374 + $0x10] sm:$0xf]
      %v546 = vld [vmem:[%s374 + $0x14] sm:$0xf]
      %v547 = vld [vmem:[%s374 + $0x18] sm:$0xf]
      %v548 = vld [vmem:[%s374 + $0x1c] sm:$0xf]
      %v549 = vld [vmem:[%s374 + $0x20] sm:$0xf]
      %v550 = vld [vmem:[%s374 + $0x24] sm:$0xf]
      %v551 = vld [vmem:[%s374 + $0x28] sm:$0xf]
      %v552 = vld [vmem:[%s374 + $0x2c] sm:$0xf]
      %v553 = vld [vmem:[%s374 + $0x30] sm:$0xf]
      %v554 = vld [vmem:[%s374 + $0x34] sm:$0xf]
      %v555 = vld [vmem:[%s374 + $0x38] sm:$0xf]
      %v556 = vld [vmem:[%s374 + $0x3c] sm:$0xf]
      %v557 = vld [vmem:[%s374 + $0x40] sm:$0xf]
      %v558 = vld [vmem:[%s374 + $0x44] sm:$0xf]
      %v559 = vld [vmem:[%s374 + $0x48] sm:$0xf]
      %v560 = vld [vmem:[%s374 + $0x4c] sm:$0xf]
      %v561 = vld [vmem:[%s374 + $0x50] sm:$0xf]
      %v562 = vld [vmem:[%s374 + $0x54] sm:$0xf]
      %v563 = vld [vmem:[%s374 + $0x58] sm:$0xf]
      %v564 = vld [vmem:[%s374 + $0x5c] sm:$0xf]
      %v565 = vld [vmem:[%s374 + $0x60] sm:$0xf]
      %v566 = vld [vmem:[%s374 + $0x64] sm:$0xf]
      %v567 = vld [vmem:[%s374 + $0x68] sm:$0xf]
      %v568 = vld [vmem:[%s374 + $0x6c] sm:$0xf]
      %v569 = vld [vmem:[%s374 + $0x70] sm:$0xf]
      %v570 = vld [vmem:[%s374 + $0x74] sm:$0xf]
      %v571 = vld [vmem:[%s374 + $0x78] sm:$0xf]
      %v572 = vld [vmem:[%s374 + $0x7c] sm:$0xf]
      %v573 = vld [vmem:[%s374 + $0x80] sm:$0xf]
      %v574 = vld [vmem:[%s374 + $0x84] sm:$0xf]
      %v575 = vld [vmem:[%s374 + $0x88] sm:$0xf]
      %v576 = vld [vmem:[%s374 + $0x8c] sm:$0xf]
      %v577 = vld [vmem:[%s374 + $0x90] sm:$0xf]
      %v578 = vld [vmem:[%s374 + $0x94] sm:$0xf]
      %v579 = vld [vmem:[%s374 + $0x98] sm:$0xf]
      %v580 = vld [vmem:[%s374 + $0x9c] sm:$0xf]
      %v581 = vld [vmem:[%s374 + $0xa0] sm:$0xf]
      %v582 = vld [vmem:[%s374 + $0xa4] sm:$0xf]
      %v583 = vld [vmem:[%s374 + $0xa8] sm:$0xf]
      %v584 = vld [vmem:[%s374 + $0xac] sm:$0xf]
      %v585 = vld [vmem:[%s374 + $0xb0] sm:$0xf]
      %v586 = vld [vmem:[%s374 + $0xb4] sm:$0xf]
      %v587 = vld [vmem:[%s374 + $0xb8] sm:$0xf]
      %v588 = vld [vmem:[%s374 + $0xbc] sm:$0xf]
      %v589 = vld [vmem:[%s374 + $0xc0] sm:$0xf]
      %v590 = vld [vmem:[%s374 + $0xc4] sm:$0xf]
      %v591 = vld [vmem:[%s374 + $0xc8] sm:$0xf]
      %v592 = vld [vmem:[%s374 + $0xcc] sm:$0xf]
      %v593 = vld [vmem:[%s374 + $0xd0] sm:$0xf]
      %v594 = vld [vmem:[%s374 + $0xd4] sm:$0xf]
      %v595 = vld [vmem:[%s374 + $0xd8] sm:$0xf]
      %v596 = vld [vmem:[%s374 + $0xdc] sm:$0xf]
      %v597 = vld [vmem:[%s374 + $0xe0] sm:$0xf]
      %v598 = vld [vmem:[%s374 + $0xe4] sm:$0xf]
      %v599 = vld [vmem:[%s374 + $0xe8] sm:$0xf]
      %v600 = vld [vmem:[%s374 + $0xec] sm:$0xf]
      %v601 = vld [vmem:[%s374 + $0xf0] sm:$0xf]
      %v602 = vld [vmem:[%s374 + $0xf4] sm:$0xf]
      %v603 = vld [vmem:[%s374 + $0xf8] sm:$0xf]
      %v604 = vld [vmem:[%s374 + $0xfc] sm:$0xf]
      %v605 = vld [vmem:[%s374 + $0x100] sm:$0xf]
      %v606 = vld [vmem:[%s374 + $0x104] sm:$0xf]
      %v607 = vld [vmem:[%s374 + $0x108] sm:$0xf]
      %v608 = vld [vmem:[%s374 + $0x10c] sm:$0xf]
      %v609 = vld [vmem:[%s374 + $0x110] sm:$0xf]
      %v610 = vld [vmem:[%s374 + $0x114] sm:$0xf]
      %v611 = vld [vmem:[%s374 + $0x118] sm:$0xf]
      %v612 = vld [vmem:[%s374 + $0x11c] sm:$0xf]
      %v613 = vld [vmem:[%s374 + $0x120] sm:$0xf]
      %v614 = vld [vmem:[%s374 + $0x124] sm:$0xf]
      %v615 = vld [vmem:[%s374 + $0x128] sm:$0xf]
      %v616 = vld [vmem:[%s374 + $0x12c] sm:$0xf]
      %v617 = vld [vmem:[%s374 + $0x130] sm:$0xf]
      %v618 = vld [vmem:[%s374 + $0x134] sm:$0xf]
      %v619 = vld [vmem:[%s374 + $0x138] sm:$0xf]
      %v620 = vld [vmem:[%s374 + $0x13c] sm:$0xf]
      %v621 = vld [vmem:[%s374 + $0x140] sm:$0xf]
      %v622 = vld [vmem:[%s374 + $0x144] sm:$0xf]
      %v623 = vld [vmem:[%s374 + $0x148] sm:$0xf]
      %v624 = vld [vmem:[%s374 + $0x14c] sm:$0xf]
      %v625 = vld [vmem:[%s374 + $0x150] sm:$0xf]
      %v626 = vld [vmem:[%s374 + $0x154] sm:$0xf]
      %v627 = vld [vmem:[%s374 + $0x158] sm:$0xf]
      %v628 = vld [vmem:[%s374 + $0x15c] sm:$0xf]
      %v629 = vld [vmem:[%s374 + $0x160] sm:$0xf]
      %v630 = vld [vmem:[%s374 + $0x164] sm:$0xf]
      %v631 = vld [vmem:[%s374 + $0x168] sm:$0xf]
      %v632 = vld [vmem:[%s374 + $0x16c] sm:$0xf]
      %v633 = vld [vmem:[%s374 + $0x170] sm:$0xf]
      %v634 = vld [vmem:[%s374 + $0x174] sm:$0xf]
      %v635 = vld [vmem:[%s374 + $0x178] sm:$0xf]
      %v636 = vld [vmem:[%s374 + $0x17c] sm:$0xf]
      %v637 = vld [vmem:[%s374 + $0x180] sm:$0xf]
      %v638 = vld [vmem:[%s374 + $0x184] sm:$0xf]
      %v639 = vld [vmem:[%s374 + $0x188] sm:$0xf]
      %v640 = vld [vmem:[%s374 + $0x18c] sm:$0xf]
      %v641 = vld [vmem:[%s374 + $0x190] sm:$0xf]
      %v642 = vld [vmem:[%s374 + $0x194] sm:$0xf]
      %v643 = vld [vmem:[%s374 + $0x198] sm:$0xf]
      %v644 = vld [vmem:[%s374 + $0x19c] sm:$0xf]
      %v645 = vld [vmem:[%s374 + $0x1a0] sm:$0xf]
      %v646 = vld [vmem:[%s374 + $0x1a4] sm:$0xf]
      %v647 = vld [vmem:[%s374 + $0x1a8] sm:$0xf]
      %v648 = vld [vmem:[%s374 + $0x1ac] sm:$0xf]
      %v649 = vld [vmem:[%s374 + $0x1b0] sm:$0xf]
      %v650 = vld [vmem:[%s374 + $0x1b4] sm:$0xf]
      %v651 = vld [vmem:[%s374 + $0x1b8] sm:$0xf]
      %v652 = vld [vmem:[%s374 + $0x1bc] sm:$0xf]
      %v653 = vld [vmem:[%s374 + $0x1c0] sm:$0xf]
      %v654 = vld [vmem:[%s374 + $0x1c4] sm:$0xf]
      %v655 = vld [vmem:[%s374 + $0x1c8] sm:$0xf]
      %v656 = vld [vmem:[%s374 + $0x1cc] sm:$0xf]
      %v657 = vld [vmem:[%s374 + $0x1d0] sm:$0xf]
      %v658 = vld [vmem:[%s374 + $0x1d4] sm:$0xf]
      %v659 = vld [vmem:[%s374 + $0x1d8] sm:$0xf]
      %v660 = vld [vmem:[%s374 + $0x1dc] sm:$0xf]
      %v661 = vld [vmem:[%s374 + $0x1e0] sm:$0xf]
      %v662 = vld [vmem:[%s374 + $0x1e4] sm:$0xf]
      %v663 = vld [vmem:[%s374 + $0x1e8] sm:$0xf]
      %v664 = vld [vmem:[%s374 + $0x1ec] sm:$0xf]
      %v665 = vld [vmem:[%s374 + $0x1f0] sm:$0xf]
      %v666 = vld [vmem:[%s374 + $0x1f4] sm:$0xf]
      %v667 = vld [vmem:[%s374 + $0x1f8] sm:$0xf]
      %v668 = vld [vmem:[%s374 + $0x1fc] sm:$0xf]
      %v685 = vunpack.c.l.b16 %v413
      %v686 = vunpack.c.l.b16 %v414
      %v687 = vunpack.c.l.b16 %v415
      %v688 = vunpack.c.l.b16 %v416
      %v689 = vunpack.c.l.b16 %v417
      %v690 = vunpack.c.l.b16 %v418
      %v691 = vunpack.c.l.b16 %v419
      %v692 = vunpack.c.l.b16 %v420
      %v693 = vunpack.c.l.b16 %v421
      %v694 = vunpack.c.l.b16 %v422
      %v695 = vunpack.c.l.b16 %v423
      %v696 = vunpack.c.l.b16 %v424
      %v697 = vunpack.c.l.b16 %v425
      %v698 = vunpack.c.l.b16 %v426
      %v699 = vunpack.c.l.b16 %v427
      %v700 = vunpack.c.l.b16 %v428
      %v701 = vpack.c.b16 %v686, %v685
      %v702 = vpack.c.b16 %v688, %v687
      %v703 = vpack.c.b16 %v690, %v689
      %v704 = vpack.c.b16 %v692, %v691
      %v705 = vpack.c.b16 %v694, %v693
      %v706 = vpack.c.b16 %v696, %v695
      %v707 = vpack.c.b16 %v698, %v697
      %v708 = vpack.c.b16 %v700, %v699
      %717 = vmatprep.subr.bf16.mxu0 0
      %718 = vmatpush1.bf16.msra.mxu0 %v701
      %719 = vmatprep.subr.bf16.mxu0 0
      %720 = vmatpush1.bf16.msra.mxu0 %v702
      %721 = vmatprep.subr.bf16.mxu0 0
      %722 = vmatpush1.bf16.msra.mxu0 %v703
      %723 = vmatprep.subr.bf16.mxu0 0
      %724 = vmatpush1.bf16.msra.mxu0 %v704
      %725 = vmatprep.subr.bf16.mxu0 0
      %726 = vmatpush1.bf16.msra.mxu0 %v705
      %727 = vmatprep.subr.bf16.mxu0 0
      %728 = vmatpush1.bf16.msra.mxu0 %v706
      %729 = vmatprep.subr.bf16.mxu0 0
      %730 = vmatpush1.bf16.msra.mxu0 %v707
      %731 = vmatprep.subr.bf16.mxu0 0
      %732 = vmatpush1.bf16.msra.mxu0 %v708
      %733 = vmatprep.subr.bf16.mxu0 0
      %734 = vmatpush1.bf16.msra.mxu0 0
      %735 = vmatprep.subr.bf16.mxu0 0
      %736 = vmatpush1.bf16.msra.mxu0 0
      %737 = vmatprep.subr.bf16.mxu0 0
      %738 = vmatpush1.bf16.msra.mxu0 0
      %739 = vmatprep.subr.bf16.mxu0 0
      %740 = vmatpush1.bf16.msra.mxu0 0
      %741 = vmatprep.subr.bf16.mxu0 0
      %742 = vmatpush1.bf16.msra.mxu0 0
      %743 = vmatprep.subr.bf16.mxu0 0
      %744 = vmatpush1.bf16.msra.mxu0 0
      %745 = vmatprep.subr.bf16.mxu0 0
      %746 = vmatpush1.bf16.msra.mxu0 0
      %747 = vmatprep.subr.bf16.mxu0 0
      %748 = vmatpush1.bf16.msra.mxu0 0
      %749 = vmatprep.mubr.bf16.mxu0 0
      %750 = vmatmul.mubr.bf16.gmra.mrb[0].mxu0 %v397
      %v751 = vpop.f32.mrb[0].mxu0
      %v752 = vadd.f32 0.0, %v751
      %v753 = vpop.f32.mrb[0].mxu0
      %v754 = vpop.f32.mrb[0].mxu0
      %v755 = vpop.f32.mrb[0].mxu0
      %756 = vdwg.mxu0
      %v773 = vunpack.c.l.b16 %v429
      %v774 = vunpack.c.l.b16 %v430
      %v775 = vunpack.c.l.b16 %v431
      %v776 = vunpack.c.l.b16 %v432
      %v777 = vunpack.c.l.b16 %v433
      %v778 = vunpack.c.l.b16 %v434
      %v779 = vunpack.c.l.b16 %v435
      %v780 = vunpack.c.l.b16 %v436
      %v781 = vunpack.c.l.b16 %v437
      %v782 = vunpack.c.l.b16 %v438
      %v783 = vunpack.c.l.b16 %v439
      %v784 = vunpack.c.l.b16 %v440
      %v785 = vunpack.c.l.b16 %v441
      %v786 = vunpack.c.l.b16 %v442
      %v787 = vunpack.c.l.b16 %v443
      %v788 = vunpack.c.l.b16 %v444
      %v789 = vpack.c.b16 %v774, %v773
      %v790 = vpack.c.b16 %v776, %v775
      %v791 = vpack.c.b16 %v778, %v777
      %v792 = vpack.c.b16 %v780, %v779
      %v793 = vpack.c.b16 %v782, %v781
      %v794 = vpack.c.b16 %v784, %v783
      %v795 = vpack.c.b16 %v786, %v785
      %v796 = vpack.c.b16 %v788, %v787
      %805 = vmatprep.subr.bf16.mxu0 0
      %806 = vmatpush1.bf16.msra.mxu0 %v789
      %807 = vmatprep.subr.bf16.mxu0 0
      %808 = vmatpush1.bf16.msra.mxu0 %v790
      %809 = vmatprep.subr.bf16.mxu0 0
      %810 = vmatpush1.bf16.msra.mxu0 %v791
      %811 = vmatprep.subr.bf16.mxu0 0
      %812 = vmatpush1.bf16.msra.mxu0 %v792
      %813 = vmatprep.subr.bf16.mxu0 0
      %814 = vmatpush1.bf16.msra.mxu0 %v793
      %815 = vmatprep.subr.bf16.mxu0 0
      %816 = vmatpush1.bf16.msra.mxu0 %v794
      %817 = vmatprep.subr.bf16.mxu0 0
      %818 = vmatpush1.bf16.msra.mxu0 %v795
      %819 = vmatprep.subr.bf16.mxu0 0
      %820 = vmatpush1.bf16.msra.mxu0 %v796
      %821 = vmatprep.subr.bf16.mxu0 0
      %822 = vmatpush1.bf16.msra.mxu0 0
      %823 = vmatprep.subr.bf16.mxu0 0
      %824 = vmatpush1.bf16.msra.mxu0 0
      %825 = vmatprep.subr.bf16.mxu0 0
      %826 = vmatpush1.bf16.msra.mxu0 0
      %827 = vmatprep.subr.bf16.mxu0 0
      %828 = vmatpush1.bf16.msra.mxu0 0
      %829 = vmatprep.subr.bf16.mxu0 0
      %830 = vmatpush1.bf16.msra.mxu0 0
      %831 = vmatprep.subr.bf16.mxu0 0
      %832 = vmatpush1.bf16.msra.mxu0 0
      %833 = vmatprep.subr.bf16.mxu0 0
      %834 = vmatpush1.bf16.msra.mxu0 0
      %835 = vmatprep.subr.bf16.mxu0 0
      %836 = vmatpush1.bf16.msra.mxu0 0
      %837 = vmatprep.mubr.bf16.mxu0 0
      %838 = vmatmul.mubr.bf16.gmra.mrb[0].mxu0 %v398
      %v839 = vpop.f32.mrb[0].mxu0
      %v840 = vadd.f32 0.0, %v839
      %v841 = vpop.f32.mrb[0].mxu0
      %v842 = vpop.f32.mrb[0].mxu0
      %v843 = vpop.f32.mrb[0].mxu0
      %844 = vdwg.mxu0
      %v861 = vunpack.c.l.b16 %v445
      %v862 = vunpack.c.l.b16 %v446
      %v863 = vunpack.c.l.b16 %v447
      %v864 = vunpack.c.l.b16 %v448
      %v865 = vunpack.c.l.b16 %v449
      %v866 = vunpack.c.l.b16 %v450
      %v867 = vunpack.c.l.b16 %v451
      %v868 = vunpack.c.l.b16 %v452
      %v869 = vunpack.c.l.b16 %v453
      %v870 = vunpack.c.l.b16 %v454
      %v871 = vunpack.c.l.b16 %v455
      %v872 = vunpack.c.l.b16 %v456
      %v873 = vunpack.c.l.b16 %v457
      %v874 = vunpack.c.l.b16 %v458
      %v875 = vunpack.c.l.b16 %v459
      %v876 = vunpack.c.l.b16 %v460
      %v877 = vpack.c.b16 %v862, %v861
      %v878 = vpack.c.b16 %v864, %v863
      %v879 = vpack.c.b16 %v866, %v865
      %v880 = vpack.c.b16 %v868, %v867
      %v881 = vpack.c.b16 %v870, %v869
      %v882 = vpack.c.b16 %v872, %v871
      %v883 = vpack.c.b16 %v874, %v873
      %v884 = vpack.c.b16 %v876, %v875
      %893 = vmatprep.subr.bf16.mxu0 0
      %894 = vmatpush1.bf16.msra.mxu0 %v877
      %895 = vmatprep.subr.bf16.mxu0 0
      %896 = vmatpush1.bf16.msra.mxu0 %v878
      %897 = vmatprep.subr.bf16.mxu0 0
      %898 = vmatpush1.bf16.msra.mxu0 %v879
      %899 = vmatprep.subr.bf16.mxu0 0
      %900 = vmatpush1.bf16.msra.mxu0 %v880
      %901 = vmatprep.subr.bf16.mxu0 0
      %902 = vmatpush1.bf16.msra.mxu0 %v881
      %903 = vmatprep.subr.bf16.mxu0 0
      %904 = vmatpush1.bf16.msra.mxu0 %v882
      %905 = vmatprep.subr.bf16.mxu0 0
      %906 = vmatpush1.bf16.msra.mxu0 %v883
      %907 = vmatprep.subr.bf16.mxu0 0
      %908 = vmatpush1.bf16.msra.mxu0 %v884
      %909 = vmatprep.subr.bf16.mxu0 0
      %910 = vmatpush1.bf16.msra.mxu0 0
      %911 = vmatprep.subr.bf16.mxu0 0
      %912 = vmatpush1.bf16.msra.mxu0 0
      %913 = vmatprep.subr.bf16.mxu0 0
      %914 = vmatpush1.bf16.msra.mxu0 0
      %915 = vmatprep.subr.bf16.mxu0 0
      %916 = vmatpush1.bf16.msra.mxu0 0
      %917 = vmatprep.subr.bf16.mxu0 0
      %918 = vmatpush1.bf16.msra.mxu0 0
      %919 = vmatprep.subr.bf16.mxu0 0
      %920 = vmatpush1.bf16.msra.mxu0 0
      %921 = vmatprep.subr.bf16.mxu0 0
      %922 = vmatpush1.bf16.msra.mxu0 0
      %923 = vmatprep.subr.bf16.mxu0 0
      %924 = vmatpush1.bf16.msra.mxu0 0
      %925 = vmatprep.mubr.bf16.mxu0 0
      %926 = vmatmul.mubr.bf16.gmra.mrb[0].mxu0 %v399
      %v927 = vpop.f32.mrb[0].mxu0
      %v928 = vadd.f32 0.0, %v927
      %v929 = vpop.f32.mrb[0].mxu0
      %v930 = vpop.f32.mrb[0].mxu0
      %v931 = vpop.f32.mrb[0].mxu0
      %932 = vdwg.mxu0
      %v949 = vunpack.c.l.b16 %v461
      %v950 = vunpack.c.l.b16 %v462
      %v951 = vunpack.c.l.b16 %v463
      %v952 = vunpack.c.l.b16 %v464
      %v953 = vunpack.c.l.b16 %v465
      %v954 = vunpack.c.l.b16 %v466
      %v955 = vunpack.c.l.b16 %v467
      %v956 = vunpack.c.l.b16 %v468
      %v957 = vunpack.c.l.b16 %v469
      %v958 = vunpack.c.l.b16 %v470
      %v959 = vunpack.c.l.b16 %v471
      %v960 = vunpack.c.l.b16 %v472
      %v961 = vunpack.c.l.b16 %v473
      %v962 = vunpack.c.l.b16 %v474
      %v963 = vunpack.c.l.b16 %v475
      %v964 = vunpack.c.l.b16 %v476
      %v965 = vpack.c.b16 %v950, %v949
      %v966 = vpack.c.b16 %v952, %v951
      %v967 = vpack.c.b16 %v954, %v953
      %v968 = vpack.c.b16 %v956, %v955
      %v969 = vpack.c.b16 %v958, %v957
      %v970 = vpack.c.b16 %v960, %v959
      %v971 = vpack.c.b16 %v962, %v961
      %v972 = vpack.c.b16 %v964, %v963
      %981 = vmatprep.subr.bf16.mxu0 0
      %982 = vmatpush1.bf16.msra.mxu0 %v965
      %983 = vmatprep.subr.bf16.mxu0 0
      %984 = vmatpush1.bf16.msra.mxu0 %v966
      %985 = vmatprep.subr.bf16.mxu0 0
      %986 = vmatpush1.bf16.msra.mxu0 %v967
      %987 = vmatprep.subr.bf16.mxu0 0
      %988 = vmatpush1.bf16.msra.mxu0 %v968
      %989 = vmatprep.subr.bf16.mxu0 0
      %990 = vmatpush1.bf16.msra.mxu0 %v969
      %991 = vmatprep.subr.bf16.mxu0 0
      %992 = vmatpush1.bf16.msra.mxu0 %v970
      %993 = vmatprep.subr.bf16.mxu0 0
      %994 = vmatpush1.bf16.msra.mxu0 %v971
      %995 = vmatprep.subr.bf16.mxu0 0
      %996 = vmatpush1.bf16.msra.mxu0 %v972
      %997 = vmatprep.subr.bf16.mxu0 0
      %998 = vmatpush1.bf16.msra.mxu0 0
      %999 = vmatprep.subr.bf16.mxu0 0
      %1000 = vmatpush1.bf16.msra.mxu0 0
      %1001 = vmatprep.subr.bf16.mxu0 0
      %1002 = vmatpush1.bf16.msra.mxu0 0
      %1003 = vmatprep.subr.bf16.mxu0 0
      %1004 = vmatpush1.bf16.msra.mxu0 0
      %1005 = vmatprep.subr.bf16.mxu0 0
      %1006 = vmatpush1.bf16.msra.mxu0 0
      %1007 = vmatprep.subr.bf16.mxu0 0
      %1008 = vmatpush1.bf16.msra.mxu0 0
      %1009 = vmatprep.subr.bf16.mxu0 0
      %1010 = vmatpush1.bf16.msra.mxu0 0
      %1011 = vmatprep.subr.bf16.mxu0 0
      %1012 = vmatpush1.bf16.msra.mxu0 0
      %1013 = vmatprep.mubr.bf16.mxu0 0
      %1014 = vmatmul.mubr.bf16.gmra.mrb[0].mxu0 %v400
      %v1015 = vpop.f32.mrb[0].mxu0
      %v1016 = vadd.f32 0.0, %v1015
      %v1017 = vpop.f32.mrb[0].mxu0
      %v1018 = vpop.f32.mrb[0].mxu0
      %v1019 = vpop.f32.mrb[0].mxu0
      %1020 = vdwg.mxu0
      %v1037 = vunpack.c.l.b16 %v477
      %v1038 = vunpack.c.l.b16 %v478
      %v1039 = vunpack.c.l.b16 %v479
      %v1040 = vunpack.c.l.b16 %v480
      %v1041 = vunpack.c.l.b16 %v481
      %v1042 = vunpack.c.l.b16 %v482
      %v1043 = vunpack.c.l.b16 %v483
      %v1044 = vunpack.c.l.b16 %v484
      %v1045 = vunpack.c.l.b16 %v485
      %v1046 = vunpack.c.l.b16 %v486
      %v1047 = vunpack.c.l.b16 %v487
      %v1048 = vunpack.c.l.b16 %v488
      %v1049 = vunpack.c.l.b16 %v489
      %v1050 = vunpack.c.l.b16 %v490
      %v1051 = vunpack.c.l.b16 %v491
      %v1052 = vunpack.c.l.b16 %v492
      %v1053 = vpack.c.b16 %v1038, %v1037
      %v1054 = vpack.c.b16 %v1040, %v1039
      %v1055 = vpack.c.b16 %v1042, %v1041
      %v1056 = vpack.c.b16 %v1044, %v1043
      %v1057 = vpack.c.b16 %v1046, %v1045
      %v1058 = vpack.c.b16 %v1048, %v1047
      %v1059 = vpack.c.b16 %v1050, %v1049
      %v1060 = vpack.c.b16 %v1052, %v1051
      %1069 = vmatprep.subr.bf16.mxu0 0
      %1070 = vmatpush1.bf16.msra.mxu0 %v1053
      %1071 = vmatprep.subr.bf16.mxu0 0
      %1072 = vmatpush1.bf16.msra.mxu0 %v1054
      %1073 = vmatprep.subr.bf16.mxu0 0
      %1074 = vmatpush1.bf16.msra.mxu0 %v1055
      %1075 = vmatprep.subr.bf16.mxu0 0
      %1076 = vmatpush1.bf16.msra.mxu0 %v1056
      %1077 = vmatprep.subr.bf16.mxu0 0
      %1078 = vmatpush1.bf16.msra.mxu0 %v1057
      %1079 = vmatprep.subr.bf16.mxu0 0
      %1080 = vmatpush1.bf16.msra.mxu0 %v1058
      %1081 = vmatprep.subr.bf16.mxu0 0
      %1082 = vmatpush1.bf16.msra.mxu0 %v1059
      %1083 = vmatprep.subr.bf16.mxu0 0
      %1084 = vmatpush1.bf16.msra.mxu0 %v1060
      %1085 = vmatprep.subr.bf16.mxu0 0
      %1086 = vmatpush1.bf16.msra.mxu0 0
      %1087 = vmatprep.subr.bf16.mxu0 0
      %1088 = vmatpush1.bf16.msra.mxu0 0
      %1089 = vmatprep.subr.bf16.mxu0 0
      %1090 = vmatpush1.bf16.msra.mxu0 0
      %1091 = vmatprep.subr.bf16.mxu0 0
      %1092 = vmatpush1.bf16.msra.mxu0 0
      %1093 = vmatprep.subr.bf16.mxu0 0
      %1094 = vmatpush1.bf16.msra.mxu0 0
      %1095 = vmatprep.subr.bf16.mxu0 0
      %1096 = vmatpush1.bf16.msra.mxu0 0
      %1097 = vmatprep.subr.bf16.mxu0 0
      %1098 = vmatpush1.bf16.msra.mxu0 0
      %1099 = vmatprep.subr.bf16.mxu0 0
      %1100 = vmatpush1.bf16.msra.mxu0 0
      %1101 = vmatprep.mubr.bf16.mxu0 0
      %1102 = vmatmul.mubr.bf16.gmra.mrb[0].mxu0 %v401
      %v1103 = vpop.f32.mrb[0].mxu0
      %v1104 = vadd.f32 0.0, %v1103
      %v1105 = vpop.f32.mrb[0].mxu0
      %v1106 = vpop.f32.mrb[0].mxu0
      %v1107 = vpop.f32.mrb[0].mxu0
      %1108 = vdwg.mxu0
      %v1125 = vunpack.c.l.b16 %v493
      %v1126 = vunpack.c.l.b16 %v494
      %v1127 = vunpack.c.l.b16 %v495
      %v1128 = vunpack.c.l.b16 %v496
      %v1129 = vunpack.c.l.b16 %v497
      %v1130 = vunpack.c.l.b16 %v498
      %v1131 = vunpack.c.l.b16 %v499
      %v1132 = vunpack.c.l.b16 %v500
      %v1133 = vunpack.c.l.b16 %v501
      %v1134 = vunpack.c.l.b16 %v502
      %v1135 = vunpack.c.l.b16 %v503
      %v1136 = vunpack.c.l.b16 %v504
      %v1137 = vunpack.c.l.b16 %v505
      %v1138 = vunpack.c.l.b16 %v506
      %v1139 = vunpack.c.l.b16 %v507
      %v1140 = vunpack.c.l.b16 %v508
      %v1141 = vpack.c.b16 %v1126, %v1125
      %v1142 = vpack.c.b16 %v1128, %v1127
      %v1143 = vpack.c.b16 %v1130, %v1129
      %v1144 = vpack.c.b16 %v1132, %v1131
      %v1145 = vpack.c.b16 %v1134, %v1133
      %v1146 = vpack.c.b16 %v1136, %v1135
      %v1147 = vpack.c.b16 %v1138, %v1137
      %v1148 = vpack.c.b16 %v1140, %v1139
      %1157 = vmatprep.subr.bf16.mxu0 0
      %1158 = vmatpush1.bf16.msra.mxu0 %v1141
      %1159 = vmatprep.subr.bf16.mxu0 0
      %1160 = vmatpush1.bf16.msra.mxu0 %v1142
      %1161 = vmatprep.subr.bf16.mxu0 0
      %1162 = vmatpush1.bf16.msra.mxu0 %v1143
      %1163 = vmatprep.subr.bf16.mxu0 0
      %1164 = vmatpush1.bf16.msra.mxu0 %v1144
      %1165 = vmatprep.subr.bf16.mxu0 0
      %1166 = vmatpush1.bf16.msra.mxu0 %v1145
      %1167 = vmatprep.subr.bf16.mxu0 0
      %1168 = vmatpush1.bf16.msra.mxu0 %v1146
      %1169 = vmatprep.subr.bf16.mxu0 0
      %1170 = vmatpush1.bf16.msra.mxu0 %v1147
      %1171 = vmatprep.subr.bf16.mxu0 0
      %1172 = vmatpush1.bf16.msra.mxu0 %v1148
      %1173 = vmatprep.subr.bf16.mxu0 0
      %1174 = vmatpush1.bf16.msra.mxu0 0
      %1175 = vmatprep.subr.bf16.mxu0 0
      %1176 = vmatpush1.bf16.msra.mxu0 0
      %1177 = vmatprep.subr.bf16.mxu0 0
      %1178 = vmatpush1.bf16.msra.mxu0 0
      %1179 = vmatprep.subr.bf16.mxu0 0
      %1180 = vmatpush1.bf16.msra.mxu0 0
      %1181 = vmatprep.subr.bf16.mxu0 0
      %1182 = vmatpush1.bf16.msra.mxu0 0
      %1183 = vmatprep.subr.bf16.mxu0 0
      %1184 = vmatpush1.bf16.msra.mxu0 0
      %1185 = vmatprep.subr.bf16.mxu0 0
      %1186 = vmatpush1.bf16.msra.mxu0 0
      %1187 = vmatprep.subr.bf16.mxu0 0
      %1188 = vmatpush1.bf16.msra.mxu0 0
      %1189 = vmatprep.mubr.bf16.mxu0 0
      %1190 = vmatmul.mubr.bf16.gmra.mrb[0].mxu0 %v402
      %v1191 = vpop.f32.mrb[0].mxu0
      %v1192 = vadd.f32 0.0, %v1191
      %v1193 = vpop.f32.mrb[0].mxu0
      %v1194 = vpop.f32.mrb[0].mxu0
      %v1195 = vpop.f32.mrb[0].mxu0
      %1196 = vdwg.mxu0
      %v1213 = vunpack.c.l.b16 %v509
      %v1214 = vunpack.c.l.b16 %v510
      %v1215 = vunpack.c.l.b16 %v511
      %v1216 = vunpack.c.l.b16 %v512
      %v1217 = vunpack.c.l.b16 %v513
      %v1218 = vunpack.c.l.b16 %v514
      %v1219 = vunpack.c.l.b16 %v515
      %v1220 = vunpack.c.l.b16 %v516
      %v1221 = vunpack.c.l.b16 %v517
      %v1222 = vunpack.c.l.b16 %v518
      %v1223 = vunpack.c.l.b16 %v519
      %v1224 = vunpack.c.l.b16 %v520
      %v1225 = vunpack.c.l.b16 %v521
      %v1226 = vunpack.c.l.b16 %v522
      %v1227 = vunpack.c.l.b16 %v523
      %v1228 = vunpack.c.l.b16 %v524
      %v1229 = vpack.c.b16 %v1214, %v1213
      %v1230 = vpack.c.b16 %v1216, %v1215
      %v1231 = vpack.c.b16 %v1218, %v1217
      %v1232 = vpack.c.b16 %v1220, %v1219
      %v1233 = vpack.c.b16 %v1222, %v1221
      %v1234 = vpack.c.b16 %v1224, %v1223
      %v1235 = vpack.c.b16 %v1226, %v1225
      %v1236 = vpack.c.b16 %v1228, %v1227
      %1245 = vmatprep.subr.bf16.mxu0 0
      %1246 = vmatpush1.bf16.msra.mxu0 %v1229
      %1247 = vmatprep.subr.bf16.mxu0 0
      %1248 = vmatpush1.bf16.msra.mxu0 %v1230
      %1249 = vmatprep.subr.bf16.mxu0 0
      %1250 = vmatpush1.bf16.msra.mxu0 %v1231
      %1251 = vmatprep.subr.bf16.mxu0 0
      %1252 = vmatpush1.bf16.msra.mxu0 %v1232
      %1253 = vmatprep.subr.bf16.mxu0 0
      %1254 = vmatpush1.bf16.msra.mxu0 %v1233
      %1255 = vmatprep.subr.bf16.mxu0 0
      %1256 = vmatpush1.bf16.msra.mxu0 %v1234
      %1257 = vmatprep.subr.bf16.mxu0 0
      %1258 = vmatpush1.bf16.msra.mxu0 %v1235
      %1259 = vmatprep.subr.bf16.mxu0 0
      %1260 = vmatpush1.bf16.msra.mxu0 %v1236
      %1261 = vmatprep.subr.bf16.mxu0 0
      %1262 = vmatpush1.bf16.msra.mxu0 0
      %1263 = vmatprep.subr.bf16.mxu0 0
      %1264 = vmatpush1.bf16.msra.mxu0 0
      %1265 = vmatprep.subr.bf16.mxu0 0
      %1266 = vmatpush1.bf16.msra.mxu0 0
      %1267 = vmatprep.subr.bf16.mxu0 0
      %1268 = vmatpush1.bf16.msra.mxu0 0
      %1269 = vmatprep.subr.bf16.mxu0 0
      %1270 = vmatpush1.bf16.msra.mxu0 0
      %1271 = vmatprep.subr.bf16.mxu0 0
      %1272 = vmatpush1.bf16.msra.mxu0 0
      %1273 = vmatprep.subr.bf16.mxu0 0
      %1274 = vmatpush1.bf16.msra.mxu0 0
      %1275 = vmatprep.subr.bf16.mxu0 0
      %1276 = vmatpush1.bf16.msra.mxu0 0
      %1277 = vmatprep.mubr.bf16.mxu0 0
      %1278 = vmatmul.mubr.bf16.gmra.mrb[0].mxu0 %v403
      %v1279 = vpop.f32.mrb[0].mxu0
      %v1280 = vadd.f32 0.0, %v1279
      %v1281 = vpop.f32.mrb[0].mxu0
      %v1282 = vpop.f32.mrb[0].mxu0
      %v1283 = vpop.f32.mrb[0].mxu0
      %1284 = vdwg.mxu0
      %v1301 = vunpack.c.l.b16 %v525
      %v1302 = vunpack.c.l.b16 %v526
      %v1303 = vunpack.c.l.b16 %v527
      %v1304 = vunpack.c.l.b16 %v528
      %v1305 = vunpack.c.l.b16 %v529
      %v1306 = vunpack.c.l.b16 %v530
      %v1307 = vunpack.c.l.b16 %v531
      %v1308 = vunpack.c.l.b16 %v532
      %v1309 = vunpack.c.l.b16 %v533
      %v1310 = vunpack.c.l.b16 %v534
      %v1311 = vunpack.c.l.b16 %v535
      %v1312 = vunpack.c.l.b16 %v536
      %v1313 = vunpack.c.l.b16 %v537
      %v1314 = vunpack.c.l.b16 %v538
      %v1315 = vunpack.c.l.b16 %v539
      %v1316 = vunpack.c.l.b16 %v540
      %v1317 = vpack.c.b16 %v1302, %v1301
      %v1318 = vpack.c.b16 %v1304, %v1303
      %v1319 = vpack.c.b16 %v1306, %v1305
      %v1320 = vpack.c.b16 %v1308, %v1307
      %v1321 = vpack.c.b16 %v1310, %v1309
      %v1322 = vpack.c.b16 %v1312, %v1311
      %v1323 = vpack.c.b16 %v1314, %v1313
      %v1324 = vpack.c.b16 %v1316, %v1315
      %1333 = vmatprep.subr.bf16.mxu0 0
      %1334 = vmatpush1.bf16.msra.mxu0 %v1317
      %1335 = vmatprep.subr.bf16.mxu0 0
      %1336 = vmatpush1.bf16.msra.mxu0 %v1318
      %1337 = vmatprep.subr.bf16.mxu0 0
      %1338 = vmatpush1.bf16.msra.mxu0 %v1319
      %1339 = vmatprep.subr.bf16.mxu0 0
      %1340 = vmatpush1.bf16.msra.mxu0 %v1320
      %1341 = vmatprep.subr.bf16.mxu0 0
      %1342 = vmatpush1.bf16.msra.mxu0 %v1321
      %1343 = vmatprep.subr.bf16.mxu0 0
      %1344 = vmatpush1.bf16.msra.mxu0 %v1322
      %1345 = vmatprep.subr.bf16.mxu0 0
      %1346 = vmatpush1.bf16.msra.mxu0 %v1323
      %1347 = vmatprep.subr.bf16.mxu0 0
      %1348 = vmatpush1.bf16.msra.mxu0 %v1324
      %1349 = vmatprep.subr.bf16.mxu0 0
      %1350 = vmatpush1.bf16.msra.mxu0 0
      %1351 = vmatprep.subr.bf16.mxu0 0
      %1352 = vmatpush1.bf16.msra.mxu0 0
      %1353 = vmatprep.subr.bf16.mxu0 0
      %1354 = vmatpush1.bf16.msra.mxu0 0
      %1355 = vmatprep.subr.bf16.mxu0 0
      %1356 = vmatpush1.bf16.msra.mxu0 0
      %1357 = vmatprep.subr.bf16.mxu0 0
      %1358 = vmatpush1.bf16.msra.mxu0 0
      %1359 = vmatprep.subr.bf16.mxu0 0
      %1360 = vmatpush1.bf16.msra.mxu0 0
      %1361 = vmatprep.subr.bf16.mxu0 0
      %1362 = vmatpush1.bf16.msra.mxu0 0
      %1363 = vmatprep.subr.bf16.mxu0 0
      %1364 = vmatpush1.bf16.msra.mxu0 0
      %1365 = vmatprep.mubr.bf16.mxu0 0
      %1366 = vmatmul.mubr.bf16.gmra.mrb[0].mxu0 %v404
      %v1367 = vpop.f32.mrb[0].mxu0
      %v1368 = vadd.f32 0.0, %v1367
      %v1369 = vpop.f32.mrb[0].mxu0
      %v1370 = vpop.f32.mrb[0].mxu0
      %v1371 = vpop.f32.mrb[0].mxu0
      %1372 = vdwg.mxu0
      %v1389 = vunpack.c.l.b16 %v541
      %v1390 = vunpack.c.l.b16 %v542
      %v1391 = vunpack.c.l.b16 %v543
      %v1392 = vunpack.c.l.b16 %v544
      %v1393 = vunpack.c.l.b16 %v545
      %v1394 = vunpack.c.l.b16 %v546
      %v1395 = vunpack.c.l.b16 %v547
      %v1396 = vunpack.c.l.b16 %v548
      %v1397 = vunpack.c.l.b16 %v549
      %v1398 = vunpack.c.l.b16 %v550
      %v1399 = vunpack.c.l.b16 %v551
      %v1400 = vunpack.c.l.b16 %v552
      %v1401 = vunpack.c.l.b16 %v553
      %v1402 = vunpack.c.l.b16 %v554
      %v1403 = vunpack.c.l.b16 %v555
      %v1404 = vunpack.c.l.b16 %v556
      %v1405 = vpack.c.b16 %v1390, %v1389
      %v1406 = vpack.c.b16 %v1392, %v1391
      %v1407 = vpack.c.b16 %v1394, %v1393
      %v1408 = vpack.c.b16 %v1396, %v1395
      %v1409 = vpack.c.b16 %v1398, %v1397
      %v1410 = vpack.c.b16 %v1400, %v1399
      %v1411 = vpack.c.b16 %v1402, %v1401
      %v1412 = vpack.c.b16 %v1404, %v1403
      %1421 = vmatprep.subr.bf16.mxu0 0
      %1422 = vmatpush1.bf16.msra.mxu0 %v1405
      %1423 = vmatprep.subr.bf16.mxu0 0
      %1424 = vmatpush1.bf16.msra.mxu0 %v1406
      %1425 = vmatprep.subr.bf16.mxu0 0
      %1426 = vmatpush1.bf16.msra.mxu0 %v1407
      %1427 = vmatprep.subr.bf16.mxu0 0
      %1428 = vmatpush1.bf16.msra.mxu0 %v1408
      %1429 = vmatprep.subr.bf16.mxu0 0
      %1430 = vmatpush1.bf16.msra.mxu0 %v1409
      %1431 = vmatprep.subr.bf16.mxu0 0
      %1432 = vmatpush1.bf16.msra.mxu0 %v1410
      %1433 = vmatprep.subr.bf16.mxu0 0
      %1434 = vmatpush1.bf16.msra.mxu0 %v1411
      %1435 = vmatprep.subr.bf16.mxu0 0
      %1436 = vmatpush1.bf16.msra.mxu0 %v1412
      %1437 = vmatprep.subr.bf16.mxu0 0
      %1438 = vmatpush1.bf16.msra.mxu0 0
      %1439 = vmatprep.subr.bf16.mxu0 0
      %1440 = vmatpush1.bf16.msra.mxu0 0
      %1441 = vmatprep.subr.bf16.mxu0 0
      %1442 = vmatpush1.bf16.msra.mxu0 0
      %1443 = vmatprep.subr.bf16.mxu0 0
      %1444 = vmatpush1.bf16.msra.mxu0 0
      %1445 = vmatprep.subr.bf16.mxu0 0
      %1446 = vmatpush1.bf16.msra.mxu0 0
      %1447 = vmatprep.subr.bf16.mxu0 0
      %1448 = vmatpush1.bf16.msra.mxu0 0
      %1449 = vmatprep.subr.bf16.mxu0 0
      %1450 = vmatpush1.bf16.msra.mxu0 0
      %1451 = vmatprep.subr.bf16.mxu0 0
      %1452 = vmatpush1.bf16.msra.mxu0 0
      %1453 = vmatprep.mubr.bf16.mxu0 0
      %1454 = vmatmul.mubr.bf16.gmra.mrb[0].mxu0 %v405
      %v1455 = vpop.f32.mrb[0].mxu0
      %v1456 = vadd.f32 0.0, %v1455
      %v1457 = vpop.f32.mrb[0].mxu0
      %v1458 = vpop.f32.mrb[0].mxu0
      %v1459 = vpop.f32.mrb[0].mxu0
      %1460 = vdwg.mxu0
      %v1477 = vunpack.c.l.b16 %v557
      %v1478 = vunpack.c.l.b16 %v558
      %v1479 = vunpack.c.l.b16 %v559
      %v1480 = vunpack.c.l.b16 %v560
      %v1481 = vunpack.c.l.b16 %v561
      %v1482 = vunpack.c.l.b16 %v562
      %v1483 = vunpack.c.l.b16 %v563
      %v1484 = vunpack.c.l.b16 %v564
      %v1485 = vunpack.c.l.b16 %v565
      %v1486 = vunpack.c.l.b16 %v566
      %v1487 = vunpack.c.l.b16 %v567
      %v1488 = vunpack.c.l.b16 %v568
      %v1489 = vunpack.c.l.b16 %v569
      %v1490 = vunpack.c.l.b16 %v570
      %v1491 = vunpack.c.l.b16 %v571
      %v1492 = vunpack.c.l.b16 %v572
      %v1493 = vpack.c.b16 %v1478, %v1477
      %v1494 = vpack.c.b16 %v1480, %v1479
      %v1495 = vpack.c.b16 %v1482, %v1481
      %v1496 = vpack.c.b16 %v1484, %v1483
      %v1497 = vpack.c.b16 %v1486, %v1485
      %v1498 = vpack.c.b16 %v1488, %v1487
      %v1499 = vpack.c.b16 %v1490, %v1489
      %v1500 = vpack.c.b16 %v1492, %v1491
      %1509 = vmatprep.subr.bf16.mxu0 0
      %1510 = vmatpush1.bf16.msra.mxu0 %v1493
      %1511 = vmatprep.subr.bf16.mxu0 0
      %1512 = vmatpush1.bf16.msra.mxu0 %v1494
      %1513 = vmatprep.subr.bf16.mxu0 0
      %1514 = vmatpush1.bf16.msra.mxu0 %v1495
      %1515 = vmatprep.subr.bf16.mxu0 0
      %1516 = vmatpush1.bf16.msra.mxu0 %v1496
      %1517 = vmatprep.subr.bf16.mxu0 0
      %1518 = vmatpush1.bf16.msra.mxu0 %v1497
      %1519 = vmatprep.subr.bf16.mxu0 0
      %1520 = vmatpush1.bf16.msra.mxu0 %v1498
      %1521 = vmatprep.subr.bf16.mxu0 0
      %1522 = vmatpush1.bf16.msra.mxu0 %v1499
      %1523 = vmatprep.subr.bf16.mxu0 0
      %1524 = vmatpush1.bf16.msra.mxu0 %v1500
      %1525 = vmatprep.subr.bf16.mxu0 0
      %1526 = vmatpush1.bf16.msra.mxu0 0
      %1527 = vmatprep.subr.bf16.mxu0 0
      %1528 = vmatpush1.bf16.msra.mxu0 0
      %1529 = vmatprep.subr.bf16.mxu0 0
      %1530 = vmatpush1.bf16.msra.mxu0 0
      %1531 = vmatprep.subr.bf16.mxu0 0
      %1532 = vmatpush1.bf16.msra.mxu0 0
      %1533 = vmatprep.subr.bf16.mxu0 0
      %1534 = vmatpush1.bf16.msra.mxu0 0
      %1535 = vmatprep.subr.bf16.mxu0 0
      %1536 = vmatpush1.bf16.msra.mxu0 0
      %1537 = vmatprep.subr.bf16.mxu0 0
      %1538 = vmatpush1.bf16.msra.mxu0 0
      %1539 = vmatprep.subr.bf16.mxu0 0
      %1540 = vmatpush1.bf16.msra.mxu0 0
      %1541 = vmatprep.mubr.bf16.mxu0 0
      %1542 = vmatmul.mubr.bf16.gmra.mrb[0].mxu0 %v406
      %v1543 = vpop.f32.mrb[0].mxu0
      %v1544 = vadd.f32 0.0, %v1543
      %v1545 = vpop.f32.mrb[0].mxu0
      %v1546 = vpop.f32.mrb[0].mxu0
      %v1547 = vpop.f32.mrb[0].mxu0
      %1548 = vdwg.mxu0
      %v1565 = vunpack.c.l.b16 %v573
      %v1566 = vunpack.c.l.b16 %v574
      %v1567 = vunpack.c.l.b16 %v575
      %v1568 = vunpack.c.l.b16 %v576
      %v1569 = vunpack.c.l.b16 %v577
      %v1570 = vunpack.c.l.b16 %v578
      %v1571 = vunpack.c.l.b16 %v579
      %v1572 = vunpack.c.l.b16 %v580
      %v1573 = vunpack.c.l.b16 %v581
      %v1574 = vunpack.c.l.b16 %v582
      %v1575 = vunpack.c.l.b16 %v583
      %v1576 = vunpack.c.l.b16 %v584
      %v1577 = vunpack.c.l.b16 %v585
      %v1578 = vunpack.c.l.b16 %v586
      %v1579 = vunpack.c.l.b16 %v587
      %v1580 = vunpack.c.l.b16 %v588
      %v1581 = vpack.c.b16 %v1566, %v1565
      %v1582 = vpack.c.b16 %v1568, %v1567
      %v1583 = vpack.c.b16 %v1570, %v1569
      %v1584 = vpack.c.b16 %v1572, %v1571
      %v1585 = vpack.c.b16 %v1574, %v1573
      %v1586 = vpack.c.b16 %v1576, %v1575
      %v1587 = vpack.c.b16 %v1578, %v1577
      %v1588 = vpack.c.b16 %v1580, %v1579
      %1597 = vmatprep.subr.bf16.mxu0 0
      %1598 = vmatpush1.bf16.msra.mxu0 %v1581
      %1599 = vmatprep.subr.bf16.mxu0 0
      %1600 = vmatpush1.bf16.msra.mxu0 %v1582
      %1601 = vmatprep.subr.bf16.mxu0 0
      %1602 = vmatpush1.bf16.msra.mxu0 %v1583
      %1603 = vmatprep.subr.bf16.mxu0 0
      %1604 = vmatpush1.bf16.msra.mxu0 %v1584
      %1605 = vmatprep.subr.bf16.mxu0 0
      %1606 = vmatpush1.bf16.msra.mxu0 %v1585
      %1607 = vmatprep.subr.bf16.mxu0 0
      %1608 = vmatpush1.bf16.msra.mxu0 %v1586
      %1609 = vmatprep.subr.bf16.mxu0 0
      %1610 = vmatpush1.bf16.msra.mxu0 %v1587
      %1611 = vmatprep.subr.bf16.mxu0 0
      %1612 = vmatpush1.bf16.msra.mxu0 %v1588
      %1613 = vmatprep.subr.bf16.mxu0 0
      %1614 = vmatpush1.bf16.msra.mxu0 0
      %1615 = vmatprep.subr.bf16.mxu0 0
      %1616 = vmatpush1.bf16.msra.mxu0 0
      %1617 = vmatprep.subr.bf16.mxu0 0
      %1618 = vmatpush1.bf16.msra.mxu0 0
      %1619 = vmatprep.subr.bf16.mxu0 0
      %1620 = vmatpush1.bf16.msra.mxu0 0
      %1621 = vmatprep.subr.bf16.mxu0 0
      %1622 = vmatpush1.bf16.msra.mxu0 0
      %1623 = vmatprep.subr.bf16.mxu0 0
      %1624 = vmatpush1.bf16.msra.mxu0 0
      %1625 = vmatprep.subr.bf16.mxu0 0
      %1626 = vmatpush1.bf16.msra.mxu0 0
      %1627 = vmatprep.subr.bf16.mxu0 0
      %1628 = vmatpush1.bf16.msra.mxu0 0
      %1629 = vmatprep.mubr.bf16.mxu0 0
      %1630 = vmatmul.mubr.bf16.gmra.mrb[0].mxu0 %v407
      %v1631 = vpop.f32.mrb[0].mxu0
      %v1632 = vadd.f32 0.0, %v1631
      %v1633 = vpop.f32.mrb[0].mxu0
      %v1634 = vpop.f32.mrb[0].mxu0
      %v1635 = vpop.f32.mrb[0].mxu0
      %1636 = vdwg.mxu0
      %v1653 = vunpack.c.l.b16 %v589
      %v1654 = vunpack.c.l.b16 %v590
      %v1655 = vunpack.c.l.b16 %v591
      %v1656 = vunpack.c.l.b16 %v592
      %v1657 = vunpack.c.l.b16 %v593
      %v1658 = vunpack.c.l.b16 %v594
      %v1659 = vunpack.c.l.b16 %v595
      %v1660 = vunpack.c.l.b16 %v596
      %v1661 = vunpack.c.l.b16 %v597
      %v1662 = vunpack.c.l.b16 %v598
      %v1663 = vunpack.c.l.b16 %v599
      %v1664 = vunpack.c.l.b16 %v600
      %v1665 = vunpack.c.l.b16 %v601
      %v1666 = vunpack.c.l.b16 %v602
      %v1667 = vunpack.c.l.b16 %v603
      %v1668 = vunpack.c.l.b16 %v604
      %v1669 = vpack.c.b16 %v1654, %v1653
      %v1670 = vpack.c.b16 %v1656, %v1655
      %v1671 = vpack.c.b16 %v1658, %v1657
      %v1672 = vpack.c.b16 %v1660, %v1659
      %v1673 = vpack.c.b16 %v1662, %v1661
      %v1674 = vpack.c.b16 %v1664, %v1663
      %v1675 = vpack.c.b16 %v1666, %v1665
      %v1676 = vpack.c.b16 %v1668, %v1667
      %1685 = vmatprep.subr.bf16.mxu0 0
      %1686 = vmatpush1.bf16.msra.mxu0 %v1669
      %1687 = vmatprep.subr.bf16.mxu0 0
      %1688 = vmatpush1.bf16.msra.mxu0 %v1670
      %1689 = vmatprep.subr.bf16.mxu0 0
      %1690 = vmatpush1.bf16.msra.mxu0 %v1671
      %1691 = vmatprep.subr.bf16.mxu0 0
      %1692 = vmatpush1.bf16.msra.mxu0 %v1672
      %1693 = vmatprep.subr.bf16.mxu0 0
      %1694 = vmatpush1.bf16.msra.mxu0 %v1673
      %1695 = vmatprep.subr.bf16.mxu0 0
      %1696 = vmatpush1.bf16.msra.mxu0 %v1674
      %1697 = vmatprep.subr.bf16.mxu0 0
      %1698 = vmatpush1.bf16.msra.mxu0 %v1675
      %1699 = vmatprep.subr.bf16.mxu0 0
      %1700 = vmatpush1.bf16.msra.mxu0 %v1676
      %1701 = vmatprep.subr.bf16.mxu0 0
      %1702 = vmatpush1.bf16.msra.mxu0 0
      %1703 = vmatprep.subr.bf16.mxu0 0
      %1704 = vmatpush1.bf16.msra.mxu0 0
      %1705 = vmatprep.subr.bf16.mxu0 0
      %1706 = vmatpush1.bf16.msra.mxu0 0
      %1707 = vmatprep.subr.bf16.mxu0 0
      %1708 = vmatpush1.bf16.msra.mxu0 0
      %1709 = vmatprep.subr.bf16.mxu0 0
      %1710 = vmatpush1.bf16.msra.mxu0 0
      %1711 = vmatprep.subr.bf16.mxu0 0
      %1712 = vmatpush1.bf16.msra.mxu0 0
      %1713 = vmatprep.subr.bf16.mxu0 0
      %1714 = vmatpush1.bf16.msra.mxu0 0
      %1715 = vmatprep.subr.bf16.mxu0 0
      %1716 = vmatpush1.bf16.msra.mxu0 0
      %1717 = vmatprep.mubr.bf16.mxu0 0
      %1718 = vmatmul.mubr.bf16.gmra.mrb[0].mxu0 %v408
      %v1719 = vpop.f32.mrb[0].mxu0
      %v1720 = vadd.f32 0.0, %v1719
      %v1721 = vpop.f32.mrb[0].mxu0
      %v1722 = vpop.f32.mrb[0].mxu0
      %v1723 = vpop.f32.mrb[0].mxu0
      %1724 = vdwg.mxu0
      %v1741 = vunpack.c.l.b16 %v605
      %v1742 = vunpack.c.l.b16 %v606
      %v1743 = vunpack.c.l.b16 %v607
      %v1744 = vunpack.c.l.b16 %v608
      %v1745 = vunpack.c.l.b16 %v609
      %v1746 = vunpack.c.l.b16 %v610
      %v1747 = vunpack.c.l.b16 %v611
      %v1748 = vunpack.c.l.b16 %v612
      %v1749 = vunpack.c.l.b16 %v613
      %v1750 = vunpack.c.l.b16 %v614
      %v1751 = vunpack.c.l.b16 %v615
      %v1752 = vunpack.c.l.b16 %v616
      %v1753 = vunpack.c.l.b16 %v617
      %v1754 = vunpack.c.l.b16 %v618
      %v1755 = vunpack.c.l.b16 %v619
      %v1756 = vunpack.c.l.b16 %v620
      %v1757 = vpack.c.b16 %v1742, %v1741
      %v1758 = vpack.c.b16 %v1744, %v1743
      %v1759 = vpack.c.b16 %v1746, %v1745
      %v1760 = vpack.c.b16 %v1748, %v1747
      %v1761 = vpack.c.b16 %v1750, %v1749
      %v1762 = vpack.c.b16 %v1752, %v1751
      %v1763 = vpack.c.b16 %v1754, %v1753
      %v1764 = vpack.c.b16 %v1756, %v1755
      %1773 = vmatprep.subr.bf16.mxu0 0
      %1774 = vmatpush1.bf16.msra.mxu0 %v1757
      %1775 = vmatprep.subr.bf16.mxu0 0
      %1776 = vmatpush1.bf16.msra.mxu0 %v1758
      %1777 = vmatprep.subr.bf16.mxu0 0
      %1778 = vmatpush1.bf16.msra.mxu0 %v1759
      %1779 = vmatprep.subr.bf16.mxu0 0
      %1780 = vmatpush1.bf16.msra.mxu0 %v1760
      %1781 = vmatprep.subr.bf16.mxu0 0
      %1782 = vmatpush1.bf16.msra.mxu0 %v1761
      %1783 = vmatprep.subr.bf16.mxu0 0
      %1784 = vmatpush1.bf16.msra.mxu0 %v1762
      %1785 = vmatprep.subr.bf16.mxu0 0
      %1786 = vmatpush1.bf16.msra.mxu0 %v1763
      %1787 = vmatprep.subr.bf16.mxu0 0
      %1788 = vmatpush1.bf16.msra.mxu0 %v1764
      %1789 = vmatprep.subr.bf16.mxu0 0
      %1790 = vmatpush1.bf16.msra.mxu0 0
      %1791 = vmatprep.subr.bf16.mxu0 0
      %1792 = vmatpush1.bf16.msra.mxu0 0
      %1793 = vmatprep.subr.bf16.mxu0 0
      %1794 = vmatpush1.bf16.msra.mxu0 0
      %1795 = vmatprep.subr.bf16.mxu0 0
      %1796 = vmatpush1.bf16.msra.mxu0 0
      %1797 = vmatprep.subr.bf16.mxu0 0
      %1798 = vmatpush1.bf16.msra.mxu0 0
      %1799 = vmatprep.subr.bf16.mxu0 0
      %1800 = vmatpush1.bf16.msra.mxu0 0
      %1801 = vmatprep.subr.bf16.mxu0 0
      %1802 = vmatpush1.bf16.msra.mxu0 0
      %1803 = vmatprep.subr.bf16.mxu0 0
      %1804 = vmatpush1.bf16.msra.mxu0 0
      %1805 = vmatprep.mubr.bf16.mxu0 0
      %1806 = vmatmul.mubr.bf16.gmra.mrb[0].mxu0 %v409
      %v1807 = vpop.f32.mrb[0].mxu0
      %v1808 = vadd.f32 0.0, %v1807
      %v1809 = vpop.f32.mrb[0].mxu0
      %v1810 = vpop.f32.mrb[0].mxu0
      %v1811 = vpop.f32.mrb[0].mxu0
      %1812 = vdwg.mxu0
      %v1829 = vunpack.c.l.b16 %v621
      %v1830 = vunpack.c.l.b16 %v622
      %v1831 = vunpack.c.l.b16 %v623
      %v1832 = vunpack.c.l.b16 %v624
      %v1833 = vunpack.c.l.b16 %v625
      %v1834 = vunpack.c.l.b16 %v626
      %v1835 = vunpack.c.l.b16 %v627
      %v1836 = vunpack.c.l.b16 %v628
      %v1837 = vunpack.c.l.b16 %v629
      %v1838 = vunpack.c.l.b16 %v630
      %v1839 = vunpack.c.l.b16 %v631
      %v1840 = vunpack.c.l.b16 %v632
      %v1841 = vunpack.c.l.b16 %v633
      %v1842 = vunpack.c.l.b16 %v634
      %v1843 = vunpack.c.l.b16 %v635
      %v1844 = vunpack.c.l.b16 %v636
      %v1845 = vpack.c.b16 %v1830, %v1829
      %v1846 = vpack.c.b16 %v1832, %v1831
      %v1847 = vpack.c.b16 %v1834, %v1833
      %v1848 = vpack.c.b16 %v1836, %v1835
      %v1849 = vpack.c.b16 %v1838, %v1837
      %v1850 = vpack.c.b16 %v1840, %v1839
      %v1851 = vpack.c.b16 %v1842, %v1841
      %v1852 = vpack.c.b16 %v1844, %v1843
      %1861 = vmatprep.subr.bf16.mxu0 0
      %1862 = vmatpush1.bf16.msra.mxu0 %v1845
      %1863 = vmatprep.subr.bf16.mxu0 0
      %1864 = vmatpush1.bf16.msra.mxu0 %v1846
      %1865 = vmatprep.subr.bf16.mxu0 0
      %1866 = vmatpush1.bf16.msra.mxu0 %v1847
      %1867 = vmatprep.subr.bf16.mxu0 0
      %1868 = vmatpush1.bf16.msra.mxu0 %v1848
      %1869 = vmatprep.subr.bf16.mxu0 0
      %1870 = vmatpush1.bf16.msra.mxu0 %v1849
      %1871 = vmatprep.subr.bf16.mxu0 0
      %1872 = vmatpush1.bf16.msra.mxu0 %v1850
      %1873 = vmatprep.subr.bf16.mxu0 0
      %1874 = vmatpush1.bf16.msra.mxu0 %v1851
      %1875 = vmatprep.subr.bf16.mxu0 0
      %1876 = vmatpush1.bf16.msra.mxu0 %v1852
      %1877 = vmatprep.subr.bf16.mxu0 0
      %1878 = vmatpush1.bf16.msra.mxu0 0
      %1879 = vmatprep.subr.bf16.mxu0 0
      %1880 = vmatpush1.bf16.msra.mxu0 0
      %1881 = vmatprep.subr.bf16.mxu0 0
      %1882 = vmatpush1.bf16.msra.mxu0 0
      %1883 = vmatprep.subr.bf16.mxu0 0
      %1884 = vmatpush1.bf16.msra.mxu0 0
      %1885 = vmatprep.subr.bf16.mxu0 0
      %1886 = vmatpush1.bf16.msra.mxu0 0
      %1887 = vmatprep.subr.bf16.mxu0 0
      %1888 = vmatpush1.bf16.msra.mxu0 0
      %1889 = vmatprep.subr.bf16.mxu0 0
      %1890 = vmatpush1.bf16.msra.mxu0 0
      %1891 = vmatprep.subr.bf16.mxu0 0
      %1892 = vmatpush1.bf16.msra.mxu0 0
      %1893 = vmatprep.mubr.bf16.mxu0 0
      %1894 = vmatmul.mubr.bf16.gmra.mrb[0].mxu0 %v410
      %v1895 = vpop.f32.mrb[0].mxu0
      %v1896 = vadd.f32 0.0, %v1895
      %v1897 = vpop.f32.mrb[0].mxu0
      %v1898 = vpop.f32.mrb[0].mxu0
      %v1899 = vpop.f32.mrb[0].mxu0
      %1900 = vdwg.mxu0
      %v1917 = vunpack.c.l.b16 %v637
      %v1918 = vunpack.c.l.b16 %v638
      %v1919 = vunpack.c.l.b16 %v639
      %v1920 = vunpack.c.l.b16 %v640
      %v1921 = vunpack.c.l.b16 %v641
      %v1922 = vunpack.c.l.b16 %v642
      %v1923 = vunpack.c.l.b16 %v643
      %v1924 = vunpack.c.l.b16 %v644
      %v1925 = vunpack.c.l.b16 %v645
      %v1926 = vunpack.c.l.b16 %v646
      %v1927 = vunpack.c.l.b16 %v647
      %v1928 = vunpack.c.l.b16 %v648
      %v1929 = vunpack.c.l.b16 %v649
      %v1930 = vunpack.c.l.b16 %v650
      %v1931 = vunpack.c.l.b16 %v651
      %v1932 = vunpack.c.l.b16 %v652
      %v1933 = vpack.c.b16 %v1918, %v1917
      %v1934 = vpack.c.b16 %v1920, %v1919
      %v1935 = vpack.c.b16 %v1922, %v1921
      %v1936 = vpack.c.b16 %v1924, %v1923
      %v1937 = vpack.c.b16 %v1926, %v1925
      %v1938 = vpack.c.b16 %v1928, %v1927
      %v1939 = vpack.c.b16 %v1930, %v1929
      %v1940 = vpack.c.b16 %v1932, %v1931
      %1949 = vmatprep.subr.bf16.mxu0 0
      %1950 = vmatpush1.bf16.msra.mxu0 %v1933
      %1951 = vmatprep.subr.bf16.mxu0 0
      %1952 = vmatpush1.bf16.msra.mxu0 %v1934
      %1953 = vmatprep.subr.bf16.mxu0 0
      %1954 = vmatpush1.bf16.msra.mxu0 %v1935
      %1955 = vmatprep.subr.bf16.mxu0 0
      %1956 = vmatpush1.bf16.msra.mxu0 %v1936
      %1957 = vmatprep.subr.bf16.mxu0 0
      %1958 = vmatpush1.bf16.msra.mxu0 %v1937
      %1959 = vmatprep.subr.bf16.mxu0 0
      %1960 = vmatpush1.bf16.msra.mxu0 %v1938
      %1961 = vmatprep.subr.bf16.mxu0 0
      %1962 = vmatpush1.bf16.msra.mxu0 %v1939
      %1963 = vmatprep.subr.bf16.mxu0 0
      %1964 = vmatpush1.bf16.msra.mxu0 %v1940
      %1965 = vmatprep.subr.bf16.mxu0 0
      %1966 = vmatpush1.bf16.msra.mxu0 0
      %1967 = vmatprep.subr.bf16.mxu0 0
      %1968 = vmatpush1.bf16.msra.mxu0 0
      %1969 = vmatprep.subr.bf16.mxu0 0
      %1970 = vmatpush1.bf16.msra.mxu0 0
      %1971 = vmatprep.subr.bf16.mxu0 0
      %1972 = vmatpush1.bf16.msra.mxu0 0
      %1973 = vmatprep.subr.bf16.mxu0 0
      %1974 = vmatpush1.bf16.msra.mxu0 0
      %1975 = vmatprep.subr.bf16.mxu0 0
      %1976 = vmatpush1.bf16.msra.mxu0 0
      %1977 = vmatprep.subr.bf16.mxu0 0
      %1978 = vmatpush1.bf16.msra.mxu0 0
      %1979 = vmatprep.subr.bf16.mxu0 0
      %1980 = vmatpush1.bf16.msra.mxu0 0
      %1981 = vmatprep.mubr.bf16.mxu0 0
      %1982 = vmatmul.mubr.bf16.gmra.mrb[0].mxu0 %v411
      %v1983 = vpop.f32.mrb[0].mxu0
      %v1984 = vadd.f32 0.0, %v1983
      %v1985 = vpop.f32.mrb[0].mxu0
      %v1986 = vpop.f32.mrb[0].mxu0
      %v1987 = vpop.f32.mrb[0].mxu0
      %1988 = vdwg.mxu0
      %v2005 = vunpack.c.l.b16 %v653
      %v2006 = vunpack.c.l.b16 %v654
      %v2007 = vunpack.c.l.b16 %v655
      %v2008 = vunpack.c.l.b16 %v656
      %v2009 = vunpack.c.l.b16 %v657
      %v2010 = vunpack.c.l.b16 %v658
      %v2011 = vunpack.c.l.b16 %v659
      %v2012 = vunpack.c.l.b16 %v660
      %v2013 = vunpack.c.l.b16 %v661
      %v2014 = vunpack.c.l.b16 %v662
      %v2015 = vunpack.c.l.b16 %v663
      %v2016 = vunpack.c.l.b16 %v664
      %v2017 = vunpack.c.l.b16 %v665
      %v2018 = vunpack.c.l.b16 %v666
      %v2019 = vunpack.c.l.b16 %v667
      %v2020 = vunpack.c.l.b16 %v668
      %v2021 = vpack.c.b16 %v2006, %v2005
      %v2022 = vpack.c.b16 %v2008, %v2007
      %v2023 = vpack.c.b16 %v2010, %v2009
      %v2024 = vpack.c.b16 %v2012, %v2011
      %v2025 = vpack.c.b16 %v2014, %v2013
      %v2026 = vpack.c.b16 %v2016, %v2015
      %v2027 = vpack.c.b16 %v2018, %v2017
      %v2028 = vpack.c.b16 %v2020, %v2019
      %2037 = vmatprep.subr.bf16.mxu0 0
      %2038 = vmatpush1.bf16.msra.mxu0 %v2021
      %2039 = vmatprep.subr.bf16.mxu0 0
      %2040 = vmatpush1.bf16.msra.mxu0 %v2022
      %2041 = vmatprep.subr.bf16.mxu0 0
      %2042 = vmatpush1.bf16.msra.mxu0 %v2023
      %2043 = vmatprep.subr.bf16.mxu0 0
      %2044 = vmatpush1.bf16.msra.mxu0 %v2024
      %2045 = vmatprep.subr.bf16.mxu0 0
      %2046 = vmatpush1.bf16.msra.mxu0 %v2025
      %2047 = vmatprep.subr.bf16.mxu0 0
      %2048 = vmatpush1.bf16.msra.mxu0 %v2026
      %2049 = vmatprep.subr.bf16.mxu0 0
      %2050 = vmatpush1.bf16.msra.mxu0 %v2027
      %2051 = vmatprep.subr.bf16.mxu0 0
      %2052 = vmatpush1.bf16.msra.mxu0 %v2028
      %2053 = vmatprep.subr.bf16.mxu0 0
      %2054 = vmatpush1.bf16.msra.mxu0 0
      %2055 = vmatprep.subr.bf16.mxu0 0
      %2056 = vmatpush1.bf16.msra.mxu0 0
      %2057 = vmatprep.subr.bf16.mxu0 0
      %2058 = vmatpush1.bf16.msra.mxu0 0
      %2059 = vmatprep.subr.bf16.mxu0 0
      %2060 = vmatpush1.bf16.msra.mxu0 0
      %2061 = vmatprep.subr.bf16.mxu0 0
      %2062 = vmatpush1.bf16.msra.mxu0 0
      %2063 = vmatprep.subr.bf16.mxu0 0
      %2064 = vmatpush1.bf16.msra.mxu0 0
      %2065 = vmatprep.subr.bf16.mxu0 0
      %2066 = vmatpush1.bf16.msra.mxu0 0
      %2067 = vmatprep.subr.bf16.mxu0 0
      %2068 = vmatpush1.bf16.msra.mxu0 0
      %2069 = vmatprep.mubr.bf16.mxu0 0
      %2070 = vmatmul.mubr.bf16.gmra.mrb[0].mxu0 %v412
      %v2071 = vpop.f32.mrb[0].mxu0
      %v2072 = vadd.f32 0.0, %v2071
      %v2073 = vpop.f32.mrb[0].mxu0
      %v2074 = vpop.f32.mrb[0].mxu0
      %v2075 = vpop.f32.mrb[0].mxu0
      %2076 = vdwg.mxu0
      %v2077 = vadd.bf16 %v397, %v405
      %v2078 = vadd.bf16 %v398, %v406
      %v2079 = vadd.bf16 %v399, %v407
      %v2080 = vadd.bf16 %v400, %v408
      %v2081 = vadd.bf16 %v401, %v409
      %v2082 = vadd.bf16 %v402, %v410
      %v2083 = vadd.bf16 %v403, %v411
      %v2084 = vadd.bf16 %v404, %v412
      %v2085 = vadd.bf16 %v413, %v541
      %v2086 = vadd.bf16 %v414, %v542
      %v2087 = vadd.bf16 %v415, %v543
      %v2088 = vadd.bf16 %v416, %v544
      %v2089 = vadd.bf16 %v417, %v545
      %v2090 = vadd.bf16 %v418, %v546
      %v2091 = vadd.bf16 %v419, %v547
      %v2092 = vadd.bf16 %v420, %v548
      %v2093 = vadd.bf16 %v421, %v549
      %v2094 = vadd.bf16 %v422, %v550
      %v2095 = vadd.bf16 %v423, %v551
      %v2096 = vadd.bf16 %v424, %v552
      %v2097 = vadd.bf16 %v425, %v553
      %v2098 = vadd.bf16 %v426, %v554
      %v2099 = vadd.bf16 %v427, %v555
      %v2100 = vadd.bf16 %v428, %v556
      %v2101 = vadd.bf16 %v429, %v557
      %v2102 = vadd.bf16 %v430, %v558
      %v2103 = vadd.bf16 %v431, %v559
      %v2104 = vadd.bf16 %v432, %v560
      %v2105 = vadd.bf16 %v433, %v561
      %v2106 = vadd.bf16 %v434, %v562
      %v2107 = vadd.bf16 %v435, %v563
      %v2108 = vadd.bf16 %v436, %v564
      %v2109 = vadd.bf16 %v437, %v565
      %v2110 = vadd.bf16 %v438, %v566
      %v2111 = vadd.bf16 %v439, %v567
      %v2112 = vadd.bf16 %v440, %v568
      %v2113 = vadd.bf16 %v441, %v569
      %v2114 = vadd.bf16 %v442, %v570
      %v2115 = vadd.bf16 %v443, %v571
      %v2116 = vadd.bf16 %v444, %v572
      %v2117 = vadd.bf16 %v445, %v573
      %v2118 = vadd.bf16 %v446, %v574
      %v2119 = vadd.bf16 %v447, %v575
      %v2120 = vadd.bf16 %v448, %v576
      %v2121 = vadd.bf16 %v449, %v577
      %v2122 = vadd.bf16 %v450, %v578
      %v2123 = vadd.bf16 %v451, %v579
      %v2124 = vadd.bf16 %v452, %v580
      %v2125 = vadd.bf16 %v453, %v581
      %v2126 = vadd.bf16 %v454, %v582
      %v2127 = vadd.bf16 %v455, %v583
      %v2128 = vadd.bf16 %v456, %v584
      %v2129 = vadd.bf16 %v457, %v585
      %v2130 = vadd.bf16 %v458, %v586
      %v2131 = vadd.bf16 %v459, %v587
      %v2132 = vadd.bf16 %v460, %v588
      %v2133 = vadd.bf16 %v461, %v589
      %v2134 = vadd.bf16 %v462, %v590
      %v2135 = vadd.bf16 %v463, %v591
      %v2136 = vadd.bf16 %v464, %v592
      %v2137 = vadd.bf16 %v465, %v593
      %v2138 = vadd.bf16 %v466, %v594
      %v2139 = vadd.bf16 %v467, %v595
      %v2140 = vadd.bf16 %v468, %v596
      %v2141 = vadd.bf16 %v469, %v597
      %v2142 = vadd.bf16 %v470, %v598
      %v2143 = vadd.bf16 %v471, %v599
      %v2144 = vadd.bf16 %v472, %v600
      %v2145 = vadd.bf16 %v473, %v601
      %v2146 = vadd.bf16 %v474, %v602
      %v2147 = vadd.bf16 %v475, %v603
      %v2148 = vadd.bf16 %v476, %v604
      %v2149 = vadd.bf16 %v477, %v605
      %v2150 = vadd.bf16 %v478, %v606
      %v2151 = vadd.bf16 %v479, %v607
      %v2152 = vadd.bf16 %v480, %v608
      %v2153 = vadd.bf16 %v481, %v609
      %v2154 = vadd.bf16 %v482, %v610
      %v2155 = vadd.bf16 %v483, %v611
      %v2156 = vadd.bf16 %v484, %v612
      %v2157 = vadd.bf16 %v485, %v613
      %v2158 = vadd.bf16 %v486, %v614
      %v2159 = vadd.bf16 %v487, %v615
      %v2160 = vadd.bf16 %v488, %v616
      %v2161 = vadd.bf16 %v489, %v617
      %v2162 = vadd.bf16 %v490, %v618
      %v2163 = vadd.bf16 %v491, %v619
      %v2164 = vadd.bf16 %v492, %v620
      %v2165 = vadd.bf16 %v493, %v621
      %v2166 = vadd.bf16 %v494, %v622
      %v2167 = vadd.bf16 %v495, %v623
      %v2168 = vadd.bf16 %v496, %v624
      %v2169 = vadd.bf16 %v497, %v625
      %v2170 = vadd.bf16 %v498, %v626
      %v2171 = vadd.bf16 %v499, %v627
      %v2172 = vadd.bf16 %v500, %v628
      %v2173 = vadd.bf16 %v501, %v629
      %v2174 = vadd.bf16 %v502, %v630
      %v2175 = vadd.bf16 %v503, %v631
      %v2176 = vadd.bf16 %v504, %v632
      %v2177 = vadd.bf16 %v505, %v633
      %v2178 = vadd.bf16 %v506, %v634
      %v2179 = vadd.bf16 %v507, %v635
      %v2180 = vadd.bf16 %v508, %v636
      %v2181 = vadd.bf16 %v509, %v637
      %v2182 = vadd.bf16 %v510, %v638
      %v2183 = vadd.bf16 %v511, %v639
      %v2184 = vadd.bf16 %v512, %v640
      %v2185 = vadd.bf16 %v513, %v641
      %v2186 = vadd.bf16 %v514, %v642
      %v2187 = vadd.bf16 %v515, %v643
      %v2188 = vadd.bf16 %v516, %v644
      %v2189 = vadd.bf16 %v517, %v645
      %v2190 = vadd.bf16 %v518, %v646
      %v2191 = vadd.bf16 %v519, %v647
      %v2192 = vadd.bf16 %v520, %v648
      %v2193 = vadd.bf16 %v521, %v649
      %v2194 = vadd.bf16 %v522, %v650
      %v2195 = vadd.bf16 %v523, %v651
      %v2196 = vadd.bf16 %v524, %v652
      %v2197 = vadd.bf16 %v525, %v653
      %v2198 = vadd.bf16 %v526, %v654
      %v2199 = vadd.bf16 %v527, %v655
      %v2200 = vadd.bf16 %v528, %v656
      %v2201 = vadd.bf16 %v529, %v657
      %v2202 = vadd.bf16 %v530, %v658
      %v2203 = vadd.bf16 %v531, %v659
      %v2204 = vadd.bf16 %v532, %v660
      %v2205 = vadd.bf16 %v533, %v661
      %v2206 = vadd.bf16 %v534, %v662
      %v2207 = vadd.bf16 %v535, %v663
      %v2208 = vadd.bf16 %v536, %v664
      %v2209 = vadd.bf16 %v537, %v665
      %v2210 = vadd.bf16 %v538, %v666
      %v2211 = vadd.bf16 %v539, %v667
      %v2212 = vadd.bf16 %v540, %v668
      %v2229 = vunpack.c.l.b16 %v2085
      %v2230 = vunpack.c.l.b16 %v2086
      %v2231 = vunpack.c.l.b16 %v2087
      %v2232 = vunpack.c.l.b16 %v2088
      %v2233 = vunpack.c.l.b16 %v2089
      %v2234 = vunpack.c.l.b16 %v2090
      %v2235 = vunpack.c.l.b16 %v2091
      %v2236 = vunpack.c.l.b16 %v2092
      %v2237 = vunpack.c.l.b16 %v2093
      %v2238 = vunpack.c.l.b16 %v2094
      %v2239 = vunpack.c.l.b16 %v2095
      %v2240 = vunpack.c.l.b16 %v2096
      %v2241 = vunpack.c.l.b16 %v2097
      %v2242 = vunpack.c.l.b16 %v2098
      %v2243 = vunpack.c.l.b16 %v2099
      %v2244 = vunpack.c.l.b16 %v2100
      %v2245 = vpack.c.b16 %v2230, %v2229
      %v2246 = vpack.c.b16 %v2232, %v2231
      %v2247 = vpack.c.b16 %v2234, %v2233
      %v2248 = vpack.c.b16 %v2236, %v2235
      %v2249 = vpack.c.b16 %v2238, %v2237
      %v2250 = vpack.c.b16 %v2240, %v2239
      %v2251 = vpack.c.b16 %v2242, %v2241
      %v2252 = vpack.c.b16 %v2244, %v2243
      %2261 = vmatprep.subr.bf16.mxu0 0
      %2262 = vmatpush1.bf16.msra.mxu0 %v2245
      %2263 = vmatprep.subr.bf16.mxu0 0
      %2264 = vmatpush1.bf16.msra.mxu0 %v2246
      %2265 = vmatprep.subr.bf16.mxu0 0
      %2266 = vmatpush1.bf16.msra.mxu0 %v2247
      %2267 = vmatprep.subr.bf16.mxu0 0
      %2268 = vmatpush1.bf16.msra.mxu0 %v2248
      %2269 = vmatprep.subr.bf16.mxu0 0
      %2270 = vmatpush1.bf16.msra.mxu0 %v2249
      %2271 = vmatprep.subr.bf16.mxu0 0
      %2272 = vmatpush1.bf16.msra.mxu0 %v2250
      %2273 = vmatprep.subr.bf16.mxu0 0
      %2274 = vmatpush1.bf16.msra.mxu0 %v2251
      %2275 = vmatprep.subr.bf16.mxu0 0
      %2276 = vmatpush1.bf16.msra.mxu0 %v2252
      %2277 = vmatprep.subr.bf16.mxu0 0
      %2278 = vmatpush1.bf16.msra.mxu0 0
      %2279 = vmatprep.subr.bf16.mxu0 0
      %2280 = vmatpush1.bf16.msra.mxu0 0
      %2281 = vmatprep.subr.bf16.mxu0 0
      %2282 = vmatpush1.bf16.msra.mxu0 0
      %2283 = vmatprep.subr.bf16.mxu0 0
      %2284 = vmatpush1.bf16.msra.mxu0 0
      %2285 = vmatprep.subr.bf16.mxu0 0
      %2286 = vmatpush1.bf16.msra.mxu0 0
      %2287 = vmatprep.subr.bf16.mxu0 0
      %2288 = vmatpush1.bf16.msra.mxu0 0
      %2289 = vmatprep.subr.bf16.mxu0 0
      %2290 = vmatpush1.bf16.msra.mxu0 0
      %2291 = vmatprep.subr.bf16.mxu0 0
      %2292 = vmatpush1.bf16.msra.mxu0 0
      %2293 = vmatprep.mubr.bf16.mxu0 0
      %2294 = vmatmul.mubr.bf16.gmra.mrb[0].mxu0 %v2077
      %v2295 = vpop.f32.mrb[0].mxu0
      %v2296 = vadd.f32 0.0, %v2295
      %v2297 = vpop.f32.mrb[0].mxu0
      %v2298 = vpop.f32.mrb[0].mxu0
      %v2299 = vpop.f32.mrb[0].mxu0
      %2300 = vdwg.mxu0
      %v2317 = vunpack.c.l.b16 %v2101
      %v2318 = vunpack.c.l.b16 %v2102
      %v2319 = vunpack.c.l.b16 %v2103
      %v2320 = vunpack.c.l.b16 %v2104
      %v2321 = vunpack.c.l.b16 %v2105
      %v2322 = vunpack.c.l.b16 %v2106
      %v2323 = vunpack.c.l.b16 %v2107
      %v2324 = vunpack.c.l.b16 %v2108
      %v2325 = vunpack.c.l.b16 %v2109
      %v2326 = vunpack.c.l.b16 %v2110
      %v2327 = vunpack.c.l.b16 %v2111
      %v2328 = vunpack.c.l.b16 %v2112
      %v2329 = vunpack.c.l.b16 %v2113
      %v2330 = vunpack.c.l.b16 %v2114
      %v2331 = vunpack.c.l.b16 %v2115
      %v2332 = vunpack.c.l.b16 %v2116
      %v2333 = vpack.c.b16 %v2318, %v2317
      %v2334 = vpack.c.b16 %v2320, %v2319
      %v2335 = vpack.c.b16 %v2322, %v2321
      %v2336 = vpack.c.b16 %v2324, %v2323
      %v2337 = vpack.c.b16 %v2326, %v2325
      %v2338 = vpack.c.b16 %v2328, %v2327
      %v2339 = vpack.c.b16 %v2330, %v2329
      %v2340 = vpack.c.b16 %v2332, %v2331
      %2349 = vmatprep.subr.bf16.mxu0 0
      %2350 = vmatpush1.bf16.msra.mxu0 %v2333
      %2351 = vmatprep.subr.bf16.mxu0 0
      %2352 = vmatpush1.bf16.msra.mxu0 %v2334
      %2353 = vmatprep.subr.bf16.mxu0 0
      %2354 = vmatpush1.bf16.msra.mxu0 %v2335
      %2355 = vmatprep.subr.bf16.mxu0 0
      %2356 = vmatpush1.bf16.msra.mxu0 %v2336
      %2357 = vmatprep.subr.bf16.mxu0 0
      %2358 = vmatpush1.bf16.msra.mxu0 %v2337
      %2359 = vmatprep.subr.bf16.mxu0 0
      %2360 = vmatpush1.bf16.msra.mxu0 %v2338
      %2361 = vmatprep.subr.bf16.mxu0 0
      %2362 = vmatpush1.bf16.msra.mxu0 %v2339
      %2363 = vmatprep.subr.bf16.mxu0 0
      %2364 = vmatpush1.bf16.msra.mxu0 %v2340
      %2365 = vmatprep.subr.bf16.mxu0 0
      %2366 = vmatpush1.bf16.msra.mxu0 0
      %2367 = vmatprep.subr.bf16.mxu0 0
      %2368 = vmatpush1.bf16.msra.mxu0 0
      %2369 = vmatprep.subr.bf16.mxu0 0
      %2370 = vmatpush1.bf16.msra.mxu0 0
      %2371 = vmatprep.subr.bf16.mxu0 0
      %2372 = vmatpush1.bf16.msra.mxu0 0
      %2373 = vmatprep.subr.bf16.mxu0 0
      %2374 = vmatpush1.bf16.msra.mxu0 0
      %2375 = vmatprep.subr.bf16.mxu0 0
      %2376 = vmatpush1.bf16.msra.mxu0 0
      %2377 = vmatprep.subr.bf16.mxu0 0
      %2378 = vmatpush1.bf16.msra.mxu0 0
      %2379 = vmatprep.subr.bf16.mxu0 0
      %2380 = vmatpush1.bf16.msra.mxu0 0
      %2381 = vmatprep.mubr.bf16.mxu0 0
      %2382 = vmatmul.mubr.bf16.gmra.mrb[0].mxu0 %v2078
      %v2383 = vpop.f32.mrb[0].mxu0
      %v2384 = vadd.f32 0.0, %v2383
      %v2385 = vpop.f32.mrb[0].mxu0
      %v2386 = vpop.f32.mrb[0].mxu0
      %v2387 = vpop.f32.mrb[0].mxu0
      %2388 = vdwg.mxu0
      %v2405 = vunpack.c.l.b16 %v2117
      %v2406 = vunpack.c.l.b16 %v2118
      %v2407 = vunpack.c.l.b16 %v2119
      %v2408 = vunpack.c.l.b16 %v2120
      %v2409 = vunpack.c.l.b16 %v2121
      %v2410 = vunpack.c.l.b16 %v2122
      %v2411 = vunpack.c.l.b16 %v2123
      %v2412 = vunpack.c.l.b16 %v2124
      %v2413 = vunpack.c.l.b16 %v2125
      %v2414 = vunpack.c.l.b16 %v2126
      %v2415 = vunpack.c.l.b16 %v2127
      %v2416 = vunpack.c.l.b16 %v2128
      %v2417 = vunpack.c.l.b16 %v2129
      %v2418 = vunpack.c.l.b16 %v2130
      %v2419 = vunpack.c.l.b16 %v2131
      %v2420 = vunpack.c.l.b16 %v2132
      %v2421 = vpack.c.b16 %v2406, %v2405
      %v2422 = vpack.c.b16 %v2408, %v2407
      %v2423 = vpack.c.b16 %v2410, %v2409
      %v2424 = vpack.c.b16 %v2412, %v2411
      %v2425 = vpack.c.b16 %v2414, %v2413
      %v2426 = vpack.c.b16 %v2416, %v2415
      %v2427 = vpack.c.b16 %v2418, %v2417
      %v2428 = vpack.c.b16 %v2420, %v2419
      %2437 = vmatprep.subr.bf16.mxu0 0
      %2438 = vmatpush1.bf16.msra.mxu0 %v2421
      %2439 = vmatprep.subr.bf16.mxu0 0
      %2440 = vmatpush1.bf16.msra.mxu0 %v2422
      %2441 = vmatprep.subr.bf16.mxu0 0
      %2442 = vmatpush1.bf16.msra.mxu0 %v2423
      %2443 = vmatprep.subr.bf16.mxu0 0
      %2444 = vmatpush1.bf16.msra.mxu0 %v2424
      %2445 = vmatprep.subr.bf16.mxu0 0
      %2446 = vmatpush1.bf16.msra.mxu0 %v2425
      %2447 = vmatprep.subr.bf16.mxu0 0
      %2448 = vmatpush1.bf16.msra.mxu0 %v2426
      %2449 = vmatprep.subr.bf16.mxu0 0
      %2450 = vmatpush1.bf16.msra.mxu0 %v2427
      %2451 = vmatprep.subr.bf16.mxu0 0
      %2452 = vmatpush1.bf16.msra.mxu0 %v2428
      %2453 = vmatprep.subr.bf16.mxu0 0
      %2454 = vmatpush1.bf16.msra.mxu0 0
      %2455 = vmatprep.subr.bf16.mxu0 0
      %2456 = vmatpush1.bf16.msra.mxu0 0
      %2457 = vmatprep.subr.bf16.mxu0 0
      %2458 = vmatpush1.bf16.msra.mxu0 0
      %2459 = vmatprep.subr.bf16.mxu0 0
      %2460 = vmatpush1.bf16.msra.mxu0 0
      %2461 = vmatprep.subr.bf16.mxu0 0
      %2462 = vmatpush1.bf16.msra.mxu0 0
      %2463 = vmatprep.subr.bf16.mxu0 0
      %2464 = vmatpush1.bf16.msra.mxu0 0
      %2465 = vmatprep.subr.bf16.mxu0 0
      %2466 = vmatpush1.bf16.msra.mxu0 0
      %2467 = vmatprep.subr.bf16.mxu0 0
      %2468 = vmatpush1.bf16.msra.mxu0 0
      %2469 = vmatprep.mubr.bf16.mxu0 0
      %2470 = vmatmul.mubr.bf16.gmra.mrb[0].mxu0 %v2079
      %v2471 = vpop.f32.mrb[0].mxu0
      %v2472 = vadd.f32 0.0, %v2471
      %v2473 = vpop.f32.mrb[0].mxu0
      %v2474 = vpop.f32.mrb[0].mxu0
      %v2475 = vpop.f32.mrb[0].mxu0
      %2476 = vdwg.mxu0
      %v2493 = vunpack.c.l.b16 %v2133
      %v2494 = vunpack.c.l.b16 %v2134
      %v2495 = vunpack.c.l.b16 %v2135
      %v2496 = vunpack.c.l.b16 %v2136
      %v2497 = vunpack.c.l.b16 %v2137
      %v2498 = vunpack.c.l.b16 %v2138
      %v2499 = vunpack.c.l.b16 %v2139
      %v2500 = vunpack.c.l.b16 %v2140
      %v2501 = vunpack.c.l.b16 %v2141
      %v2502 = vunpack.c.l.b16 %v2142
      %v2503 = vunpack.c.l.b16 %v2143
      %v2504 = vunpack.c.l.b16 %v2144
      %v2505 = vunpack.c.l.b16 %v2145
      %v2506 = vunpack.c.l.b16 %v2146
      %v2507 = vunpack.c.l.b16 %v2147
      %v2508 = vunpack.c.l.b16 %v2148
      %v2509 = vpack.c.b16 %v2494, %v2493
      %v2510 = vpack.c.b16 %v2496, %v2495
      %v2511 = vpack.c.b16 %v2498, %v2497
      %v2512 = vpack.c.b16 %v2500, %v2499
      %v2513 = vpack.c.b16 %v2502, %v2501
      %v2514 = vpack.c.b16 %v2504, %v2503
      %v2515 = vpack.c.b16 %v2506, %v2505
      %v2516 = vpack.c.b16 %v2508, %v2507
      %2525 = vmatprep.subr.bf16.mxu0 0
      %2526 = vmatpush1.bf16.msra.mxu0 %v2509
      %2527 = vmatprep.subr.bf16.mxu0 0
      %2528 = vmatpush1.bf16.msra.mxu0 %v2510
      %2529 = vmatprep.subr.bf16.mxu0 0
      %2530 = vmatpush1.bf16.msra.mxu0 %v2511
      %2531 = vmatprep.subr.bf16.mxu0 0
      %2532 = vmatpush1.bf16.msra.mxu0 %v2512
      %2533 = vmatprep.subr.bf16.mxu0 0
      %2534 = vmatpush1.bf16.msra.mxu0 %v2513
      %2535 = vmatprep.subr.bf16.mxu0 0
      %2536 = vmatpush1.bf16.msra.mxu0 %v2514
      %2537 = vmatprep.subr.bf16.mxu0 0
      %2538 = vmatpush1.bf16.msra.mxu0 %v2515
      %2539 = vmatprep.subr.bf16.mxu0 0
      %2540 = vmatpush1.bf16.msra.mxu0 %v2516
      %2541 = vmatprep.subr.bf16.mxu0 0
      %2542 = vmatpush1.bf16.msra.mxu0 0
      %2543 = vmatprep.subr.bf16.mxu0 0
      %2544 = vmatpush1.bf16.msra.mxu0 0
      %2545 = vmatprep.subr.bf16.mxu0 0
      %2546 = vmatpush1.bf16.msra.mxu0 0
      %2547 = vmatprep.subr.bf16.mxu0 0
      %2548 = vmatpush1.bf16.msra.mxu0 0
      %2549 = vmatprep.subr.bf16.mxu0 0
      %2550 = vmatpush1.bf16.msra.mxu0 0
      %2551 = vmatprep.subr.bf16.mxu0 0
      %2552 = vmatpush1.bf16.msra.mxu0 0
      %2553 = vmatprep.subr.bf16.mxu0 0
      %2554 = vmatpush1.bf16.msra.mxu0 0
      %2555 = vmatprep.subr.bf16.mxu0 0
      %2556 = vmatpush1.bf16.msra.mxu0 0
      %2557 = vmatprep.mubr.bf16.mxu0 0
      %2558 = vmatmul.mubr.bf16.gmra.mrb[0].mxu0 %v2080
      %v2559 = vpop.f32.mrb[0].mxu0
      %v2560 = vadd.f32 0.0, %v2559
      %v2561 = vpop.f32.mrb[0].mxu0
      %v2562 = vpop.f32.mrb[0].mxu0
      %v2563 = vpop.f32.mrb[0].mxu0
      %2564 = vdwg.mxu0
      %v2581 = vunpack.c.l.b16 %v2149
      %v2582 = vunpack.c.l.b16 %v2150
      %v2583 = vunpack.c.l.b16 %v2151
      %v2584 = vunpack.c.l.b16 %v2152
      %v2585 = vunpack.c.l.b16 %v2153
      %v2586 = vunpack.c.l.b16 %v2154
      %v2587 = vunpack.c.l.b16 %v2155
      %v2588 = vunpack.c.l.b16 %v2156
      %v2589 = vunpack.c.l.b16 %v2157
      %v2590 = vunpack.c.l.b16 %v2158
      %v2591 = vunpack.c.l.b16 %v2159
      %v2592 = vunpack.c.l.b16 %v2160
      %v2593 = vunpack.c.l.b16 %v2161
      %v2594 = vunpack.c.l.b16 %v2162
      %v2595 = vunpack.c.l.b16 %v2163
      %v2596 = vunpack.c.l.b16 %v2164
      %v2597 = vpack.c.b16 %v2582, %v2581
      %v2598 = vpack.c.b16 %v2584, %v2583
      %v2599 = vpack.c.b16 %v2586, %v2585
      %v2600 = vpack.c.b16 %v2588, %v2587
      %v2601 = vpack.c.b16 %v2590, %v2589
      %v2602 = vpack.c.b16 %v2592, %v2591
      %v2603 = vpack.c.b16 %v2594, %v2593
      %v2604 = vpack.c.b16 %v2596, %v2595
      %2613 = vmatprep.subr.bf16.mxu0 0
      %2614 = vmatpush1.bf16.msra.mxu0 %v2597
      %2615 = vmatprep.subr.bf16.mxu0 0
      %2616 = vmatpush1.bf16.msra.mxu0 %v2598
      %2617 = vmatprep.subr.bf16.mxu0 0
      %2618 = vmatpush1.bf16.msra.mxu0 %v2599
      %2619 = vmatprep.subr.bf16.mxu0 0
      %2620 = vmatpush1.bf16.msra.mxu0 %v2600
      %2621 = vmatprep.subr.bf16.mxu0 0
      %2622 = vmatpush1.bf16.msra.mxu0 %v2601
      %2623 = vmatprep.subr.bf16.mxu0 0
      %2624 = vmatpush1.bf16.msra.mxu0 %v2602
      %2625 = vmatprep.subr.bf16.mxu0 0
      %2626 = vmatpush1.bf16.msra.mxu0 %v2603
      %2627 = vmatprep.subr.bf16.mxu0 0
      %2628 = vmatpush1.bf16.msra.mxu0 %v2604
      %2629 = vmatprep.subr.bf16.mxu0 0
      %2630 = vmatpush1.bf16.msra.mxu0 0
      %2631 = vmatprep.subr.bf16.mxu0 0
      %2632 = vmatpush1.bf16.msra.mxu0 0
      %2633 = vmatprep.subr.bf16.mxu0 0
      %2634 = vmatpush1.bf16.msra.mxu0 0
      %2635 = vmatprep.subr.bf16.mxu0 0
      %2636 = vmatpush1.bf16.msra.mxu0 0
      %2637 = vmatprep.subr.bf16.mxu0 0
      %2638 = vmatpush1.bf16.msra.mxu0 0
      %2639 = vmatprep.subr.bf16.mxu0 0
      %2640 = vmatpush1.bf16.msra.mxu0 0
      %2641 = vmatprep.subr.bf16.mxu0 0
      %2642 = vmatpush1.bf16.msra.mxu0 0
      %2643 = vmatprep.subr.bf16.mxu0 0
      %2644 = vmatpush1.bf16.msra.mxu0 0
      %2645 = vmatprep.mubr.bf16.mxu0 0
      %2646 = vmatmul.mubr.bf16.gmra.mrb[0].mxu0 %v2081
      %v2647 = vpop.f32.mrb[0].mxu0
      %v2648 = vadd.f32 0.0, %v2647
      %v2649 = vpop.f32.mrb[0].mxu0
      %v2650 = vpop.f32.mrb[0].mxu0
      %v2651 = vpop.f32.mrb[0].mxu0
      %2652 = vdwg.mxu0
      %v2669 = vunpack.c.l.b16 %v2165
      %v2670 = vunpack.c.l.b16 %v2166
      %v2671 = vunpack.c.l.b16 %v2167
      %v2672 = vunpack.c.l.b16 %v2168
      %v2673 = vunpack.c.l.b16 %v2169
      %v2674 = vunpack.c.l.b16 %v2170
      %v2675 = vunpack.c.l.b16 %v2171
      %v2676 = vunpack.c.l.b16 %v2172
      %v2677 = vunpack.c.l.b16 %v2173
      %v2678 = vunpack.c.l.b16 %v2174
      %v2679 = vunpack.c.l.b16 %v2175
      %v2680 = vunpack.c.l.b16 %v2176
      %v2681 = vunpack.c.l.b16 %v2177
      %v2682 = vunpack.c.l.b16 %v2178
      %v2683 = vunpack.c.l.b16 %v2179
      %v2684 = vunpack.c.l.b16 %v2180
      %v2685 = vpack.c.b16 %v2670, %v2669
      %v2686 = vpack.c.b16 %v2672, %v2671
      %v2687 = vpack.c.b16 %v2674, %v2673
      %v2688 = vpack.c.b16 %v2676, %v2675
      %v2689 = vpack.c.b16 %v2678, %v2677
      %v2690 = vpack.c.b16 %v2680, %v2679
      %v2691 = vpack.c.b16 %v2682, %v2681
      %v2692 = vpack.c.b16 %v2684, %v2683
      %2701 = vmatprep.subr.bf16.mxu0 0
      %2702 = vmatpush1.bf16.msra.mxu0 %v2685
      %2703 = vmatprep.subr.bf16.mxu0 0
      %2704 = vmatpush1.bf16.msra.mxu0 %v2686
      %2705 = vmatprep.subr.bf16.mxu0 0
      %2706 = vmatpush1.bf16.msra.mxu0 %v2687
      %2707 = vmatprep.subr.bf16.mxu0 0
      %2708 = vmatpush1.bf16.msra.mxu0 %v2688
      %2709 = vmatprep.subr.bf16.mxu0 0
      %2710 = vmatpush1.bf16.msra.mxu0 %v2689
      %2711 = vmatprep.subr.bf16.mxu0 0
      %2712 = vmatpush1.bf16.msra.mxu0 %v2690
      %2713 = vmatprep.subr.bf16.mxu0 0
      %2714 = vmatpush1.bf16.msra.mxu0 %v2691
      %2715 = vmatprep.subr.bf16.mxu0 0
      %2716 = vmatpush1.bf16.msra.mxu0 %v2692
      %2717 = vmatprep.subr.bf16.mxu0 0
      %2718 = vmatpush1.bf16.msra.mxu0 0
      %2719 = vmatprep.subr.bf16.mxu0 0
      %2720 = vmatpush1.bf16.msra.mxu0 0
      %2721 = vmatprep.subr.bf16.mxu0 0
      %2722 = vmatpush1.bf16.msra.mxu0 0
      %2723 = vmatprep.subr.bf16.mxu0 0
      %2724 = vmatpush1.bf16.msra.mxu0 0
      %2725 = vmatprep.subr.bf16.mxu0 0
      %2726 = vmatpush1.bf16.msra.mxu0 0
      %2727 = vmatprep.subr.bf16.mxu0 0
      %2728 = vmatpush1.bf16.msra.mxu0 0
      %2729 = vmatprep.subr.bf16.mxu0 0
      %2730 = vmatpush1.bf16.msra.mxu0 0
      %2731 = vmatprep.subr.bf16.mxu0 0
      %2732 = vmatpush1.bf16.msra.mxu0 0
      %2733 = vmatprep.mubr.bf16.mxu0 0
      %2734 = vmatmul.mubr.bf16.gmra.mrb[0].mxu0 %v2082
      %v2735 = vpop.f32.mrb[0].mxu0
      %v2736 = vadd.f32 0.0, %v2735
      %v2737 = vpop.f32.mrb[0].mxu0
      %v2738 = vpop.f32.mrb[0].mxu0
      %v2739 = vpop.f32.mrb[0].mxu0
      %2740 = vdwg.mxu0
      %v2757 = vunpack.c.l.b16 %v2181
      %v2758 = vunpack.c.l.b16 %v2182
      %v2759 = vunpack.c.l.b16 %v2183
      %v2760 = vunpack.c.l.b16 %v2184
      %v2761 = vunpack.c.l.b16 %v2185
      %v2762 = vunpack.c.l.b16 %v2186
      %v2763 = vunpack.c.l.b16 %v2187
      %v2764 = vunpack.c.l.b16 %v2188
      %v2765 = vunpack.c.l.b16 %v2189
      %v2766 = vunpack.c.l.b16 %v2190
      %v2767 = vunpack.c.l.b16 %v2191
      %v2768 = vunpack.c.l.b16 %v2192
      %v2769 = vunpack.c.l.b16 %v2193
      %v2770 = vunpack.c.l.b16 %v2194
      %v2771 = vunpack.c.l.b16 %v2195
      %v2772 = vunpack.c.l.b16 %v2196
      %v2773 = vpack.c.b16 %v2758, %v2757
      %v2774 = vpack.c.b16 %v2760, %v2759
      %v2775 = vpack.c.b16 %v2762, %v2761
      %v2776 = vpack.c.b16 %v2764, %v2763
      %v2777 = vpack.c.b16 %v2766, %v2765
      %v2778 = vpack.c.b16 %v2768, %v2767
      %v2779 = vpack.c.b16 %v2770, %v2769
      %v2780 = vpack.c.b16 %v2772, %v2771
      %2789 = vmatprep.subr.bf16.mxu0 0
      %2790 = vmatpush1.bf16.msra.mxu0 %v2773
      %2791 = vmatprep.subr.bf16.mxu0 0
      %2792 = vmatpush1.bf16.msra.mxu0 %v2774
      %2793 = vmatprep.subr.bf16.mxu0 0
      %2794 = vmatpush1.bf16.msra.mxu0 %v2775
      %2795 = vmatprep.subr.bf16.mxu0 0
      %2796 = vmatpush1.bf16.msra.mxu0 %v2776
      %2797 = vmatprep.subr.bf16.mxu0 0
      %2798 = vmatpush1.bf16.msra.mxu0 %v2777
      %2799 = vmatprep.subr.bf16.mxu0 0
      %2800 = vmatpush1.bf16.msra.mxu0 %v2778
      %2801 = vmatprep.subr.bf16.mxu0 0
      %2802 = vmatpush1.bf16.msra.mxu0 %v2779
      %2803 = vmatprep.subr.bf16.mxu0 0
      %2804 = vmatpush1.bf16.msra.mxu0 %v2780
      %2805 = vmatprep.subr.bf16.mxu0 0
      %2806 = vmatpush1.bf16.msra.mxu0 0
      %2807 = vmatprep.subr.bf16.mxu0 0
      %2808 = vmatpush1.bf16.msra.mxu0 0
      %2809 = vmatprep.subr.bf16.mxu0 0
      %2810 = vmatpush1.bf16.msra.mxu0 0
      %2811 = vmatprep.subr.bf16.mxu0 0
      %2812 = vmatpush1.bf16.msra.mxu0 0
      %2813 = vmatprep.subr.bf16.mxu0 0
      %2814 = vmatpush1.bf16.msra.mxu0 0
      %2815 = vmatprep.subr.bf16.mxu0 0
      %2816 = vmatpush1.bf16.msra.mxu0 0
      %2817 = vmatprep.subr.bf16.mxu0 0
      %2818 = vmatpush1.bf16.msra.mxu0 0
      %2819 = vmatprep.subr.bf16.mxu0 0
      %2820 = vmatpush1.bf16.msra.mxu0 0
      %2821 = vmatprep.mubr.bf16.mxu0 0
      %2822 = vmatmul.mubr.bf16.gmra.mrb[0].mxu0 %v2083
      %v2823 = vpop.f32.mrb[0].mxu0
      %v2824 = vadd.f32 0.0, %v2823
      %v2825 = vpop.f32.mrb[0].mxu0
      %v2826 = vpop.f32.mrb[0].mxu0
      %v2827 = vpop.f32.mrb[0].mxu0
      %2828 = vdwg.mxu0
      %v2845 = vunpack.c.l.b16 %v2197
      %v2846 = vunpack.c.l.b16 %v2198
      %v2847 = vunpack.c.l.b16 %v2199
      %v2848 = vunpack.c.l.b16 %v2200
      %v2849 = vunpack.c.l.b16 %v2201
      %v2850 = vunpack.c.l.b16 %v2202
      %v2851 = vunpack.c.l.b16 %v2203
      %v2852 = vunpack.c.l.b16 %v2204
      %v2853 = vunpack.c.l.b16 %v2205
      %v2854 = vunpack.c.l.b16 %v2206
      %v2855 = vunpack.c.l.b16 %v2207
      %v2856 = vunpack.c.l.b16 %v2208
      %v2857 = vunpack.c.l.b16 %v2209
      %v2858 = vunpack.c.l.b16 %v2210
      %v2859 = vunpack.c.l.b16 %v2211
      %v2860 = vunpack.c.l.b16 %v2212
      %v2861 = vpack.c.b16 %v2846, %v2845
      %v2862 = vpack.c.b16 %v2848, %v2847
      %v2863 = vpack.c.b16 %v2850, %v2849
      %v2864 = vpack.c.b16 %v2852, %v2851
      %v2865 = vpack.c.b16 %v2854, %v2853
      %v2866 = vpack.c.b16 %v2856, %v2855
      %v2867 = vpack.c.b16 %v2858, %v2857
      %v2868 = vpack.c.b16 %v2860, %v2859
      %2877 = vmatprep.subr.bf16.mxu0 0
      %2878 = vmatpush1.bf16.msra.mxu0 %v2861
      %2879 = vmatprep.subr.bf16.mxu0 0
      %2880 = vmatpush1.bf16.msra.mxu0 %v2862
      %2881 = vmatprep.subr.bf16.mxu0 0
      %2882 = vmatpush1.bf16.msra.mxu0 %v2863
      %2883 = vmatprep.subr.bf16.mxu0 0
      %2884 = vmatpush1.bf16.msra.mxu0 %v2864
      %2885 = vmatprep.subr.bf16.mxu0 0
      %2886 = vmatpush1.bf16.msra.mxu0 %v2865
      %2887 = vmatprep.subr.bf16.mxu0 0
      %2888 = vmatpush1.bf16.msra.mxu0 %v2866
      %2889 = vmatprep.subr.bf16.mxu0 0
      %2890 = vmatpush1.bf16.msra.mxu0 %v2867
      %2891 = vmatprep.subr.bf16.mxu0 0
      %2892 = vmatpush1.bf16.msra.mxu0 %v2868
      %2893 = vmatprep.subr.bf16.mxu0 0
      %2894 = vmatpush1.bf16.msra.mxu0 0
      %2895 = vmatprep.subr.bf16.mxu0 0
      %2896 = vmatpush1.bf16.msra.mxu0 0
      %2897 = vmatprep.subr.bf16.mxu0 0
      %2898 = vmatpush1.bf16.msra.mxu0 0
      %2899 = vmatprep.subr.bf16.mxu0 0
      %2900 = vmatpush1.bf16.msra.mxu0 0
      %2901 = vmatprep.subr.bf16.mxu0 0
      %2902 = vmatpush1.bf16.msra.mxu0 0
      %2903 = vmatprep.subr.bf16.mxu0 0
      %2904 = vmatpush1.bf16.msra.mxu0 0
      %2905 = vmatprep.subr.bf16.mxu0 0
      %2906 = vmatpush1.bf16.msra.mxu0 0
      %2907 = vmatprep.subr.bf16.mxu0 0
      %2908 = vmatpush1.bf16.msra.mxu0 0
      %2909 = vmatprep.mubr.bf16.mxu0 0
      %2910 = vmatmul.mubr.bf16.gmra.mrb[0].mxu0 %v2084
      %v2911 = vpop.f32.mrb[0].mxu0
      %v2912 = vadd.f32 0.0, %v2911
      %v2913 = vpop.f32.mrb[0].mxu0
      %v2914 = vpop.f32.mrb[0].mxu0
      %v2915 = vpop.f32.mrb[0].mxu0
      %2916 = vdwg.mxu0
      %v2917 = vsub.f32 %v752, %v1456
      %v2918 = vsub.f32 %v840, %v1544
      %v2919 = vsub.f32 %v928, %v1632
      %v2920 = vsub.f32 %v1016, %v1720
      %v2921 = vsub.f32 %v1104, %v1808
      %v2922 = vsub.f32 %v1192, %v1896
      %v2923 = vsub.f32 %v1280, %v1984
      %v2924 = vsub.f32 %v1368, %v2072
      %2925 = vst [vmem:[%s384] sm:$0x3] %v2917
      %2926 = vst [vmem:[%s384 + $0x2] sm:$0x3] %v2918
      %2927 = vst [vmem:[%s384 + $0x4] sm:$0x3] %v2919
      %2928 = vst [vmem:[%s384 + $0x6] sm:$0x3] %v2920
      %2929 = vst [vmem:[%s384 + $0x8] sm:$0x3] %v2921
      %2930 = vst [vmem:[%s384 + $0xa] sm:$0x3] %v2922
      %2931 = vst [vmem:[%s384 + $0xc] sm:$0x3] %v2923
      %2932 = vst [vmem:[%s384 + $0xe] sm:$0x3] %v2924
      %v2933 = vsub.f32 %v2296, %v752
      %v2934 = vsub.f32 %v2384, %v840
      %v2935 = vsub.f32 %v2472, %v928
      %v2936 = vsub.f32 %v2560, %v1016
      %v2937 = vsub.f32 %v2648, %v1104
      %v2938 = vsub.f32 %v2736, %v1192
      %v2939 = vsub.f32 %v2824, %v1280
      %v2940 = vsub.f32 %v2912, %v1368
      %v2941 = vsub.f32 %v2933, %v1456
      %v2942 = vsub.f32 %v2934, %v1544
      %v2943 = vsub.f32 %v2935, %v1632
      %v2944 = vsub.f32 %v2936, %v1720
      %v2945 = vsub.f32 %v2937, %v1808
      %v2946 = vsub.f32 %v2938, %v1896
      %v2947 = vsub.f32 %v2939, %v1984
      %v2948 = vsub.f32 %v2940, %v2072
      %2949 = vst [vmem:[%s394] sm:$0x3] %v2941
      %2950 = vst [vmem:[%s394 + $0x2] sm:$0x3] %v2942
      %2951 = vst [vmem:[%s394 + $0x4] sm:$0x3] %v2943
      %2952 = vst [vmem:[%s394 + $0x6] sm:$0x3] %v2944
      %2953 = vst [vmem:[%s394 + $0x8] sm:$0x3] %v2945
      %2954 = vst [vmem:[%s394 + $0xa] sm:$0x3] %v2946
      %2955 = vst [vmem:[%s394 + $0xc] sm:$0x3] %v2947
      %2956 = vst [vmem:[%s394 + $0xe] sm:$0x3] %v2948
      %s2957 = smul.u32 8, %s22
      %p2958 = scmp.lt.s32.totalorder %s21, 3
      %s2959 = scalar_select %p2958, %s21, 3
      %p2960 = scmp.lt.s32.totalorder %s2957, 7
      %s2961 = scalar_select %p2960, %s2957, 7
      %s2962 = smul.addr %s2959, 8
      %s2963 = sadd.s32 %s2961, %s2962
      %s2964 = smul.addr %s2963, 2
      %s2965 = scalar_lea.vmem %s4, %s2964
      %s2966 = smul.u32 8, %s22
      %p2967 = scmp.lt.s32.totalorder %s21, 3
      %s2968 = scalar_select %p2967, %s21, 3
      %p2969 = scmp.lt.s32.totalorder %s2966, 7
      %s2970 = scalar_select %p2969, %s2966, 7
      %s2971 = smul.addr %s2968, 8
      %s2972 = sadd.s32 %s2970, %s2971
      %s2973 = smul.addr %s2972, 2
      %s2974 = scalar_lea.vmem %s5, %s2973
      // Predicated region
      $region37: #{fno3d_forward.9} parent=35 // pred_check
        %p2975 = pneg %p161
      $region38: #{fno3d_forward.9} parent=35 // pred_check_branch
        %2977 = sbr.rel (%p2975) target = $region40
      $region39: #{fno3d_forward.9} parent=35 // pred_region
        %s2978 = smul.u32 8, %s22
      $region40: #{fno3d_forward.9} parent=35 // pred_fallthru
        _
      // Predicated region
      $region41: #{fno3d_forward.9} parent=35 // pred_check
        %p2979 = pneg %p189
      $region42: #{fno3d_forward.9} parent=35 // pred_check_branch
        %2981 = sbr.rel (%p2979) target = $region44
      $region43: #{fno3d_forward.9} parent=35 // pred_region
        %s2982 = smul.u32 8, %s22
      $region44: #{fno3d_forward.9} parent=35 // pred_fallthru
        _
    $region36: #{fno3d_forward.9} parent=5 // pred_fallthru
      _
    %p2983 = scmp.le.s32.totalorder 2, %s12
    // Predicated region
    $region45: #{fno3d_forward.9} parent=5 // pred_check
      %p2984 = pneg %p2983
    $region46: #{fno3d_forward.9} parent=5 // pred_check_branch
      %2986 = sbr.rel (%p2984) target = $region48
    $region47: #{fno3d_forward.9} parent=5 // pred_region
      %s2987 = ssub.s32 %s12, 2
      // Predicated region
      $region49: #{fno3d_forward.9} parent=47 // pred_check
        %p2988 = pneg %p167
      $region50: #{fno3d_forward.9} parent=47 // pred_check_branch
        %2990 = sbr.rel (%p2988) target = $region52
      $region51: #{fno3d_forward.9} parent=47 // pred_region
        %s2991 = smul.u32 8, %s24
        %p2992 = scmp.lt.s32.totalorder %s23, 3
        %s2993 = scalar_select %p2992, %s23, 3
        %p2994 = scmp.lt.s32.totalorder %s2991, 7
        %s2995 = scalar_select %p2994, %s2991, 7
        %s2996 = smul.addr %s2993, 8
        %s2997 = sadd.s32 %s2995, %s2996
        %s2998 = smul.addr %s2997, 2
        %s2999 = scalar_lea.vmem %s4, %s2998
      $region52: #{fno3d_forward.9} parent=47 // pred_fallthru
        _
      // Predicated region
      $region53: #{fno3d_forward.9} parent=47 // pred_check
        %p3000 = pneg %p195
      $region54: #{fno3d_forward.9} parent=47 // pred_check_branch
        %3002 = sbr.rel (%p3000) target = $region56
      $region55: #{fno3d_forward.9} parent=47 // pred_region
        %s3003 = smul.u32 8, %s24
        %p3004 = scmp.lt.s32.totalorder %s23, 3
        %s3005 = scalar_select %p3004, %s23, 3
        %p3006 = scmp.lt.s32.totalorder %s3003, 7
        %s3007 = scalar_select %p3006, %s3003, 7
        %s3008 = smul.addr %s3005, 8
        %s3009 = sadd.s32 %s3007, %s3008
        %s3010 = smul.addr %s3009, 2
        %s3011 = scalar_lea.vmem %s5, %s3010
      $region56: #{fno3d_forward.9} parent=47 // pred_fallthru
        _
    $region48: #{fno3d_forward.9} parent=5 // pred_fallthru
      _
  $region6: #{fno3d_forward.9} parent=0 // loop_footer
    %s16 = sadd.s32 1, %s12
  $region7: #{fno3d_forward.9} parent=0 // loop_footer_branch
    %11 = sbr.rel target = $region3
  $region8: #{fno3d_forward.9} parent=0 // loop_exit
    _

// kernel: reverse.6
$region0: #{reverse.6}
  #allocation0 [shape = 's32[1]{0}', space=sflag, size = 0x4, scoped, tag = 'scoped memory for reverse.6']
  %s0 = inlined_call_operand.vmem [shape: f32[2,16,8,8,6], index: 0, kind: input, shape index: {}]
  %s1 = inlined_call_operand.vmem [shape: f32[2,16,8,8,6], index: 1, kind: output, shape index: {}]
  %s2 = scalar_lea.vmem %s0, 320
  %v3 = vld [vmem:[%s2] sm:$0xff]
  %4 = vst [vmem:[%s1] sm:$0xff] %v3
  %s5 = scalar_lea.vmem %s0, 704
  %v6 = vld [vmem:[%s5] sm:$0xff]
  %s7 = scalar_lea.vmem %s1, 384
  %8 = vst [vmem:[%s7] sm:$0xff] %v6
  %s9 = scalar_lea.vmem %s0, 256
  %v10 = vld [vmem:[%s9] sm:$0xff]
  %s11 = scalar_lea.vmem %s1, 64
  %12 = vst [vmem:[%s11] sm:$0xff] %v10
  %s13 = scalar_lea.vmem %s0, 640
  %v14 = vld [vmem:[%s13] sm:$0xff]
  %s15 = scalar_lea.vmem %s1, 448
  %16 = vst [vmem:[%s15] sm:$0xff] %v14
  %s17 = scalar_lea.vmem %s0, 192
  %v18 = vld [vmem:[%s17] sm:$0xff]
  %s19 = scalar_lea.vmem %s1, 128
  %20 = vst [vmem:[%s19] sm:$0xff] %v18
  %s21 = scalar_lea.vmem %s0, 576
  %v22 = vld [vmem:[%s21] sm:$0xff]
  %s23 = scalar_lea.vmem %s1, 512
  %24 = vst [vmem:[%s23] sm:$0xff] %v22
  %s25 = scalar_lea.vmem %s0, 128
  %v26 = vld [vmem:[%s25] sm:$0xff]
  %s27 = scalar_lea.vmem %s1, 192
  %28 = vst [vmem:[%s27] sm:$0xff] %v26
  %s29 = scalar_lea.vmem %s0, 512
  %v30 = vld [vmem:[%s29] sm:$0xff]
  %s31 = scalar_lea.vmem %s1, 576
  %32 = vst [vmem:[%s31] sm:$0xff] %v30
  %s33 = scalar_lea.vmem %s0, 64
  %v34 = vld [vmem:[%s33] sm:$0xff]
  %s35 = scalar_lea.vmem %s1, 256
  %36 = vst [vmem:[%s35] sm:$0xff] %v34
  %s37 = scalar_lea.vmem %s0, 448
  %v38 = vld [vmem:[%s37] sm:$0xff]
  %s39 = scalar_lea.vmem %s1, 640
  %40 = vst [vmem:[%s39] sm:$0xff] %v38
  %v41 = vld [vmem:[%s0] sm:$0xff]
  %s42 = scalar_lea.vmem %s1, 320
  %43 = vst [vmem:[%s42] sm:$0xff] %v41
  %s44 = scalar_lea.vmem %s0, 384
  %v45 = vld [vmem:[%s44] sm:$0xff]
  %s46 = scalar_lea.vmem %s1, 704
  %47 = vst [vmem:[%s46] sm:$0xff] %v45
  %s48 = scalar_lea.vmem %s0, 328
  %v49 = vld [vmem:[%s48] sm:$0xff]
  %s50 = scalar_lea.vmem %s1, 8
  %51 = vst [vmem:[%s50] sm:$0xff] %v49
  %s52 = scalar_lea.vmem %s0, 712
  %v53 = vld [vmem:[%s52] sm:$0xff]
  %s54 = scalar_lea.vmem %s1, 392
  %55 = vst [vmem:[%s54] sm:$0xff] %v53
  %s56 = scalar_lea.vmem %s0, 264
  %v57 = vld [vmem:[%s56] sm:$0xff]
  %s58 = scalar_lea.vmem %s1, 72
  %59 = vst [vmem:[%s58] sm:$0xff] %v57
  %s60 = scalar_lea.vmem %s0, 648
  %v61 = vld [vmem:[%s60] sm:$0xff]
  %s62 = scalar_lea.vmem %s1, 456
  %63 = vst [vmem:[%s62] sm:$0xff] %v61
  %s64 = scalar_lea.vmem %s0, 200
  %v65 = vld [vmem:[%s64] sm:$0xff]
  %s66 = scalar_lea.vmem %s1, 136
  %67 = vst [vmem:[%s66] sm:$0xff] %v65
  %s68 = scalar_lea.vmem %s0, 584
  %v69 = vld [vmem:[%s68] sm:$0xff]
  %s70 = scalar_lea.vmem %s1, 520
  %71 = vst [vmem:[%s70] sm:$0xff] %v69
  %s72 = scalar_lea.vmem %s0, 136
  %v73 = vld [vmem:[%s72] sm:$0xff]
  %s74 = scalar_lea.vmem %s1, 200
  %75 = vst [vmem:[%s74] sm:$0xff] %v73
  %s76 = scalar_lea.vmem %s0, 520
  %v77 = vld [vmem:[%s76] sm:$0xff]
  %s78 = scalar_lea.vmem %s1, 584
  %79 = vst [vmem:[%s78] sm:$0xff] %v77
  %s80 = scalar_lea.vmem %s0, 72
  %v81 = vld [vmem:[%s80] sm:$0xff]
  %s82 = scalar_lea.vmem %s1, 264
  %83 = vst [vmem:[%s82] sm:$0xff] %v81
  %s84 = scalar_lea.vmem %s0, 456
  %v85 = vld [vmem:[%s84] sm:$0xff]
  %s86 = scalar_lea.vmem %s1, 648
  %87 = vst [vmem:[%s86] sm:$0xff] %v85
  %s88 = scalar_lea.vmem %s0, 8
  %v89 = vld [vmem:[%s88] sm:$0xff]
  %s90 = scalar_lea.vmem %s1, 328
  %91 = vst [vmem:[%s90] sm:$0xff] %v89
  %s92 = scalar_lea.vmem %s0, 392
  %v93 = vld [vmem:[%s92] sm:$0xff]
  %s94 = scalar_lea.vmem %s1, 712
  %95 = vst [vmem:[%s94] sm:$0xff] %v93
  %s96 = scalar_lea.vmem %s0, 336
  %v97 = vld [vmem:[%s96] sm:$0xff]
  %s98 = scalar_lea.vmem %s1, 16
  %99 = vst [vmem:[%s98] sm:$0xff] %v97
  %s100 = scalar_lea.vmem %s0, 720
  %v101 = vld [vmem:[%s100] sm:$0xff]
  %s102 = scalar_lea.vmem %s1, 400
  %103 = vst [vmem:[%s102] sm:$0xff] %v101
  %s104 = scalar_lea.vmem %s0, 272
  %v105 = vld [vmem:[%s104] sm:$0xff]
  %s106 = scalar_lea.vmem %s1, 80
  %107 = vst [vmem:[%s106] sm:$0xff] %v105
  %s108 = scalar_lea.vmem %s0, 656
  %v109 = vld [vmem:[%s108] sm:$0xff]
  %s110 = scalar_lea.vmem %s1, 464
  %111 = vst [vmem:[%s110] sm:$0xff] %v109
  %s112 = scalar_lea.vmem %s0, 208
  %v113 = vld [vmem:[%s112] sm:$0xff]
  %s114 = scalar_lea.vmem %s1, 144
  %115 = vst [vmem:[%s114] sm:$0xff] %v113
  %s116 = scalar_lea.vmem %s0, 592
  %v117 = vld [vmem:[%s116] sm:$0xff]
  %s118 = scalar_lea.vmem %s1, 528
  %119 = vst [vmem:[%s118] sm:$0xff] %v117
  %s120 = scalar_lea.vmem %s0, 144
  %v121 = vld [vmem:[%s120] sm:$0xff]
  %s122 = scalar_lea.vmem %s1, 208
  %123 = vst [vmem:[%s122] sm:$0xff] %v121
  %s124 = scalar_lea.vmem %s0, 528
  %v125 = vld [vmem:[%s124] sm:$0xff]
  %s126 = scalar_lea.vmem %s1, 592
  %127 = vst [vmem:[%s126] sm:$0xff] %v125
  %s128 = scalar_lea.vmem %s0, 80
  %v129 = vld [vmem:[%s128] sm:$0xff]
  %s130 = scalar_lea.vmem %s1, 272
  %131 = vst [vmem:[%s130] sm:$0xff] %v129
  %s132 = scalar_lea.vmem %s0, 464
  %v133 = vld [vmem:[%s132] sm:$0xff]
  %s134 = scalar_lea.vmem %s1, 656
  %135 = vst [vmem:[%s134] sm:$0xff] %v133
  %s136 = scalar_lea.vmem %s0, 16
  %v137 = vld [vmem:[%s136] sm:$0xff]
  %s138 = scalar_lea.vmem %s1, 336
  %139 = vst [vmem:[%s138] sm:$0xff] %v137
  %s140 = scalar_lea.vmem %s0, 400
  %v141 = vld [vmem:[%s140] sm:$0xff]
  %s142 = scalar_lea.vmem %s1, 720
  %143 = vst [vmem:[%s142] sm:$0xff] %v141
  %s144 = scalar_lea.vmem %s0, 344
  %v145 = vld [vmem:[%s144] sm:$0xff]
  %s146 = scalar_lea.vmem %s1, 24
  %147 = vst [vmem:[%s146] sm:$0xff] %v145
  %s148 = scalar_lea.vmem %s0, 728
  %v149 = vld [vmem:[%s148] sm:$0xff]
  %s150 = scalar_lea.vmem %s1, 408
  %151 = vst [vmem:[%s150] sm:$0xff] %v149
  %s152 = scalar_lea.vmem %s0, 280
  %v153 = vld [vmem:[%s152] sm:$0xff]
  %s154 = scalar_lea.vmem %s1, 88
  %155 = vst [vmem:[%s154] sm:$0xff] %v153
  %s156 = scalar_lea.vmem %s0, 664
  %v157 = vld [vmem:[%s156] sm:$0xff]
  %s158 = scalar_lea.vmem %s1, 472
  %159 = vst [vmem:[%s158] sm:$0xff] %v157
  %s160 = scalar_lea.vmem %s0, 216
  %v161 = vld [vmem:[%s160] sm:$0xff]
  %s162 = scalar_lea.vmem %s1, 152
  %163 = vst [vmem:[%s162] sm:$0xff] %v161
  %s164 = scalar_lea.vmem %s0, 600
  %v165 = vld [vmem:[%s164] sm:$0xff]
  %s166 = scalar_lea.vmem %s1, 536
  %167 = vst [vmem:[%s166] sm:$0xff] %v165
  %s168 = scalar_lea.vmem %s0, 152
  %v169 = vld [vmem:[%s168] sm:$0xff]
  %s170 = scalar_lea.vmem %s1, 216
  %171 = vst [vmem:[%s170] sm:$0xff] %v169
  %s172 = scalar_lea.vmem %s0, 536
  %v173 = vld [vmem:[%s172] sm:$0xff]
  %s174 = scalar_lea.vmem %s1, 600
  %175 = vst [vmem:[%s174] sm:$0xff] %v173
  %s176 = scalar_lea.vmem %s0, 88
  %v177 = vld [vmem:[%s176] sm:$0xff]
  %s178 = scalar_lea.vmem %s1, 280
  %179 = vst [vmem:[%s178] sm:$0xff] %v177
  %s180 = scalar_lea.vmem %s0, 472
  %v181 = vld [vmem:[%s180] sm:$0xff]
  %s182 = scalar_lea.vmem %s1, 664
  %183 = vst [vmem:[%s182] sm:$0xff] %v181
  %s184 = scalar_lea.vmem %s0, 24
  %v185 = vld [vmem:[%s184] sm:$0xff]
  %s186 = scalar_lea.vmem %s1, 344
  %187 = vst [vmem:[%s186] sm:$0xff] %v185
  %s188 = scalar_lea.vmem %s0, 408
  %v189 = vld [vmem:[%s188] sm:$0xff]
  %s190 = scalar_lea.vmem %s1, 728
  %191 = vst [vmem:[%s190] sm:$0xff] %v189
  %s192 = scalar_lea.vmem %s0, 352
  %v193 = vld [vmem:[%s192] sm:$0xff]
  %s194 = scalar_lea.vmem %s1, 32
  %195 = vst [vmem:[%s194] sm:$0xff] %v193
  %s196 = scalar_lea.vmem %s0, 736
  %v197 = vld [vmem:[%s196] sm:$0xff]
  %s198 = scalar_lea.vmem %s1, 416
  %199 = vst [vmem:[%s198] sm:$0xff] %v197
  %s200 = scalar_lea.vmem %s0, 288
  %v201 = vld [vmem:[%s200] sm:$0xff]
  %s202 = scalar_lea.vmem %s1, 96
  %203 = vst [vmem:[%s202] sm:$0xff] %v201
  %s204 = scalar_lea.vmem %s0, 672
  %v205 = vld [vmem:[%s204] sm:$0xff]
  %s206 = scalar_lea.vmem %s1, 480
  %207 = vst [vmem:[%s206] sm:$0xff] %v205
  %s208 = scalar_lea.vmem %s0, 224
  %v209 = vld [vmem:[%s208] sm:$0xff]
  %s210 = scalar_lea.vmem %s1, 160
  %211 = vst [vmem:[%s210] sm:$0xff] %v209
  %s212 = scalar_lea.vmem %s0, 608
  %v213 = vld [vmem:[%s212] sm:$0xff]
  %s214 = scalar_lea.vmem %s1, 544
  %215 = vst [vmem:[%s214] sm:$0xff] %v213
  %s216 = scalar_lea.vmem %s0, 160
  %v217 = vld [vmem:[%s216] sm:$0xff]
  %s218 = scalar_lea.vmem %s1, 224
  %219 = vst [vmem:[%s218] sm:$0xff] %v217
  %s220 = scalar_lea.vmem %s0, 544
  %v221 = vld [vmem:[%s220] sm:$0xff]
  %s222 = scalar_lea.vmem %s1, 608
  %223 = vst [vmem:[%s222] sm:$0xff] %v221
  %s224 = scalar_lea.vmem %s0, 96
  %v225 = vld [vmem:[%s224] sm:$0xff]
  %s226 = scalar_lea.vmem %s1, 288
  %227 = vst [vmem:[%s226] sm:$0xff] %v225
  %s228 = scalar_lea.vmem %s0, 480
  %v229 = vld [vmem:[%s228] sm:$0xff]
  %s230 = scalar_lea.vmem %s1, 672
  %231 = vst [vmem:[%s230] sm:$0xff] %v229
  %s232 = scalar_lea.vmem %s0, 32
  %v233 = vld [vmem:[%s232] sm:$0xff]
  %s234 = scalar_lea.vmem %s1, 352
  %235 = vst [vmem:[%s234] sm:$0xff] %v233
  %s236 = scalar_lea.vmem %s0, 416
  %v237 = vld [vmem:[%s236] sm:$0xff]
  %s238 = scalar_lea.vmem %s1, 736
  %239 = vst [vmem:[%s238] sm:$0xff] %v237
  %s240 = scalar_lea.vmem %s0, 360
  %v241 = vld [vmem:[%s240] sm:$0xff]
  %s242 = scalar_lea.vmem %s1, 40
  %243 = vst [vmem:[%s242] sm:$0xff] %v241
  %s244 = scalar_lea.vmem %s0, 744
  %v245 = vld [vmem:[%s244] sm:$0xff]
  %s246 = scalar_lea.vmem %s1, 424
  %247 = vst [vmem:[%s246] sm:$0xff] %v245
  %s248 = scalar_lea.vmem %s0, 296
  %v249 = vld [vmem:[%s248] sm:$0xff]
  %s250 = scalar_lea.vmem %s1, 104
  %251 = vst [vmem:[%s250] sm:$0xff] %v249
  %s252 = scalar_lea.vmem %s0, 680
  %v253 = vld [vmem:[%s252] sm:$0xff]
  %s254 = scalar_lea.vmem %s1, 488
  %255 = vst [vmem:[%s254] sm:$0xff] %v253
  %s256 = scalar_lea.vmem %s0, 232
  %v257 = vld [vmem:[%s256] sm:$0xff]
  %s258 = scalar_lea.vmem %s1, 168
  %259 = vst [vmem:[%s258] sm:$0xff] %v257
  %s260 = scalar_lea.vmem %s0, 616
  %v261 = vld [vmem:[%s260] sm:$0xff]
  %s262 = scalar_lea.vmem %s1, 552
  %263 = vst [vmem:[%s262] sm:$0xff] %v261
  %s264 = scalar_lea.vmem %s0, 168
  %v265 = vld [vmem:[%s264] sm:$0xff]
  %s266 = scalar_lea.vmem %s1, 232
  %267 = vst [vmem:[%s266] sm:$0xff] %v265
  %s268 = scalar_lea.vmem %s0, 552
  %v269 = vld [vmem:[%s268] sm:$0xff]
  %s270 = scalar_lea.vmem %s1, 616
  %271 = vst [vmem:[%s270] sm:$0xff] %v269
  %s272 = scalar_lea.vmem %s0, 104
  %v273 = vld [vmem:[%s272] sm:$0xff]
  %s274 = scalar_lea.vmem %s1, 296
  %275 = vst [vmem:[%s274] sm:$0xff] %v273
  %s276 = scalar_lea.vmem %s0, 488
  %v277 = vld [vmem:[%s276] sm:$0xff]
  %s278 = scalar_lea.vmem %s1, 680
  %279 = vst [vmem:[%s278] sm:$0xff] %v277
  %s280 = scalar_lea.vmem %s0, 40
  %v281 = vld [vmem:[%s280] sm:$0xff]
  %s282 = scalar_lea.vmem %s1, 360
  %283 = vst [vmem:[%s282] sm:$0xff] %v281
  %s284 = scalar_lea.vmem %s0, 424
  %v285 = vld [vmem:[%s284] sm:$0xff]
  %s286 = scalar_lea.vmem %s1, 744
  %287 = vst [vmem:[%s286] sm:$0xff] %v285
  %s288 = scalar_lea.vmem %s0, 368
  %v289 = vld [vmem:[%s288] sm:$0xff]
  %s290 = scalar_lea.vmem %s1, 48
  %291 = vst [vmem:[%s290] sm:$0xff] %v289
  %s292 = scalar_lea.vmem %s0, 752
  %v293 = vld [vmem:[%s292] sm:$0xff]
  %s294 = scalar_lea.vmem %s1, 432
  %295 = vst [vmem:[%s294] sm:$0xff] %v293
  %s296 = scalar_lea.vmem %s0, 304
  %v297 = vld [vmem:[%s296] sm:$0xff]
  %s298 = scalar_lea.vmem %s1, 112
  %299 = vst [vmem:[%s298] sm:$0xff] %v297
  %s300 = scalar_lea.vmem %s0, 688
  %v301 = vld [vmem:[%s300] sm:$0xff]
  %s302 = scalar_lea.vmem %s1, 496
  %303 = vst [vmem:[%s302] sm:$0xff] %v301
  %s304 = scalar_lea.vmem %s0, 240
  %v305 = vld [vmem:[%s304] sm:$0xff]
  %s306 = scalar_lea.vmem %s1, 176
  %307 = vst [vmem:[%s306] sm:$0xff] %v305
  %s308 = scalar_lea.vmem %s0, 624
  %v309 = vld [vmem:[%s308] sm:$0xff]
  %s310 = scalar_lea.vmem %s1, 560
  %311 = vst [vmem:[%s310] sm:$0xff] %v309
  %s312 = scalar_lea.vmem %s0, 176
  %v313 = vld [vmem:[%s312] sm:$0xff]
  %s314 = scalar_lea.vmem %s1, 240
  %315 = vst [vmem:[%s314] sm:$0xff] %v313
  %s316 = scalar_lea.vmem %s0, 560
  %v317 = vld [vmem:[%s316] sm:$0xff]
  %s318 = scalar_lea.vmem %s1, 624
  %319 = vst [vmem:[%s318] sm:$0xff] %v317
  %s320 = scalar_lea.vmem %s0, 112
  %v321 = vld [vmem:[%s320] sm:$0xff]
  %s322 = scalar_lea.vmem %s1, 304
  %323 = vst [vmem:[%s322] sm:$0xff] %v321
  %s324 = scalar_lea.vmem %s0, 496
  %v325 = vld [vmem:[%s324] sm:$0xff]
  %s326 = scalar_lea.vmem %s1, 688
  %327 = vst [vmem:[%s326] sm:$0xff] %v325
  %s328 = scalar_lea.vmem %s0, 48
  %v329 = vld [vmem:[%s328] sm:$0xff]
  %s330 = scalar_lea.vmem %s1, 368
  %331 = vst [vmem:[%s330] sm:$0xff] %v329
  %s332 = scalar_lea.vmem %s0, 432
  %v333 = vld [vmem:[%s332] sm:$0xff]
  %s334 = scalar_lea.vmem %s1, 752
  %335 = vst [vmem:[%s334] sm:$0xff] %v333
  %s336 = scalar_lea.vmem %s0, 376
  %v337 = vld [vmem:[%s336] sm:$0xff]
  %s338 = scalar_lea.vmem %s1, 56
  %339 = vst [vmem:[%s338] sm:$0xff] %v337
  %s340 = scalar_lea.vmem %s0, 760
  %v341 = vld [vmem:[%s340] sm:$0xff]
  %s342 = scalar_lea.vmem %s1, 440
  %343 = vst [vmem:[%s342] sm:$0xff] %v341
  %s344 = scalar_lea.vmem %s0, 312
  %v345 = vld [vmem:[%s344] sm:$0xff]
  %s346 = scalar_lea.vmem %s1, 120
  %347 = vst [vmem:[%s346] sm:$0xff] %v345
  %s348 = scalar_lea.vmem %s0, 696
  %v349 = vld [vmem:[%s348] sm:$0xff]
  %s350 = scalar_lea.vmem %s1, 504
  %351 = vst [vmem:[%s350] sm:$0xff] %v349
  %s352 = scalar_lea.vmem %s0, 248
  %v353 = vld [vmem:[%s352] sm:$0xff]
  %s354 = scalar_lea.vmem %s1, 184
  %355 = vst [vmem:[%s354] sm:$0xff] %v353
  %s356 = scalar_lea.vmem %s0, 632
  %v357 = vld [vmem:[%s356] sm:$0xff]
  %s358 = scalar_lea.vmem %s1, 568
  %359 = vst [vmem:[%s358] sm:$0xff] %v357
  %s360 = scalar_lea.vmem %s0, 184
  %v361 = vld [vmem:[%s360] sm:$0xff]
  %s362 = scalar_lea.vmem %s1, 248
  %363 = vst [vmem:[%s362] sm:$0xff] %v361
  %s364 = scalar_lea.vmem %s0, 568
  %v365 = vld [vmem:[%s364] sm:$0xff]
  %s366 = scalar_lea.vmem %s1, 632
  %367 = vst [vmem:[%s366] sm:$0xff] %v365
  %s368 = scalar_lea.vmem %s0, 120
  %v369 = vld [vmem:[%s368] sm:$0xff]
  %s370 = scalar_lea.vmem %s1, 312
  %371 = vst [vmem:[%s370] sm:$0xff] %v369
  %s372 = scalar_lea.vmem %s0, 504
  %v373 = vld [vmem:[%s372] sm:$0xff]
  %s374 = scalar_lea.vmem %s1, 696
  %375 = vst [vmem:[%s374] sm:$0xff] %v373
  %s376 = scalar_lea.vmem %s0, 56
  %v377 = vld [vmem:[%s376] sm:$0xff]
  %s378 = scalar_lea.vmem %s1, 376
  %379 = vst [vmem:[%s378] sm:$0xff] %v377
  %s380 = scalar_lea.vmem %s0, 440
  %v381 = vld [vmem:[%s380] sm:$0xff]
  %s382 = scalar_lea.vmem %s1, 760
  %383 = vst [vmem:[%s382] sm:$0xff] %v381

// kernel: fno3d_forward.10
$region0: #{fno3d_forward.10}
  #allocation0 [shape = 'u32[]', space=smem, size = 0x4, offset = 0x4, fixed_abs, tag = 'smem constant byte address 0x4 - core index']
  #allocation1 [shape = 'u32[144,128]{1,0:T(1,128)}', space=vmem, size = 0x12000, scoped, tag = 'internal scratch']
  %s0 = inlined_call_operand.vmem [shape: bf16[224,128], index: 0, kind: input, shape index: {}]
  %s1 = inlined_call_operand.vmem [shape: bf16[224,128], index: 1, kind: input, shape index: {}]
  %s2 = inlined_call_operand.vmem [shape: bf16[128,128], index: 2, kind: input, shape index: {}]
  %s3 = inlined_call_operand.vmem [shape: f32[1,128], index: 3, kind: input, shape index: {}]
  %s4 = inlined_call_operand.vmem [shape: bf16[128,128], index: 4, kind: input, shape index: {}]
  %s5 = inlined_call_operand.vmem [shape: f32[1,128], index: 5, kind: input, shape index: {}]
  %s6 = inlined_call_operand.vmem [shape: bf16[128,128], index: 6, kind: input, shape index: {}]
  %s7 = inlined_call_operand.vmem [shape: f32[1,128], index: 7, kind: input, shape index: {}]
  %s8 = inlined_call_operand.vmem [shape: bf16[224,128], index: 8, kind: output, shape index: {}]
  %s9 = sld [smem:[#allocation0]]
  $region65: #{fno3d_forward.10} parent=0
    _
  %s11 = ssub.s32 1, %s9
  %s12 = scalar_select 0, %s11, %s9
  loop: start=0, step=1, limit=4
  $region2: #{fno3d_forward.10} parent=0 // loop_pre_header
    _
  $region3: #{fno3d_forward.10} parent=0 // loop_header
    %s14 = sphi 0, %s18
    %p15 = scmp.ge.s32.totalorder %s14, 4
    %s24 = sphi 0, %s26
    %s27 = sphi 0, %s24
    %s28 = sphi 0, %s27
    %s44 = sphi 0, %s28
    %s50 = sphi 0, %s52
    %s53 = sphi 0, %s50
    %s54 = sphi 0, %s53
    %s70 = sphi 0, %s54
    %s74 = sphi 0, %s74
    %s76 = sphi 0, %s74
    %s77 = sphi 0, %s76
    %s91 = sphi 0, %s77
    %s95 = sphi 0, %s95
    %s97 = sphi 0, %s95
    %s98 = sphi 0, %s97
    %s112 = sphi 0, %s98
    %s116 = sphi 0, %s116
    %s118 = sphi 0, %s116
    %s119 = sphi 0, %s118
    %s133 = sphi 0, %s119
    %s137 = sphi 0, %s137
    %s139 = sphi 0, %s137
    %s140 = sphi 0, %s139
    %s154 = sphi 0, %s140
    %s158 = sphi 0, %s158
    %s160 = sphi 0, %s158
    %s161 = sphi 0, %s160
    %s175 = sphi 0, %s161
    %s179 = sphi 0, %s179
    %s181 = sphi 0, %s179
    %s182 = sphi 0, %s181
    %s196 = sphi 0, %s182
    %s202 = sphi 0, %s204
    %s205 = sphi 0, %s202
    %s206 = sphi 0, %s205
    %s222 = sphi 0, %s206
  $region4: #{fno3d_forward.10} parent=0 // loop_header_branch
    %17 = sbr.rel (%p15) target = $region8
  $region5: #{fno3d_forward.10} parent=0 // loop_body
    %s19 = ssub.s32 %s14, 1
    %s20 = ssub.s32 %s14, 2
    %s21 = sadd.s32 %s14, 1
    %s22 = ssub.s32 %s14, %s21
    %p23 = scmp.eq.s32.totalorder %s22, 0
    %s25 = sadd.s32 %s24, 1
    %s26 = scalar_select %p23, %s24, %s25
    %p29 = pneg %p23
    %p30 = scmp.eq.s32.totalorder %s14, 1
    %p31 = por %p29, %p30
    %p32 = scmp.ne.s32.totalorder %s24, %s27
    %p33 = scmp.eq.s32.totalorder %s14, 0
    %p34 = por %p32, %p33
    %p35 = scmp.ne.s32.totalorder %s24, %s27
    %p36 = scmp.eq.s32.totalorder %s19, 1
    %p37 = por %p35, %p36
    %p38 = scmp.ne.s32.totalorder %s27, %s28
    %p39 = scmp.eq.s32.totalorder %s19, 0
    %p40 = por %p38, %p39
    %p41 = scmp.ne.s32.totalorder %s27, %s28
    %p42 = scmp.eq.s32.totalorder %s20, 1
    %p43 = por %p41, %p42
    %p45 = scmp.ne.s32.totalorder %s28, %s44
    %p46 = scmp.eq.s32.totalorder %s20, 0
    %p47 = por %p45, %p46
    %s48 = ssub.s32 %s14, %s21
    %p49 = scmp.eq.s32.totalorder %s48, 0
    %s51 = sadd.s32 %s50, 1
    %s52 = scalar_select %p49, %s50, %s51
    %p55 = pneg %p49
    %p56 = scmp.eq.s32.totalorder %s14, 1
    %p57 = por %p55, %p56
    %p58 = scmp.ne.s32.totalorder %s50, %s53
    %p59 = scmp.eq.s32.totalorder %s14, 0
    %p60 = por %p58, %p59
    %p61 = scmp.ne.s32.totalorder %s50, %s53
    %p62 = scmp.eq.s32.totalorder %s19, 1
    %p63 = por %p61, %p62
    %p64 = scmp.ne.s32.totalorder %s53, %s54
    %p65 = scmp.eq.s32.totalorder %s19, 0
    %p66 = por %p64, %p65
    %p67 = scmp.ne.s32.totalorder %s53, %s54
    %p68 = scmp.eq.s32.totalorder %s20, 1
    %p69 = por %p67, %p68
    %p71 = scmp.ne.s32.totalorder %s54, %s70
    %p72 = scmp.eq.s32.totalorder %s20, 0
    %p73 = por %p71, %p72
    %s75 = sadd.s32 %s74, 1
    %p78 = scmp.eq.s32.totalorder %s14, 1
    %p79 = scmp.ne.s32.totalorder %s74, %s76
    %p80 = scmp.eq.s32.totalorder %s14, 0
    %p81 = por %p79, %p80
    %p82 = scmp.ne.s32.totalorder %s74, %s76
    %p83 = scmp.eq.s32.totalorder %s19, 1
    %p84 = por %p82, %p83
    %p85 = scmp.ne.s32.totalorder %s76, %s77
    %p86 = scmp.eq.s32.totalorder %s19, 0
    %p87 = por %p85, %p86
    %p88 = scmp.ne.s32.totalorder %s76, %s77
    %p89 = scmp.eq.s32.totalorder %s20, 1
    %p90 = por %p88, %p89
    %p92 = scmp.ne.s32.totalorder %s77, %s91
    %p93 = scmp.eq.s32.totalorder %s20, 0
    %p94 = por %p92, %p93
    %s96 = sadd.s32 %s95, 1
    %p99 = scmp.eq.s32.totalorder %s14, 1
    %p100 = scmp.ne.s32.totalorder %s95, %s97
    %p101 = scmp.eq.s32.totalorder %s14, 0
    %p102 = por %p100, %p101
    %p103 = scmp.ne.s32.totalorder %s95, %s97
    %p104 = scmp.eq.s32.totalorder %s19, 1
    %p105 = por %p103, %p104
    %p106 = scmp.ne.s32.totalorder %s97, %s98
    %p107 = scmp.eq.s32.totalorder %s19, 0
    %p108 = por %p106, %p107
    %p109 = scmp.ne.s32.totalorder %s97, %s98
    %p110 = scmp.eq.s32.totalorder %s20, 1
    %p111 = por %p109, %p110
    %p113 = scmp.ne.s32.totalorder %s98, %s112
    %p114 = scmp.eq.s32.totalorder %s20, 0
    %p115 = por %p113, %p114
    %s117 = sadd.s32 %s116, 1
    %p120 = scmp.eq.s32.totalorder %s14, 1
    %p121 = scmp.ne.s32.totalorder %s116, %s118
    %p122 = scmp.eq.s32.totalorder %s14, 0
    %p123 = por %p121, %p122
    %p124 = scmp.ne.s32.totalorder %s116, %s118
    %p125 = scmp.eq.s32.totalorder %s19, 1
    %p126 = por %p124, %p125
    %p127 = scmp.ne.s32.totalorder %s118, %s119
    %p128 = scmp.eq.s32.totalorder %s19, 0
    %p129 = por %p127, %p128
    %p130 = scmp.ne.s32.totalorder %s118, %s119
    %p131 = scmp.eq.s32.totalorder %s20, 1
    %p132 = por %p130, %p131
    %p134 = scmp.ne.s32.totalorder %s119, %s133
    %p135 = scmp.eq.s32.totalorder %s20, 0
    %p136 = por %p134, %p135
    %s138 = sadd.s32 %s137, 1
    %p141 = scmp.eq.s32.totalorder %s14, 1
    %p142 = scmp.ne.s32.totalorder %s137, %s139
    %p143 = scmp.eq.s32.totalorder %s14, 0
    %p144 = por %p142, %p143
    %p145 = scmp.ne.s32.totalorder %s137, %s139
    %p146 = scmp.eq.s32.totalorder %s19, 1
    %p147 = por %p145, %p146
    %p148 = scmp.ne.s32.totalorder %s139, %s140
    %p149 = scmp.eq.s32.totalorder %s19, 0
    %p150 = por %p148, %p149
    %p151 = scmp.ne.s32.totalorder %s139, %s140
    %p152 = scmp.eq.s32.totalorder %s20, 1
    %p153 = por %p151, %p152
    %p155 = scmp.ne.s32.totalorder %s140, %s154
    %p156 = scmp.eq.s32.totalorder %s20, 0
    %p157 = por %p155, %p156
    %s159 = sadd.s32 %s158, 1
    %p162 = scmp.eq.s32.totalorder %s14, 1
    %p163 = scmp.ne.s32.totalorder %s158, %s160
    %p164 = scmp.eq.s32.totalorder %s14, 0
    %p165 = por %p163, %p164
    %p166 = scmp.ne.s32.totalorder %s158, %s160
    %p167 = scmp.eq.s32.totalorder %s19, 1
    %p168 = por %p166, %p167
    %p169 = scmp.ne.s32.totalorder %s160, %s161
    %p170 = scmp.eq.s32.totalorder %s19, 0
    %p171 = por %p169, %p170
    %p172 = scmp.ne.s32.totalorder %s160, %s161
    %p173 = scmp.eq.s32.totalorder %s20, 1
    %p174 = por %p172, %p173
    %p176 = scmp.ne.s32.totalorder %s161, %s175
    %p177 = scmp.eq.s32.totalorder %s20, 0
    %p178 = por %p176, %p177
    %s180 = sadd.s32 %s179, 1
    %p183 = scmp.eq.s32.totalorder %s14, 1
    %p184 = scmp.ne.s32.totalorder %s179, %s181
    %p185 = scmp.eq.s32.totalorder %s14, 0
    %p186 = por %p184, %p185
    %p187 = scmp.ne.s32.totalorder %s179, %s181
    %p188 = scmp.eq.s32.totalorder %s19, 1
    %p189 = por %p187, %p188
    %p190 = scmp.ne.s32.totalorder %s181, %s182
    %p191 = scmp.eq.s32.totalorder %s19, 0
    %p192 = por %p190, %p191
    %p193 = scmp.ne.s32.totalorder %s181, %s182
    %p194 = scmp.eq.s32.totalorder %s20, 1
    %p195 = por %p193, %p194
    %p197 = scmp.ne.s32.totalorder %s182, %s196
    %p198 = scmp.eq.s32.totalorder %s20, 0
    %p199 = por %p197, %p198
    %s200 = ssub.s32 %s14, %s21
    %p201 = scmp.eq.s32.totalorder %s200, 0
    %s203 = sadd.s32 %s202, 1
    %s204 = scalar_select %p201, %s202, %s203
    %p207 = pneg %p201
    %p208 = scmp.eq.s32.totalorder %s14, 1
    %p209 = por %p207, %p208
    %p210 = scmp.ne.s32.totalorder %s202, %s205
    %p211 = scmp.eq.s32.totalorder %s14, 0
    %p212 = por %p210, %p211
    %p213 = scmp.ne.s32.totalorder %s202, %s205
    %p214 = scmp.eq.s32.totalorder %s19, 1
    %p215 = por %p213, %p214
    %p216 = scmp.ne.s32.totalorder %s205, %s206
    %p217 = scmp.eq.s32.totalorder %s19, 0
    %p218 = por %p216, %p217
    %p219 = scmp.ne.s32.totalorder %s205, %s206
    %p220 = scmp.eq.s32.totalorder %s20, 1
    %p221 = por %p219, %p220
    %p223 = scmp.ne.s32.totalorder %s206, %s222
    %p224 = scmp.eq.s32.totalorder %s20, 0
    %p225 = por %p223, %p224
    %p226 = scmp.le.s32.totalorder 1, %s14
    %p227 = scmp.lt.s32.totalorder %s14, 3
    %p228 = pnand %p226, %p227
    %p229 = pneg %p228
    // Predicated region
    $region9: #{fno3d_forward.10} parent=5 // pred_check
      _
    $region10: #{fno3d_forward.10} parent=5 // pred_check_branch
      %231 = sbr.rel (%p228) target = $region12
    $region11: #{fno3d_forward.10} parent=5 // pred_region
      %s232 = ssub.s32 %s14, 1
      // Predicated region
      $region13: #{fno3d_forward.10} parent=11 // pred_check
        %p233 = pneg %p87
      $region14: #{fno3d_forward.10} parent=11 // pred_check_branch
        %235 = sbr.rel (%p233) target = $region16
      $region15: #{fno3d_forward.10} parent=11 // pred_region
        _
      $region16: #{fno3d_forward.10} parent=11 // pred_fallthru
        _
      // Predicated region
      $region17: #{fno3d_forward.10} parent=11 // pred_check
        %p236 = pneg %p108
      $region18: #{fno3d_forward.10} parent=11 // pred_check_branch
        %238 = sbr.rel (%p236) target = $region20
      $region19: #{fno3d_forward.10} parent=11 // pred_region
        _
      $region20: #{fno3d_forward.10} parent=11 // pred_fallthru
        _
      // Predicated region
      $region21: #{fno3d_forward.10} parent=11 // pred_check
        %p239 = pneg %p129
      $region22: #{fno3d_forward.10} parent=11 // pred_check_branch
        %241 = sbr.rel (%p239) target = $region24
      $region23: #{fno3d_forward.10} parent=11 // pred_region
        _
      $region24: #{fno3d_forward.10} parent=11 // pred_fallthru
        _
      // Predicated region
      $region25: #{fno3d_forward.10} parent=11 // pred_check
        %p242 = pneg %p150
      $region26: #{fno3d_forward.10} parent=11 // pred_check_branch
        %244 = sbr.rel (%p242) target = $region28
      $region27: #{fno3d_forward.10} parent=11 // pred_region
        _
      $region28: #{fno3d_forward.10} parent=11 // pred_fallthru
        _
      // Predicated region
      $region29: #{fno3d_forward.10} parent=11 // pred_check
        %p245 = pneg %p171
      $region30: #{fno3d_forward.10} parent=11 // pred_check_branch
        %247 = sbr.rel (%p245) target = $region32
      $region31: #{fno3d_forward.10} parent=11 // pred_region
        _
      $region32: #{fno3d_forward.10} parent=11 // pred_fallthru
        _
      // Predicated region
      $region33: #{fno3d_forward.10} parent=11 // pred_check
        %p248 = pneg %p192
      $region34: #{fno3d_forward.10} parent=11 // pred_check_branch
        %250 = sbr.rel (%p248) target = $region36
      $region35: #{fno3d_forward.10} parent=11 // pred_region
        _
      $region36: #{fno3d_forward.10} parent=11 // pred_fallthru
        _
    $region12: #{fno3d_forward.10} parent=5 // pred_fallthru
      _
    %p251 = scmp.lt.s32.totalorder %s14, 2
    // Predicated region
    $region37: #{fno3d_forward.10} parent=5 // pred_check
      %p252 = pneg %p251
    $region38: #{fno3d_forward.10} parent=5 // pred_check_branch
      %254 = sbr.rel (%p252) target = $region40
    $region39: #{fno3d_forward.10} parent=5 // pred_region
      // Predicated region
      $region41: #{fno3d_forward.10} parent=39 // pred_check
        %p255 = pneg %p34
      $region42: #{fno3d_forward.10} parent=39 // pred_check_branch
        %257 = sbr.rel (%p255) target = $region44
      $region43: #{fno3d_forward.10} parent=39 // pred_region
        %s258 = smul.u32 14, %s14
        %p259 = scmp.lt.s32.totalorder %s258, 27
        %s260 = scalar_select %p259, %s258, 27
        %s261 = smul.addr %s260, 4
        %s262 = scalar_lea.vmem %s0, %s261
        %s263 = smul.u32 14, %s14
      $region44: #{fno3d_forward.10} parent=39 // pred_fallthru
        _
      // Predicated region
      $region45: #{fno3d_forward.10} parent=39 // pred_check
        %p264 = pneg %p60
      $region46: #{fno3d_forward.10} parent=39 // pred_check_branch
        %266 = sbr.rel (%p264) target = $region48
      $region47: #{fno3d_forward.10} parent=39 // pred_region
        %s267 = smul.u32 14, %s14
        %p268 = scmp.lt.s32.totalorder %s267, 27
        %s269 = scalar_select %p268, %s267, 27
        %s270 = smul.addr %s269, 4
        %s271 = scalar_lea.vmem %s1, %s270
        %s272 = smul.u32 14, %s14
      $region48: #{fno3d_forward.10} parent=39 // pred_fallthru
        _
    $region40: #{fno3d_forward.10} parent=5 // pred_fallthru
      _
    %p273 = scmp.le.s32.totalorder 1, %s14
    %p274 = scmp.lt.s32.totalorder %s14, 3
    %p275 = pnand %p273, %p274
    %p276 = pneg %p275
    // Predicated region
    $region49: #{fno3d_forward.10} parent=5 // pred_check
      _
    $region50: #{fno3d_forward.10} parent=5 // pred_check_branch
      %278 = sbr.rel (%p275) target = $region52
    $region51: #{fno3d_forward.10} parent=5 // pred_region
      %s279 = ssub.s32 %s14, 1
      %s280 = smul.u32 14, %s19
      %p281 = scmp.lt.s32.totalorder %s280, 27
      %s282 = scalar_select %p281, %s280, 27
      %s283 = smul.addr %s282, 4
      %s284 = scalar_lea.vmem %s0, %s283
      %p285 = pneg %p40
      %p286 = pneg %p37
      %s287 = smul.u32 14, %s19
      %p288 = scmp.lt.s32.totalorder %s287, 27
      %s289 = scalar_select %p288, %s287, 27
      %s290 = smul.addr %s289, 4
      %s291 = scalar_lea.vmem %s1, %s290
      %p292 = pneg %p66
      %p293 = pneg %p63
      %p294 = pneg %p87
      %p295 = pneg %p84
      %p296 = pneg %p108
      %p297 = pneg %p105
      %p298 = pneg %p129
      %p299 = pneg %p126
      %p300 = pneg %p150
      %p301 = pneg %p147
      %p302 = pneg %p171
      %p303 = pneg %p168
      %p304 = pneg %p192
      %p305 = pneg %p189
      %p306 = pneg %p218
      %p307 = pneg %p215
      %s308 = smul.u32 14, %s19
      %p309 = scmp.lt.s32.totalorder %s308, 27
      %s310 = scalar_select %p309, %s308, 27
      %s311 = smul.addr %s310, 4
      %s312 = scalar_lea.vmem %s8, %s311
      %s313 = smul.u32 14, %s19
      %p314 = scmp.lt.s32.totalorder %s313, 27
      %s315 = scalar_select %p314, %s313, 27
      %s316 = smul.addr %s315, 4
      %s317 = scalar_lea.vmem %s0, %s316
      %s318 = smul.u32 14, %s19
      %s319 = smul.u32 14, %s19
      %p320 = scmp.lt.s32.totalorder %s319, 27
      %s321 = scalar_select %p320, %s319, 27
      %s322 = smul.addr %s321, 4
      %s323 = scalar_lea.vmem %s1, %s322
      %s324 = smul.u32 14, %s19
      %s325 = smul.u32 14, %s19
      %p326 = scmp.lt.s32.totalorder %s325, 27
      %s327 = scalar_select %p326, %s325, 27
      %s328 = smul.addr %s327, 4
      %s329 = scalar_lea.vmem %s8, %s328
      %s330 = smul.u32 14, %s19
      %v332 = vld [vmem:[%s317] sm:$0xf]
      %v333 = vld [vmem:[%s317 + $0x4] sm:$0xf]
      %v334 = vld [vmem:[%s317 + $0x8] sm:$0xf]
      %v335 = vld [vmem:[%s317 + $0xc] sm:$0xf]
      %v336 = vld [vmem:[%s317 + $0x10] sm:$0xf]
      %v337 = vld [vmem:[%s317 + $0x14] sm:$0xf]
      %v338 = vld [vmem:[%s317 + $0x18] sm:$0xf]
      %v339 = vld [vmem:[%s317 + $0x1c] sm:$0xf]
      %v340 = vld [vmem:[%s317 + $0x20] sm:$0xf]
      %v341 = vld [vmem:[%s317 + $0x24] sm:$0xf]
      %v342 = vld [vmem:[%s317 + $0x28] sm:$0xf]
      %v343 = vld [vmem:[%s317 + $0x2c] sm:$0xf]
      %v344 = vld [vmem:[%s317 + $0x30] sm:$0xf]
      %v345 = vld [vmem:[%s317 + $0x34] sm:$0xf]
      %v346 = vld [vmem:[%s323] sm:$0xf]
      %v347 = vld [vmem:[%s323 + $0x4] sm:$0xf]
      %v348 = vld [vmem:[%s323 + $0x8] sm:$0xf]
      %v349 = vld [vmem:[%s323 + $0xc] sm:$0xf]
      %v350 = vld [vmem:[%s323 + $0x10] sm:$0xf]
      %v351 = vld [vmem:[%s323 + $0x14] sm:$0xf]
      %v352 = vld [vmem:[%s323 + $0x18] sm:$0xf]
      %v353 = vld [vmem:[%s323 + $0x1c] sm:$0xf]
      %v354 = vld [vmem:[%s323 + $0x20] sm:$0xf]
      %v355 = vld [vmem:[%s323 + $0x24] sm:$0xf]
      %v356 = vld [vmem:[%s323 + $0x28] sm:$0xf]
      %v357 = vld [vmem:[%s323 + $0x2c] sm:$0xf]
      %v358 = vld [vmem:[%s323 + $0x30] sm:$0xf]
      %v359 = vld [vmem:[%s323 + $0x34] sm:$0xf]
      %v360 = vld [vmem:[%s2] sm:$0xf]
      %v361 = vld [vmem:[%s2 + $0x4] sm:$0xf]
      %v362 = vld [vmem:[%s2 + $0x8] sm:$0xf]
      %v363 = vld [vmem:[%s2 + $0xc] sm:$0xf]
      %v364 = vld [vmem:[%s2 + $0x10] sm:$0xf]
      %v365 = vld [vmem:[%s2 + $0x14] sm:$0xf]
      %v366 = vld [vmem:[%s2 + $0x18] sm:$0xf]
      %v367 = vld [vmem:[%s2 + $0x1c] sm:$0xf]
      %v368 = vld [vmem:[%s2 + $0x20] sm:$0xf]
      %v369 = vld [vmem:[%s2 + $0x24] sm:$0xf]
      %v370 = vld [vmem:[%s2 + $0x28] sm:$0xf]
      %v371 = vld [vmem:[%s2 + $0x2c] sm:$0xf]
      %v372 = vld [vmem:[%s2 + $0x30] sm:$0xf]
      %v373 = vld [vmem:[%s2 + $0x34] sm:$0xf]
      %v374 = vld [vmem:[%s2 + $0x38] sm:$0xf]
      %v375 = vld [vmem:[%s2 + $0x3c] sm:$0xf]
      %v376 = vld [vmem:[%s3] sm:$0x1]
      %v378 = vlaneseq
      %v379 = vshrl.u32 %v378, 7
      %v380 = vsub.s32 0, %v379
      %v381 = vrot.slane %v376, %v380
      %v397 = vunpack.c.l.b16 %v332
      %v398 = vunpack.c.l.b16 %v333
      %v399 = vunpack.c.l.b16 %v334
      %v400 = vunpack.c.l.b16 %v335
      %v401 = vunpack.c.l.b16 %v336
      %v402 = vunpack.c.l.b16 %v337
      %v403 = vunpack.c.l.b16 %v338
      %v404 = vunpack.c.l.b16 %v339
      %v405 = vunpack.c.l.b16 %v340
      %v406 = vunpack.c.l.b16 %v341
      %v407 = vunpack.c.l.b16 %v342
      %v408 = vunpack.c.l.b16 %v343
      %v409 = vunpack.c.l.b16 %v344
      %v410 = vunpack.c.l.b16 %v345
      %v411 = vpack.c.b16 %v398, %v397
      %v412 = vpack.c.b16 %v400, %v399
      %v413 = vpack.c.b16 %v402, %v401
      %v414 = vpack.c.b16 %v404, %v403
      %v415 = vpack.c.b16 %v406, %v405
      %v416 = vpack.c.b16 %v408, %v407
      %v417 = vpack.c.b16 %v410, %v409
      %v441 = vunpack.c.l.b16 %v360
      %v442 = vunpack.c.l.b16 %v361
      %v443 = vunpack.c.l.b16 %v362
      %v444 = vunpack.c.l.b16 %v363
      %v445 = vunpack.c.l.b16 %v364
      %v446 = vunpack.c.l.b16 %v365
      %v447 = vunpack.c.l.b16 %v366
      %v448 = vunpack.c.l.b16 %v367
      %v449 = vunpack.c.l.b16 %v368
      %v450 = vunpack.c.l.b16 %v369
      %v451 = vunpack.c.l.b16 %v370
      %v452 = vunpack.c.l.b16 %v371
      %v453 = vunpack.c.l.b16 %v372
      %v454 = vunpack.c.l.b16 %v373
      %v455 = vunpack.c.l.b16 %v374
      %v456 = vunpack.c.l.b16 %v375
      %v457 = vpack.c.b16 %v442, %v441
      %v458 = vpack.c.b16 %v444, %v443
      %v459 = vpack.c.b16 %v446, %v445
      %v460 = vpack.c.b16 %v448, %v447
      %v461 = vpack.c.b16 %v450, %v449
      %v462 = vpack.c.b16 %v452, %v451
      %v463 = vpack.c.b16 %v454, %v453
      %v464 = vpack.c.b16 %v456, %v455
      %473 = vmatprep.subr.bf16.mxu0 0
      %474 = vmatpush1.bf16.msra.mxu0 %v457
      %475 = vmatprep.subr.bf16.mxu0 0
      %476 = vmatpush1.bf16.msra.mxu0 %v458
      %477 = vmatprep.subr.bf16.mxu0 0
      %478 = vmatpush1.bf16.msra.mxu0 %v459
      %479 = vmatprep.subr.bf16.mxu0 0
      %480 = vmatpush1.bf16.msra.mxu0 %v460
      %481 = vmatprep.subr.bf16.mxu0 0
      %482 = vmatpush1.bf16.msra.mxu0 %v461
      %483 = vmatprep.subr.bf16.mxu0 0
      %484 = vmatpush1.bf16.msra.mxu0 %v462
      %485 = vmatprep.subr.bf16.mxu0 0
      %486 = vmatpush1.bf16.msra.mxu0 %v463
      %487 = vmatprep.subr.bf16.mxu0 0
      %488 = vmatpush1.bf16.msra.mxu0 %v464
      %489 = vmatprep.subr.bf16.mxu0 0
      %490 = vmatpush1.bf16.msra.mxu0 0
      %491 = vmatprep.subr.bf16.mxu0 0
      %492 = vmatpush1.bf16.msra.mxu0 0
      %493 = vmatprep.subr.bf16.mxu0 0
      %494 = vmatpush1.bf16.msra.mxu0 0
      %495 = vmatprep.subr.bf16.mxu0 0
      %496 = vmatpush1.bf16.msra.mxu0 0
      %497 = vmatprep.subr.bf16.mxu0 0
      %498 = vmatpush1.bf16.msra.mxu0 0
      %499 = vmatprep.subr.bf16.mxu0 0
      %500 = vmatpush1.bf16.msra.mxu0 0
      %501 = vmatprep.subr.bf16.mxu0 0
      %502 = vmatpush1.bf16.msra.mxu0 0
      %503 = vmatprep.subr.bf16.mxu0 0
      %504 = vmatpush1.bf16.msra.mxu0 0
      %505 = vmatprep.mubr.bf16.mxu0 0
      %506 = vmatmul.mubr.bf16.gmra.mrb[0].mxu0 %v411
      %v507 = vpop.f32.mrb[0].mxu0
      %v508 = vadd.f32 %v381, %v507
      %v509 = vpop.f32.mrb[0].mxu0
      %v510 = vpop.f32.mrb[0].mxu0
      %v511 = vadd.f32 %v381, %v510
      %v512 = vpop.f32.mrb[0].mxu0
      %513 = vmatprep.mubr.bf16.mxu0 0
      %514 = vmatmul.mubr.bf16.gmra.mrb[0].mxu0 %v412
      %v515 = vpop.f32.mrb[0].mxu0
      %v516 = vadd.f32 %v381, %v515
      %v517 = vpop.f32.mrb[0].mxu0
      %v518 = vpop.f32.mrb[0].mxu0
      %v519 = vadd.f32 %v381, %v518
      %v520 = vpop.f32.mrb[0].mxu0
      %521 = vmatprep.mubr.bf16.mxu0 0
      %522 = vmatmul.mubr.bf16.gmra.mrb[0].mxu0 %v413
      %v523 = vpop.f32.mrb[0].mxu0
      %v524 = vadd.f32 %v381, %v523
      %v525 = vpop.f32.mrb[0].mxu0
      %v526 = vpop.f32.mrb[0].mxu0
      %v527 = vadd.f32 %v381, %v526
      %v528 = vpop.f32.mrb[0].mxu0
      %529 = vmatprep.mubr.bf16.mxu0 0
      %530 = vmatmul.mubr.bf16.gmra.mrb[0].mxu0 %v414
      %v531 = vpop.f32.mrb[0].mxu0
      %v532 = vadd.f32 %v381, %v531
      %v533 = vpop.f32.mrb[0].mxu0
      %v534 = vpop.f32.mrb[0].mxu0
      %v535 = vadd.f32 %v381, %v534
      %v536 = vpop.f32.mrb[0].mxu0
      %537 = vmatprep.mubr.bf16.mxu0 0
      %538 = vmatmul.mubr.bf16.gmra.mrb[0].mxu0 %v415
      %v539 = vpop.f32.mrb[0].mxu0
      %v540 = vadd.f32 %v381, %v539
      %v541 = vpop.f32.mrb[0].mxu0
      %v542 = vpop.f32.mrb[0].mxu0
      %v543 = vadd.f32 %v381, %v542
      %v544 = vpop.f32.mrb[0].mxu0
      %545 = vmatprep.mubr.bf16.mxu0 0
      %546 = vmatmul.mubr.bf16.gmra.mrb[0].mxu0 %v416
      %v547 = vpop.f32.mrb[0].mxu0
      %v548 = vadd.f32 %v381, %v547
      %v549 = vpop.f32.mrb[0].mxu0
      %v550 = vpop.f32.mrb[0].mxu0
      %v551 = vadd.f32 %v381, %v550
      %v552 = vpop.f32.mrb[0].mxu0
      %553 = vmatprep.mubr.bf16.mxu0 0
      %554 = vmatmul.mubr.bf16.gmra.mrb[0].mxu0 %v417
      %v555 = vpop.f32.mrb[0].mxu0
      %v556 = vadd.f32 %v381, %v555
      %v557 = vpop.f32.mrb[0].mxu0
      %v558 = vpop.f32.mrb[0].mxu0
      %v559 = vadd.f32 %v381, %v558
      %v560 = vpop.f32.mrb[0].mxu0
      %561 = vdwg.mxu0
      %v562 = vmul.f32 %v508, 0.5
      %v563 = vmul.f32 %v511, 0.5
      %v564 = vmul.f32 %v516, 0.5
      %v565 = vmul.f32 %v519, 0.5
      %v566 = vmul.f32 %v524, 0.5
      %v567 = vmul.f32 %v527, 0.5
      %v568 = vmul.f32 %v532, 0.5
      %v569 = vmul.f32 %v535, 0.5
      %v570 = vmul.f32 %v540, 0.5
      %v571 = vmul.f32 %v543, 0.5
      %v572 = vmul.f32 %v548, 0.5
      %v573 = vmul.f32 %v551, 0.5
      %v574 = vmul.f32 %v556, 0.5
      %v575 = vmul.f32 %v559, 0.5
      %v576 = vmul.f32 %v508, 0.044715
      %v577 = vmul.f32 %v511, 0.044715
      %v578 = vmul.f32 %v516, 0.044715
      %v579 = vmul.f32 %v519, 0.044715
      %v580 = vmul.f32 %v524, 0.044715
      %v581 = vmul.f32 %v527, 0.044715
      %v582 = vmul.f32 %v532, 0.044715
      %v583 = vmul.f32 %v535, 0.044715
      %v584 = vmul.f32 %v540, 0.044715
      %v585 = vmul.f32 %v543, 0.044715
      %v586 = vmul.f32 %v548, 0.044715
      %v587 = vmul.f32 %v551, 0.044715
      %v588 = vmul.f32 %v556, 0.044715
      %v589 = vmul.f32 %v559, 0.044715
      %v590 = vmul.f32 %v576, %v508
      %v591 = vmul.f32 %v577, %v511
      %v592 = vmul.f32 %v578, %v516
      %v593 = vmul.f32 %v579, %v519
      %v594 = vmul.f32 %v580, %v524
      %v595 = vmul.f32 %v581, %v527
      %v596 = vmul.f32 %v582, %v532
      %v597 = vmul.f32 %v583, %v535
      %v598 = vmul.f32 %v584, %v540
      %v599 = vmul.f32 %v585, %v543
      %v600 = vmul.f32 %v586, %v548
      %v601 = vmul.f32 %v587, %v551
      %v602 = vmul.f32 %v588, %v556
      %v603 = vmul.f32 %v589, %v559
      %v604 = vmul.f32 %v590, %v508
      %v605 = vmul.f32 %v591, %v511
      %v606 = vmul.f32 %v592, %v516
      %v607 = vmul.f32 %v593, %v519
      %v608 = vmul.f32 %v594, %v524
      %v609 = vmul.f32 %v595, %v527
      %v610 = vmul.f32 %v596, %v532
      %v611 = vmul.f32 %v597, %v535
      %v612 = vmul.f32 %v598, %v540
      %v613 = vmul.f32 %v599, %v543
      %v614 = vmul.f32 %v600, %v548
      %v615 = vmul.f32 %v601, %v551
      %v616 = vmul.f32 %v602, %v556
      %v617 = vmul.f32 %v603, %v559
      %v618 = vadd.f32 %v508, %v604
      %v619 = vadd.f32 %v511, %v605
      %v620 = vadd.f32 %v516, %v606
      %v621 = vadd.f32 %v519, %v607
      %v622 = vadd.f32 %v524, %v608
      %v623 = vadd.f32 %v527, %v609
      %v624 = vadd.f32 %v532, %v610
      %v625 = vadd.f32 %v535, %v611
      %v626 = vadd.f32 %v540, %v612
      %v627 = vadd.f32 %v543, %v613
      %v628 = vadd.f32 %v548, %v614
      %v629 = vadd.f32 %v551, %v615
      %v630 = vadd.f32 %v556, %v616
      %v631 = vadd.f32 %v559, %v617
      %v632 = vmul.f32 %v618, 0.7978846
      %v633 = vmul.f32 %v619, 0.7978846
      %v634 = vmul.f32 %v620, 0.7978846
      %v635 = vmul.f32 %v621, 0.7978846
      %v636 = vmul.f32 %v622, 0.7978846
      %v637 = vmul.f32 %v623, 0.7978846
      %v638 = vmul.f32 %v624, 0.7978846
      %v639 = vmul.f32 %v625, 0.7978846
      %v640 = vmul.f32 %v626, 0.7978846
      %v641 = vmul.f32 %v627, 0.7978846
      %v642 = vmul.f32 %v628, 0.7978846
      %v643 = vmul.f32 %v629, 0.7978846
      %v644 = vmul.f32 %v630, 0.7978846
      %v645 = vmul.f32 %v631, 0.7978846
      %v646 = vtanh.pop %v632
      %v647 = vtanh.pop %v633
      %v648 = vtanh.pop %v634
      %v649 = vtanh.pop %v635
      %v650 = vtanh.pop %v636
      %v651 = vtanh.pop %v637
      %v652 = vtanh.pop %v638
      %v653 = vtanh.pop %v639
      %v654 = vtanh.pop %v640
      %v655 = vtanh.pop %v641
      %v656 = vtanh.pop %v642
      %v657 = vtanh.pop %v643
      %v658 = vtanh.pop %v644
      %v659 = vtanh.pop %v645
      %v660 = vadd.f32 %v646, 1.0
      %v661 = vadd.f32 %v647, 1.0
      %v662 = vadd.f32 %v648, 1.0
      %v663 = vadd.f32 %v649, 1.0
      %v664 = vadd.f32 %v650, 1.0
      %v665 = vadd.f32 %v651, 1.0
      %v666 = vadd.f32 %v652, 1.0
      %v667 = vadd.f32 %v653, 1.0
      %v668 = vadd.f32 %v654, 1.0
      %v669 = vadd.f32 %v655, 1.0
      %v670 = vadd.f32 %v656, 1.0
      %v671 = vadd.f32 %v657, 1.0
      %v672 = vadd.f32 %v658, 1.0
      %v673 = vadd.f32 %v659, 1.0
      %v674 = vmul.f32 %v562, %v660
      %v675 = vmul.f32 %v563, %v661
      %v676 = vmul.f32 %v564, %v662
      %v677 = vmul.f32 %v565, %v663
      %v678 = vmul.f32 %v566, %v664
      %v679 = vmul.f32 %v567, %v665
      %v680 = vmul.f32 %v568, %v666
      %v681 = vmul.f32 %v569, %v667
      %v682 = vmul.f32 %v570, %v668
      %v683 = vmul.f32 %v571, %v669
      %v684 = vmul.f32 %v572, %v670
      %v685 = vmul.f32 %v573, %v671
      %v686 = vmul.f32 %v574, %v672
      %v687 = vmul.f32 %v575, %v673
      %v688 = vpack.c.bf16 %v675, %v674
      %v689 = vpack.c.bf16 %v677, %v676
      %v690 = vpack.c.bf16 %v679, %v678
      %v691 = vpack.c.bf16 %v681, %v680
      %v692 = vpack.c.bf16 %v683, %v682
      %v693 = vpack.c.bf16 %v685, %v684
      %v694 = vpack.c.bf16 %v687, %v686
      %v695 = vld [vmem:[%s4] sm:$0xf]
      %v696 = vld [vmem:[%s4 + $0x4] sm:$0xf]
      %v697 = vld [vmem:[%s4 + $0x8] sm:$0xf]
      %v698 = vld [vmem:[%s4 + $0xc] sm:$0xf]
      %v699 = vld [vmem:[%s4 + $0x10] sm:$0xf]
      %v700 = vld [vmem:[%s4 + $0x14] sm:$0xf]
      %v701 = vld [vmem:[%s4 + $0x18] sm:$0xf]
      %v702 = vld [vmem:[%s4 + $0x1c] sm:$0xf]
      %v703 = vld [vmem:[%s4 + $0x20] sm:$0xf]
      %v704 = vld [vmem:[%s4 + $0x24] sm:$0xf]
      %v705 = vld [vmem:[%s4 + $0x28] sm:$0xf]
      %v706 = vld [vmem:[%s4 + $0x2c] sm:$0xf]
      %v707 = vld [vmem:[%s4 + $0x30] sm:$0xf]
      %v708 = vld [vmem:[%s4 + $0x34] sm:$0xf]
      %v709 = vld [vmem:[%s4 + $0x38] sm:$0xf]
      %v710 = vld [vmem:[%s4 + $0x3c] sm:$0xf]
      %v711 = vld [vmem:[%s5] sm:$0x1]
      %v713 = vlaneseq
      %v714 = vshrl.u32 %v713, 7
      %v715 = vsub.s32 0, %v714
      %v716 = vrot.slane %v711, %v715
      %v734 = vunpack.c.l.b16 %v695
      %v735 = vunpack.c.l.b16 %v696
      %v736 = vunpack.c.l.b16 %v697
      %v737 = vunpack.c.l.b16 %v698
      %v738 = vunpack.c.l.b16 %v699
      %v739 = vunpack.c.l.b16 %v700
      %v740 = vunpack.c.l.b16 %v701
      %v741 = vunpack.c.l.b16 %v702
      %v742 = vunpack.c.l.b16 %v703
      %v743 = vunpack.c.l.b16 %v704
      %v744 = vunpack.c.l.b16 %v705
      %v745 = vunpack.c.l.b16 %v706
      %v746 = vunpack.c.l.b16 %v707
      %v747 = vunpack.c.l.b16 %v708
      %v748 = vunpack.c.l.b16 %v709
      %v749 = vunpack.c.l.b16 %v710
      %v750 = vpack.c.b16 %v735, %v734
      %v751 = vpack.c.b16 %v737, %v736
      %v752 = vpack.c.b16 %v739, %v738
      %v753 = vpack.c.b16 %v741, %v740
      %v754 = vpack.c.b16 %v743, %v742
      %v755 = vpack.c.b16 %v745, %v744
      %v756 = vpack.c.b16 %v747, %v746
      %v757 = vpack.c.b16 %v749, %v748
      %766 = vmatprep.subr.bf16.mxu0 0
      %767 = vmatpush1.bf16.msra.mxu0 %v750
      %768 = vmatprep.subr.bf16.mxu0 0
      %769 = vmatpush1.bf16.msra.mxu0 %v751
      %770 = vmatprep.subr.bf16.mxu0 0
      %771 = vmatpush1.bf16.msra.mxu0 %v752
      %772 = vmatprep.subr.bf16.mxu0 0
      %773 = vmatpush1.bf16.msra.mxu0 %v753
      %774 = vmatprep.subr.bf16.mxu0 0
      %775 = vmatpush1.bf16.msra.mxu0 %v754
      %776 = vmatprep.subr.bf16.mxu0 0
      %777 = vmatpush1.bf16.msra.mxu0 %v755
      %778 = vmatprep.subr.bf16.mxu0 0
      %779 = vmatpush1.bf16.msra.mxu0 %v756
      %780 = vmatprep.subr.bf16.mxu0 0
      %781 = vmatpush1.bf16.msra.mxu0 %v757
      %782 = vmatprep.subr.bf16.mxu0 0
      %783 = vmatpush1.bf16.msra.mxu0 0
      %784 = vmatprep.subr.bf16.mxu0 0
      %785 = vmatpush1.bf16.msra.mxu0 0
      %786 = vmatprep.subr.bf16.mxu0 0
      %787 = vmatpush1.bf16.msra.mxu0 0
      %788 = vmatprep.subr.bf16.mxu0 0
      %789 = vmatpush1.bf16.msra.mxu0 0
      %790 = vmatprep.subr.bf16.mxu0 0
      %791 = vmatpush1.bf16.msra.mxu0 0
      %792 = vmatprep.subr.bf16.mxu0 0
      %793 = vmatpush1.bf16.msra.mxu0 0
      %794 = vmatprep.subr.bf16.mxu0 0
      %795 = vmatpush1.bf16.msra.mxu0 0
      %796 = vmatprep.subr.bf16.mxu0 0
      %797 = vmatpush1.bf16.msra.mxu0 0
      %798 = vmatprep.mubr.bf16.mxu0 0
      %799 = vmatmul.mubr.bf16.gmra.mrb[0].mxu0 %v688
      %v800 = vpop.f32.mrb[0].mxu0
      %v801 = vadd.f32 %v716, %v800
      %v802 = vpop.f32.mrb[0].mxu0
      %v803 = vpop.f32.mrb[0].mxu0
      %v804 = vadd.f32 %v716, %v803
      %v805 = vpop.f32.mrb[0].mxu0
      %806 = vmatprep.mubr.bf16.mxu0 0
      %807 = vmatmul.mubr.bf16.gmra.mrb[0].mxu0 %v689
      %v808 = vpop.f32.mrb[0].mxu0
      %v809 = vadd.f32 %v716, %v808
      %v810 = vpop.f32.mrb[0].mxu0
      %v811 = vpop.f32.mrb[0].mxu0
      %v812 = vadd.f32 %v716, %v811
      %v813 = vpop.f32.mrb[0].mxu0
      %814 = vmatprep.mubr.bf16.mxu0 0
      %815 = vmatmul.mubr.bf16.gmra.mrb[0].mxu0 %v690
      %v816 = vpop.f32.mrb[0].mxu0
      %v817 = vadd.f32 %v716, %v816
      %v818 = vpop.f32.mrb[0].mxu0
      %v819 = vpop.f32.mrb[0].mxu0
      %v820 = vadd.f32 %v716, %v819
      %v821 = vpop.f32.mrb[0].mxu0
      %822 = vmatprep.mubr.bf16.mxu0 0
      %823 = vmatmul.mubr.bf16.gmra.mrb[0].mxu0 %v691
      %v824 = vpop.f32.mrb[0].mxu0
      %v825 = vadd.f32 %v716, %v824
      %v826 = vpop.f32.mrb[0].mxu0
      %v827 = vpop.f32.mrb[0].mxu0
      %v828 = vadd.f32 %v716, %v827
      %v829 = vpop.f32.mrb[0].mxu0
      %830 = vmatprep.mubr.bf16.mxu0 0
      %831 = vmatmul.mubr.bf16.gmra.mrb[0].mxu0 %v692
      %v832 = vpop.f32.mrb[0].mxu0
      %v833 = vadd.f32 %v716, %v832
      %v834 = vpop.f32.mrb[0].mxu0
      %v835 = vpop.f32.mrb[0].mxu0
      %v836 = vadd.f32 %v716, %v835
      %v837 = vpop.f32.mrb[0].mxu0
      %838 = vmatprep.mubr.bf16.mxu0 0
      %839 = vmatmul.mubr.bf16.gmra.mrb[0].mxu0 %v693
      %v840 = vpop.f32.mrb[0].mxu0
      %v841 = vadd.f32 %v716, %v840
      %v842 = vpop.f32.mrb[0].mxu0
      %v843 = vpop.f32.mrb[0].mxu0
      %v844 = vadd.f32 %v716, %v843
      %v845 = vpop.f32.mrb[0].mxu0
      %846 = vmatprep.mubr.bf16.mxu0 0
      %847 = vmatmul.mubr.bf16.gmra.mrb[0].mxu0 %v694
      %v848 = vpop.f32.mrb[0].mxu0
      %v849 = vadd.f32 %v716, %v848
      %v850 = vpop.f32.mrb[0].mxu0
      %v851 = vpop.f32.mrb[0].mxu0
      %v852 = vadd.f32 %v716, %v851
      %v853 = vpop.f32.mrb[0].mxu0
      %854 = vdwg.mxu0
      %v855 = vld [vmem:[%s6] sm:$0xf]
      %v856 = vld [vmem:[%s6 + $0x4] sm:$0xf]
      %v857 = vld [vmem:[%s6 + $0x8] sm:$0xf]
      %v858 = vld [vmem:[%s6 + $0xc] sm:$0xf]
      %v859 = vld [vmem:[%s6 + $0x10] sm:$0xf]
      %v860 = vld [vmem:[%s6 + $0x14] sm:$0xf]
      %v861 = vld [vmem:[%s6 + $0x18] sm:$0xf]
      %v862 = vld [vmem:[%s6 + $0x1c] sm:$0xf]
      %v863 = vld [vmem:[%s6 + $0x20] sm:$0xf]
      %v864 = vld [vmem:[%s6 + $0x24] sm:$0xf]
      %v865 = vld [vmem:[%s6 + $0x28] sm:$0xf]
      %v866 = vld [vmem:[%s6 + $0x2c] sm:$0xf]
      %v867 = vld [vmem:[%s6 + $0x30] sm:$0xf]
      %v868 = vld [vmem:[%s6 + $0x34] sm:$0xf]
      %v869 = vld [vmem:[%s6 + $0x38] sm:$0xf]
      %v870 = vld [vmem:[%s6 + $0x3c] sm:$0xf]
      %v885 = vunpack.c.l.b16 %v346
      %v886 = vunpack.c.l.b16 %v347
      %v887 = vunpack.c.l.b16 %v348
      %v888 = vunpack.c.l.b16 %v349
      %v889 = vunpack.c.l.b16 %v350
      %v890 = vunpack.c.l.b16 %v351
      %v891 = vunpack.c.l.b16 %v352
      %v892 = vunpack.c.l.b16 %v353
      %v893 = vunpack.c.l.b16 %v354
      %v894 = vunpack.c.l.b16 %v355
      %v895 = vunpack.c.l.b16 %v356
      %v896 = vunpack.c.l.b16 %v357
      %v897 = vunpack.c.l.b16 %v358
      %v898 = vunpack.c.l.b16 %v359
      %v899 = vpack.c.b16 %v886, %v885
      %v900 = vpack.c.b16 %v888, %v887
      %v901 = vpack.c.b16 %v890, %v889
      %v902 = vpack.c.b16 %v892, %v891
      %v903 = vpack.c.b16 %v894, %v893
      %v904 = vpack.c.b16 %v896, %v895
      %v905 = vpack.c.b16 %v898, %v897
      %v929 = vunpack.c.l.b16 %v855
      %v930 = vunpack.c.l.b16 %v856
      %v931 = vunpack.c.l.b16 %v857
      %v932 = vunpack.c.l.b16 %v858
      %v933 = vunpack.c.l.b16 %v859
      %v934 = vunpack.c.l.b16 %v860
      %v935 = vunpack.c.l.b16 %v861
      %v936 = vunpack.c.l.b16 %v862
      %v937 = vunpack.c.l.b16 %v863
      %v938 = vunpack.c.l.b16 %v864
      %v939 = vunpack.c.l.b16 %v865
      %v940 = vunpack.c.l.b16 %v866
      %v941 = vunpack.c.l.b16 %v867
      %v942 = vunpack.c.l.b16 %v868
      %v943 = vunpack.c.l.b16 %v869
      %v944 = vunpack.c.l.b16 %v870
      %v945 = vpack.c.b16 %v930, %v929
      %v946 = vpack.c.b16 %v932, %v931
      %v947 = vpack.c.b16 %v934, %v933
      %v948 = vpack.c.b16 %v936, %v935
      %v949 = vpack.c.b16 %v938, %v937
      %v950 = vpack.c.b16 %v940, %v939
      %v951 = vpack.c.b16 %v942, %v941
      %v952 = vpack.c.b16 %v944, %v943
      %961 = vmatprep.subr.bf16.mxu0 0
      %962 = vmatpush1.bf16.msra.mxu0 %v945
      %963 = vmatprep.subr.bf16.mxu0 0
      %964 = vmatpush1.bf16.msra.mxu0 %v946
      %965 = vmatprep.subr.bf16.mxu0 0
      %966 = vmatpush1.bf16.msra.mxu0 %v947
      %967 = vmatprep.subr.bf16.mxu0 0
      %968 = vmatpush1.bf16.msra.mxu0 %v948
      %969 = vmatprep.subr.bf16.mxu0 0
      %970 = vmatpush1.bf16.msra.mxu0 %v949
      %971 = vmatprep.subr.bf16.mxu0 0
      %972 = vmatpush1.bf16.msra.mxu0 %v950
      %973 = vmatprep.subr.bf16.mxu0 0
      %974 = vmatpush1.bf16.msra.mxu0 %v951
      %975 = vmatprep.subr.bf16.mxu0 0
      %976 = vmatpush1.bf16.msra.mxu0 %v952
      %977 = vmatprep.subr.bf16.mxu0 0
      %978 = vmatpush1.bf16.msra.mxu0 0
      %979 = vmatprep.subr.bf16.mxu0 0
      %980 = vmatpush1.bf16.msra.mxu0 0
      %981 = vmatprep.subr.bf16.mxu0 0
      %982 = vmatpush1.bf16.msra.mxu0 0
      %983 = vmatprep.subr.bf16.mxu0 0
      %984 = vmatpush1.bf16.msra.mxu0 0
      %985 = vmatprep.subr.bf16.mxu0 0
      %986 = vmatpush1.bf16.msra.mxu0 0
      %987 = vmatprep.subr.bf16.mxu0 0
      %988 = vmatpush1.bf16.msra.mxu0 0
      %989 = vmatprep.subr.bf16.mxu0 0
      %990 = vmatpush1.bf16.msra.mxu0 0
      %991 = vmatprep.subr.bf16.mxu0 0
      %992 = vmatpush1.bf16.msra.mxu0 0
      %993 = vmatprep.mubr.bf16.mxu0 0
      %994 = vmatmul.mubr.bf16.gmra.mrb[0].mxu0 %v899
      %v995 = vpop.f32.mrb[0].mxu0
      %v996 = vadd.f32 0.0, %v995
      %v997 = vpop.f32.mrb[0].mxu0
      %v998 = vpop.f32.mrb[0].mxu0
      %v999 = vadd.f32 0.0, %v998
      %v1000 = vpop.f32.mrb[0].mxu0
      %1001 = vmatprep.mubr.bf16.mxu0 0
      %1002 = vmatmul.mubr.bf16.gmra.mrb[0].mxu0 %v900
      %v1003 = vpop.f32.mrb[0].mxu0
      %v1004 = vadd.f32 0.0, %v1003
      %v1005 = vpop.f32.mrb[0].mxu0
      %v1006 = vpop.f32.mrb[0].mxu0
      %v1007 = vadd.f32 0.0, %v1006
      %v1008 = vpop.f32.mrb[0].mxu0
      %1009 = vmatprep.mubr.bf16.mxu0 0
      %1010 = vmatmul.mubr.bf16.gmra.mrb[0].mxu0 %v901
      %v1011 = vpop.f32.mrb[0].mxu0
      %v1012 = vadd.f32 0.0, %v1011
      %v1013 = vpop.f32.mrb[0].mxu0
      %v1014 = vpop.f32.mrb[0].mxu0
      %v1015 = vadd.f32 0.0, %v1014
      %v1016 = vpop.f32.mrb[0].mxu0
      %1017 = vmatprep.mubr.bf16.mxu0 0
      %1018 = vmatmul.mubr.bf16.gmra.mrb[0].mxu0 %v902
      %v1019 = vpop.f32.mrb[0].mxu0
      %v1020 = vadd.f32 0.0, %v1019
      %v1021 = vpop.f32.mrb[0].mxu0
      %v1022 = vpop.f32.mrb[0].mxu0
      %v1023 = vadd.f32 0.0, %v1022
      %v1024 = vpop.f32.mrb[0].mxu0
      %1025 = vmatprep.mubr.bf16.mxu0 0
      %1026 = vmatmul.mubr.bf16.gmra.mrb[0].mxu0 %v903
      %v1027 = vpop.f32.mrb[0].mxu0
      %v1028 = vadd.f32 0.0, %v1027
      %v1029 = vpop.f32.mrb[0].mxu0
      %v1030 = vpop.f32.mrb[0].mxu0
      %v1031 = vadd.f32 0.0, %v1030
      %v1032 = vpop.f32.mrb[0].mxu0
      %1033 = vmatprep.mubr.bf16.mxu0 0
      %1034 = vmatmul.mubr.bf16.gmra.mrb[0].mxu0 %v904
      %v1035 = vpop.f32.mrb[0].mxu0
      %v1036 = vadd.f32 0.0, %v1035
      %v1037 = vpop.f32.mrb[0].mxu0
      %v1038 = vpop.f32.mrb[0].mxu0
      %v1039 = vadd.f32 0.0, %v1038
      %v1040 = vpop.f32.mrb[0].mxu0
      %1041 = vmatprep.mubr.bf16.mxu0 0
      %1042 = vmatmul.mubr.bf16.gmra.mrb[0].mxu0 %v905
      %v1043 = vpop.f32.mrb[0].mxu0
      %v1044 = vadd.f32 0.0, %v1043
      %v1045 = vpop.f32.mrb[0].mxu0
      %v1046 = vpop.f32.mrb[0].mxu0
      %v1047 = vadd.f32 0.0, %v1046
      %v1048 = vpop.f32.mrb[0].mxu0
      %1049 = vdwg.mxu0
      %v1050 = vadd.f32 %v801, %v996
      %v1051 = vadd.f32 %v804, %v999
      %v1052 = vadd.f32 %v809, %v1004
      %v1053 = vadd.f32 %v812, %v1007
      %v1054 = vadd.f32 %v817, %v1012
      %v1055 = vadd.f32 %v820, %v1015
      %v1056 = vadd.f32 %v825, %v1020
      %v1057 = vadd.f32 %v828, %v1023
      %v1058 = vadd.f32 %v833, %v1028
      %v1059 = vadd.f32 %v836, %v1031
      %v1060 = vadd.f32 %v841, %v1036
      %v1061 = vadd.f32 %v844, %v1039
      %v1062 = vadd.f32 %v849, %v1044
      %v1063 = vadd.f32 %v852, %v1047
      %v1064 = vld [vmem:[%s7] sm:$0x1]
      %v1066 = vlaneseq
      %v1067 = vshrl.u32 %v1066, 7
      %v1068 = vsub.s32 0, %v1067
      %v1069 = vrot.slane %v1064, %v1068
      %v1071 = vadd.f32 %v1050, %v1069
      %v1072 = vadd.f32 %v1051, %v1069
      %v1073 = vadd.f32 %v1052, %v1069
      %v1074 = vadd.f32 %v1053, %v1069
      %v1075 = vadd.f32 %v1054, %v1069
      %v1076 = vadd.f32 %v1055, %v1069
      %v1077 = vadd.f32 %v1056, %v1069
      %v1078 = vadd.f32 %v1057, %v1069
      %v1079 = vadd.f32 %v1058, %v1069
      %v1080 = vadd.f32 %v1059, %v1069
      %v1081 = vadd.f32 %v1060, %v1069
      %v1082 = vadd.f32 %v1061, %v1069
      %v1083 = vadd.f32 %v1062, %v1069
      %v1084 = vadd.f32 %v1063, %v1069
      %v1085 = vmul.f32 %v1071, 0.5
      %v1086 = vmul.f32 %v1072, 0.5
      %v1087 = vmul.f32 %v1073, 0.5
      %v1088 = vmul.f32 %v1074, 0.5
      %v1089 = vmul.f32 %v1075, 0.5
      %v1090 = vmul.f32 %v1076, 0.5
      %v1091 = vmul.f32 %v1077, 0.5
      %v1092 = vmul.f32 %v1078, 0.5
      %v1093 = vmul.f32 %v1079, 0.5
      %v1094 = vmul.f32 %v1080, 0.5
      %v1095 = vmul.f32 %v1081, 0.5
      %v1096 = vmul.f32 %v1082, 0.5
      %v1097 = vmul.f32 %v1083, 0.5
      %v1098 = vmul.f32 %v1084, 0.5
      %v1099 = vmul.f32 %v1071, 0.044715
      %v1100 = vmul.f32 %v1072, 0.044715
      %v1101 = vmul.f32 %v1073, 0.044715
      %v1102 = vmul.f32 %v1074, 0.044715
      %v1103 = vmul.f32 %v1075, 0.044715
      %v1104 = vmul.f32 %v1076, 0.044715
      %v1105 = vmul.f32 %v1077, 0.044715
      %v1106 = vmul.f32 %v1078, 0.044715
      %v1107 = vmul.f32 %v1079, 0.044715
      %v1108 = vmul.f32 %v1080, 0.044715
      %v1109 = vmul.f32 %v1081, 0.044715
      %v1110 = vmul.f32 %v1082, 0.044715
      %v1111 = vmul.f32 %v1083, 0.044715
      %v1112 = vmul.f32 %v1084, 0.044715
      %v1113 = vmul.f32 %v1099, %v1071
      %v1114 = vmul.f32 %v1100, %v1072
      %v1115 = vmul.f32 %v1101, %v1073
      %v1116 = vmul.f32 %v1102, %v1074
      %v1117 = vmul.f32 %v1103, %v1075
      %v1118 = vmul.f32 %v1104, %v1076
      %v1119 = vmul.f32 %v1105, %v1077
      %v1120 = vmul.f32 %v1106, %v1078
      %v1121 = vmul.f32 %v1107, %v1079
      %v1122 = vmul.f32 %v1108, %v1080
      %v1123 = vmul.f32 %v1109, %v1081
      %v1124 = vmul.f32 %v1110, %v1082
      %v1125 = vmul.f32 %v1111, %v1083
      %v1126 = vmul.f32 %v1112, %v1084
      %v1127 = vmul.f32 %v1113, %v1071
      %v1128 = vmul.f32 %v1114, %v1072
      %v1129 = vmul.f32 %v1115, %v1073
      %v1130 = vmul.f32 %v1116, %v1074
      %v1131 = vmul.f32 %v1117, %v1075
      %v1132 = vmul.f32 %v1118, %v1076
      %v1133 = vmul.f32 %v1119, %v1077
      %v1134 = vmul.f32 %v1120, %v1078
      %v1135 = vmul.f32 %v1121, %v1079
      %v1136 = vmul.f32 %v1122, %v1080
      %v1137 = vmul.f32 %v1123, %v1081
      %v1138 = vmul.f32 %v1124, %v1082
      %v1139 = vmul.f32 %v1125, %v1083
      %v1140 = vmul.f32 %v1126, %v1084
      %v1141 = vadd.f32 %v1071, %v1127
      %v1142 = vadd.f32 %v1072, %v1128
      %v1143 = vadd.f32 %v1073, %v1129
      %v1144 = vadd.f32 %v1074, %v1130
      %v1145 = vadd.f32 %v1075, %v1131
      %v1146 = vadd.f32 %v1076, %v1132
      %v1147 = vadd.f32 %v1077, %v1133
      %v1148 = vadd.f32 %v1078, %v1134
      %v1149 = vadd.f32 %v1079, %v1135
      %v1150 = vadd.f32 %v1080, %v1136
      %v1151 = vadd.f32 %v1081, %v1137
      %v1152 = vadd.f32 %v1082, %v1138
      %v1153 = vadd.f32 %v1083, %v1139
      %v1154 = vadd.f32 %v1084, %v1140
      %v1155 = vmul.f32 %v1141, 0.7978846
      %v1156 = vmul.f32 %v1142, 0.7978846
      %v1157 = vmul.f32 %v1143, 0.7978846
      %v1158 = vmul.f32 %v1144, 0.7978846
      %v1159 = vmul.f32 %v1145, 0.7978846
      %v1160 = vmul.f32 %v1146, 0.7978846
      %v1161 = vmul.f32 %v1147, 0.7978846
      %v1162 = vmul.f32 %v1148, 0.7978846
      %v1163 = vmul.f32 %v1149, 0.7978846
      %v1164 = vmul.f32 %v1150, 0.7978846
      %v1165 = vmul.f32 %v1151, 0.7978846
      %v1166 = vmul.f32 %v1152, 0.7978846
      %v1167 = vmul.f32 %v1153, 0.7978846
      %v1168 = vmul.f32 %v1154, 0.7978846
      %v1169 = vtanh.pop %v1155
      %v1170 = vtanh.pop %v1156
      %v1171 = vtanh.pop %v1157
      %v1172 = vtanh.pop %v1158
      %v1173 = vtanh.pop %v1159
      %v1174 = vtanh.pop %v1160
      %v1175 = vtanh.pop %v1161
      %v1176 = vtanh.pop %v1162
      %v1177 = vtanh.pop %v1163
      %v1178 = vtanh.pop %v1164
      %v1179 = vtanh.pop %v1165
      %v1180 = vtanh.pop %v1166
      %v1181 = vtanh.pop %v1167
      %v1182 = vtanh.pop %v1168
      %v1183 = vadd.f32 %v1169, 1.0
      %v1184 = vadd.f32 %v1170, 1.0
      %v1185 = vadd.f32 %v1171, 1.0
      %v1186 = vadd.f32 %v1172, 1.0
      %v1187 = vadd.f32 %v1173, 1.0
      %v1188 = vadd.f32 %v1174, 1.0
      %v1189 = vadd.f32 %v1175, 1.0
      %v1190 = vadd.f32 %v1176, 1.0
      %v1191 = vadd.f32 %v1177, 1.0
      %v1192 = vadd.f32 %v1178, 1.0
      %v1193 = vadd.f32 %v1179, 1.0
      %v1194 = vadd.f32 %v1180, 1.0
      %v1195 = vadd.f32 %v1181, 1.0
      %v1196 = vadd.f32 %v1182, 1.0
      %v1197 = vmul.f32 %v1085, %v1183
      %v1198 = vmul.f32 %v1086, %v1184
      %v1199 = vmul.f32 %v1087, %v1185
      %v1200 = vmul.f32 %v1088, %v1186
      %v1201 = vmul.f32 %v1089, %v1187
      %v1202 = vmul.f32 %v1090, %v1188
      %v1203 = vmul.f32 %v1091, %v1189
      %v1204 = vmul.f32 %v1092, %v1190
      %v1205 = vmul.f32 %v1093, %v1191
      %v1206 = vmul.f32 %v1094, %v1192
      %v1207 = vmul.f32 %v1095, %v1193
      %v1208 = vmul.f32 %v1096, %v1194
      %v1209 = vmul.f32 %v1097, %v1195
      %v1210 = vmul.f32 %v1098, %v1196
      %v1211 = vpack.c.bf16 %v1198, %v1197
      %v1212 = vpack.c.bf16 %v1200, %v1199
      %v1213 = vpack.c.bf16 %v1202, %v1201
      %v1214 = vpack.c.bf16 %v1204, %v1203
      %v1215 = vpack.c.bf16 %v1206, %v1205
      %v1216 = vpack.c.bf16 %v1208, %v1207
      %v1217 = vpack.c.bf16 %v1210, %v1209
      %v1225 = vunpack.c.l.b16 %v1211
      %v1226 = vunpack.c.h.b16 %v1211
      %v1227 = vunpack.c.l.b16 %v1212
      %v1228 = vunpack.c.h.b16 %v1212
      %v1229 = vunpack.c.l.b16 %v1213
      %v1230 = vunpack.c.h.b16 %v1213
      %v1231 = vunpack.c.l.b16 %v1214
      %v1232 = vunpack.c.h.b16 %v1214
      %v1233 = vunpack.c.l.b16 %v1215
      %v1234 = vunpack.c.h.b16 %v1215
      %v1235 = vunpack.c.l.b16 %v1216
      %v1236 = vunpack.c.h.b16 %v1216
      %v1237 = vunpack.c.l.b16 %v1217
      %v1238 = vunpack.c.h.b16 %v1217
      %v1239 = vpack.c.b16 %v1225, %v1225
      %v1240 = vpack.c.b16 %v1226, %v1226
      %v1241 = vpack.c.b16 %v1227, %v1227
      %v1242 = vpack.c.b16 %v1228, %v1228
      %v1243 = vpack.c.b16 %v1229, %v1229
      %v1244 = vpack.c.b16 %v1230, %v1230
      %v1245 = vpack.c.b16 %v1231, %v1231
      %v1246 = vpack.c.b16 %v1232, %v1232
      %v1247 = vpack.c.b16 %v1233, %v1233
      %v1248 = vpack.c.b16 %v1234, %v1234
      %v1249 = vpack.c.b16 %v1235, %v1235
      %v1250 = vpack.c.b16 %v1236, %v1236
      %v1251 = vpack.c.b16 %v1237, %v1237
      %v1252 = vpack.c.b16 %v1238, %v1238
      %1267 = vst [vmem:[%s329] sm:$0xf] %v1239
      %1268 = vst [vmem:[%s329 + $0x4] sm:$0xf] %v1240
      %1269 = vst [vmem:[%s329 + $0x8] sm:$0xf] %v1241
      %1270 = vst [vmem:[%s329 + $0xc] sm:$0xf] %v1242
      %1271 = vst [vmem:[%s329 + $0x10] sm:$0xf] %v1243
      %1272 = vst [vmem:[%s329 + $0x14] sm:$0xf] %v1244
      %1273 = vst [vmem:[%s329 + $0x18] sm:$0xf] %v1245
      %1274 = vst [vmem:[%s329 + $0x1c] sm:$0xf] %v1246
      %1275 = vst [vmem:[%s329 + $0x20] sm:$0xf] %v1247
      %1276 = vst [vmem:[%s329 + $0x24] sm:$0xf] %v1248
      %1277 = vst [vmem:[%s329 + $0x28] sm:$0xf] %v1249
      %1278 = vst [vmem:[%s329 + $0x2c] sm:$0xf] %v1250
      %1279 = vst [vmem:[%s329 + $0x30] sm:$0xf] %v1251
      %1280 = vst [vmem:[%s329 + $0x34] sm:$0xf] %v1252
      %s1281 = smul.u32 14, %s19
      %p1282 = scmp.lt.s32.totalorder %s1281, 27
      %s1283 = scalar_select %p1282, %s1281, 27
      %s1284 = smul.addr %s1283, 4
      %s1285 = scalar_lea.vmem %s8, %s1284
      // Predicated region
      $region53: #{fno3d_forward.10} parent=51 // pred_check
        %p1286 = pneg %p215
      $region54: #{fno3d_forward.10} parent=51 // pred_check_branch
        %1288 = sbr.rel (%p1286) target = $region56
      $region55: #{fno3d_forward.10} parent=51 // pred_region
        %s1289 = smul.u32 14, %s19
      $region56: #{fno3d_forward.10} parent=51 // pred_fallthru
        _
    $region52: #{fno3d_forward.10} parent=5 // pred_fallthru
      _
    %p1290 = scmp.le.s32.totalorder 2, %s14
    // Predicated region
    $region57: #{fno3d_forward.10} parent=5 // pred_check
      %p1291 = pneg %p1290
    $region58: #{fno3d_forward.10} parent=5 // pred_check_branch
      %1293 = sbr.rel (%p1291) target = $region60
    $region59: #{fno3d_forward.10} parent=5 // pred_region
      %s1294 = ssub.s32 %s14, 2
      // Predicated region
      $region61: #{fno3d_forward.10} parent=59 // pred_check
        %p1295 = pneg %p221
      $region62: #{fno3d_forward.10} parent=59 // pred_check_branch
        %1297 = sbr.rel (%p1295) target = $region64
      $region63: #{fno3d_forward.10} parent=59 // pred_region
        %s1298 = smul.u32 14, %s20
        %p1299 = scmp.lt.s32.totalorder %s1298, 27
        %s1300 = scalar_select %p1299, %s1298, 27
        %s1301 = smul.addr %s1300, 4
        %s1302 = scalar_lea.vmem %s8, %s1301
      $region64: #{fno3d_forward.10} parent=59 // pred_fallthru
        _
    $region60: #{fno3d_forward.10} parent=5 // pred_fallthru
      _
  $region6: #{fno3d_forward.10} parent=0 // loop_footer
    %s18 = sadd.s32 1, %s14
  $region7: #{fno3d_forward.10} parent=0 // loop_footer_branch
    %13 = sbr.rel target = $region3
  $region8: #{fno3d_forward.10} parent=0 // loop_exit
    _

// kernel: fno3d_forward.12
$region0: #{fno3d_forward.12}
  #allocation0 [shape = 'u32[]', space=smem, size = 0x4, offset = 0x4, fixed_abs, tag = 'smem constant byte address 0x4 - core index']
  #allocation1 [shape = 'u32[144,128]{1,0:T(1,128)}', space=vmem, size = 0x12000, scoped, tag = 'internal scratch']
  %s0 = inlined_call_operand.vmem [shape: bf16[224,128], index: 0, kind: input, shape index: {}]
  %s1 = inlined_call_operand.vmem [shape: bf16[224,128], index: 1, kind: input, shape index: {}]
  %s2 = inlined_call_operand.vmem [shape: bf16[128,128], index: 2, kind: input, shape index: {}]
  %s3 = inlined_call_operand.vmem [shape: f32[1,128], index: 3, kind: input, shape index: {}]
  %s4 = inlined_call_operand.vmem [shape: bf16[128,128], index: 4, kind: input, shape index: {}]
  %s5 = inlined_call_operand.vmem [shape: f32[1,128], index: 5, kind: input, shape index: {}]
  %s6 = inlined_call_operand.vmem [shape: bf16[128,128], index: 6, kind: input, shape index: {}]
  %s7 = inlined_call_operand.vmem [shape: f32[1,128], index: 7, kind: input, shape index: {}]
  %s8 = inlined_call_operand.vmem [shape: bf16[128,128], index: 8, kind: input, shape index: {}]
  %s9 = inlined_call_operand.vmem [shape: f32[1,128], index: 9, kind: input, shape index: {}]
  %s10 = inlined_call_operand.vmem [shape: bf16[224,128], index: 10, kind: output, shape index: {}]
  %s11 = sld [smem:[#allocation0]]
  $region73: #{fno3d_forward.12} parent=0
    _
  %s13 = ssub.s32 1, %s11
  %s14 = scalar_select 0, %s13, %s11
  loop: start=0, step=1, limit=4
  $region2: #{fno3d_forward.12} parent=0 // loop_pre_header
    _
  $region3: #{fno3d_forward.12} parent=0 // loop_header
    %s16 = sphi 0, %s20
    %p17 = scmp.ge.s32.totalorder %s16, 4
    %s26 = sphi 0, %s28
    %s29 = sphi 0, %s26
    %s30 = sphi 0, %s29
    %s46 = sphi 0, %s30
    %s52 = sphi 0, %s54
    %s55 = sphi 0, %s52
    %s56 = sphi 0, %s55
    %s72 = sphi 0, %s56
    %s76 = sphi 0, %s76
    %s78 = sphi 0, %s76
    %s79 = sphi 0, %s78
    %s93 = sphi 0, %s79
    %s97 = sphi 0, %s97
    %s99 = sphi 0, %s97
    %s100 = sphi 0, %s99
    %s114 = sphi 0, %s100
    %s118 = sphi 0, %s118
    %s120 = sphi 0, %s118
    %s121 = sphi 0, %s120
    %s135 = sphi 0, %s121
    %s139 = sphi 0, %s139
    %s141 = sphi 0, %s139
    %s142 = sphi 0, %s141
    %s156 = sphi 0, %s142
    %s160 = sphi 0, %s160
    %s162 = sphi 0, %s160
    %s163 = sphi 0, %s162
    %s177 = sphi 0, %s163
    %s181 = sphi 0, %s181
    %s183 = sphi 0, %s181
    %s184 = sphi 0, %s183
    %s198 = sphi 0, %s184
    %s202 = sphi 0, %s202
    %s204 = sphi 0, %s202
    %s205 = sphi 0, %s204
    %s219 = sphi 0, %s205
    %s223 = sphi 0, %s223
    %s225 = sphi 0, %s223
    %s226 = sphi 0, %s225
    %s240 = sphi 0, %s226
    %s246 = sphi 0, %s248
    %s249 = sphi 0, %s246
    %s250 = sphi 0, %s249
    %s266 = sphi 0, %s250
  $region4: #{fno3d_forward.12} parent=0 // loop_header_branch
    %19 = sbr.rel (%p17) target = $region8
  $region5: #{fno3d_forward.12} parent=0 // loop_body
    %s21 = ssub.s32 %s16, 1
    %s22 = ssub.s32 %s16, 2
    %s23 = sadd.s32 %s16, 1
    %s24 = ssub.s32 %s16, %s23
    %p25 = scmp.eq.s32.totalorder %s24, 0
    %s27 = sadd.s32 %s26, 1
    %s28 = scalar_select %p25, %s26, %s27
    %p31 = pneg %p25
    %p32 = scmp.eq.s32.totalorder %s16, 1
    %p33 = por %p31, %p32
    %p34 = scmp.ne.s32.totalorder %s26, %s29
    %p35 = scmp.eq.s32.totalorder %s16, 0
    %p36 = por %p34, %p35
    %p37 = scmp.ne.s32.totalorder %s26, %s29
    %p38 = scmp.eq.s32.totalorder %s21, 1
    %p39 = por %p37, %p38
    %p40 = scmp.ne.s32.totalorder %s29, %s30
    %p41 = scmp.eq.s32.totalorder %s21, 0
    %p42 = por %p40, %p41
    %p43 = scmp.ne.s32.totalorder %s29, %s30
    %p44 = scmp.eq.s32.totalorder %s22, 1
    %p45 = por %p43, %p44
    %p47 = scmp.ne.s32.totalorder %s30, %s46
    %p48 = scmp.eq.s32.totalorder %s22, 0
    %p49 = por %p47, %p48
    %s50 = ssub.s32 %s16, %s23
    %p51 = scmp.eq.s32.totalorder %s50, 0
    %s53 = sadd.s32 %s52, 1
    %s54 = scalar_select %p51, %s52, %s53
    %p57 = pneg %p51
    %p58 = scmp.eq.s32.totalorder %s16, 1
    %p59 = por %p57, %p58
    %p60 = scmp.ne.s32.totalorder %s52, %s55
    %p61 = scmp.eq.s32.totalorder %s16, 0
    %p62 = por %p60, %p61
    %p63 = scmp.ne.s32.totalorder %s52, %s55
    %p64 = scmp.eq.s32.totalorder %s21, 1
    %p65 = por %p63, %p64
    %p66 = scmp.ne.s32.totalorder %s55, %s56
    %p67 = scmp.eq.s32.totalorder %s21, 0
    %p68 = por %p66, %p67
    %p69 = scmp.ne.s32.totalorder %s55, %s56
    %p70 = scmp.eq.s32.totalorder %s22, 1
    %p71 = por %p69, %p70
    %p73 = scmp.ne.s32.totalorder %s56, %s72
    %p74 = scmp.eq.s32.totalorder %s22, 0
    %p75 = por %p73, %p74
    %s77 = sadd.s32 %s76, 1
    %p80 = scmp.eq.s32.totalorder %s16, 1
    %p81 = scmp.ne.s32.totalorder %s76, %s78
    %p82 = scmp.eq.s32.totalorder %s16, 0
    %p83 = por %p81, %p82
    %p84 = scmp.ne.s32.totalorder %s76, %s78
    %p85 = scmp.eq.s32.totalorder %s21, 1
    %p86 = por %p84, %p85
    %p87 = scmp.ne.s32.totalorder %s78, %s79
    %p88 = scmp.eq.s32.totalorder %s21, 0
    %p89 = por %p87, %p88
    %p90 = scmp.ne.s32.totalorder %s78, %s79
    %p91 = scmp.eq.s32.totalorder %s22, 1
    %p92 = por %p90, %p91
    %p94 = scmp.ne.s32.totalorder %s79, %s93
    %p95 = scmp.eq.s32.totalorder %s22, 0
    %p96 = por %p94, %p95
    %s98 = sadd.s32 %s97, 1
    %p101 = scmp.eq.s32.totalorder %s16, 1
    %p102 = scmp.ne.s32.totalorder %s97, %s99
    %p103 = scmp.eq.s32.totalorder %s16, 0
    %p104 = por %p102, %p103
    %p105 = scmp.ne.s32.totalorder %s97, %s99
    %p106 = scmp.eq.s32.totalorder %s21, 1
    %p107 = por %p105, %p106
    %p108 = scmp.ne.s32.totalorder %s99, %s100
    %p109 = scmp.eq.s32.totalorder %s21, 0
    %p110 = por %p108, %p109
    %p111 = scmp.ne.s32.totalorder %s99, %s100
    %p112 = scmp.eq.s32.totalorder %s22, 1
    %p113 = por %p111, %p112
    %p115 = scmp.ne.s32.totalorder %s100, %s114
    %p116 = scmp.eq.s32.totalorder %s22, 0
    %p117 = por %p115, %p116
    %s119 = sadd.s32 %s118, 1
    %p122 = scmp.eq.s32.totalorder %s16, 1
    %p123 = scmp.ne.s32.totalorder %s118, %s120
    %p124 = scmp.eq.s32.totalorder %s16, 0
    %p125 = por %p123, %p124
    %p126 = scmp.ne.s32.totalorder %s118, %s120
    %p127 = scmp.eq.s32.totalorder %s21, 1
    %p128 = por %p126, %p127
    %p129 = scmp.ne.s32.totalorder %s120, %s121
    %p130 = scmp.eq.s32.totalorder %s21, 0
    %p131 = por %p129, %p130
    %p132 = scmp.ne.s32.totalorder %s120, %s121
    %p133 = scmp.eq.s32.totalorder %s22, 1
    %p134 = por %p132, %p133
    %p136 = scmp.ne.s32.totalorder %s121, %s135
    %p137 = scmp.eq.s32.totalorder %s22, 0
    %p138 = por %p136, %p137
    %s140 = sadd.s32 %s139, 1
    %p143 = scmp.eq.s32.totalorder %s16, 1
    %p144 = scmp.ne.s32.totalorder %s139, %s141
    %p145 = scmp.eq.s32.totalorder %s16, 0
    %p146 = por %p144, %p145
    %p147 = scmp.ne.s32.totalorder %s139, %s141
    %p148 = scmp.eq.s32.totalorder %s21, 1
    %p149 = por %p147, %p148
    %p150 = scmp.ne.s32.totalorder %s141, %s142
    %p151 = scmp.eq.s32.totalorder %s21, 0
    %p152 = por %p150, %p151
    %p153 = scmp.ne.s32.totalorder %s141, %s142
    %p154 = scmp.eq.s32.totalorder %s22, 1
    %p155 = por %p153, %p154
    %p157 = scmp.ne.s32.totalorder %s142, %s156
    %p158 = scmp.eq.s32.totalorder %s22, 0
    %p159 = por %p157, %p158
    %s161 = sadd.s32 %s160, 1
    %p164 = scmp.eq.s32.totalorder %s16, 1
    %p165 = scmp.ne.s32.totalorder %s160, %s162
    %p166 = scmp.eq.s32.totalorder %s16, 0
    %p167 = por %p165, %p166
    %p168 = scmp.ne.s32.totalorder %s160, %s162
    %p169 = scmp.eq.s32.totalorder %s21, 1
    %p170 = por %p168, %p169
    %p171 = scmp.ne.s32.totalorder %s162, %s163
    %p172 = scmp.eq.s32.totalorder %s21, 0
    %p173 = por %p171, %p172
    %p174 = scmp.ne.s32.totalorder %s162, %s163
    %p175 = scmp.eq.s32.totalorder %s22, 1
    %p176 = por %p174, %p175
    %p178 = scmp.ne.s32.totalorder %s163, %s177
    %p179 = scmp.eq.s32.totalorder %s22, 0
    %p180 = por %p178, %p179
    %s182 = sadd.s32 %s181, 1
    %p185 = scmp.eq.s32.totalorder %s16, 1
    %p186 = scmp.ne.s32.totalorder %s181, %s183
    %p187 = scmp.eq.s32.totalorder %s16, 0
    %p188 = por %p186, %p187
    %p189 = scmp.ne.s32.totalorder %s181, %s183
    %p190 = scmp.eq.s32.totalorder %s21, 1
    %p191 = por %p189, %p190
    %p192 = scmp.ne.s32.totalorder %s183, %s184
    %p193 = scmp.eq.s32.totalorder %s21, 0
    %p194 = por %p192, %p193
    %p195 = scmp.ne.s32.totalorder %s183, %s184
    %p196 = scmp.eq.s32.totalorder %s22, 1
    %p197 = por %p195, %p196
    %p199 = scmp.ne.s32.totalorder %s184, %s198
    %p200 = scmp.eq.s32.totalorder %s22, 0
    %p201 = por %p199, %p200
    %s203 = sadd.s32 %s202, 1
    %p206 = scmp.eq.s32.totalorder %s16, 1
    %p207 = scmp.ne.s32.totalorder %s202, %s204
    %p208 = scmp.eq.s32.totalorder %s16, 0
    %p209 = por %p207, %p208
    %p210 = scmp.ne.s32.totalorder %s202, %s204
    %p211 = scmp.eq.s32.totalorder %s21, 1
    %p212 = por %p210, %p211
    %p213 = scmp.ne.s32.totalorder %s204, %s205
    %p214 = scmp.eq.s32.totalorder %s21, 0
    %p215 = por %p213, %p214
    %p216 = scmp.ne.s32.totalorder %s204, %s205
    %p217 = scmp.eq.s32.totalorder %s22, 1
    %p218 = por %p216, %p217
    %p220 = scmp.ne.s32.totalorder %s205, %s219
    %p221 = scmp.eq.s32.totalorder %s22, 0
    %p222 = por %p220, %p221
    %s224 = sadd.s32 %s223, 1
    %p227 = scmp.eq.s32.totalorder %s16, 1
    %p228 = scmp.ne.s32.totalorder %s223, %s225
    %p229 = scmp.eq.s32.totalorder %s16, 0
    %p230 = por %p228, %p229
    %p231 = scmp.ne.s32.totalorder %s223, %s225
    %p232 = scmp.eq.s32.totalorder %s21, 1
    %p233 = por %p231, %p232
    %p234 = scmp.ne.s32.totalorder %s225, %s226
    %p235 = scmp.eq.s32.totalorder %s21, 0
    %p236 = por %p234, %p235
    %p237 = scmp.ne.s32.totalorder %s225, %s226
    %p238 = scmp.eq.s32.totalorder %s22, 1
    %p239 = por %p237, %p238
    %p241 = scmp.ne.s32.totalorder %s226, %s240
    %p242 = scmp.eq.s32.totalorder %s22, 0
    %p243 = por %p241, %p242
    %s244 = ssub.s32 %s16, %s23
    %p245 = scmp.eq.s32.totalorder %s244, 0
    %s247 = sadd.s32 %s246, 1
    %s248 = scalar_select %p245, %s246, %s247
    %p251 = pneg %p245
    %p252 = scmp.eq.s32.totalorder %s16, 1
    %p253 = por %p251, %p252
    %p254 = scmp.ne.s32.totalorder %s246, %s249
    %p255 = scmp.eq.s32.totalorder %s16, 0
    %p256 = por %p254, %p255
    %p257 = scmp.ne.s32.totalorder %s246, %s249
    %p258 = scmp.eq.s32.totalorder %s21, 1
    %p259 = por %p257, %p258
    %p260 = scmp.ne.s32.totalorder %s249, %s250
    %p261 = scmp.eq.s32.totalorder %s21, 0
    %p262 = por %p260, %p261
    %p263 = scmp.ne.s32.totalorder %s249, %s250
    %p264 = scmp.eq.s32.totalorder %s22, 1
    %p265 = por %p263, %p264
    %p267 = scmp.ne.s32.totalorder %s250, %s266
    %p268 = scmp.eq.s32.totalorder %s22, 0
    %p269 = por %p267, %p268
    %p270 = scmp.le.s32.totalorder 1, %s16
    %p271 = scmp.lt.s32.totalorder %s16, 3
    %p272 = pnand %p270, %p271
    %p273 = pneg %p272
    // Predicated region
    $region9: #{fno3d_forward.12} parent=5 // pred_check
      _
    $region10: #{fno3d_forward.12} parent=5 // pred_check_branch
      %275 = sbr.rel (%p272) target = $region12
    $region11: #{fno3d_forward.12} parent=5 // pred_region
      %s276 = ssub.s32 %s16, 1
      // Predicated region
      $region13: #{fno3d_forward.12} parent=11 // pred_check
        %p277 = pneg %p89
      $region14: #{fno3d_forward.12} parent=11 // pred_check_branch
        %279 = sbr.rel (%p277) target = $region16
      $region15: #{fno3d_forward.12} parent=11 // pred_region
        _
      $region16: #{fno3d_forward.12} parent=11 // pred_fallthru
        _
      // Predicated region
      $region17: #{fno3d_forward.12} parent=11 // pred_check
        %p280 = pneg %p110
      $region18: #{fno3d_forward.12} parent=11 // pred_check_branch
        %282 = sbr.rel (%p280) target = $region20
      $region19: #{fno3d_forward.12} parent=11 // pred_region
        _
      $region20: #{fno3d_forward.12} parent=11 // pred_fallthru
        _
      // Predicated region
      $region21: #{fno3d_forward.12} parent=11 // pred_check
        %p283 = pneg %p131
      $region22: #{fno3d_forward.12} parent=11 // pred_check_branch
        %285 = sbr.rel (%p283) target = $region24
      $region23: #{fno3d_forward.12} parent=11 // pred_region
        _
      $region24: #{fno3d_forward.12} parent=11 // pred_fallthru
        _
      // Predicated region
      $region25: #{fno3d_forward.12} parent=11 // pred_check
        %p286 = pneg %p152
      $region26: #{fno3d_forward.12} parent=11 // pred_check_branch
        %288 = sbr.rel (%p286) target = $region28
      $region27: #{fno3d_forward.12} parent=11 // pred_region
        _
      $region28: #{fno3d_forward.12} parent=11 // pred_fallthru
        _
      // Predicated region
      $region29: #{fno3d_forward.12} parent=11 // pred_check
        %p289 = pneg %p173
      $region30: #{fno3d_forward.12} parent=11 // pred_check_branch
        %291 = sbr.rel (%p289) target = $region32
      $region31: #{fno3d_forward.12} parent=11 // pred_region
        _
      $region32: #{fno3d_forward.12} parent=11 // pred_fallthru
        _
      // Predicated region
      $region33: #{fno3d_forward.12} parent=11 // pred_check
        %p292 = pneg %p194
      $region34: #{fno3d_forward.12} parent=11 // pred_check_branch
        %294 = sbr.rel (%p292) target = $region36
      $region35: #{fno3d_forward.12} parent=11 // pred_region
        _
      $region36: #{fno3d_forward.12} parent=11 // pred_fallthru
        _
      // Predicated region
      $region37: #{fno3d_forward.12} parent=11 // pred_check
        %p295 = pneg %p215
      $region38: #{fno3d_forward.12} parent=11 // pred_check_branch
        %297 = sbr.rel (%p295) target = $region40
      $region39: #{fno3d_forward.12} parent=11 // pred_region
        _
      $region40: #{fno3d_forward.12} parent=11 // pred_fallthru
        _
      // Predicated region
      $region41: #{fno3d_forward.12} parent=11 // pred_check
        %p298 = pneg %p236
      $region42: #{fno3d_forward.12} parent=11 // pred_check_branch
        %300 = sbr.rel (%p298) target = $region44
      $region43: #{fno3d_forward.12} parent=11 // pred_region
        _
      $region44: #{fno3d_forward.12} parent=11 // pred_fallthru
        _
    $region12: #{fno3d_forward.12} parent=5 // pred_fallthru
      _
    %p301 = scmp.lt.s32.totalorder %s16, 2
    // Predicated region
    $region45: #{fno3d_forward.12} parent=5 // pred_check
      %p302 = pneg %p301
    $region46: #{fno3d_forward.12} parent=5 // pred_check_branch
      %304 = sbr.rel (%p302) target = $region48
    $region47: #{fno3d_forward.12} parent=5 // pred_region
      // Predicated region
      $region49: #{fno3d_forward.12} parent=47 // pred_check
        %p305 = pneg %p36
      $region50: #{fno3d_forward.12} parent=47 // pred_check_branch
        %307 = sbr.rel (%p305) target = $region52
      $region51: #{fno3d_forward.12} parent=47 // pred_region
        %s308 = smul.u32 14, %s16
        %p309 = scmp.lt.s32.totalorder %s308, 27
        %s310 = scalar_select %p309, %s308, 27
        %s311 = smul.addr %s310, 4
        %s312 = scalar_lea.vmem %s0, %s311
        %s313 = smul.u32 14, %s16
      $region52: #{fno3d_forward.12} parent=47 // pred_fallthru
        _
      // Predicated region
      $region53: #{fno3d_forward.12} parent=47 // pred_check
        %p314 = pneg %p62
      $region54: #{fno3d_forward.12} parent=47 // pred_check_branch
        %316 = sbr.rel (%p314) target = $region56
      $region55: #{fno3d_forward.12} parent=47 // pred_region
        %s317 = smul.u32 14, %s16
        %p318 = scmp.lt.s32.totalorder %s317, 27
        %s319 = scalar_select %p318, %s317, 27
        %s320 = smul.addr %s319, 4
        %s321 = scalar_lea.vmem %s1, %s320
        %s322 = smul.u32 14, %s16
      $region56: #{fno3d_forward.12} parent=47 // pred_fallthru
        _
    $region48: #{fno3d_forward.12} parent=5 // pred_fallthru
      _
    %p323 = scmp.le.s32.totalorder 1, %s16
    %p324 = scmp.lt.s32.totalorder %s16, 3
    %p325 = pnand %p323, %p324
    %p326 = pneg %p325
    // Predicated region
    $region57: #{fno3d_forward.12} parent=5 // pred_check
      _
    $region58: #{fno3d_forward.12} parent=5 // pred_check_branch
      %328 = sbr.rel (%p325) target = $region60
    $region59: #{fno3d_forward.12} parent=5 // pred_region
      %s329 = ssub.s32 %s16, 1
      %s330 = smul.u32 14, %s21
      %p331 = scmp.lt.s32.totalorder %s330, 27
      %s332 = scalar_select %p331, %s330, 27
      %s333 = smul.addr %s332, 4
      %s334 = scalar_lea.vmem %s0, %s333
      %p335 = pneg %p42
      %p336 = pneg %p39
      %s337 = smul.u32 14, %s21
      %p338 = scmp.lt.s32.totalorder %s337, 27
      %s339 = scalar_select %p338, %s337, 27
      %s340 = smul.addr %s339, 4
      %s341 = scalar_lea.vmem %s1, %s340
      %p342 = pneg %p68
      %p343 = pneg %p65
      %p344 = pneg %p89
      %p345 = pneg %p86
      %p346 = pneg %p110
      %p347 = pneg %p107
      %p348 = pneg %p131
      %p349 = pneg %p128
      %p350 = pneg %p152
      %p351 = pneg %p149
      %p352 = pneg %p173
      %p353 = pneg %p170
      %p354 = pneg %p194
      %p355 = pneg %p191
      %p356 = pneg %p215
      %p357 = pneg %p212
      %p358 = pneg %p236
      %p359 = pneg %p233
      %p360 = pneg %p262
      %p361 = pneg %p259
      %s362 = smul.u32 14, %s21
      %p363 = scmp.lt.s32.totalorder %s362, 27
      %s364 = scalar_select %p363, %s362, 27
      %s365 = smul.addr %s364, 4
      %s366 = scalar_lea.vmem %s10, %s365
      %s367 = smul.u32 14, %s21
      %p368 = scmp.lt.s32.totalorder %s367, 27
      %s369 = scalar_select %p368, %s367, 27
      %s370 = smul.addr %s369, 4
      %s371 = scalar_lea.vmem %s0, %s370
      %s372 = smul.u32 14, %s21
      %s373 = smul.u32 14, %s21
      %p374 = scmp.lt.s32.totalorder %s373, 27
      %s375 = scalar_select %p374, %s373, 27
      %s376 = smul.addr %s375, 4
      %s377 = scalar_lea.vmem %s1, %s376
      %s378 = smul.u32 14, %s21
      %s379 = smul.u32 14, %s21
      %p380 = scmp.lt.s32.totalorder %s379, 27
      %s381 = scalar_select %p380, %s379, 27
      %s382 = smul.addr %s381, 4
      %s383 = scalar_lea.vmem %s10, %s382
      %s384 = smul.u32 14, %s21
      %v386 = vld [vmem:[%s371] sm:$0xf]
      %v387 = vld [vmem:[%s371 + $0x4] sm:$0xf]
      %v388 = vld [vmem:[%s371 + $0x8] sm:$0xf]
      %v389 = vld [vmem:[%s371 + $0xc] sm:$0xf]
      %v390 = vld [vmem:[%s371 + $0x10] sm:$0xf]
      %v391 = vld [vmem:[%s371 + $0x14] sm:$0xf]
      %v392 = vld [vmem:[%s371 + $0x18] sm:$0xf]
      %v393 = vld [vmem:[%s371 + $0x1c] sm:$0xf]
      %v394 = vld [vmem:[%s371 + $0x20] sm:$0xf]
      %v395 = vld [vmem:[%s371 + $0x24] sm:$0xf]
      %v396 = vld [vmem:[%s371 + $0x28] sm:$0xf]
      %v397 = vld [vmem:[%s371 + $0x2c] sm:$0xf]
      %v398 = vld [vmem:[%s371 + $0x30] sm:$0xf]
      %v399 = vld [vmem:[%s371 + $0x34] sm:$0xf]
      %v400 = vld [vmem:[%s377] sm:$0xf]
      %v401 = vld [vmem:[%s377 + $0x4] sm:$0xf]
      %v402 = vld [vmem:[%s377 + $0x8] sm:$0xf]
      %v403 = vld [vmem:[%s377 + $0xc] sm:$0xf]
      %v404 = vld [vmem:[%s377 + $0x10] sm:$0xf]
      %v405 = vld [vmem:[%s377 + $0x14] sm:$0xf]
      %v406 = vld [vmem:[%s377 + $0x18] sm:$0xf]
      %v407 = vld [vmem:[%s377 + $0x1c] sm:$0xf]
      %v408 = vld [vmem:[%s377 + $0x20] sm:$0xf]
      %v409 = vld [vmem:[%s377 + $0x24] sm:$0xf]
      %v410 = vld [vmem:[%s377 + $0x28] sm:$0xf]
      %v411 = vld [vmem:[%s377 + $0x2c] sm:$0xf]
      %v412 = vld [vmem:[%s377 + $0x30] sm:$0xf]
      %v413 = vld [vmem:[%s377 + $0x34] sm:$0xf]
      %v414 = vld [vmem:[%s2] sm:$0xf]
      %v415 = vld [vmem:[%s2 + $0x4] sm:$0xf]
      %v416 = vld [vmem:[%s2 + $0x8] sm:$0xf]
      %v417 = vld [vmem:[%s2 + $0xc] sm:$0xf]
      %v418 = vld [vmem:[%s2 + $0x10] sm:$0xf]
      %v419 = vld [vmem:[%s2 + $0x14] sm:$0xf]
      %v420 = vld [vmem:[%s2 + $0x18] sm:$0xf]
      %v421 = vld [vmem:[%s2 + $0x1c] sm:$0xf]
      %v422 = vld [vmem:[%s2 + $0x20] sm:$0xf]
      %v423 = vld [vmem:[%s2 + $0x24] sm:$0xf]
      %v424 = vld [vmem:[%s2 + $0x28] sm:$0xf]
      %v425 = vld [vmem:[%s2 + $0x2c] sm:$0xf]
      %v426 = vld [vmem:[%s2 + $0x30] sm:$0xf]
      %v427 = vld [vmem:[%s2 + $0x34] sm:$0xf]
      %v428 = vld [vmem:[%s2 + $0x38] sm:$0xf]
      %v429 = vld [vmem:[%s2 + $0x3c] sm:$0xf]
      %v430 = vld [vmem:[%s3] sm:$0x1]
      %v432 = vlaneseq
      %v433 = vshrl.u32 %v432, 7
      %v434 = vsub.s32 0, %v433
      %v435 = vrot.slane %v430, %v434
      %v451 = vunpack.c.l.b16 %v386
      %v452 = vunpack.c.l.b16 %v387
      %v453 = vunpack.c.l.b16 %v388
      %v454 = vunpack.c.l.b16 %v389
      %v455 = vunpack.c.l.b16 %v390
      %v456 = vunpack.c.l.b16 %v391
      %v457 = vunpack.c.l.b16 %v392
      %v458 = vunpack.c.l.b16 %v393
      %v459 = vunpack.c.l.b16 %v394
      %v460 = vunpack.c.l.b16 %v395
      %v461 = vunpack.c.l.b16 %v396
      %v462 = vunpack.c.l.b16 %v397
      %v463 = vunpack.c.l.b16 %v398
      %v464 = vunpack.c.l.b16 %v399
      %v465 = vpack.c.b16 %v452, %v451
      %v466 = vpack.c.b16 %v454, %v453
      %v467 = vpack.c.b16 %v456, %v455
      %v468 = vpack.c.b16 %v458, %v457
      %v469 = vpack.c.b16 %v460, %v459
      %v470 = vpack.c.b16 %v462, %v461
      %v471 = vpack.c.b16 %v464, %v463
      %v495 = vunpack.c.l.b16 %v414
      %v496 = vunpack.c.l.b16 %v415
      %v497 = vunpack.c.l.b16 %v416
      %v498 = vunpack.c.l.b16 %v417
      %v499 = vunpack.c.l.b16 %v418
      %v500 = vunpack.c.l.b16 %v419
      %v501 = vunpack.c.l.b16 %v420
      %v502 = vunpack.c.l.b16 %v421
      %v503 = vunpack.c.l.b16 %v422
      %v504 = vunpack.c.l.b16 %v423
      %v505 = vunpack.c.l.b16 %v424
      %v506 = vunpack.c.l.b16 %v425
      %v507 = vunpack.c.l.b16 %v426
      %v508 = vunpack.c.l.b16 %v427
      %v509 = vunpack.c.l.b16 %v428
      %v510 = vunpack.c.l.b16 %v429
      %v511 = vpack.c.b16 %v496, %v495
      %v512 = vpack.c.b16 %v498, %v497
      %v513 = vpack.c.b16 %v500, %v499
      %v514 = vpack.c.b16 %v502, %v501
      %v515 = vpack.c.b16 %v504, %v503
      %v516 = vpack.c.b16 %v506, %v505
      %v517 = vpack.c.b16 %v508, %v507
      %v518 = vpack.c.b16 %v510, %v509
      %527 = vmatprep.subr.bf16.mxu0 0
      %528 = vmatpush1.bf16.msra.mxu0 %v511
      %529 = vmatprep.subr.bf16.mxu0 0
      %530 = vmatpush1.bf16.msra.mxu0 %v512
      %531 = vmatprep.subr.bf16.mxu0 0
      %532 = vmatpush1.bf16.msra.mxu0 %v513
      %533 = vmatprep.subr.bf16.mxu0 0
      %534 = vmatpush1.bf16.msra.mxu0 %v514
      %535 = vmatprep.subr.bf16.mxu0 0
      %536 = vmatpush1.bf16.msra.mxu0 %v515
      %537 = vmatprep.subr.bf16.mxu0 0
      %538 = vmatpush1.bf16.msra.mxu0 %v516
      %539 = vmatprep.subr.bf16.mxu0 0
      %540 = vmatpush1.bf16.msra.mxu0 %v517
      %541 = vmatprep.subr.bf16.mxu0 0
      %542 = vmatpush1.bf16.msra.mxu0 %v518
      %543 = vmatprep.subr.bf16.mxu0 0
      %544 = vmatpush1.bf16.msra.mxu0 0
      %545 = vmatprep.subr.bf16.mxu0 0
      %546 = vmatpush1.bf16.msra.mxu0 0
      %547 = vmatprep.subr.bf16.mxu0 0
      %548 = vmatpush1.bf16.msra.mxu0 0
      %549 = vmatprep.subr.bf16.mxu0 0
      %550 = vmatpush1.bf16.msra.mxu0 0
      %551 = vmatprep.subr.bf16.mxu0 0
      %552 = vmatpush1.bf16.msra.mxu0 0
      %553 = vmatprep.subr.bf16.mxu0 0
      %554 = vmatpush1.bf16.msra.mxu0 0
      %555 = vmatprep.subr.bf16.mxu0 0
      %556 = vmatpush1.bf16.msra.mxu0 0
      %557 = vmatprep.subr.bf16.mxu0 0
      %558 = vmatpush1.bf16.msra.mxu0 0
      %559 = vmatprep.mubr.bf16.mxu0 0
      %560 = vmatmul.mubr.bf16.gmra.mrb[0].mxu0 %v465
      %v561 = vpop.f32.mrb[0].mxu0
      %v562 = vadd.f32 %v435, %v561
      %v563 = vpop.f32.mrb[0].mxu0
      %v564 = vpop.f32.mrb[0].mxu0
      %v565 = vadd.f32 %v435, %v564
      %v566 = vpop.f32.mrb[0].mxu0
      %567 = vmatprep.mubr.bf16.mxu0 0
      %568 = vmatmul.mubr.bf16.gmra.mrb[0].mxu0 %v466
      %v569 = vpop.f32.mrb[0].mxu0
      %v570 = vadd.f32 %v435, %v569
      %v571 = vpop.f32.mrb[0].mxu0
      %v572 = vpop.f32.mrb[0].mxu0
      %v573 = vadd.f32 %v435, %v572
      %v574 = vpop.f32.mrb[0].mxu0
      %575 = vmatprep.mubr.bf16.mxu0 0
      %576 = vmatmul.mubr.bf16.gmra.mrb[0].mxu0 %v467
      %v577 = vpop.f32.mrb[0].mxu0
      %v578 = vadd.f32 %v435, %v577
      %v579 = vpop.f32.mrb[0].mxu0
      %v580 = vpop.f32.mrb[0].mxu0
      %v581 = vadd.f32 %v435, %v580
      %v582 = vpop.f32.mrb[0].mxu0
      %583 = vmatprep.mubr.bf16.mxu0 0
      %584 = vmatmul.mubr.bf16.gmra.mrb[0].mxu0 %v468
      %v585 = vpop.f32.mrb[0].mxu0
      %v586 = vadd.f32 %v435, %v585
      %v587 = vpop.f32.mrb[0].mxu0
      %v588 = vpop.f32.mrb[0].mxu0
      %v589 = vadd.f32 %v435, %v588
      %v590 = vpop.f32.mrb[0].mxu0
      %591 = vmatprep.mubr.bf16.mxu0 0
      %592 = vmatmul.mubr.bf16.gmra.mrb[0].mxu0 %v469
      %v593 = vpop.f32.mrb[0].mxu0
      %v594 = vadd.f32 %v435, %v593
      %v595 = vpop.f32.mrb[0].mxu0
      %v596 = vpop.f32.mrb[0].mxu0
      %v597 = vadd.f32 %v435, %v596
      %v598 = vpop.f32.mrb[0].mxu0
      %599 = vmatprep.mubr.bf16.mxu0 0
      %600 = vmatmul.mubr.bf16.gmra.mrb[0].mxu0 %v470
      %v601 = vpop.f32.mrb[0].mxu0
      %v602 = vadd.f32 %v435, %v601
      %v603 = vpop.f32.mrb[0].mxu0
      %v604 = vpop.f32.mrb[0].mxu0
      %v605 = vadd.f32 %v435, %v604
      %v606 = vpop.f32.mrb[0].mxu0
      %607 = vmatprep.mubr.bf16.mxu0 0
      %608 = vmatmul.mubr.bf16.gmra.mrb[0].mxu0 %v471
      %v609 = vpop.f32.mrb[0].mxu0
      %v610 = vadd.f32 %v435, %v609
      %v611 = vpop.f32.mrb[0].mxu0
      %v612 = vpop.f32.mrb[0].mxu0
      %v613 = vadd.f32 %v435, %v612
      %v614 = vpop.f32.mrb[0].mxu0
      %615 = vdwg.mxu0
      %v616 = vmul.f32 %v562, 0.5
      %v617 = vmul.f32 %v565, 0.5
      %v618 = vmul.f32 %v570, 0.5
      %v619 = vmul.f32 %v573, 0.5
      %v620 = vmul.f32 %v578, 0.5
      %v621 = vmul.f32 %v581, 0.5
      %v622 = vmul.f32 %v586, 0.5
      %v623 = vmul.f32 %v589, 0.5
      %v624 = vmul.f32 %v594, 0.5
      %v625 = vmul.f32 %v597, 0.5
      %v626 = vmul.f32 %v602, 0.5
      %v627 = vmul.f32 %v605, 0.5
      %v628 = vmul.f32 %v610, 0.5
      %v629 = vmul.f32 %v613, 0.5
      %v630 = vmul.f32 %v562, 0.044715
      %v631 = vmul.f32 %v565, 0.044715
      %v632 = vmul.f32 %v570, 0.044715
      %v633 = vmul.f32 %v573, 0.044715
      %v634 = vmul.f32 %v578, 0.044715
      %v635 = vmul.f32 %v581, 0.044715
      %v636 = vmul.f32 %v586, 0.044715
      %v637 = vmul.f32 %v589, 0.044715
      %v638 = vmul.f32 %v594, 0.044715
      %v639 = vmul.f32 %v597, 0.044715
      %v640 = vmul.f32 %v602, 0.044715
      %v641 = vmul.f32 %v605, 0.044715
      %v642 = vmul.f32 %v610, 0.044715
      %v643 = vmul.f32 %v613, 0.044715
      %v644 = vmul.f32 %v630, %v562
      %v645 = vmul.f32 %v631, %v565
      %v646 = vmul.f32 %v632, %v570
      %v647 = vmul.f32 %v633, %v573
      %v648 = vmul.f32 %v634, %v578
      %v649 = vmul.f32 %v635, %v581
      %v650 = vmul.f32 %v636, %v586
      %v651 = vmul.f32 %v637, %v589
      %v652 = vmul.f32 %v638, %v594
      %v653 = vmul.f32 %v639, %v597
      %v654 = vmul.f32 %v640, %v602
      %v655 = vmul.f32 %v641, %v605
      %v656 = vmul.f32 %v642, %v610
      %v657 = vmul.f32 %v643, %v613
      %v658 = vmul.f32 %v644, %v562
      %v659 = vmul.f32 %v645, %v565
      %v660 = vmul.f32 %v646, %v570
      %v661 = vmul.f32 %v647, %v573
      %v662 = vmul.f32 %v648, %v578
      %v663 = vmul.f32 %v649, %v581
      %v664 = vmul.f32 %v650, %v586
      %v665 = vmul.f32 %v651, %v589
      %v666 = vmul.f32 %v652, %v594
      %v667 = vmul.f32 %v653, %v597
      %v668 = vmul.f32 %v654, %v602
      %v669 = vmul.f32 %v655, %v605
      %v670 = vmul.f32 %v656, %v610
      %v671 = vmul.f32 %v657, %v613
      %v672 = vadd.f32 %v562, %v658
      %v673 = vadd.f32 %v565, %v659
      %v674 = vadd.f32 %v570, %v660
      %v675 = vadd.f32 %v573, %v661
      %v676 = vadd.f32 %v578, %v662
      %v677 = vadd.f32 %v581, %v663
      %v678 = vadd.f32 %v586, %v664
      %v679 = vadd.f32 %v589, %v665
      %v680 = vadd.f32 %v594, %v666
      %v681 = vadd.f32 %v597, %v667
      %v682 = vadd.f32 %v602, %v668
      %v683 = vadd.f32 %v605, %v669
      %v684 = vadd.f32 %v610, %v670
      %v685 = vadd.f32 %v613, %v671
      %v686 = vmul.f32 %v672, 0.7978846
      %v687 = vmul.f32 %v673, 0.7978846
      %v688 = vmul.f32 %v674, 0.7978846
      %v689 = vmul.f32 %v675, 0.7978846
      %v690 = vmul.f32 %v676, 0.7978846
      %v691 = vmul.f32 %v677, 0.7978846
      %v692 = vmul.f32 %v678, 0.7978846
      %v693 = vmul.f32 %v679, 0.7978846
      %v694 = vmul.f32 %v680, 0.7978846
      %v695 = vmul.f32 %v681, 0.7978846
      %v696 = vmul.f32 %v682, 0.7978846
      %v697 = vmul.f32 %v683, 0.7978846
      %v698 = vmul.f32 %v684, 0.7978846
      %v699 = vmul.f32 %v685, 0.7978846
      %v700 = vtanh.pop %v686
      %v701 = vtanh.pop %v687
      %v702 = vtanh.pop %v688
      %v703 = vtanh.pop %v689
      %v704 = vtanh.pop %v690
      %v705 = vtanh.pop %v691
      %v706 = vtanh.pop %v692
      %v707 = vtanh.pop %v693
      %v708 = vtanh.pop %v694
      %v709 = vtanh.pop %v695
      %v710 = vtanh.pop %v696
      %v711 = vtanh.pop %v697
      %v712 = vtanh.pop %v698
      %v713 = vtanh.pop %v699
      %v714 = vadd.f32 %v700, 1.0
      %v715 = vadd.f32 %v701, 1.0
      %v716 = vadd.f32 %v702, 1.0
      %v717 = vadd.f32 %v703, 1.0
      %v718 = vadd.f32 %v704, 1.0
      %v719 = vadd.f32 %v705, 1.0
      %v720 = vadd.f32 %v706, 1.0
      %v721 = vadd.f32 %v707, 1.0
      %v722 = vadd.f32 %v708, 1.0
      %v723 = vadd.f32 %v709, 1.0
      %v724 = vadd.f32 %v710, 1.0
      %v725 = vadd.f32 %v711, 1.0
      %v726 = vadd.f32 %v712, 1.0
      %v727 = vadd.f32 %v713, 1.0
      %v728 = vmul.f32 %v616, %v714
      %v729 = vmul.f32 %v617, %v715
      %v730 = vmul.f32 %v618, %v716
      %v731 = vmul.f32 %v619, %v717
      %v732 = vmul.f32 %v620, %v718
      %v733 = vmul.f32 %v621, %v719
      %v734 = vmul.f32 %v622, %v720
      %v735 = vmul.f32 %v623, %v721
      %v736 = vmul.f32 %v624, %v722
      %v737 = vmul.f32 %v625, %v723
      %v738 = vmul.f32 %v626, %v724
      %v739 = vmul.f32 %v627, %v725
      %v740 = vmul.f32 %v628, %v726
      %v741 = vmul.f32 %v629, %v727
      %v742 = vpack.c.bf16 %v729, %v728
      %v743 = vpack.c.bf16 %v731, %v730
      %v744 = vpack.c.bf16 %v733, %v732
      %v745 = vpack.c.bf16 %v735, %v734
      %v746 = vpack.c.bf16 %v737, %v736
      %v747 = vpack.c.bf16 %v739, %v738
      %v748 = vpack.c.bf16 %v741, %v740
      %v749 = vld [vmem:[%s4] sm:$0xf]
      %v750 = vld [vmem:[%s4 + $0x4] sm:$0xf]
      %v751 = vld [vmem:[%s4 + $0x8] sm:$0xf]
      %v752 = vld [vmem:[%s4 + $0xc] sm:$0xf]
      %v753 = vld [vmem:[%s4 + $0x10] sm:$0xf]
      %v754 = vld [vmem:[%s4 + $0x14] sm:$0xf]
      %v755 = vld [vmem:[%s4 + $0x18] sm:$0xf]
      %v756 = vld [vmem:[%s4 + $0x1c] sm:$0xf]
      %v757 = vld [vmem:[%s4 + $0x20] sm:$0xf]
      %v758 = vld [vmem:[%s4 + $0x24] sm:$0xf]
      %v759 = vld [vmem:[%s4 + $0x28] sm:$0xf]
      %v760 = vld [vmem:[%s4 + $0x2c] sm:$0xf]
      %v761 = vld [vmem:[%s4 + $0x30] sm:$0xf]
      %v762 = vld [vmem:[%s4 + $0x34] sm:$0xf]
      %v763 = vld [vmem:[%s4 + $0x38] sm:$0xf]
      %v764 = vld [vmem:[%s4 + $0x3c] sm:$0xf]
      %v765 = vld [vmem:[%s5] sm:$0x1]
      %v767 = vlaneseq
      %v768 = vshrl.u32 %v767, 7
      %v769 = vsub.s32 0, %v768
      %v770 = vrot.slane %v765, %v769
      %v788 = vunpack.c.l.b16 %v749
      %v789 = vunpack.c.l.b16 %v750
      %v790 = vunpack.c.l.b16 %v751
      %v791 = vunpack.c.l.b16 %v752
      %v792 = vunpack.c.l.b16 %v753
      %v793 = vunpack.c.l.b16 %v754
      %v794 = vunpack.c.l.b16 %v755
      %v795 = vunpack.c.l.b16 %v756
      %v796 = vunpack.c.l.b16 %v757
      %v797 = vunpack.c.l.b16 %v758
      %v798 = vunpack.c.l.b16 %v759
      %v799 = vunpack.c.l.b16 %v760
      %v800 = vunpack.c.l.b16 %v761
      %v801 = vunpack.c.l.b16 %v762
      %v802 = vunpack.c.l.b16 %v763
      %v803 = vunpack.c.l.b16 %v764
      %v804 = vpack.c.b16 %v789, %v788
      %v805 = vpack.c.b16 %v791, %v790
      %v806 = vpack.c.b16 %v793, %v792
      %v807 = vpack.c.b16 %v795, %v794
      %v808 = vpack.c.b16 %v797, %v796
      %v809 = vpack.c.b16 %v799, %v798
      %v810 = vpack.c.b16 %v801, %v800
      %v811 = vpack.c.b16 %v803, %v802
      %820 = vmatprep.subr.bf16.mxu0 0
      %821 = vmatpush1.bf16.msra.mxu0 %v804
      %822 = vmatprep.subr.bf16.mxu0 0
      %823 = vmatpush1.bf16.msra.mxu0 %v805
      %824 = vmatprep.subr.bf16.mxu0 0
      %825 = vmatpush1.bf16.msra.mxu0 %v806
      %826 = vmatprep.subr.bf16.mxu0 0
      %827 = vmatpush1.bf16.msra.mxu0 %v807
      %828 = vmatprep.subr.bf16.mxu0 0
      %829 = vmatpush1.bf16.msra.mxu0 %v808
      %830 = vmatprep.subr.bf16.mxu0 0
      %831 = vmatpush1.bf16.msra.mxu0 %v809
      %832 = vmatprep.subr.bf16.mxu0 0
      %833 = vmatpush1.bf16.msra.mxu0 %v810
      %834 = vmatprep.subr.bf16.mxu0 0
      %835 = vmatpush1.bf16.msra.mxu0 %v811
      %836 = vmatprep.subr.bf16.mxu0 0
      %837 = vmatpush1.bf16.msra.mxu0 0
      %838 = vmatprep.subr.bf16.mxu0 0
      %839 = vmatpush1.bf16.msra.mxu0 0
      %840 = vmatprep.subr.bf16.mxu0 0
      %841 = vmatpush1.bf16.msra.mxu0 0
      %842 = vmatprep.subr.bf16.mxu0 0
      %843 = vmatpush1.bf16.msra.mxu0 0
      %844 = vmatprep.subr.bf16.mxu0 0
      %845 = vmatpush1.bf16.msra.mxu0 0
      %846 = vmatprep.subr.bf16.mxu0 0
      %847 = vmatpush1.bf16.msra.mxu0 0
      %848 = vmatprep.subr.bf16.mxu0 0
      %849 = vmatpush1.bf16.msra.mxu0 0
      %850 = vmatprep.subr.bf16.mxu0 0
      %851 = vmatpush1.bf16.msra.mxu0 0
      %852 = vmatprep.mubr.bf16.mxu0 0
      %853 = vmatmul.mubr.bf16.gmra.mrb[0].mxu0 %v742
      %v854 = vpop.f32.mrb[0].mxu0
      %v855 = vadd.f32 %v770, %v854
      %v856 = vpop.f32.mrb[0].mxu0
      %v857 = vpop.f32.mrb[0].mxu0
      %v858 = vadd.f32 %v770, %v857
      %v859 = vpop.f32.mrb[0].mxu0
      %860 = vmatprep.mubr.bf16.mxu0 0
      %861 = vmatmul.mubr.bf16.gmra.mrb[0].mxu0 %v743
      %v862 = vpop.f32.mrb[0].mxu0
      %v863 = vadd.f32 %v770, %v862
      %v864 = vpop.f32.mrb[0].mxu0
      %v865 = vpop.f32.mrb[0].mxu0
      %v866 = vadd.f32 %v770, %v865
      %v867 = vpop.f32.mrb[0].mxu0
      %868 = vmatprep.mubr.bf16.mxu0 0
      %869 = vmatmul.mubr.bf16.gmra.mrb[0].mxu0 %v744
      %v870 = vpop.f32.mrb[0].mxu0
      %v871 = vadd.f32 %v770, %v870
      %v872 = vpop.f32.mrb[0].mxu0
      %v873 = vpop.f32.mrb[0].mxu0
      %v874 = vadd.f32 %v770, %v873
      %v875 = vpop.f32.mrb[0].mxu0
      %876 = vmatprep.mubr.bf16.mxu0 0
      %877 = vmatmul.mubr.bf16.gmra.mrb[0].mxu0 %v745
      %v878 = vpop.f32.mrb[0].mxu0
      %v879 = vadd.f32 %v770, %v878
      %v880 = vpop.f32.mrb[0].mxu0
      %v881 = vpop.f32.mrb[0].mxu0
      %v882 = vadd.f32 %v770, %v881
      %v883 = vpop.f32.mrb[0].mxu0
      %884 = vmatprep.mubr.bf16.mxu0 0
      %885 = vmatmul.mubr.bf16.gmra.mrb[0].mxu0 %v746
      %v886 = vpop.f32.mrb[0].mxu0
      %v887 = vadd.f32 %v770, %v886
      %v888 = vpop.f32.mrb[0].mxu0
      %v889 = vpop.f32.mrb[0].mxu0
      %v890 = vadd.f32 %v770, %v889
      %v891 = vpop.f32.mrb[0].mxu0
      %892 = vmatprep.mubr.bf16.mxu0 0
      %893 = vmatmul.mubr.bf16.gmra.mrb[0].mxu0 %v747
      %v894 = vpop.f32.mrb[0].mxu0
      %v895 = vadd.f32 %v770, %v894
      %v896 = vpop.f32.mrb[0].mxu0
      %v897 = vpop.f32.mrb[0].mxu0
      %v898 = vadd.f32 %v770, %v897
      %v899 = vpop.f32.mrb[0].mxu0
      %900 = vmatprep.mubr.bf16.mxu0 0
      %901 = vmatmul.mubr.bf16.gmra.mrb[0].mxu0 %v748
      %v902 = vpop.f32.mrb[0].mxu0
      %v903 = vadd.f32 %v770, %v902
      %v904 = vpop.f32.mrb[0].mxu0
      %v905 = vpop.f32.mrb[0].mxu0
      %v906 = vadd.f32 %v770, %v905
      %v907 = vpop.f32.mrb[0].mxu0
      %908 = vdwg.mxu0
      %v909 = vld [vmem:[%s6] sm:$0xf]
      %v910 = vld [vmem:[%s6 + $0x4] sm:$0xf]
      %v911 = vld [vmem:[%s6 + $0x8] sm:$0xf]
      %v912 = vld [vmem:[%s6 + $0xc] sm:$0xf]
      %v913 = vld [vmem:[%s6 + $0x10] sm:$0xf]
      %v914 = vld [vmem:[%s6 + $0x14] sm:$0xf]
      %v915 = vld [vmem:[%s6 + $0x18] sm:$0xf]
      %v916 = vld [vmem:[%s6 + $0x1c] sm:$0xf]
      %v917 = vld [vmem:[%s6 + $0x20] sm:$0xf]
      %v918 = vld [vmem:[%s6 + $0x24] sm:$0xf]
      %v919 = vld [vmem:[%s6 + $0x28] sm:$0xf]
      %v920 = vld [vmem:[%s6 + $0x2c] sm:$0xf]
      %v921 = vld [vmem:[%s6 + $0x30] sm:$0xf]
      %v922 = vld [vmem:[%s6 + $0x34] sm:$0xf]
      %v923 = vld [vmem:[%s6 + $0x38] sm:$0xf]
      %v924 = vld [vmem:[%s6 + $0x3c] sm:$0xf]
      %v939 = vunpack.c.l.b16 %v400
      %v940 = vunpack.c.l.b16 %v401
      %v941 = vunpack.c.l.b16 %v402
      %v942 = vunpack.c.l.b16 %v403
      %v943 = vunpack.c.l.b16 %v404
      %v944 = vunpack.c.l.b16 %v405
      %v945 = vunpack.c.l.b16 %v406
      %v946 = vunpack.c.l.b16 %v407
      %v947 = vunpack.c.l.b16 %v408
      %v948 = vunpack.c.l.b16 %v409
      %v949 = vunpack.c.l.b16 %v410
      %v950 = vunpack.c.l.b16 %v411
      %v951 = vunpack.c.l.b16 %v412
      %v952 = vunpack.c.l.b16 %v413
      %v953 = vpack.c.b16 %v940, %v939
      %v954 = vpack.c.b16 %v942, %v941
      %v955 = vpack.c.b16 %v944, %v943
      %v956 = vpack.c.b16 %v946, %v945
      %v957 = vpack.c.b16 %v948, %v947
      %v958 = vpack.c.b16 %v950, %v949
      %v959 = vpack.c.b16 %v952, %v951
      %v983 = vunpack.c.l.b16 %v909
      %v984 = vunpack.c.l.b16 %v910
      %v985 = vunpack.c.l.b16 %v911
      %v986 = vunpack.c.l.b16 %v912
      %v987 = vunpack.c.l.b16 %v913
      %v988 = vunpack.c.l.b16 %v914
      %v989 = vunpack.c.l.b16 %v915
      %v990 = vunpack.c.l.b16 %v916
      %v991 = vunpack.c.l.b16 %v917
      %v992 = vunpack.c.l.b16 %v918
      %v993 = vunpack.c.l.b16 %v919
      %v994 = vunpack.c.l.b16 %v920
      %v995 = vunpack.c.l.b16 %v921
      %v996 = vunpack.c.l.b16 %v922
      %v997 = vunpack.c.l.b16 %v923
      %v998 = vunpack.c.l.b16 %v924
      %v999 = vpack.c.b16 %v984, %v983
      %v1000 = vpack.c.b16 %v986, %v985
      %v1001 = vpack.c.b16 %v988, %v987
      %v1002 = vpack.c.b16 %v990, %v989
      %v1003 = vpack.c.b16 %v992, %v991
      %v1004 = vpack.c.b16 %v994, %v993
      %v1005 = vpack.c.b16 %v996, %v995
      %v1006 = vpack.c.b16 %v998, %v997
      %1015 = vmatprep.subr.bf16.mxu0 0
      %1016 = vmatpush1.bf16.msra.mxu0 %v999
      %1017 = vmatprep.subr.bf16.mxu0 0
      %1018 = vmatpush1.bf16.msra.mxu0 %v1000
      %1019 = vmatprep.subr.bf16.mxu0 0
      %1020 = vmatpush1.bf16.msra.mxu0 %v1001
      %1021 = vmatprep.subr.bf16.mxu0 0
      %1022 = vmatpush1.bf16.msra.mxu0 %v1002
      %1023 = vmatprep.subr.bf16.mxu0 0
      %1024 = vmatpush1.bf16.msra.mxu0 %v1003
      %1025 = vmatprep.subr.bf16.mxu0 0
      %1026 = vmatpush1.bf16.msra.mxu0 %v1004
      %1027 = vmatprep.subr.bf16.mxu0 0
      %1028 = vmatpush1.bf16.msra.mxu0 %v1005
      %1029 = vmatprep.subr.bf16.mxu0 0
      %1030 = vmatpush1.bf16.msra.mxu0 %v1006
      %1031 = vmatprep.subr.bf16.mxu0 0
      %1032 = vmatpush1.bf16.msra.mxu0 0
      %1033 = vmatprep.subr.bf16.mxu0 0
      %1034 = vmatpush1.bf16.msra.mxu0 0
      %1035 = vmatprep.subr.bf16.mxu0 0
      %1036 = vmatpush1.bf16.msra.mxu0 0
      %1037 = vmatprep.subr.bf16.mxu0 0
      %1038 = vmatpush1.bf16.msra.mxu0 0
      %1039 = vmatprep.subr.bf16.mxu0 0
      %1040 = vmatpush1.bf16.msra.mxu0 0
      %1041 = vmatprep.subr.bf16.mxu0 0
      %1042 = vmatpush1.bf16.msra.mxu0 0
      %1043 = vmatprep.subr.bf16.mxu0 0
      %1044 = vmatpush1.bf16.msra.mxu0 0
      %1045 = vmatprep.subr.bf16.mxu0 0
      %1046 = vmatpush1.bf16.msra.mxu0 0
      %1047 = vmatprep.mubr.bf16.mxu0 0
      %1048 = vmatmul.mubr.bf16.gmra.mrb[0].mxu0 %v953
      %v1049 = vpop.f32.mrb[0].mxu0
      %v1050 = vadd.f32 0.0, %v1049
      %v1051 = vpop.f32.mrb[0].mxu0
      %v1052 = vpop.f32.mrb[0].mxu0
      %v1053 = vadd.f32 0.0, %v1052
      %v1054 = vpop.f32.mrb[0].mxu0
      %1055 = vmatprep.mubr.bf16.mxu0 0
      %1056 = vmatmul.mubr.bf16.gmra.mrb[0].mxu0 %v954
      %v1057 = vpop.f32.mrb[0].mxu0
      %v1058 = vadd.f32 0.0, %v1057
      %v1059 = vpop.f32.mrb[0].mxu0
      %v1060 = vpop.f32.mrb[0].mxu0
      %v1061 = vadd.f32 0.0, %v1060
      %v1062 = vpop.f32.mrb[0].mxu0
      %1063 = vmatprep.mubr.bf16.mxu0 0
      %1064 = vmatmul.mubr.bf16.gmra.mrb[0].mxu0 %v955
      %v1065 = vpop.f32.mrb[0].mxu0
      %v1066 = vadd.f32 0.0, %v1065
      %v1067 = vpop.f32.mrb[0].mxu0
      %v1068 = vpop.f32.mrb[0].mxu0
      %v1069 = vadd.f32 0.0, %v1068
      %v1070 = vpop.f32.mrb[0].mxu0
      %1071 = vmatprep.mubr.bf16.mxu0 0
      %1072 = vmatmul.mubr.bf16.gmra.mrb[0].mxu0 %v956
      %v1073 = vpop.f32.mrb[0].mxu0
      %v1074 = vadd.f32 0.0, %v1073
      %v1075 = vpop.f32.mrb[0].mxu0
      %v1076 = vpop.f32.mrb[0].mxu0
      %v1077 = vadd.f32 0.0, %v1076
      %v1078 = vpop.f32.mrb[0].mxu0
      %1079 = vmatprep.mubr.bf16.mxu0 0
      %1080 = vmatmul.mubr.bf16.gmra.mrb[0].mxu0 %v957
      %v1081 = vpop.f32.mrb[0].mxu0
      %v1082 = vadd.f32 0.0, %v1081
      %v1083 = vpop.f32.mrb[0].mxu0
      %v1084 = vpop.f32.mrb[0].mxu0
      %v1085 = vadd.f32 0.0, %v1084
      %v1086 = vpop.f32.mrb[0].mxu0
      %1087 = vmatprep.mubr.bf16.mxu0 0
      %1088 = vmatmul.mubr.bf16.gmra.mrb[0].mxu0 %v958
      %v1089 = vpop.f32.mrb[0].mxu0
      %v1090 = vadd.f32 0.0, %v1089
      %v1091 = vpop.f32.mrb[0].mxu0
      %v1092 = vpop.f32.mrb[0].mxu0
      %v1093 = vadd.f32 0.0, %v1092
      %v1094 = vpop.f32.mrb[0].mxu0
      %1095 = vmatprep.mubr.bf16.mxu0 0
      %1096 = vmatmul.mubr.bf16.gmra.mrb[0].mxu0 %v959
      %v1097 = vpop.f32.mrb[0].mxu0
      %v1098 = vadd.f32 0.0, %v1097
      %v1099 = vpop.f32.mrb[0].mxu0
      %v1100 = vpop.f32.mrb[0].mxu0
      %v1101 = vadd.f32 0.0, %v1100
      %v1102 = vpop.f32.mrb[0].mxu0
      %1103 = vdwg.mxu0
      %v1104 = vadd.f32 %v855, %v1050
      %v1105 = vadd.f32 %v858, %v1053
      %v1106 = vadd.f32 %v863, %v1058
      %v1107 = vadd.f32 %v866, %v1061
      %v1108 = vadd.f32 %v871, %v1066
      %v1109 = vadd.f32 %v874, %v1069
      %v1110 = vadd.f32 %v879, %v1074
      %v1111 = vadd.f32 %v882, %v1077
      %v1112 = vadd.f32 %v887, %v1082
      %v1113 = vadd.f32 %v890, %v1085
      %v1114 = vadd.f32 %v895, %v1090
      %v1115 = vadd.f32 %v898, %v1093
      %v1116 = vadd.f32 %v903, %v1098
      %v1117 = vadd.f32 %v906, %v1101
      %v1118 = vld [vmem:[%s7] sm:$0x1]
      %v1120 = vlaneseq
      %v1121 = vshrl.u32 %v1120, 7
      %v1122 = vsub.s32 0, %v1121
      %v1123 = vrot.slane %v1118, %v1122
      %v1125 = vadd.f32 %v1104, %v1123
      %v1126 = vadd.f32 %v1105, %v1123
      %v1127 = vadd.f32 %v1106, %v1123
      %v1128 = vadd.f32 %v1107, %v1123
      %v1129 = vadd.f32 %v1108, %v1123
      %v1130 = vadd.f32 %v1109, %v1123
      %v1131 = vadd.f32 %v1110, %v1123
      %v1132 = vadd.f32 %v1111, %v1123
      %v1133 = vadd.f32 %v1112, %v1123
      %v1134 = vadd.f32 %v1113, %v1123
      %v1135 = vadd.f32 %v1114, %v1123
      %v1136 = vadd.f32 %v1115, %v1123
      %v1137 = vadd.f32 %v1116, %v1123
      %v1138 = vadd.f32 %v1117, %v1123
      %v1139 = vmul.f32 %v1125, 0.5
      %v1140 = vmul.f32 %v1126, 0.5
      %v1141 = vmul.f32 %v1127, 0.5
      %v1142 = vmul.f32 %v1128, 0.5
      %v1143 = vmul.f32 %v1129, 0.5
      %v1144 = vmul.f32 %v1130, 0.5
      %v1145 = vmul.f32 %v1131, 0.5
      %v1146 = vmul.f32 %v1132, 0.5
      %v1147 = vmul.f32 %v1133, 0.5
      %v1148 = vmul.f32 %v1134, 0.5
      %v1149 = vmul.f32 %v1135, 0.5
      %v1150 = vmul.f32 %v1136, 0.5
      %v1151 = vmul.f32 %v1137, 0.5
      %v1152 = vmul.f32 %v1138, 0.5
      %v1153 = vmul.f32 %v1125, 0.044715
      %v1154 = vmul.f32 %v1126, 0.044715
      %v1155 = vmul.f32 %v1127, 0.044715
      %v1156 = vmul.f32 %v1128, 0.044715
      %v1157 = vmul.f32 %v1129, 0.044715
      %v1158 = vmul.f32 %v1130, 0.044715
      %v1159 = vmul.f32 %v1131, 0.044715
      %v1160 = vmul.f32 %v1132, 0.044715
      %v1161 = vmul.f32 %v1133, 0.044715
      %v1162 = vmul.f32 %v1134, 0.044715
      %v1163 = vmul.f32 %v1135, 0.044715
      %v1164 = vmul.f32 %v1136, 0.044715
      %v1165 = vmul.f32 %v1137, 0.044715
      %v1166 = vmul.f32 %v1138, 0.044715
      %v1167 = vmul.f32 %v1153, %v1125
      %v1168 = vmul.f32 %v1154, %v1126
      %v1169 = vmul.f32 %v1155, %v1127
      %v1170 = vmul.f32 %v1156, %v1128
      %v1171 = vmul.f32 %v1157, %v1129
      %v1172 = vmul.f32 %v1158, %v1130
      %v1173 = vmul.f32 %v1159, %v1131
      %v1174 = vmul.f32 %v1160, %v1132
      %v1175 = vmul.f32 %v1161, %v1133
      %v1176 = vmul.f32 %v1162, %v1134
      %v1177 = vmul.f32 %v1163, %v1135
      %v1178 = vmul.f32 %v1164, %v1136
      %v1179 = vmul.f32 %v1165, %v1137
      %v1180 = vmul.f32 %v1166, %v1138
      %v1181 = vmul.f32 %v1167, %v1125
      %v1182 = vmul.f32 %v1168, %v1126
      %v1183 = vmul.f32 %v1169, %v1127
      %v1184 = vmul.f32 %v1170, %v1128
      %v1185 = vmul.f32 %v1171, %v1129
      %v1186 = vmul.f32 %v1172, %v1130
      %v1187 = vmul.f32 %v1173, %v1131
      %v1188 = vmul.f32 %v1174, %v1132
      %v1189 = vmul.f32 %v1175, %v1133
      %v1190 = vmul.f32 %v1176, %v1134
      %v1191 = vmul.f32 %v1177, %v1135
      %v1192 = vmul.f32 %v1178, %v1136
      %v1193 = vmul.f32 %v1179, %v1137
      %v1194 = vmul.f32 %v1180, %v1138
      %v1195 = vadd.f32 %v1125, %v1181
      %v1196 = vadd.f32 %v1126, %v1182
      %v1197 = vadd.f32 %v1127, %v1183
      %v1198 = vadd.f32 %v1128, %v1184
      %v1199 = vadd.f32 %v1129, %v1185
      %v1200 = vadd.f32 %v1130, %v1186
      %v1201 = vadd.f32 %v1131, %v1187
      %v1202 = vadd.f32 %v1132, %v1188
      %v1203 = vadd.f32 %v1133, %v1189
      %v1204 = vadd.f32 %v1134, %v1190
      %v1205 = vadd.f32 %v1135, %v1191
      %v1206 = vadd.f32 %v1136, %v1192
      %v1207 = vadd.f32 %v1137, %v1193
      %v1208 = vadd.f32 %v1138, %v1194
      %v1209 = vmul.f32 %v1195, 0.7978846
      %v1210 = vmul.f32 %v1196, 0.7978846
      %v1211 = vmul.f32 %v1197, 0.7978846
      %v1212 = vmul.f32 %v1198, 0.7978846
      %v1213 = vmul.f32 %v1199, 0.7978846
      %v1214 = vmul.f32 %v1200, 0.7978846
      %v1215 = vmul.f32 %v1201, 0.7978846
      %v1216 = vmul.f32 %v1202, 0.7978846
      %v1217 = vmul.f32 %v1203, 0.7978846
      %v1218 = vmul.f32 %v1204, 0.7978846
      %v1219 = vmul.f32 %v1205, 0.7978846
      %v1220 = vmul.f32 %v1206, 0.7978846
      %v1221 = vmul.f32 %v1207, 0.7978846
      %v1222 = vmul.f32 %v1208, 0.7978846
      %v1223 = vtanh.pop %v1209
      %v1224 = vtanh.pop %v1210
      %v1225 = vtanh.pop %v1211
      %v1226 = vtanh.pop %v1212
      %v1227 = vtanh.pop %v1213
      %v1228 = vtanh.pop %v1214
      %v1229 = vtanh.pop %v1215
      %v1230 = vtanh.pop %v1216
      %v1231 = vtanh.pop %v1217
      %v1232 = vtanh.pop %v1218
      %v1233 = vtanh.pop %v1219
      %v1234 = vtanh.pop %v1220
      %v1235 = vtanh.pop %v1221
      %v1236 = vtanh.pop %v1222
      %v1237 = vadd.f32 %v1223, 1.0
      %v1238 = vadd.f32 %v1224, 1.0
      %v1239 = vadd.f32 %v1225, 1.0
      %v1240 = vadd.f32 %v1226, 1.0
      %v1241 = vadd.f32 %v1227, 1.0
      %v1242 = vadd.f32 %v1228, 1.0
      %v1243 = vadd.f32 %v1229, 1.0
      %v1244 = vadd.f32 %v1230, 1.0
      %v1245 = vadd.f32 %v1231, 1.0
      %v1246 = vadd.f32 %v1232, 1.0
      %v1247 = vadd.f32 %v1233, 1.0
      %v1248 = vadd.f32 %v1234, 1.0
      %v1249 = vadd.f32 %v1235, 1.0
      %v1250 = vadd.f32 %v1236, 1.0
      %v1251 = vmul.f32 %v1139, %v1237
      %v1252 = vmul.f32 %v1140, %v1238
      %v1253 = vmul.f32 %v1141, %v1239
      %v1254 = vmul.f32 %v1142, %v1240
      %v1255 = vmul.f32 %v1143, %v1241
      %v1256 = vmul.f32 %v1144, %v1242
      %v1257 = vmul.f32 %v1145, %v1243
      %v1258 = vmul.f32 %v1146, %v1244
      %v1259 = vmul.f32 %v1147, %v1245
      %v1260 = vmul.f32 %v1148, %v1246
      %v1261 = vmul.f32 %v1149, %v1247
      %v1262 = vmul.f32 %v1150, %v1248
      %v1263 = vmul.f32 %v1151, %v1249
      %v1264 = vmul.f32 %v1152, %v1250
      %v1265 = vpack.c.bf16 %v1252, %v1251
      %v1266 = vpack.c.bf16 %v1254, %v1253
      %v1267 = vpack.c.bf16 %v1256, %v1255
      %v1268 = vpack.c.bf16 %v1258, %v1257
      %v1269 = vpack.c.bf16 %v1260, %v1259
      %v1270 = vpack.c.bf16 %v1262, %v1261
      %v1271 = vpack.c.bf16 %v1264, %v1263
      %v1272 = vld [vmem:[%s8] sm:$0xf]
      %v1273 = vld [vmem:[%s8 + $0x4] sm:$0xf]
      %v1274 = vld [vmem:[%s8 + $0x8] sm:$0xf]
      %v1275 = vld [vmem:[%s8 + $0xc] sm:$0xf]
      %v1276 = vld [vmem:[%s8 + $0x10] sm:$0xf]
      %v1277 = vld [vmem:[%s8 + $0x14] sm:$0xf]
      %v1278 = vld [vmem:[%s8 + $0x18] sm:$0xf]
      %v1279 = vld [vmem:[%s8 + $0x1c] sm:$0xf]
      %v1280 = vld [vmem:[%s8 + $0x20] sm:$0xf]
      %v1281 = vld [vmem:[%s8 + $0x24] sm:$0xf]
      %v1282 = vld [vmem:[%s8 + $0x28] sm:$0xf]
      %v1283 = vld [vmem:[%s8 + $0x2c] sm:$0xf]
      %v1284 = vld [vmem:[%s8 + $0x30] sm:$0xf]
      %v1285 = vld [vmem:[%s8 + $0x34] sm:$0xf]
      %v1286 = vld [vmem:[%s8 + $0x38] sm:$0xf]
      %v1287 = vld [vmem:[%s8 + $0x3c] sm:$0xf]
      %v1288 = vld [vmem:[%s9] sm:$0x1]
      %v1290 = vlaneseq
      %v1291 = vshrl.u32 %v1290, 7
      %v1292 = vsub.s32 0, %v1291
      %v1293 = vrot.slane %v1288, %v1292
      %v1311 = vunpack.c.l.b16 %v1272
      %v1312 = vunpack.c.l.b16 %v1273
      %v1313 = vunpack.c.l.b16 %v1274
      %v1314 = vunpack.c.l.b16 %v1275
      %v1315 = vunpack.c.l.b16 %v1276
      %v1316 = vunpack.c.l.b16 %v1277
      %v1317 = vunpack.c.l.b16 %v1278
      %v1318 = vunpack.c.l.b16 %v1279
      %v1319 = vunpack.c.l.b16 %v1280
      %v1320 = vunpack.c.l.b16 %v1281
      %v1321 = vunpack.c.l.b16 %v1282
      %v1322 = vunpack.c.l.b16 %v1283
      %v1323 = vunpack.c.l.b16 %v1284
      %v1324 = vunpack.c.l.b16 %v1285
      %v1325 = vunpack.c.l.b16 %v1286
      %v1326 = vunpack.c.l.b16 %v1287
      %v1327 = vpack.c.b16 %v1312, %v1311
      %v1328 = vpack.c.b16 %v1314, %v1313
      %v1329 = vpack.c.b16 %v1316, %v1315
      %v1330 = vpack.c.b16 %v1318, %v1317
      %v1331 = vpack.c.b16 %v1320, %v1319
      %v1332 = vpack.c.b16 %v1322, %v1321
      %v1333 = vpack.c.b16 %v1324, %v1323
      %v1334 = vpack.c.b16 %v1326, %v1325
      %1343 = vmatprep.subr.bf16.mxu0 0
      %1344 = vmatpush1.bf16.msra.mxu0 %v1327
      %1345 = vmatprep.subr.bf16.mxu0 0
      %1346 = vmatpush1.bf16.msra.mxu0 %v1328
      %1347 = vmatprep.subr.bf16.mxu0 0
      %1348 = vmatpush1.bf16.msra.mxu0 %v1329
      %1349 = vmatprep.subr.bf16.mxu0 0
      %1350 = vmatpush1.bf16.msra.mxu0 %v1330
      %1351 = vmatprep.subr.bf16.mxu0 0
      %1352 = vmatpush1.bf16.msra.mxu0 %v1331
      %1353 = vmatprep.subr.bf16.mxu0 0
      %1354 = vmatpush1.bf16.msra.mxu0 %v1332
      %1355 = vmatprep.subr.bf16.mxu0 0
      %1356 = vmatpush1.bf16.msra.mxu0 %v1333
      %1357 = vmatprep.subr.bf16.mxu0 0
      %1358 = vmatpush1.bf16.msra.mxu0 %v1334
      %1359 = vmatprep.subr.bf16.mxu0 0
      %1360 = vmatpush1.bf16.msra.mxu0 0
      %1361 = vmatprep.subr.bf16.mxu0 0
      %1362 = vmatpush1.bf16.msra.mxu0 0
      %1363 = vmatprep.subr.bf16.mxu0 0
      %1364 = vmatpush1.bf16.msra.mxu0 0
      %1365 = vmatprep.subr.bf16.mxu0 0
      %1366 = vmatpush1.bf16.msra.mxu0 0
      %1367 = vmatprep.subr.bf16.mxu0 0
      %1368 = vmatpush1.bf16.msra.mxu0 0
      %1369 = vmatprep.subr.bf16.mxu0 0
      %1370 = vmatpush1.bf16.msra.mxu0 0
      %1371 = vmatprep.subr.bf16.mxu0 0
      %1372 = vmatpush1.bf16.msra.mxu0 0
      %1373 = vmatprep.subr.bf16.mxu0 0
      %1374 = vmatpush1.bf16.msra.mxu0 0
      %1375 = vmatprep.mubr.bf16.mxu0 0
      %1376 = vmatmul.mubr.bf16.gmra.mrb[0].mxu0 %v1265
      %v1377 = vpop.f32.mrb[0].mxu0
      %v1378 = vadd.f32 %v1293, %v1377
      %v1379 = vpop.f32.mrb[0].mxu0
      %v1380 = vpop.f32.mrb[0].mxu0
      %v1381 = vadd.f32 %v1293, %v1380
      %v1382 = vpop.f32.mrb[0].mxu0
      %1383 = vmatprep.mubr.bf16.mxu0 0
      %1384 = vmatmul.mubr.bf16.gmra.mrb[0].mxu0 %v1266
      %v1385 = vpop.f32.mrb[0].mxu0
      %v1386 = vadd.f32 %v1293, %v1385
      %v1387 = vpop.f32.mrb[0].mxu0
      %v1388 = vpop.f32.mrb[0].mxu0
      %v1389 = vadd.f32 %v1293, %v1388
      %v1390 = vpop.f32.mrb[0].mxu0
      %1391 = vmatprep.mubr.bf16.mxu0 0
      %1392 = vmatmul.mubr.bf16.gmra.mrb[0].mxu0 %v1267
      %v1393 = vpop.f32.mrb[0].mxu0
      %v1394 = vadd.f32 %v1293, %v1393
      %v1395 = vpop.f32.mrb[0].mxu0
      %v1396 = vpop.f32.mrb[0].mxu0
      %v1397 = vadd.f32 %v1293, %v1396
      %v1398 = vpop.f32.mrb[0].mxu0
      %1399 = vmatprep.mubr.bf16.mxu0 0
      %1400 = vmatmul.mubr.bf16.gmra.mrb[0].mxu0 %v1268
      %v1401 = vpop.f32.mrb[0].mxu0
      %v1402 = vadd.f32 %v1293, %v1401
      %v1403 = vpop.f32.mrb[0].mxu0
      %v1404 = vpop.f32.mrb[0].mxu0
      %v1405 = vadd.f32 %v1293, %v1404
      %v1406 = vpop.f32.mrb[0].mxu0
      %1407 = vmatprep.mubr.bf16.mxu0 0
      %1408 = vmatmul.mubr.bf16.gmra.mrb[0].mxu0 %v1269
      %v1409 = vpop.f32.mrb[0].mxu0
      %v1410 = vadd.f32 %v1293, %v1409
      %v1411 = vpop.f32.mrb[0].mxu0
      %v1412 = vpop.f32.mrb[0].mxu0
      %v1413 = vadd.f32 %v1293, %v1412
      %v1414 = vpop.f32.mrb[0].mxu0
      %1415 = vmatprep.mubr.bf16.mxu0 0
      %1416 = vmatmul.mubr.bf16.gmra.mrb[0].mxu0 %v1270
      %v1417 = vpop.f32.mrb[0].mxu0
      %v1418 = vadd.f32 %v1293, %v1417
      %v1419 = vpop.f32.mrb[0].mxu0
      %v1420 = vpop.f32.mrb[0].mxu0
      %v1421 = vadd.f32 %v1293, %v1420
      %v1422 = vpop.f32.mrb[0].mxu0
      %1423 = vmatprep.mubr.bf16.mxu0 0
      %1424 = vmatmul.mubr.bf16.gmra.mrb[0].mxu0 %v1271
      %v1425 = vpop.f32.mrb[0].mxu0
      %v1426 = vadd.f32 %v1293, %v1425
      %v1427 = vpop.f32.mrb[0].mxu0
      %v1428 = vpop.f32.mrb[0].mxu0
      %v1429 = vadd.f32 %v1293, %v1428
      %v1430 = vpop.f32.mrb[0].mxu0
      %1431 = vdwg.mxu0
      %v1432 = vadd.f32 %v1251, %v1378
      %v1433 = vadd.f32 %v1252, %v1381
      %v1434 = vadd.f32 %v1253, %v1386
      %v1435 = vadd.f32 %v1254, %v1389
      %v1436 = vadd.f32 %v1255, %v1394
      %v1437 = vadd.f32 %v1256, %v1397
      %v1438 = vadd.f32 %v1257, %v1402
      %v1439 = vadd.f32 %v1258, %v1405
      %v1440 = vadd.f32 %v1259, %v1410
      %v1441 = vadd.f32 %v1260, %v1413
      %v1442 = vadd.f32 %v1261, %v1418
      %v1443 = vadd.f32 %v1262, %v1421
      %v1444 = vadd.f32 %v1263, %v1426
      %v1445 = vadd.f32 %v1264, %v1429
      %v1446 = vmul.f32 %v1432, 0.5
      %v1447 = vmul.f32 %v1433, 0.5
      %v1448 = vmul.f32 %v1434, 0.5
      %v1449 = vmul.f32 %v1435, 0.5
      %v1450 = vmul.f32 %v1436, 0.5
      %v1451 = vmul.f32 %v1437, 0.5
      %v1452 = vmul.f32 %v1438, 0.5
      %v1453 = vmul.f32 %v1439, 0.5
      %v1454 = vmul.f32 %v1440, 0.5
      %v1455 = vmul.f32 %v1441, 0.5
      %v1456 = vmul.f32 %v1442, 0.5
      %v1457 = vmul.f32 %v1443, 0.5
      %v1458 = vmul.f32 %v1444, 0.5
      %v1459 = vmul.f32 %v1445, 0.5
      %v1460 = vmul.f32 %v1432, 0.044715
      %v1461 = vmul.f32 %v1433, 0.044715
      %v1462 = vmul.f32 %v1434, 0.044715
      %v1463 = vmul.f32 %v1435, 0.044715
      %v1464 = vmul.f32 %v1436, 0.044715
      %v1465 = vmul.f32 %v1437, 0.044715
      %v1466 = vmul.f32 %v1438, 0.044715
      %v1467 = vmul.f32 %v1439, 0.044715
      %v1468 = vmul.f32 %v1440, 0.044715
      %v1469 = vmul.f32 %v1441, 0.044715
      %v1470 = vmul.f32 %v1442, 0.044715
      %v1471 = vmul.f32 %v1443, 0.044715
      %v1472 = vmul.f32 %v1444, 0.044715
      %v1473 = vmul.f32 %v1445, 0.044715
      %v1474 = vmul.f32 %v1460, %v1432
      %v1475 = vmul.f32 %v1461, %v1433
      %v1476 = vmul.f32 %v1462, %v1434
      %v1477 = vmul.f32 %v1463, %v1435
      %v1478 = vmul.f32 %v1464, %v1436
      %v1479 = vmul.f32 %v1465, %v1437
      %v1480 = vmul.f32 %v1466, %v1438
      %v1481 = vmul.f32 %v1467, %v1439
      %v1482 = vmul.f32 %v1468, %v1440
      %v1483 = vmul.f32 %v1469, %v1441
      %v1484 = vmul.f32 %v1470, %v1442
      %v1485 = vmul.f32 %v1471, %v1443
      %v1486 = vmul.f32 %v1472, %v1444
      %v1487 = vmul.f32 %v1473, %v1445
      %v1488 = vmul.f32 %v1474, %v1432
      %v1489 = vmul.f32 %v1475, %v1433
      %v1490 = vmul.f32 %v1476, %v1434
      %v1491 = vmul.f32 %v1477, %v1435
      %v1492 = vmul.f32 %v1478, %v1436
      %v1493 = vmul.f32 %v1479, %v1437
      %v1494 = vmul.f32 %v1480, %v1438
      %v1495 = vmul.f32 %v1481, %v1439
      %v1496 = vmul.f32 %v1482, %v1440
      %v1497 = vmul.f32 %v1483, %v1441
      %v1498 = vmul.f32 %v1484, %v1442
      %v1499 = vmul.f32 %v1485, %v1443
      %v1500 = vmul.f32 %v1486, %v1444
      %v1501 = vmul.f32 %v1487, %v1445
      %v1502 = vadd.f32 %v1432, %v1488
      %v1503 = vadd.f32 %v1433, %v1489
      %v1504 = vadd.f32 %v1434, %v1490
      %v1505 = vadd.f32 %v1435, %v1491
      %v1506 = vadd.f32 %v1436, %v1492
      %v1507 = vadd.f32 %v1437, %v1493
      %v1508 = vadd.f32 %v1438, %v1494
      %v1509 = vadd.f32 %v1439, %v1495
      %v1510 = vadd.f32 %v1440, %v1496
      %v1511 = vadd.f32 %v1441, %v1497
      %v1512 = vadd.f32 %v1442, %v1498
      %v1513 = vadd.f32 %v1443, %v1499
      %v1514 = vadd.f32 %v1444, %v1500
      %v1515 = vadd.f32 %v1445, %v1501
      %v1516 = vmul.f32 %v1502, 0.7978846
      %v1517 = vmul.f32 %v1503, 0.7978846
      %v1518 = vmul.f32 %v1504, 0.7978846
      %v1519 = vmul.f32 %v1505, 0.7978846
      %v1520 = vmul.f32 %v1506, 0.7978846
      %v1521 = vmul.f32 %v1507, 0.7978846
      %v1522 = vmul.f32 %v1508, 0.7978846
      %v1523 = vmul.f32 %v1509, 0.7978846
      %v1524 = vmul.f32 %v1510, 0.7978846
      %v1525 = vmul.f32 %v1511, 0.7978846
      %v1526 = vmul.f32 %v1512, 0.7978846
      %v1527 = vmul.f32 %v1513, 0.7978846
      %v1528 = vmul.f32 %v1514, 0.7978846
      %v1529 = vmul.f32 %v1515, 0.7978846
      %v1530 = vtanh.pop %v1516
      %v1531 = vtanh.pop %v1517
      %v1532 = vtanh.pop %v1518
      %v1533 = vtanh.pop %v1519
      %v1534 = vtanh.pop %v1520
      %v1535 = vtanh.pop %v1521
      %v1536 = vtanh.pop %v1522
      %v1537 = vtanh.pop %v1523
      %v1538 = vtanh.pop %v1524
      %v1539 = vtanh.pop %v1525
      %v1540 = vtanh.pop %v1526
      %v1541 = vtanh.pop %v1527
      %v1542 = vtanh.pop %v1528
      %v1543 = vtanh.pop %v1529
      %v1544 = vadd.f32 %v1530, 1.0
      %v1545 = vadd.f32 %v1531, 1.0
      %v1546 = vadd.f32 %v1532, 1.0
      %v1547 = vadd.f32 %v1533, 1.0
      %v1548 = vadd.f32 %v1534, 1.0
      %v1549 = vadd.f32 %v1535, 1.0
      %v1550 = vadd.f32 %v1536, 1.0
      %v1551 = vadd.f32 %v1537, 1.0
      %v1552 = vadd.f32 %v1538, 1.0
      %v1553 = vadd.f32 %v1539, 1.0
      %v1554 = vadd.f32 %v1540, 1.0
      %v1555 = vadd.f32 %v1541, 1.0
      %v1556 = vadd.f32 %v1542, 1.0
      %v1557 = vadd.f32 %v1543, 1.0
      %v1558 = vmul.f32 %v1446, %v1544
      %v1559 = vmul.f32 %v1447, %v1545
      %v1560 = vmul.f32 %v1448, %v1546
      %v1561 = vmul.f32 %v1449, %v1547
      %v1562 = vmul.f32 %v1450, %v1548
      %v1563 = vmul.f32 %v1451, %v1549
      %v1564 = vmul.f32 %v1452, %v1550
      %v1565 = vmul.f32 %v1453, %v1551
      %v1566 = vmul.f32 %v1454, %v1552
      %v1567 = vmul.f32 %v1455, %v1553
      %v1568 = vmul.f32 %v1456, %v1554
      %v1569 = vmul.f32 %v1457, %v1555
      %v1570 = vmul.f32 %v1458, %v1556
      %v1571 = vmul.f32 %v1459, %v1557
      %v1572 = vpack.c.bf16 %v1559, %v1558
      %v1573 = vpack.c.bf16 %v1561, %v1560
      %v1574 = vpack.c.bf16 %v1563, %v1562
      %v1575 = vpack.c.bf16 %v1565, %v1564
      %v1576 = vpack.c.bf16 %v1567, %v1566
      %v1577 = vpack.c.bf16 %v1569, %v1568
      %v1578 = vpack.c.bf16 %v1571, %v1570
      %v1586 = vunpack.c.l.b16 %v1572
      %v1587 = vunpack.c.h.b16 %v1572
      %v1588 = vunpack.c.l.b16 %v1573
      %v1589 = vunpack.c.h.b16 %v1573
      %v1590 = vunpack.c.l.b16 %v1574
      %v1591 = vunpack.c.h.b16 %v1574
      %v1592 = vunpack.c.l.b16 %v1575
      %v1593 = vunpack.c.h.b16 %v1575
      %v1594 = vunpack.c.l.b16 %v1576
      %v1595 = vunpack.c.h.b16 %v1576
      %v1596 = vunpack.c.l.b16 %v1577
      %v1597 = vunpack.c.h.b16 %v1577
      %v1598 = vunpack.c.l.b16 %v1578
      %v1599 = vunpack.c.h.b16 %v1578
      %v1600 = vpack.c.b16 %v1586, %v1586
      %v1601 = vpack.c.b16 %v1587, %v1587
      %v1602 = vpack.c.b16 %v1588, %v1588
      %v1603 = vpack.c.b16 %v1589, %v1589
      %v1604 = vpack.c.b16 %v1590, %v1590
      %v1605 = vpack.c.b16 %v1591, %v1591
      %v1606 = vpack.c.b16 %v1592, %v1592
      %v1607 = vpack.c.b16 %v1593, %v1593
      %v1608 = vpack.c.b16 %v1594, %v1594
      %v1609 = vpack.c.b16 %v1595, %v1595
      %v1610 = vpack.c.b16 %v1596, %v1596
      %v1611 = vpack.c.b16 %v1597, %v1597
      %v1612 = vpack.c.b16 %v1598, %v1598
      %v1613 = vpack.c.b16 %v1599, %v1599
      %1628 = vst [vmem:[%s383] sm:$0xf] %v1600
      %1629 = vst [vmem:[%s383 + $0x4] sm:$0xf] %v1601
      %1630 = vst [vmem:[%s383 + $0x8] sm:$0xf] %v1602
      %1631 = vst [vmem:[%s383 + $0xc] sm:$0xf] %v1603
      %1632 = vst [vmem:[%s383 + $0x10] sm:$0xf] %v1604
      %1633 = vst [vmem:[%s383 + $0x14] sm:$0xf] %v1605
      %1634 = vst [vmem:[%s383 + $0x18] sm:$0xf] %v1606
      %1635 = vst [vmem:[%s383 + $0x1c] sm:$0xf] %v1607
      %1636 = vst [vmem:[%s383 + $0x20] sm:$0xf] %v1608
      %1637 = vst [vmem:[%s383 + $0x24] sm:$0xf] %v1609
      %1638 = vst [vmem:[%s383 + $0x28] sm:$0xf] %v1610
      %1639 = vst [vmem:[%s383 + $0x2c] sm:$0xf] %v1611
      %1640 = vst [vmem:[%s383 + $0x30] sm:$0xf] %v1612
      %1641 = vst [vmem:[%s383 + $0x34] sm:$0xf] %v1613
      %s1642 = smul.u32 14, %s21
      %p1643 = scmp.lt.s32.totalorder %s1642, 27
      %s1644 = scalar_select %p1643, %s1642, 27
      %s1645 = smul.addr %s1644, 4
      %s1646 = scalar_lea.vmem %s10, %s1645
      // Predicated region
      $region61: #{fno3d_forward.12} parent=59 // pred_check
        %p1647 = pneg %p259
      $region62: #{fno3d_forward.12} parent=59 // pred_check_branch
        %1649 = sbr.rel (%p1647) target = $region64
      $region63: #{fno3d_forward.12} parent=59 // pred_region
        %s1650 = smul.u32 14, %s21
      $region64: #{fno3d_forward.12} parent=59 // pred_fallthru
        _
    $region60: #{fno3d_forward.12} parent=5 // pred_fallthru
      _
    %p1651 = scmp.le.s32.totalorder 2, %s16
    // Predicated region
    $region65: #{fno3d_forward.12} parent=5 // pred_check
      %p1652 = pneg %p1651
    $region66: #{fno3d_forward.12} parent=5 // pred_check_branch
      %1654 = sbr.rel (%p1652) target = $region68
    $region67: #{fno3d_forward.12} parent=5 // pred_region
      %s1655 = ssub.s32 %s16, 2
      // Predicated region
      $region69: #{fno3d_forward.12} parent=67 // pred_check
        %p1656 = pneg %p265
      $region70: #{fno3d_forward.12} parent=67 // pred_check_branch
        %1658 = sbr.rel (%p1656) target = $region72
      $region71: #{fno3d_forward.12} parent=67 // pred_region
        %s1659 = smul.u32 14, %s22
        %p1660 = scmp.lt.s32.totalorder %s1659, 27
        %s1661 = scalar_select %p1660, %s1659, 27
        %s1662 = smul.addr %s1661, 4
        %s1663 = scalar_lea.vmem %s10, %s1662
      $region72: #{fno3d_forward.12} parent=67 // pred_fallthru
        _
    $region68: #{fno3d_forward.12} parent=5 // pred_fallthru
      _
  $region6: #{fno3d_forward.12} parent=0 // loop_footer
    %s20 = sadd.s32 1, %s16
  $region7: #{fno3d_forward.12} parent=0 // loop_footer_branch
    %15 = sbr.rel target = $region3
  $region8: #{fno3d_forward.12} parent=0 // loop_exit
    _

// kernel: fno3d_forward.14
$region0: #{fno3d_forward.14}
  #allocation0 [shape = 'u32[]', space=smem, size = 0x4, offset = 0x4, fixed_abs, tag = 'smem constant byte address 0x4 - core index']
  #allocation1 [shape = 'u32[144,128]{1,0:T(1,128)}', space=vmem, size = 0x12000, scoped, tag = 'internal scratch']
  %s0 = inlined_call_operand.vmem [shape: bf16[224,128], index: 0, kind: input, shape index: {}]
  %s1 = inlined_call_operand.vmem [shape: bf16[224,128], index: 1, kind: input, shape index: {}]
  %s2 = inlined_call_operand.vmem [shape: bf16[128,128], index: 2, kind: input, shape index: {}]
  %s3 = inlined_call_operand.vmem [shape: f32[1,128], index: 3, kind: input, shape index: {}]
  %s4 = inlined_call_operand.vmem [shape: bf16[128,128], index: 4, kind: input, shape index: {}]
  %s5 = inlined_call_operand.vmem [shape: f32[1,128], index: 5, kind: input, shape index: {}]
  %s6 = inlined_call_operand.vmem [shape: bf16[128,128], index: 6, kind: input, shape index: {}]
  %s7 = inlined_call_operand.vmem [shape: f32[1,128], index: 7, kind: input, shape index: {}]
  %s8 = inlined_call_operand.vmem [shape: bf16[224,128], index: 8, kind: output, shape index: {}]
  %s9 = sld [smem:[#allocation0]]
  $region65: #{fno3d_forward.14} parent=0
    _
  %s11 = ssub.s32 1, %s9
  %s12 = scalar_select 0, %s11, %s9
  loop: start=0, step=1, limit=4
  $region2: #{fno3d_forward.14} parent=0 // loop_pre_header
    _
  $region3: #{fno3d_forward.14} parent=0 // loop_header
    %s14 = sphi 0, %s18
    %p15 = scmp.ge.s32.totalorder %s14, 4
    %s24 = sphi 0, %s26
    %s27 = sphi 0, %s24
    %s28 = sphi 0, %s27
    %s44 = sphi 0, %s28
    %s50 = sphi 0, %s52
    %s53 = sphi 0, %s50
    %s54 = sphi 0, %s53
    %s70 = sphi 0, %s54
    %s74 = sphi 0, %s74
    %s76 = sphi 0, %s74
    %s77 = sphi 0, %s76
    %s91 = sphi 0, %s77
    %s95 = sphi 0, %s95
    %s97 = sphi 0, %s95
    %s98 = sphi 0, %s97
    %s112 = sphi 0, %s98
    %s116 = sphi 0, %s116
    %s118 = sphi 0, %s116
    %s119 = sphi 0, %s118
    %s133 = sphi 0, %s119
    %s137 = sphi 0, %s137
    %s139 = sphi 0, %s137
    %s140 = sphi 0, %s139
    %s154 = sphi 0, %s140
    %s158 = sphi 0, %s158
    %s160 = sphi 0, %s158
    %s161 = sphi 0, %s160
    %s175 = sphi 0, %s161
    %s179 = sphi 0, %s179
    %s181 = sphi 0, %s179
    %s182 = sphi 0, %s181
    %s196 = sphi 0, %s182
    %s202 = sphi 0, %s204
    %s205 = sphi 0, %s202
    %s206 = sphi 0, %s205
    %s222 = sphi 0, %s206
  $region4: #{fno3d_forward.14} parent=0 // loop_header_branch
    %17 = sbr.rel (%p15) target = $region8
  $region5: #{fno3d_forward.14} parent=0 // loop_body
    %s19 = ssub.s32 %s14, 1
    %s20 = ssub.s32 %s14, 2
    %s21 = sadd.s32 %s14, 1
    %s22 = ssub.s32 %s14, %s21
    %p23 = scmp.eq.s32.totalorder %s22, 0
    %s25 = sadd.s32 %s24, 1
    %s26 = scalar_select %p23, %s24, %s25
    %p29 = pneg %p23
    %p30 = scmp.eq.s32.totalorder %s14, 1
    %p31 = por %p29, %p30
    %p32 = scmp.ne.s32.totalorder %s24, %s27
    %p33 = scmp.eq.s32.totalorder %s14, 0
    %p34 = por %p32, %p33
    %p35 = scmp.ne.s32.totalorder %s24, %s27
    %p36 = scmp.eq.s32.totalorder %s19, 1
    %p37 = por %p35, %p36
    %p38 = scmp.ne.s32.totalorder %s27, %s28
    %p39 = scmp.eq.s32.totalorder %s19, 0
    %p40 = por %p38, %p39
    %p41 = scmp.ne.s32.totalorder %s27, %s28
    %p42 = scmp.eq.s32.totalorder %s20, 1
    %p43 = por %p41, %p42
    %p45 = scmp.ne.s32.totalorder %s28, %s44
    %p46 = scmp.eq.s32.totalorder %s20, 0
    %p47 = por %p45, %p46
    %s48 = ssub.s32 %s14, %s21
    %p49 = scmp.eq.s32.totalorder %s48, 0
    %s51 = sadd.s32 %s50, 1
    %s52 = scalar_select %p49, %s50, %s51
    %p55 = pneg %p49
    %p56 = scmp.eq.s32.totalorder %s14, 1
    %p57 = por %p55, %p56
    %p58 = scmp.ne.s32.totalorder %s50, %s53
    %p59 = scmp.eq.s32.totalorder %s14, 0
    %p60 = por %p58, %p59
    %p61 = scmp.ne.s32.totalorder %s50, %s53
    %p62 = scmp.eq.s32.totalorder %s19, 1
    %p63 = por %p61, %p62
    %p64 = scmp.ne.s32.totalorder %s53, %s54
    %p65 = scmp.eq.s32.totalorder %s19, 0
    %p66 = por %p64, %p65
    %p67 = scmp.ne.s32.totalorder %s53, %s54
    %p68 = scmp.eq.s32.totalorder %s20, 1
    %p69 = por %p67, %p68
    %p71 = scmp.ne.s32.totalorder %s54, %s70
    %p72 = scmp.eq.s32.totalorder %s20, 0
    %p73 = por %p71, %p72
    %s75 = sadd.s32 %s74, 1
    %p78 = scmp.eq.s32.totalorder %s14, 1
    %p79 = scmp.ne.s32.totalorder %s74, %s76
    %p80 = scmp.eq.s32.totalorder %s14, 0
    %p81 = por %p79, %p80
    %p82 = scmp.ne.s32.totalorder %s74, %s76
    %p83 = scmp.eq.s32.totalorder %s19, 1
    %p84 = por %p82, %p83
    %p85 = scmp.ne.s32.totalorder %s76, %s77
    %p86 = scmp.eq.s32.totalorder %s19, 0
    %p87 = por %p85, %p86
    %p88 = scmp.ne.s32.totalorder %s76, %s77
    %p89 = scmp.eq.s32.totalorder %s20, 1
    %p90 = por %p88, %p89
    %p92 = scmp.ne.s32.totalorder %s77, %s91
    %p93 = scmp.eq.s32.totalorder %s20, 0
    %p94 = por %p92, %p93
    %s96 = sadd.s32 %s95, 1
    %p99 = scmp.eq.s32.totalorder %s14, 1
    %p100 = scmp.ne.s32.totalorder %s95, %s97
    %p101 = scmp.eq.s32.totalorder %s14, 0
    %p102 = por %p100, %p101
    %p103 = scmp.ne.s32.totalorder %s95, %s97
    %p104 = scmp.eq.s32.totalorder %s19, 1
    %p105 = por %p103, %p104
    %p106 = scmp.ne.s32.totalorder %s97, %s98
    %p107 = scmp.eq.s32.totalorder %s19, 0
    %p108 = por %p106, %p107
    %p109 = scmp.ne.s32.totalorder %s97, %s98
    %p110 = scmp.eq.s32.totalorder %s20, 1
    %p111 = por %p109, %p110
    %p113 = scmp.ne.s32.totalorder %s98, %s112
    %p114 = scmp.eq.s32.totalorder %s20, 0
    %p115 = por %p113, %p114
    %s117 = sadd.s32 %s116, 1
    %p120 = scmp.eq.s32.totalorder %s14, 1
    %p121 = scmp.ne.s32.totalorder %s116, %s118
    %p122 = scmp.eq.s32.totalorder %s14, 0
    %p123 = por %p121, %p122
    %p124 = scmp.ne.s32.totalorder %s116, %s118
    %p125 = scmp.eq.s32.totalorder %s19, 1
    %p126 = por %p124, %p125
    %p127 = scmp.ne.s32.totalorder %s118, %s119
    %p128 = scmp.eq.s32.totalorder %s19, 0
    %p129 = por %p127, %p128
    %p130 = scmp.ne.s32.totalorder %s118, %s119
    %p131 = scmp.eq.s32.totalorder %s20, 1
    %p132 = por %p130, %p131
    %p134 = scmp.ne.s32.totalorder %s119, %s133
    %p135 = scmp.eq.s32.totalorder %s20, 0
    %p136 = por %p134, %p135
    %s138 = sadd.s32 %s137, 1
    %p141 = scmp.eq.s32.totalorder %s14, 1
    %p142 = scmp.ne.s32.totalorder %s137, %s139
    %p143 = scmp.eq.s32.totalorder %s14, 0
    %p144 = por %p142, %p143
    %p145 = scmp.ne.s32.totalorder %s137, %s139
    %p146 = scmp.eq.s32.totalorder %s19, 1
    %p147 = por %p145, %p146
    %p148 = scmp.ne.s32.totalorder %s139, %s140
    %p149 = scmp.eq.s32.totalorder %s19, 0
    %p150 = por %p148, %p149
    %p151 = scmp.ne.s32.totalorder %s139, %s140
    %p152 = scmp.eq.s32.totalorder %s20, 1
    %p153 = por %p151, %p152
    %p155 = scmp.ne.s32.totalorder %s140, %s154
    %p156 = scmp.eq.s32.totalorder %s20, 0
    %p157 = por %p155, %p156
    %s159 = sadd.s32 %s158, 1
    %p162 = scmp.eq.s32.totalorder %s14, 1
    %p163 = scmp.ne.s32.totalorder %s158, %s160
    %p164 = scmp.eq.s32.totalorder %s14, 0
    %p165 = por %p163, %p164
    %p166 = scmp.ne.s32.totalorder %s158, %s160
    %p167 = scmp.eq.s32.totalorder %s19, 1
    %p168 = por %p166, %p167
    %p169 = scmp.ne.s32.totalorder %s160, %s161
    %p170 = scmp.eq.s32.totalorder %s19, 0
    %p171 = por %p169, %p170
    %p172 = scmp.ne.s32.totalorder %s160, %s161
    %p173 = scmp.eq.s32.totalorder %s20, 1
    %p174 = por %p172, %p173
    %p176 = scmp.ne.s32.totalorder %s161, %s175
    %p177 = scmp.eq.s32.totalorder %s20, 0
    %p178 = por %p176, %p177
    %s180 = sadd.s32 %s179, 1
    %p183 = scmp.eq.s32.totalorder %s14, 1
    %p184 = scmp.ne.s32.totalorder %s179, %s181
    %p185 = scmp.eq.s32.totalorder %s14, 0
    %p186 = por %p184, %p185
    %p187 = scmp.ne.s32.totalorder %s179, %s181
    %p188 = scmp.eq.s32.totalorder %s19, 1
    %p189 = por %p187, %p188
    %p190 = scmp.ne.s32.totalorder %s181, %s182
    %p191 = scmp.eq.s32.totalorder %s19, 0
    %p192 = por %p190, %p191
    %p193 = scmp.ne.s32.totalorder %s181, %s182
    %p194 = scmp.eq.s32.totalorder %s20, 1
    %p195 = por %p193, %p194
    %p197 = scmp.ne.s32.totalorder %s182, %s196
    %p198 = scmp.eq.s32.totalorder %s20, 0
    %p199 = por %p197, %p198
    %s200 = ssub.s32 %s14, %s21
    %p201 = scmp.eq.s32.totalorder %s200, 0
    %s203 = sadd.s32 %s202, 1
    %s204 = scalar_select %p201, %s202, %s203
    %p207 = pneg %p201
    %p208 = scmp.eq.s32.totalorder %s14, 1
    %p209 = por %p207, %p208
    %p210 = scmp.ne.s32.totalorder %s202, %s205
    %p211 = scmp.eq.s32.totalorder %s14, 0
    %p212 = por %p210, %p211
    %p213 = scmp.ne.s32.totalorder %s202, %s205
    %p214 = scmp.eq.s32.totalorder %s19, 1
    %p215 = por %p213, %p214
    %p216 = scmp.ne.s32.totalorder %s205, %s206
    %p217 = scmp.eq.s32.totalorder %s19, 0
    %p218 = por %p216, %p217
    %p219 = scmp.ne.s32.totalorder %s205, %s206
    %p220 = scmp.eq.s32.totalorder %s20, 1
    %p221 = por %p219, %p220
    %p223 = scmp.ne.s32.totalorder %s206, %s222
    %p224 = scmp.eq.s32.totalorder %s20, 0
    %p225 = por %p223, %p224
    %p226 = scmp.le.s32.totalorder 1, %s14
    %p227 = scmp.lt.s32.totalorder %s14, 3
    %p228 = pnand %p226, %p227
    %p229 = pneg %p228
    // Predicated region
    $region9: #{fno3d_forward.14} parent=5 // pred_check
      _
    $region10: #{fno3d_forward.14} parent=5 // pred_check_branch
      %231 = sbr.rel (%p228) target = $region12
    $region11: #{fno3d_forward.14} parent=5 // pred_region
      %s232 = ssub.s32 %s14, 1
      // Predicated region
      $region13: #{fno3d_forward.14} parent=11 // pred_check
        %p233 = pneg %p87
      $region14: #{fno3d_forward.14} parent=11 // pred_check_branch
        %235 = sbr.rel (%p233) target = $region16
      $region15: #{fno3d_forward.14} parent=11 // pred_region
        _
      $region16: #{fno3d_forward.14} parent=11 // pred_fallthru
        _
      // Predicated region
      $region17: #{fno3d_forward.14} parent=11 // pred_check
        %p236 = pneg %p108
      $region18: #{fno3d_forward.14} parent=11 // pred_check_branch
        %238 = sbr.rel (%p236) target = $region20
      $region19: #{fno3d_forward.14} parent=11 // pred_region
        _
      $region20: #{fno3d_forward.14} parent=11 // pred_fallthru
        _
      // Predicated region
      $region21: #{fno3d_forward.14} parent=11 // pred_check
        %p239 = pneg %p129
      $region22: #{fno3d_forward.14} parent=11 // pred_check_branch
        %241 = sbr.rel (%p239) target = $region24
      $region23: #{fno3d_forward.14} parent=11 // pred_region
        _
      $region24: #{fno3d_forward.14} parent=11 // pred_fallthru
        _
      // Predicated region
      $region25: #{fno3d_forward.14} parent=11 // pred_check
        %p242 = pneg %p150
      $region26: #{fno3d_forward.14} parent=11 // pred_check_branch
        %244 = sbr.rel (%p242) target = $region28
      $region27: #{fno3d_forward.14} parent=11 // pred_region
        _
      $region28: #{fno3d_forward.14} parent=11 // pred_fallthru
        _
      // Predicated region
      $region29: #{fno3d_forward.14} parent=11 // pred_check
        %p245 = pneg %p171
      $region30: #{fno3d_forward.14} parent=11 // pred_check_branch
        %247 = sbr.rel (%p245) target = $region32
      $region31: #{fno3d_forward.14} parent=11 // pred_region
        _
      $region32: #{fno3d_forward.14} parent=11 // pred_fallthru
        _
      // Predicated region
      $region33: #{fno3d_forward.14} parent=11 // pred_check
        %p248 = pneg %p192
      $region34: #{fno3d_forward.14} parent=11 // pred_check_branch
        %250 = sbr.rel (%p248) target = $region36
      $region35: #{fno3d_forward.14} parent=11 // pred_region
        _
      $region36: #{fno3d_forward.14} parent=11 // pred_fallthru
        _
    $region12: #{fno3d_forward.14} parent=5 // pred_fallthru
      _
    %p251 = scmp.lt.s32.totalorder %s14, 2
    // Predicated region
    $region37: #{fno3d_forward.14} parent=5 // pred_check
      %p252 = pneg %p251
    $region38: #{fno3d_forward.14} parent=5 // pred_check_branch
      %254 = sbr.rel (%p252) target = $region40
    $region39: #{fno3d_forward.14} parent=5 // pred_region
      // Predicated region
      $region41: #{fno3d_forward.14} parent=39 // pred_check
        %p255 = pneg %p34
      $region42: #{fno3d_forward.14} parent=39 // pred_check_branch
        %257 = sbr.rel (%p255) target = $region44
      $region43: #{fno3d_forward.14} parent=39 // pred_region
        %s258 = smul.u32 14, %s14
        %p259 = scmp.lt.s32.totalorder %s258, 27
        %s260 = scalar_select %p259, %s258, 27
        %s261 = smul.addr %s260, 4
        %s262 = scalar_lea.vmem %s0, %s261
        %s263 = smul.u32 14, %s14
      $region44: #{fno3d_forward.14} parent=39 // pred_fallthru
        _
      // Predicated region
      $region45: #{fno3d_forward.14} parent=39 // pred_check
        %p264 = pneg %p60
      $region46: #{fno3d_forward.14} parent=39 // pred_check_branch
        %266 = sbr.rel (%p264) target = $region48
      $region47: #{fno3d_forward.14} parent=39 // pred_region
        %s267 = smul.u32 14, %s14
        %p268 = scmp.lt.s32.totalorder %s267, 27
        %s269 = scalar_select %p268, %s267, 27
        %s270 = smul.addr %s269, 4
        %s271 = scalar_lea.vmem %s1, %s270
        %s272 = smul.u32 14, %s14
      $region48: #{fno3d_forward.14} parent=39 // pred_fallthru
        _
    $region40: #{fno3d_forward.14} parent=5 // pred_fallthru
      _
    %p273 = scmp.le.s32.totalorder 1, %s14
    %p274 = scmp.lt.s32.totalorder %s14, 3
    %p275 = pnand %p273, %p274
    %p276 = pneg %p275
    // Predicated region
    $region49: #{fno3d_forward.14} parent=5 // pred_check
      _
    $region50: #{fno3d_forward.14} parent=5 // pred_check_branch
      %278 = sbr.rel (%p275) target = $region52
    $region51: #{fno3d_forward.14} parent=5 // pred_region
      %s279 = ssub.s32 %s14, 1
      %s280 = smul.u32 14, %s19
      %p281 = scmp.lt.s32.totalorder %s280, 27
      %s282 = scalar_select %p281, %s280, 27
      %s283 = smul.addr %s282, 4
      %s284 = scalar_lea.vmem %s0, %s283
      %p285 = pneg %p40
      %p286 = pneg %p37
      %s287 = smul.u32 14, %s19
      %p288 = scmp.lt.s32.totalorder %s287, 27
      %s289 = scalar_select %p288, %s287, 27
      %s290 = smul.addr %s289, 4
      %s291 = scalar_lea.vmem %s1, %s290
      %p292 = pneg %p66
      %p293 = pneg %p63
      %p294 = pneg %p87
      %p295 = pneg %p84
      %p296 = pneg %p108
      %p297 = pneg %p105
      %p298 = pneg %p129
      %p299 = pneg %p126
      %p300 = pneg %p150
      %p301 = pneg %p147
      %p302 = pneg %p171
      %p303 = pneg %p168
      %p304 = pneg %p192
      %p305 = pneg %p189
      %p306 = pneg %p218
      %p307 = pneg %p215
      %s308 = smul.u32 14, %s19
      %p309 = scmp.lt.s32.totalorder %s308, 27
      %s310 = scalar_select %p309, %s308, 27
      %s311 = smul.addr %s310, 4
      %s312 = scalar_lea.vmem %s8, %s311
      %s313 = smul.u32 14, %s19
      %p314 = scmp.lt.s32.totalorder %s313, 27
      %s315 = scalar_select %p314, %s313, 27
      %s316 = smul.addr %s315, 4
      %s317 = scalar_lea.vmem %s0, %s316
      %s318 = smul.u32 14, %s19
      %s319 = smul.u32 14, %s19
      %p320 = scmp.lt.s32.totalorder %s319, 27
      %s321 = scalar_select %p320, %s319, 27
      %s322 = smul.addr %s321, 4
      %s323 = scalar_lea.vmem %s1, %s322
      %s324 = smul.u32 14, %s19
      %s325 = smul.u32 14, %s19
      %p326 = scmp.lt.s32.totalorder %s325, 27
      %s327 = scalar_select %p326, %s325, 27
      %s328 = smul.addr %s327, 4
      %s329 = scalar_lea.vmem %s8, %s328
      %s330 = smul.u32 14, %s19
      %v332 = vld [vmem:[%s317] sm:$0xf]
      %v333 = vld [vmem:[%s317 + $0x4] sm:$0xf]
      %v334 = vld [vmem:[%s317 + $0x8] sm:$0xf]
      %v335 = vld [vmem:[%s317 + $0xc] sm:$0xf]
      %v336 = vld [vmem:[%s317 + $0x10] sm:$0xf]
      %v337 = vld [vmem:[%s317 + $0x14] sm:$0xf]
      %v338 = vld [vmem:[%s317 + $0x18] sm:$0xf]
      %v339 = vld [vmem:[%s317 + $0x1c] sm:$0xf]
      %v340 = vld [vmem:[%s317 + $0x20] sm:$0xf]
      %v341 = vld [vmem:[%s317 + $0x24] sm:$0xf]
      %v342 = vld [vmem:[%s317 + $0x28] sm:$0xf]
      %v343 = vld [vmem:[%s317 + $0x2c] sm:$0xf]
      %v344 = vld [vmem:[%s317 + $0x30] sm:$0xf]
      %v345 = vld [vmem:[%s317 + $0x34] sm:$0xf]
      %v346 = vld [vmem:[%s323] sm:$0xf]
      %v347 = vld [vmem:[%s323 + $0x4] sm:$0xf]
      %v348 = vld [vmem:[%s323 + $0x8] sm:$0xf]
      %v349 = vld [vmem:[%s323 + $0xc] sm:$0xf]
      %v350 = vld [vmem:[%s323 + $0x10] sm:$0xf]
      %v351 = vld [vmem:[%s323 + $0x14] sm:$0xf]
      %v352 = vld [vmem:[%s323 + $0x18] sm:$0xf]
      %v353 = vld [vmem:[%s323 + $0x1c] sm:$0xf]
      %v354 = vld [vmem:[%s323 + $0x20] sm:$0xf]
      %v355 = vld [vmem:[%s323 + $0x24] sm:$0xf]
      %v356 = vld [vmem:[%s323 + $0x28] sm:$0xf]
      %v357 = vld [vmem:[%s323 + $0x2c] sm:$0xf]
      %v358 = vld [vmem:[%s323 + $0x30] sm:$0xf]
      %v359 = vld [vmem:[%s323 + $0x34] sm:$0xf]
      %v360 = vld [vmem:[%s2] sm:$0xf]
      %v361 = vld [vmem:[%s2 + $0x4] sm:$0xf]
      %v362 = vld [vmem:[%s2 + $0x8] sm:$0xf]
      %v363 = vld [vmem:[%s2 + $0xc] sm:$0xf]
      %v364 = vld [vmem:[%s2 + $0x10] sm:$0xf]
      %v365 = vld [vmem:[%s2 + $0x14] sm:$0xf]
      %v366 = vld [vmem:[%s2 + $0x18] sm:$0xf]
      %v367 = vld [vmem:[%s2 + $0x1c] sm:$0xf]
      %v368 = vld [vmem:[%s2 + $0x20] sm:$0xf]
      %v369 = vld [vmem:[%s2 + $0x24] sm:$0xf]
      %v370 = vld [vmem:[%s2 + $0x28] sm:$0xf]
      %v371 = vld [vmem:[%s2 + $0x2c] sm:$0xf]
      %v372 = vld [vmem:[%s2 + $0x30] sm:$0xf]
      %v373 = vld [vmem:[%s2 + $0x34] sm:$0xf]
      %v374 = vld [vmem:[%s2 + $0x38] sm:$0xf]
      %v375 = vld [vmem:[%s2 + $0x3c] sm:$0xf]
      %v376 = vld [vmem:[%s3] sm:$0x1]
      %v378 = vlaneseq
      %v379 = vshrl.u32 %v378, 7
      %v380 = vsub.s32 0, %v379
      %v381 = vrot.slane %v376, %v380
      %v397 = vunpack.c.l.b16 %v332
      %v398 = vunpack.c.l.b16 %v333
      %v399 = vunpack.c.l.b16 %v334
      %v400 = vunpack.c.l.b16 %v335
      %v401 = vunpack.c.l.b16 %v336
      %v402 = vunpack.c.l.b16 %v337
      %v403 = vunpack.c.l.b16 %v338
      %v404 = vunpack.c.l.b16 %v339
      %v405 = vunpack.c.l.b16 %v340
      %v406 = vunpack.c.l.b16 %v341
      %v407 = vunpack.c.l.b16 %v342
      %v408 = vunpack.c.l.b16 %v343
      %v409 = vunpack.c.l.b16 %v344
      %v410 = vunpack.c.l.b16 %v345
      %v411 = vpack.c.b16 %v398, %v397
      %v412 = vpack.c.b16 %v400, %v399
      %v413 = vpack.c.b16 %v402, %v401
      %v414 = vpack.c.b16 %v404, %v403
      %v415 = vpack.c.b16 %v406, %v405
      %v416 = vpack.c.b16 %v408, %v407
      %v417 = vpack.c.b16 %v410, %v409
      %v441 = vunpack.c.l.b16 %v360
      %v442 = vunpack.c.l.b16 %v361
      %v443 = vunpack.c.l.b16 %v362
      %v444 = vunpack.c.l.b16 %v363
      %v445 = vunpack.c.l.b16 %v364
      %v446 = vunpack.c.l.b16 %v365
      %v447 = vunpack.c.l.b16 %v366
      %v448 = vunpack.c.l.b16 %v367
      %v449 = vunpack.c.l.b16 %v368
      %v450 = vunpack.c.l.b16 %v369
      %v451 = vunpack.c.l.b16 %v370
      %v452 = vunpack.c.l.b16 %v371
      %v453 = vunpack.c.l.b16 %v372
      %v454 = vunpack.c.l.b16 %v373
      %v455 = vunpack.c.l.b16 %v374
      %v456 = vunpack.c.l.b16 %v375
      %v457 = vpack.c.b16 %v442, %v441
      %v458 = vpack.c.b16 %v444, %v443
      %v459 = vpack.c.b16 %v446, %v445
      %v460 = vpack.c.b16 %v448, %v447
      %v461 = vpack.c.b16 %v450, %v449
      %v462 = vpack.c.b16 %v452, %v451
      %v463 = vpack.c.b16 %v454, %v453
      %v464 = vpack.c.b16 %v456, %v455
      %473 = vmatprep.subr.bf16.mxu0 0
      %474 = vmatpush1.bf16.msra.mxu0 %v457
      %475 = vmatprep.subr.bf16.mxu0 0
      %476 = vmatpush1.bf16.msra.mxu0 %v458
      %477 = vmatprep.subr.bf16.mxu0 0
      %478 = vmatpush1.bf16.msra.mxu0 %v459
      %479 = vmatprep.subr.bf16.mxu0 0
      %480 = vmatpush1.bf16.msra.mxu0 %v460
      %481 = vmatprep.subr.bf16.mxu0 0
      %482 = vmatpush1.bf16.msra.mxu0 %v461
      %483 = vmatprep.subr.bf16.mxu0 0
      %484 = vmatpush1.bf16.msra.mxu0 %v462
      %485 = vmatprep.subr.bf16.mxu0 0
      %486 = vmatpush1.bf16.msra.mxu0 %v463
      %487 = vmatprep.subr.bf16.mxu0 0
      %488 = vmatpush1.bf16.msra.mxu0 %v464
      %489 = vmatprep.subr.bf16.mxu0 0
      %490 = vmatpush1.bf16.msra.mxu0 0
      %491 = vmatprep.subr.bf16.mxu0 0
      %492 = vmatpush1.bf16.msra.mxu0 0
      %493 = vmatprep.subr.bf16.mxu0 0
      %494 = vmatpush1.bf16.msra.mxu0 0
      %495 = vmatprep.subr.bf16.mxu0 0
      %496 = vmatpush1.bf16.msra.mxu0 0
      %497 = vmatprep.subr.bf16.mxu0 0
      %498 = vmatpush1.bf16.msra.mxu0 0
      %499 = vmatprep.subr.bf16.mxu0 0
      %500 = vmatpush1.bf16.msra.mxu0 0
      %501 = vmatprep.subr.bf16.mxu0 0
      %502 = vmatpush1.bf16.msra.mxu0 0
      %503 = vmatprep.subr.bf16.mxu0 0
      %504 = vmatpush1.bf16.msra.mxu0 0
      %505 = vmatprep.mubr.bf16.mxu0 0
      %506 = vmatmul.mubr.bf16.gmra.mrb[0].mxu0 %v411
      %v507 = vpop.f32.mrb[0].mxu0
      %v508 = vadd.f32 %v381, %v507
      %v509 = vpop.f32.mrb[0].mxu0
      %v510 = vpop.f32.mrb[0].mxu0
      %v511 = vadd.f32 %v381, %v510
      %v512 = vpop.f32.mrb[0].mxu0
      %513 = vmatprep.mubr.bf16.mxu0 0
      %514 = vmatmul.mubr.bf16.gmra.mrb[0].mxu0 %v412
      %v515 = vpop.f32.mrb[0].mxu0
      %v516 = vadd.f32 %v381, %v515
      %v517 = vpop.f32.mrb[0].mxu0
      %v518 = vpop.f32.mrb[0].mxu0
      %v519 = vadd.f32 %v381, %v518
      %v520 = vpop.f32.mrb[0].mxu0
      %521 = vmatprep.mubr.bf16.mxu0 0
      %522 = vmatmul.mubr.bf16.gmra.mrb[0].mxu0 %v413
      %v523 = vpop.f32.mrb[0].mxu0
      %v524 = vadd.f32 %v381, %v523
      %v525 = vpop.f32.mrb[0].mxu0
      %v526 = vpop.f32.mrb[0].mxu0
      %v527 = vadd.f32 %v381, %v526
      %v528 = vpop.f32.mrb[0].mxu0
      %529 = vmatprep.mubr.bf16.mxu0 0
      %530 = vmatmul.mubr.bf16.gmra.mrb[0].mxu0 %v414
      %v531 = vpop.f32.mrb[0].mxu0
      %v532 = vadd.f32 %v381, %v531
      %v533 = vpop.f32.mrb[0].mxu0
      %v534 = vpop.f32.mrb[0].mxu0
      %v535 = vadd.f32 %v381, %v534
      %v536 = vpop.f32.mrb[0].mxu0
      %537 = vmatprep.mubr.bf16.mxu0 0
      %538 = vmatmul.mubr.bf16.gmra.mrb[0].mxu0 %v415
      %v539 = vpop.f32.mrb[0].mxu0
      %v540 = vadd.f32 %v381, %v539
      %v541 = vpop.f32.mrb[0].mxu0
      %v542 = vpop.f32.mrb[0].mxu0
      %v543 = vadd.f32 %v381, %v542
      %v544 = vpop.f32.mrb[0].mxu0
      %545 = vmatprep.mubr.bf16.mxu0 0
      %546 = vmatmul.mubr.bf16.gmra.mrb[0].mxu0 %v416
      %v547 = vpop.f32.mrb[0].mxu0
      %v548 = vadd.f32 %v381, %v547
      %v549 = vpop.f32.mrb[0].mxu0
      %v550 = vpop.f32.mrb[0].mxu0
      %v551 = vadd.f32 %v381, %v550
      %v552 = vpop.f32.mrb[0].mxu0
      %553 = vmatprep.mubr.bf16.mxu0 0
      %554 = vmatmul.mubr.bf16.gmra.mrb[0].mxu0 %v417
      %v555 = vpop.f32.mrb[0].mxu0
      %v556 = vadd.f32 %v381, %v555
      %v557 = vpop.f32.mrb[0].mxu0
      %v558 = vpop.f32.mrb[0].mxu0
      %v559 = vadd.f32 %v381, %v558
      %v560 = vpop.f32.mrb[0].mxu0
      %561 = vdwg.mxu0
      %v562 = vmul.f32 %v508, 0.5
      %v563 = vmul.f32 %v511, 0.5
      %v564 = vmul.f32 %v516, 0.5
      %v565 = vmul.f32 %v519, 0.5
      %v566 = vmul.f32 %v524, 0.5
      %v567 = vmul.f32 %v527, 0.5
      %v568 = vmul.f32 %v532, 0.5
      %v569 = vmul.f32 %v535, 0.5
      %v570 = vmul.f32 %v540, 0.5
      %v571 = vmul.f32 %v543, 0.5
      %v572 = vmul.f32 %v548, 0.5
      %v573 = vmul.f32 %v551, 0.5
      %v574 = vmul.f32 %v556, 0.5
      %v575 = vmul.f32 %v559, 0.5
      %v576 = vmul.f32 %v508, 0.044715
      %v577 = vmul.f32 %v511, 0.044715
      %v578 = vmul.f32 %v516, 0.044715
      %v579 = vmul.f32 %v519, 0.044715
      %v580 = vmul.f32 %v524, 0.044715
      %v581 = vmul.f32 %v527, 0.044715
      %v582 = vmul.f32 %v532, 0.044715
      %v583 = vmul.f32 %v535, 0.044715
      %v584 = vmul.f32 %v540, 0.044715
      %v585 = vmul.f32 %v543, 0.044715
      %v586 = vmul.f32 %v548, 0.044715
      %v587 = vmul.f32 %v551, 0.044715
      %v588 = vmul.f32 %v556, 0.044715
      %v589 = vmul.f32 %v559, 0.044715
      %v590 = vmul.f32 %v576, %v508
      %v591 = vmul.f32 %v577, %v511
      %v592 = vmul.f32 %v578, %v516
      %v593 = vmul.f32 %v579, %v519
      %v594 = vmul.f32 %v580, %v524
      %v595 = vmul.f32 %v581, %v527
      %v596 = vmul.f32 %v582, %v532
      %v597 = vmul.f32 %v583, %v535
      %v598 = vmul.f32 %v584, %v540
      %v599 = vmul.f32 %v585, %v543
      %v600 = vmul.f32 %v586, %v548
      %v601 = vmul.f32 %v587, %v551
      %v602 = vmul.f32 %v588, %v556
      %v603 = vmul.f32 %v589, %v559
      %v604 = vmul.f32 %v590, %v508
      %v605 = vmul.f32 %v591, %v511
      %v606 = vmul.f32 %v592, %v516
      %v607 = vmul.f32 %v593, %v519
      %v608 = vmul.f32 %v594, %v524
      %v609 = vmul.f32 %v595, %v527
      %v610 = vmul.f32 %v596, %v532
      %v611 = vmul.f32 %v597, %v535
      %v612 = vmul.f32 %v598, %v540
      %v613 = vmul.f32 %v599, %v543
      %v614 = vmul.f32 %v600, %v548
      %v615 = vmul.f32 %v601, %v551
      %v616 = vmul.f32 %v602, %v556
      %v617 = vmul.f32 %v603, %v559
      %v618 = vadd.f32 %v508, %v604
      %v619 = vadd.f32 %v511, %v605
      %v620 = vadd.f32 %v516, %v606
      %v621 = vadd.f32 %v519, %v607
      %v622 = vadd.f32 %v524, %v608
      %v623 = vadd.f32 %v527, %v609
      %v624 = vadd.f32 %v532, %v610
      %v625 = vadd.f32 %v535, %v611
      %v626 = vadd.f32 %v540, %v612
      %v627 = vadd.f32 %v543, %v613
      %v628 = vadd.f32 %v548, %v614
      %v629 = vadd.f32 %v551, %v615
      %v630 = vadd.f32 %v556, %v616
      %v631 = vadd.f32 %v559, %v617
      %v632 = vmul.f32 %v618, 0.7978846
      %v633 = vmul.f32 %v619, 0.7978846
      %v634 = vmul.f32 %v620, 0.7978846
      %v635 = vmul.f32 %v621, 0.7978846
      %v636 = vmul.f32 %v622, 0.7978846
      %v637 = vmul.f32 %v623, 0.7978846
      %v638 = vmul.f32 %v624, 0.7978846
      %v639 = vmul.f32 %v625, 0.7978846
      %v640 = vmul.f32 %v626, 0.7978846
      %v641 = vmul.f32 %v627, 0.7978846
      %v642 = vmul.f32 %v628, 0.7978846
      %v643 = vmul.f32 %v629, 0.7978846
      %v644 = vmul.f32 %v630, 0.7978846
      %v645 = vmul.f32 %v631, 0.7978846
      %v646 = vtanh.pop %v632
      %v647 = vtanh.pop %v633
      %v648 = vtanh.pop %v634
      %v649 = vtanh.pop %v635
      %v650 = vtanh.pop %v636
      %v651 = vtanh.pop %v637
      %v652 = vtanh.pop %v638
      %v653 = vtanh.pop %v639
      %v654 = vtanh.pop %v640
      %v655 = vtanh.pop %v641
      %v656 = vtanh.pop %v642
      %v657 = vtanh.pop %v643
      %v658 = vtanh.pop %v644
      %v659 = vtanh.pop %v645
      %v660 = vadd.f32 %v646, 1.0
      %v661 = vadd.f32 %v647, 1.0
      %v662 = vadd.f32 %v648, 1.0
      %v663 = vadd.f32 %v649, 1.0
      %v664 = vadd.f32 %v650, 1.0
      %v665 = vadd.f32 %v651, 1.0
      %v666 = vadd.f32 %v652, 1.0
      %v667 = vadd.f32 %v653, 1.0
      %v668 = vadd.f32 %v654, 1.0
      %v669 = vadd.f32 %v655, 1.0
      %v670 = vadd.f32 %v656, 1.0
      %v671 = vadd.f32 %v657, 1.0
      %v672 = vadd.f32 %v658, 1.0
      %v673 = vadd.f32 %v659, 1.0
      %v674 = vmul.f32 %v562, %v660
      %v675 = vmul.f32 %v563, %v661
      %v676 = vmul.f32 %v564, %v662
      %v677 = vmul.f32 %v565, %v663
      %v678 = vmul.f32 %v566, %v664
      %v679 = vmul.f32 %v567, %v665
      %v680 = vmul.f32 %v568, %v666
      %v681 = vmul.f32 %v569, %v667
      %v682 = vmul.f32 %v570, %v668
      %v683 = vmul.f32 %v571, %v669
      %v684 = vmul.f32 %v572, %v670
      %v685 = vmul.f32 %v573, %v671
      %v686 = vmul.f32 %v574, %v672
      %v687 = vmul.f32 %v575, %v673
      %v688 = vpack.c.bf16 %v675, %v674
      %v689 = vpack.c.bf16 %v677, %v676
      %v690 = vpack.c.bf16 %v679, %v678
      %v691 = vpack.c.bf16 %v681, %v680
      %v692 = vpack.c.bf16 %v683, %v682
      %v693 = vpack.c.bf16 %v685, %v684
      %v694 = vpack.c.bf16 %v687, %v686
      %v695 = vld [vmem:[%s4] sm:$0xf]
      %v696 = vld [vmem:[%s4 + $0x4] sm:$0xf]
      %v697 = vld [vmem:[%s4 + $0x8] sm:$0xf]
      %v698 = vld [vmem:[%s4 + $0xc] sm:$0xf]
      %v699 = vld [vmem:[%s4 + $0x10] sm:$0xf]
      %v700 = vld [vmem:[%s4 + $0x14] sm:$0xf]
      %v701 = vld [vmem:[%s4 + $0x18] sm:$0xf]
      %v702 = vld [vmem:[%s4 + $0x1c] sm:$0xf]
      %v703 = vld [vmem:[%s4 + $0x20] sm:$0xf]
      %v704 = vld [vmem:[%s4 + $0x24] sm:$0xf]
      %v705 = vld [vmem:[%s4 + $0x28] sm:$0xf]
      %v706 = vld [vmem:[%s4 + $0x2c] sm:$0xf]
      %v707 = vld [vmem:[%s4 + $0x30] sm:$0xf]
      %v708 = vld [vmem:[%s4 + $0x34] sm:$0xf]
      %v709 = vld [vmem:[%s4 + $0x38] sm:$0xf]
      %v710 = vld [vmem:[%s4 + $0x3c] sm:$0xf]
      %v711 = vld [vmem:[%s5] sm:$0x1]
      %v713 = vlaneseq
      %v714 = vshrl.u32 %v713, 7
      %v715 = vsub.s32 0, %v714
      %v716 = vrot.slane %v711, %v715
      %v734 = vunpack.c.l.b16 %v695
      %v735 = vunpack.c.l.b16 %v696
      %v736 = vunpack.c.l.b16 %v697
      %v737 = vunpack.c.l.b16 %v698
      %v738 = vunpack.c.l.b16 %v699
      %v739 = vunpack.c.l.b16 %v700
      %v740 = vunpack.c.l.b16 %v701
      %v741 = vunpack.c.l.b16 %v702
      %v742 = vunpack.c.l.b16 %v703
      %v743 = vunpack.c.l.b16 %v704
      %v744 = vunpack.c.l.b16 %v705
      %v745 = vunpack.c.l.b16 %v706
      %v746 = vunpack.c.l.b16 %v707
      %v747 = vunpack.c.l.b16 %v708
      %v748 = vunpack.c.l.b16 %v709
      %v749 = vunpack.c.l.b16 %v710
      %v750 = vpack.c.b16 %v735, %v734
      %v751 = vpack.c.b16 %v737, %v736
      %v752 = vpack.c.b16 %v739, %v738
      %v753 = vpack.c.b16 %v741, %v740
      %v754 = vpack.c.b16 %v743, %v742
      %v755 = vpack.c.b16 %v745, %v744
      %v756 = vpack.c.b16 %v747, %v746
      %v757 = vpack.c.b16 %v749, %v748
      %766 = vmatprep.subr.bf16.mxu0 0
      %767 = vmatpush1.bf16.msra.mxu0 %v750
      %768 = vmatprep.subr.bf16.mxu0 0
      %769 = vmatpush1.bf16.msra.mxu0 %v751
      %770 = vmatprep.subr.bf16.mxu0 0
      %771 = vmatpush1.bf16.msra.mxu0 %v752
      %772 = vmatprep.subr.bf16.mxu0 0
      %773 = vmatpush1.bf16.msra.mxu0 %v753
      %774 = vmatprep.subr.bf16.mxu0 0
      %775 = vmatpush1.bf16.msra.mxu0 %v754
      %776 = vmatprep.subr.bf16.mxu0 0
      %777 = vmatpush1.bf16.msra.mxu0 %v755
      %778 = vmatprep.subr.bf16.mxu0 0
      %779 = vmatpush1.bf16.msra.mxu0 %v756
      %780 = vmatprep.subr.bf16.mxu0 0
      %781 = vmatpush1.bf16.msra.mxu0 %v757
      %782 = vmatprep.subr.bf16.mxu0 0
      %783 = vmatpush1.bf16.msra.mxu0 0
      %784 = vmatprep.subr.bf16.mxu0 0
      %785 = vmatpush1.bf16.msra.mxu0 0
      %786 = vmatprep.subr.bf16.mxu0 0
      %787 = vmatpush1.bf16.msra.mxu0 0
      %788 = vmatprep.subr.bf16.mxu0 0
      %789 = vmatpush1.bf16.msra.mxu0 0
      %790 = vmatprep.subr.bf16.mxu0 0
      %791 = vmatpush1.bf16.msra.mxu0 0
      %792 = vmatprep.subr.bf16.mxu0 0
      %793 = vmatpush1.bf16.msra.mxu0 0
      %794 = vmatprep.subr.bf16.mxu0 0
      %795 = vmatpush1.bf16.msra.mxu0 0
      %796 = vmatprep.subr.bf16.mxu0 0
      %797 = vmatpush1.bf16.msra.mxu0 0
      %798 = vmatprep.mubr.bf16.mxu0 0
      %799 = vmatmul.mubr.bf16.gmra.mrb[0].mxu0 %v688
      %v800 = vpop.f32.mrb[0].mxu0
      %v801 = vadd.f32 %v716, %v800
      %v802 = vpop.f32.mrb[0].mxu0
      %v803 = vpop.f32.mrb[0].mxu0
      %v804 = vadd.f32 %v716, %v803
      %v805 = vpop.f32.mrb[0].mxu0
      %806 = vmatprep.mubr.bf16.mxu0 0
      %807 = vmatmul.mubr.bf16.gmra.mrb[0].mxu0 %v689
      %v808 = vpop.f32.mrb[0].mxu0
      %v809 = vadd.f32 %v716, %v808
      %v810 = vpop.f32.mrb[0].mxu0
      %v811 = vpop.f32.mrb[0].mxu0
      %v812 = vadd.f32 %v716, %v811
      %v813 = vpop.f32.mrb[0].mxu0
      %814 = vmatprep.mubr.bf16.mxu0 0
      %815 = vmatmul.mubr.bf16.gmra.mrb[0].mxu0 %v690
      %v816 = vpop.f32.mrb[0].mxu0
      %v817 = vadd.f32 %v716, %v816
      %v818 = vpop.f32.mrb[0].mxu0
      %v819 = vpop.f32.mrb[0].mxu0
      %v820 = vadd.f32 %v716, %v819
      %v821 = vpop.f32.mrb[0].mxu0
      %822 = vmatprep.mubr.bf16.mxu0 0
      %823 = vmatmul.mubr.bf16.gmra.mrb[0].mxu0 %v691
      %v824 = vpop.f32.mrb[0].mxu0
      %v825 = vadd.f32 %v716, %v824
      %v826 = vpop.f32.mrb[0].mxu0
      %v827 = vpop.f32.mrb[0].mxu0
      %v828 = vadd.f32 %v716, %v827
      %v829 = vpop.f32.mrb[0].mxu0
      %830 = vmatprep.mubr.bf16.mxu0 0
      %831 = vmatmul.mubr.bf16.gmra.mrb[0].mxu0 %v692
      %v832 = vpop.f32.mrb[0].mxu0
      %v833 = vadd.f32 %v716, %v832
      %v834 = vpop.f32.mrb[0].mxu0
      %v835 = vpop.f32.mrb[0].mxu0
      %v836 = vadd.f32 %v716, %v835
      %v837 = vpop.f32.mrb[0].mxu0
      %838 = vmatprep.mubr.bf16.mxu0 0
      %839 = vmatmul.mubr.bf16.gmra.mrb[0].mxu0 %v693
      %v840 = vpop.f32.mrb[0].mxu0
      %v841 = vadd.f32 %v716, %v840
      %v842 = vpop.f32.mrb[0].mxu0
      %v843 = vpop.f32.mrb[0].mxu0
      %v844 = vadd.f32 %v716, %v843
      %v845 = vpop.f32.mrb[0].mxu0
      %846 = vmatprep.mubr.bf16.mxu0 0
      %847 = vmatmul.mubr.bf16.gmra.mrb[0].mxu0 %v694
      %v848 = vpop.f32.mrb[0].mxu0
      %v849 = vadd.f32 %v716, %v848
      %v850 = vpop.f32.mrb[0].mxu0
      %v851 = vpop.f32.mrb[0].mxu0
      %v852 = vadd.f32 %v716, %v851
      %v853 = vpop.f32.mrb[0].mxu0
      %854 = vdwg.mxu0
      %v855 = vld [vmem:[%s6] sm:$0xf]
      %v856 = vld [vmem:[%s6 + $0x4] sm:$0xf]
      %v857 = vld [vmem:[%s6 + $0x8] sm:$0xf]
      %v858 = vld [vmem:[%s6 + $0xc] sm:$0xf]
      %v859 = vld [vmem:[%s6 + $0x10] sm:$0xf]
      %v860 = vld [vmem:[%s6 + $0x14] sm:$0xf]
      %v861 = vld [vmem:[%s6 + $0x18] sm:$0xf]
      %v862 = vld [vmem:[%s6 + $0x1c] sm:$0xf]
      %v863 = vld [vmem:[%s6 + $0x20] sm:$0xf]
      %v864 = vld [vmem:[%s6 + $0x24] sm:$0xf]
      %v865 = vld [vmem:[%s6 + $0x28] sm:$0xf]
      %v866 = vld [vmem:[%s6 + $0x2c] sm:$0xf]
      %v867 = vld [vmem:[%s6 + $0x30] sm:$0xf]
      %v868 = vld [vmem:[%s6 + $0x34] sm:$0xf]
      %v869 = vld [vmem:[%s6 + $0x38] sm:$0xf]
      %v870 = vld [vmem:[%s6 + $0x3c] sm:$0xf]
      %v885 = vunpack.c.l.b16 %v346
      %v886 = vunpack.c.l.b16 %v347
      %v887 = vunpack.c.l.b16 %v348
      %v888 = vunpack.c.l.b16 %v349
      %v889 = vunpack.c.l.b16 %v350
      %v890 = vunpack.c.l.b16 %v351
      %v891 = vunpack.c.l.b16 %v352
      %v892 = vunpack.c.l.b16 %v353
      %v893 = vunpack.c.l.b16 %v354
      %v894 = vunpack.c.l.b16 %v355
      %v895 = vunpack.c.l.b16 %v356
      %v896 = vunpack.c.l.b16 %v357
      %v897 = vunpack.c.l.b16 %v358
      %v898 = vunpack.c.l.b16 %v359
      %v899 = vpack.c.b16 %v886, %v885
      %v900 = vpack.c.b16 %v888, %v887
      %v901 = vpack.c.b16 %v890, %v889
      %v902 = vpack.c.b16 %v892, %v891
      %v903 = vpack.c.b16 %v894, %v893
      %v904 = vpack.c.b16 %v896, %v895
      %v905 = vpack.c.b16 %v898, %v897
      %v929 = vunpack.c.l.b16 %v855
      %v930 = vunpack.c.l.b16 %v856
      %v931 = vunpack.c.l.b16 %v857
      %v932 = vunpack.c.l.b16 %v858
      %v933 = vunpack.c.l.b16 %v859
      %v934 = vunpack.c.l.b16 %v860
      %v935 = vunpack.c.l.b16 %v861
      %v936 = vunpack.c.l.b16 %v862
      %v937 = vunpack.c.l.b16 %v863
      %v938 = vunpack.c.l.b16 %v864
      %v939 = vunpack.c.l.b16 %v865
      %v940 = vunpack.c.l.b16 %v866
      %v941 = vunpack.c.l.b16 %v867
      %v942 = vunpack.c.l.b16 %v868
      %v943 = vunpack.c.l.b16 %v869
      %v944 = vunpack.c.l.b16 %v870
      %v945 = vpack.c.b16 %v930, %v929
      %v946 = vpack.c.b16 %v932, %v931
      %v947 = vpack.c.b16 %v934, %v933
      %v948 = vpack.c.b16 %v936, %v935
      %v949 = vpack.c.b16 %v938, %v937
      %v950 = vpack.c.b16 %v940, %v939
      %v951 = vpack.c.b16 %v942, %v941
      %v952 = vpack.c.b16 %v944, %v943
      %961 = vmatprep.subr.bf16.mxu0 0
      %962 = vmatpush1.bf16.msra.mxu0 %v945
      %963 = vmatprep.subr.bf16.mxu0 0
      %964 = vmatpush1.bf16.msra.mxu0 %v946
      %965 = vmatprep.subr.bf16.mxu0 0
      %966 = vmatpush1.bf16.msra.mxu0 %v947
      %967 = vmatprep.subr.bf16.mxu0 0
      %968 = vmatpush1.bf16.msra.mxu0 %v948
      %969 = vmatprep.subr.bf16.mxu0 0
      %970 = vmatpush1.bf16.msra.mxu0 %v949
      %971 = vmatprep.subr.bf16.mxu0 0
      %972 = vmatpush1.bf16.msra.mxu0 %v950
      %973 = vmatprep.subr.bf16.mxu0 0
      %974 = vmatpush1.bf16.msra.mxu0 %v951
      %975 = vmatprep.subr.bf16.mxu0 0
      %976 = vmatpush1.bf16.msra.mxu0 %v952
      %977 = vmatprep.subr.bf16.mxu0 0
      %978 = vmatpush1.bf16.msra.mxu0 0
      %979 = vmatprep.subr.bf16.mxu0 0
      %980 = vmatpush1.bf16.msra.mxu0 0
      %981 = vmatprep.subr.bf16.mxu0 0
      %982 = vmatpush1.bf16.msra.mxu0 0
      %983 = vmatprep.subr.bf16.mxu0 0
      %984 = vmatpush1.bf16.msra.mxu0 0
      %985 = vmatprep.subr.bf16.mxu0 0
      %986 = vmatpush1.bf16.msra.mxu0 0
      %987 = vmatprep.subr.bf16.mxu0 0
      %988 = vmatpush1.bf16.msra.mxu0 0
      %989 = vmatprep.subr.bf16.mxu0 0
      %990 = vmatpush1.bf16.msra.mxu0 0
      %991 = vmatprep.subr.bf16.mxu0 0
      %992 = vmatpush1.bf16.msra.mxu0 0
      %993 = vmatprep.mubr.bf16.mxu0 0
      %994 = vmatmul.mubr.bf16.gmra.mrb[0].mxu0 %v899
      %v995 = vpop.f32.mrb[0].mxu0
      %v996 = vadd.f32 0.0, %v995
      %v997 = vpop.f32.mrb[0].mxu0
      %v998 = vpop.f32.mrb[0].mxu0
      %v999 = vadd.f32 0.0, %v998
      %v1000 = vpop.f32.mrb[0].mxu0
      %1001 = vmatprep.mubr.bf16.mxu0 0
      %1002 = vmatmul.mubr.bf16.gmra.mrb[0].mxu0 %v900
      %v1003 = vpop.f32.mrb[0].mxu0
      %v1004 = vadd.f32 0.0, %v1003
      %v1005 = vpop.f32.mrb[0].mxu0
      %v1006 = vpop.f32.mrb[0].mxu0
      %v1007 = vadd.f32 0.0, %v1006
      %v1008 = vpop.f32.mrb[0].mxu0
      %1009 = vmatprep.mubr.bf16.mxu0 0
      %1010 = vmatmul.mubr.bf16.gmra.mrb[0].mxu0 %v901
      %v1011 = vpop.f32.mrb[0].mxu0
      %v1012 = vadd.f32 0.0, %v1011
      %v1013 = vpop.f32.mrb[0].mxu0
      %v1014 = vpop.f32.mrb[0].mxu0
      %v1015 = vadd.f32 0.0, %v1014
      %v1016 = vpop.f32.mrb[0].mxu0
      %1017 = vmatprep.mubr.bf16.mxu0 0
      %1018 = vmatmul.mubr.bf16.gmra.mrb[0].mxu0 %v902
      %v1019 = vpop.f32.mrb[0].mxu0
      %v1020 = vadd.f32 0.0, %v1019
      %v1021 = vpop.f32.mrb[0].mxu0
      %v1022 = vpop.f32.mrb[0].mxu0
      %v1023 = vadd.f32 0.0, %v1022
      %v1024 = vpop.f32.mrb[0].mxu0
      %1025 = vmatprep.mubr.bf16.mxu0 0
      %1026 = vmatmul.mubr.bf16.gmra.mrb[0].mxu0 %v903
      %v1027 = vpop.f32.mrb[0].mxu0
      %v1028 = vadd.f32 0.0, %v1027
      %v1029 = vpop.f32.mrb[0].mxu0
      %v1030 = vpop.f32.mrb[0].mxu0
      %v1031 = vadd.f32 0.0, %v1030
      %v1032 = vpop.f32.mrb[0].mxu0
      %1033 = vmatprep.mubr.bf16.mxu0 0
      %1034 = vmatmul.mubr.bf16.gmra.mrb[0].mxu0 %v904
      %v1035 = vpop.f32.mrb[0].mxu0
      %v1036 = vadd.f32 0.0, %v1035
      %v1037 = vpop.f32.mrb[0].mxu0
      %v1038 = vpop.f32.mrb[0].mxu0
      %v1039 = vadd.f32 0.0, %v1038
      %v1040 = vpop.f32.mrb[0].mxu0
      %1041 = vmatprep.mubr.bf16.mxu0 0
      %1042 = vmatmul.mubr.bf16.gmra.mrb[0].mxu0 %v905
      %v1043 = vpop.f32.mrb[0].mxu0
      %v1044 = vadd.f32 0.0, %v1043
      %v1045 = vpop.f32.mrb[0].mxu0
      %v1046 = vpop.f32.mrb[0].mxu0
      %v1047 = vadd.f32 0.0, %v1046
      %v1048 = vpop.f32.mrb[0].mxu0
      %1049 = vdwg.mxu0
      %v1050 = vadd.f32 %v801, %v996
      %v1051 = vadd.f32 %v804, %v999
      %v1052 = vadd.f32 %v809, %v1004
      %v1053 = vadd.f32 %v812, %v1007
      %v1054 = vadd.f32 %v817, %v1012
      %v1055 = vadd.f32 %v820, %v1015
      %v1056 = vadd.f32 %v825, %v1020
      %v1057 = vadd.f32 %v828, %v1023
      %v1058 = vadd.f32 %v833, %v1028
      %v1059 = vadd.f32 %v836, %v1031
      %v1060 = vadd.f32 %v841, %v1036
      %v1061 = vadd.f32 %v844, %v1039
      %v1062 = vadd.f32 %v849, %v1044
      %v1063 = vadd.f32 %v852, %v1047
      %v1064 = vld [vmem:[%s7] sm:$0x1]
      %v1066 = vlaneseq
      %v1067 = vshrl.u32 %v1066, 7
      %v1068 = vsub.s32 0, %v1067
      %v1069 = vrot.slane %v1064, %v1068
      %v1071 = vadd.f32 %v1050, %v1069
      %v1072 = vadd.f32 %v1051, %v1069
      %v1073 = vadd.f32 %v1052, %v1069
      %v1074 = vadd.f32 %v1053, %v1069
      %v1075 = vadd.f32 %v1054, %v1069
      %v1076 = vadd.f32 %v1055, %v1069
      %v1077 = vadd.f32 %v1056, %v1069
      %v1078 = vadd.f32 %v1057, %v1069
      %v1079 = vadd.f32 %v1058, %v1069
      %v1080 = vadd.f32 %v1059, %v1069
      %v1081 = vadd.f32 %v1060, %v1069
      %v1082 = vadd.f32 %v1061, %v1069
      %v1083 = vadd.f32 %v1062, %v1069
      %v1084 = vadd.f32 %v1063, %v1069
      %v1085 = vsub.f32 0.0, %v1071
      %v1086 = vsub.f32 0.0, %v1072
      %v1087 = vsub.f32 0.0, %v1073
      %v1088 = vsub.f32 0.0, %v1074
      %v1089 = vsub.f32 0.0, %v1075
      %v1090 = vsub.f32 0.0, %v1076
      %v1091 = vsub.f32 0.0, %v1077
      %v1092 = vsub.f32 0.0, %v1078
      %v1093 = vsub.f32 0.0, %v1079
      %v1094 = vsub.f32 0.0, %v1080
      %v1095 = vsub.f32 0.0, %v1081
      %v1096 = vsub.f32 0.0, %v1082
      %v1097 = vsub.f32 0.0, %v1083
      %v1098 = vsub.f32 0.0, %v1084
      %v1099 = vmul.f32 %v1085, 1.442695
      %v1100 = vpow.pop %v1099
      %v1101 = vmul.f32 %v1086, 1.442695
      %v1102 = vpow.pop %v1101
      %v1103 = vmul.f32 %v1087, 1.442695
      %v1104 = vpow.pop %v1103
      %v1105 = vmul.f32 %v1088, 1.442695
      %v1106 = vpow.pop %v1105
      %v1107 = vmul.f32 %v1089, 1.442695
      %v1108 = vpow.pop %v1107
      %v1109 = vmul.f32 %v1090, 1.442695
      %v1110 = vpow.pop %v1109
      %v1111 = vmul.f32 %v1091, 1.442695
      %v1112 = vpow.pop %v1111
      %v1113 = vmul.f32 %v1092, 1.442695
      %v1114 = vpow.pop %v1113
      %v1115 = vmul.f32 %v1093, 1.442695
      %v1116 = vpow.pop %v1115
      %v1117 = vmul.f32 %v1094, 1.442695
      %v1118 = vpow.pop %v1117
      %v1119 = vmul.f32 %v1095, 1.442695
      %v1120 = vpow.pop %v1119
      %v1121 = vmul.f32 %v1096, 1.442695
      %v1122 = vpow.pop %v1121
      %v1123 = vmul.f32 %v1097, 1.442695
      %v1124 = vpow.pop %v1123
      %v1125 = vmul.f32 %v1098, 1.442695
      %v1126 = vpow.pop %v1125
      %v1127 = vadd.f32 %v1100, 1.0
      %v1128 = vadd.f32 %v1102, 1.0
      %v1129 = vadd.f32 %v1104, 1.0
      %v1130 = vadd.f32 %v1106, 1.0
      %v1131 = vadd.f32 %v1108, 1.0
      %v1132 = vadd.f32 %v1110, 1.0
      %v1133 = vadd.f32 %v1112, 1.0
      %v1134 = vadd.f32 %v1114, 1.0
      %v1135 = vadd.f32 %v1116, 1.0
      %v1136 = vadd.f32 %v1118, 1.0
      %v1137 = vadd.f32 %v1120, 1.0
      %v1138 = vadd.f32 %v1122, 1.0
      %v1139 = vadd.f32 %v1124, 1.0
      %v1140 = vadd.f32 %v1126, 1.0
      %v1141 = vrcp.pop %v1127
      %v1142 = vrcp.pop %v1128
      %v1143 = vrcp.pop %v1129
      %v1144 = vrcp.pop %v1130
      %v1145 = vrcp.pop %v1131
      %v1146 = vrcp.pop %v1132
      %v1147 = vrcp.pop %v1133
      %v1148 = vrcp.pop %v1134
      %v1149 = vrcp.pop %v1135
      %v1150 = vrcp.pop %v1136
      %v1151 = vrcp.pop %v1137
      %v1152 = vrcp.pop %v1138
      %v1153 = vrcp.pop %v1139
      %v1154 = vrcp.pop %v1140
      %v1155 = vpack.c.bf16 %v1142, %v1141
      %v1156 = vpack.c.bf16 %v1144, %v1143
      %v1157 = vpack.c.bf16 %v1146, %v1145
      %v1158 = vpack.c.bf16 %v1148, %v1147
      %v1159 = vpack.c.bf16 %v1150, %v1149
      %v1160 = vpack.c.bf16 %v1152, %v1151
      %v1161 = vpack.c.bf16 %v1154, %v1153
      %v1169 = vunpack.c.l.b16 %v1155
      %v1170 = vunpack.c.h.b16 %v1155
      %v1171 = vunpack.c.l.b16 %v1156
      %v1172 = vunpack.c.h.b16 %v1156
      %v1173 = vunpack.c.l.b16 %v1157
      %v1174 = vunpack.c.h.b16 %v1157
      %v1175 = vunpack.c.l.b16 %v1158
      %v1176 = vunpack.c.h.b16 %v1158
      %v1177 = vunpack.c.l.b16 %v1159
      %v1178 = vunpack.c.h.b16 %v1159
      %v1179 = vunpack.c.l.b16 %v1160
      %v1180 = vunpack.c.h.b16 %v1160
      %v1181 = vunpack.c.l.b16 %v1161
      %v1182 = vunpack.c.h.b16 %v1161
      %v1183 = vpack.c.b16 %v1169, %v1169
      %v1184 = vpack.c.b16 %v1170, %v1170
      %v1185 = vpack.c.b16 %v1171, %v1171
      %v1186 = vpack.c.b16 %v1172, %v1172
      %v1187 = vpack.c.b16 %v1173, %v1173
      %v1188 = vpack.c.b16 %v1174, %v1174
      %v1189 = vpack.c.b16 %v1175, %v1175
      %v1190 = vpack.c.b16 %v1176, %v1176
      %v1191 = vpack.c.b16 %v1177, %v1177
      %v1192 = vpack.c.b16 %v1178, %v1178
      %v1193 = vpack.c.b16 %v1179, %v1179
      %v1194 = vpack.c.b16 %v1180, %v1180
      %v1195 = vpack.c.b16 %v1181, %v1181
      %v1196 = vpack.c.b16 %v1182, %v1182
      %1211 = vst [vmem:[%s329] sm:$0xf] %v1183
      %1212 = vst [vmem:[%s329 + $0x4] sm:$0xf] %v1184
      %1213 = vst [vmem:[%s329 + $0x8] sm:$0xf] %v1185
      %1214 = vst [vmem:[%s329 + $0xc] sm:$0xf] %v1186
      %1215 = vst [vmem:[%s329 + $0x10] sm:$0xf] %v1187
      %1216 = vst [vmem:[%s329 + $0x14] sm:$0xf] %v1188
      %1217 = vst [vmem:[%s329 + $0x18] sm:$0xf] %v1189
      %1218 = vst [vmem:[%s329 + $0x1c] sm:$0xf] %v1190
      %1219 = vst [vmem:[%s329 + $0x20] sm:$0xf] %v1191
      %1220 = vst [vmem:[%s329 + $0x24] sm:$0xf] %v1192
      %1221 = vst [vmem:[%s329 + $0x28] sm:$0xf] %v1193
      %1222 = vst [vmem:[%s329 + $0x2c] sm:$0xf] %v1194
      %1223 = vst [vmem:[%s329 + $0x30] sm:$0xf] %v1195
      %1224 = vst [vmem:[%s329 + $0x34] sm:$0xf] %v1196
      %s1225 = smul.u32 14, %s19
      %p1226 = scmp.lt.s32.totalorder %s1225, 27
      %s1227 = scalar_select %p1226, %s1225, 27
      %s1228 = smul.addr %s1227, 4
      %s1229 = scalar_lea.vmem %s8, %s1228
      // Predicated region
      $region53: #{fno3d_forward.14} parent=51 // pred_check
        %p1230 = pneg %p215
      $region54: #{fno3d_forward.14} parent=51 // pred_check_branch
        %1232 = sbr.rel (%p1230) target = $region56
      $region55: #{fno3d_forward.14} parent=51 // pred_region
        %s1233 = smul.u32 14, %s19
      $region56: #{fno3d_forward.14} parent=51 // pred_fallthru
        _
    $region52: #{fno3d_forward.14} parent=5 // pred_fallthru
      _
    %p1234 = scmp.le.s32.totalorder 2, %s14
    // Predicated region
    $region57: #{fno3d_forward.14} parent=5 // pred_check
      %p1235 = pneg %p1234
    $region58: #{fno3d_forward.14} parent=5 // pred_check_branch
      %1237 = sbr.rel (%p1235) target = $region60
    $region59: #{fno3d_forward.14} parent=5 // pred_region
      %s1238 = ssub.s32 %s14, 2
      // Predicated region
      $region61: #{fno3d_forward.14} parent=59 // pred_check
        %p1239 = pneg %p221
      $region62: #{fno3d_forward.14} parent=59 // pred_check_branch
        %1241 = sbr.rel (%p1239) target = $region64
      $region63: #{fno3d_forward.14} parent=59 // pred_region
        %s1242 = smul.u32 14, %s20
        %p1243 = scmp.lt.s32.totalorder %s1242, 27
        %s1244 = scalar_select %p1243, %s1242, 27
        %s1245 = smul.addr %s1244, 4
        %s1246 = scalar_lea.vmem %s8, %s1245
      $region64: #{fno3d_forward.14} parent=59 // pred_fallthru
        _
    $region60: #{fno3d_forward.14} parent=5 // pred_fallthru
      _
  $region6: #{fno3d_forward.14} parent=0 // loop_footer
    %s18 = sadd.s32 1, %s14
  $region7: #{fno3d_forward.14} parent=0 // loop_footer_branch
    %13 = sbr.rel target = $region3
  $region8: #{fno3d_forward.14} parent=0 // loop_exit
    _

// kernel: fno3d_forward.15
$region0: #{fno3d_forward.15}
  #allocation0 [shape = 'u32[]', space=smem, size = 0x4, offset = 0x4, fixed_abs, tag = 'smem constant byte address 0x4 - core index']
  #allocation1 [shape = 'u32[144,128]{1,0:T(1,128)}', space=vmem, size = 0x12000, scoped, tag = 'internal scratch']
  %s0 = inlined_call_operand.vmem [shape: bf16[128,128], index: 0, kind: input, shape index: {}]
  %s1 = inlined_call_operand.vmem [shape: bf16[128,512], index: 1, kind: input, shape index: {}]
  %s2 = inlined_call_operand.vmem [shape: f32[1,512], index: 2, kind: input, shape index: {}]
  %s3 = inlined_call_operand.vmem [shape: bf16[512,8], index: 3, kind: input, shape index: {}]
  %s4 = inlined_call_operand.vmem [shape: f32[1,8], index: 4, kind: input, shape index: {}]
  %s5 = inlined_call_operand.hbm [shape: f32[128,8], index: 5, kind: output, shape index: {}]
  %s6 = sld [smem:[#allocation0]]
  $region53: #{fno3d_forward.15} parent=0
    _
  %s8 = ssub.s32 1, %s6
  %s9 = scalar_select 0, %s8, %s6
  $region1: #{fno3d_forward.15} parent=0
    #allocation2 [shape = 'u8[65536]{0}', space=vmem, size = 0x10000, scoped, tag = 'output window, operand 0']
    #allocation3 [shape = 's32[2]{0}', space=sflag, size = 0x8, scoped, tag = 'scoped memory for fno3d_forward.15']
    %10 = vsyncpa [#allocation3], 0
    %s11 = scalar_lea.sflag [#allocation3], 1
    %12 = vsyncpa %s11, 0
    loop: start=0, step=1, limit=4
    $region2: #{fno3d_forward.15} parent=1 // loop_pre_header
      _
    $region3: #{fno3d_forward.15} parent=1 // loop_header
      %s14 = sphi 0, %s18
      %p15 = scmp.ge.s32.totalorder %s14, 4
      %s24 = sphi 0, %s26
      %s27 = sphi 0, %s24
      %s28 = sphi 0, %s27
      %s44 = sphi 0, %s28
      %s48 = sphi 0, %s48
      %s50 = sphi 0, %s48
      %s51 = sphi 0, %s50
      %s65 = sphi 0, %s51
      %s69 = sphi 0, %s69
      %s71 = sphi 0, %s69
      %s72 = sphi 0, %s71
      %s86 = sphi 0, %s72
      %s90 = sphi 0, %s90
      %s92 = sphi 0, %s90
      %s93 = sphi 0, %s92
      %s107 = sphi 0, %s93
      %s111 = sphi 0, %s111
      %s113 = sphi 0, %s111
      %s114 = sphi 0, %s113
      %s128 = sphi 0, %s114
      %s134 = sphi 0, %s136
      %s137 = sphi 0, %s134
      %s138 = sphi 0, %s137
      %s154 = sphi 0, %s138
    $region4: #{fno3d_forward.15} parent=1 // loop_header_branch
      %17 = sbr.rel (%p15) target = $region8
    $region5: #{fno3d_forward.15} parent=1 // loop_body
      %s19 = ssub.s32 %s14, 1
      %s20 = ssub.s32 %s14, 2
      %s21 = sadd.s32 %s14, 1
      %s22 = ssub.s32 %s14, %s21
      %p23 = scmp.eq.s32.totalorder %s22, 0
      %s25 = sadd.s32 %s24, 1
      %s26 = scalar_select %p23, %s24, %s25
      %p29 = pneg %p23
      %p30 = scmp.eq.s32.totalorder %s14, 1
      %p31 = por %p29, %p30
      %p32 = scmp.ne.s32.totalorder %s24, %s27
      %p33 = scmp.eq.s32.totalorder %s14, 0
      %p34 = por %p32, %p33
      %p35 = scmp.ne.s32.totalorder %s24, %s27
      %p36 = scmp.eq.s32.totalorder %s19, 1
      %p37 = por %p35, %p36
      %p38 = scmp.ne.s32.totalorder %s27, %s28
      %p39 = scmp.eq.s32.totalorder %s19, 0
      %p40 = por %p38, %p39
      %p41 = scmp.ne.s32.totalorder %s27, %s28
      %p42 = scmp.eq.s32.totalorder %s20, 1
      %p43 = por %p41, %p42
      %p45 = scmp.ne.s32.totalorder %s28, %s44
      %p46 = scmp.eq.s32.totalorder %s20, 0
      %p47 = por %p45, %p46
      %s49 = sadd.s32 %s48, 1
      %p52 = scmp.eq.s32.totalorder %s14, 1
      %p53 = scmp.ne.s32.totalorder %s48, %s50
      %p54 = scmp.eq.s32.totalorder %s14, 0
      %p55 = por %p53, %p54
      %p56 = scmp.ne.s32.totalorder %s48, %s50
      %p57 = scmp.eq.s32.totalorder %s19, 1
      %p58 = por %p56, %p57
      %p59 = scmp.ne.s32.totalorder %s50, %s51
      %p60 = scmp.eq.s32.totalorder %s19, 0
      %p61 = por %p59, %p60
      %p62 = scmp.ne.s32.totalorder %s50, %s51
      %p63 = scmp.eq.s32.totalorder %s20, 1
      %p64 = por %p62, %p63
      %p66 = scmp.ne.s32.totalorder %s51, %s65
      %p67 = scmp.eq.s32.totalorder %s20, 0
      %p68 = por %p66, %p67
      %s70 = sadd.s32 %s69, 1
      %p73 = scmp.eq.s32.totalorder %s14, 1
      %p74 = scmp.ne.s32.totalorder %s69, %s71
      %p75 = scmp.eq.s32.totalorder %s14, 0
      %p76 = por %p74, %p75
      %p77 = scmp.ne.s32.totalorder %s69, %s71
      %p78 = scmp.eq.s32.totalorder %s19, 1
      %p79 = por %p77, %p78
      %p80 = scmp.ne.s32.totalorder %s71, %s72
      %p81 = scmp.eq.s32.totalorder %s19, 0
      %p82 = por %p80, %p81
      %p83 = scmp.ne.s32.totalorder %s71, %s72
      %p84 = scmp.eq.s32.totalorder %s20, 1
      %p85 = por %p83, %p84
      %p87 = scmp.ne.s32.totalorder %s72, %s86
      %p88 = scmp.eq.s32.totalorder %s20, 0
      %p89 = por %p87, %p88
      %s91 = sadd.s32 %s90, 1
      %p94 = scmp.eq.s32.totalorder %s14, 1
      %p95 = scmp.ne.s32.totalorder %s90, %s92
      %p96 = scmp.eq.s32.totalorder %s14, 0
      %p97 = por %p95, %p96
      %p98 = scmp.ne.s32.totalorder %s90, %s92
      %p99 = scmp.eq.s32.totalorder %s19, 1
      %p100 = por %p98, %p99
      %p101 = scmp.ne.s32.totalorder %s92, %s93
      %p102 = scmp.eq.s32.totalorder %s19, 0
      %p103 = por %p101, %p102
      %p104 = scmp.ne.s32.totalorder %s92, %s93
      %p105 = scmp.eq.s32.totalorder %s20, 1
      %p106 = por %p104, %p105
      %p108 = scmp.ne.s32.totalorder %s93, %s107
      %p109 = scmp.eq.s32.totalorder %s20, 0
      %p110 = por %p108, %p109
      %s112 = sadd.s32 %s111, 1
      %p115 = scmp.eq.s32.totalorder %s14, 1
      %p116 = scmp.ne.s32.totalorder %s111, %s113
      %p117 = scmp.eq.s32.totalorder %s14, 0
      %p118 = por %p116, %p117
      %p119 = scmp.ne.s32.totalorder %s111, %s113
      %p120 = scmp.eq.s32.totalorder %s19, 1
      %p121 = por %p119, %p120
      %p122 = scmp.ne.s32.totalorder %s113, %s114
      %p123 = scmp.eq.s32.totalorder %s19, 0
      %p124 = por %p122, %p123
      %p125 = scmp.ne.s32.totalorder %s113, %s114
      %p126 = scmp.eq.s32.totalorder %s20, 1
      %p127 = por %p125, %p126
      %p129 = scmp.ne.s32.totalorder %s114, %s128
      %p130 = scmp.eq.s32.totalorder %s20, 0
      %p131 = por %p129, %p130
      %s132 = ssub.s32 %s14, %s21
      %p133 = scmp.eq.s32.totalorder %s132, 0
      %s135 = sadd.s32 %s134, 1
      %s136 = scalar_select %p133, %s134, %s135
      %p139 = pneg %p133
      %p140 = scmp.eq.s32.totalorder %s14, 1
      %p141 = por %p139, %p140
      %p142 = scmp.ne.s32.totalorder %s134, %s137
      %p143 = scmp.eq.s32.totalorder %s14, 0
      %p144 = por %p142, %p143
      %p145 = scmp.ne.s32.totalorder %s134, %s137
      %p146 = scmp.eq.s32.totalorder %s19, 1
      %p147 = por %p145, %p146
      %p148 = scmp.ne.s32.totalorder %s137, %s138
      %p149 = scmp.eq.s32.totalorder %s19, 0
      %p150 = por %p148, %p149
      %p151 = scmp.ne.s32.totalorder %s137, %s138
      %p152 = scmp.eq.s32.totalorder %s20, 1
      %p153 = por %p151, %p152
      %p155 = scmp.ne.s32.totalorder %s138, %s154
      %p156 = scmp.eq.s32.totalorder %s20, 0
      %p157 = por %p155, %p156
      %p158 = scmp.le.s32.totalorder 1, %s14
      %p159 = scmp.lt.s32.totalorder %s14, 3
      %p160 = pnand %p158, %p159
      %p161 = pneg %p160
      // Predicated region
      $region9: #{fno3d_forward.15} parent=5 // pred_check
        _
      $region10: #{fno3d_forward.15} parent=5 // pred_check_branch
        %163 = sbr.rel (%p160) target = $region12
      $region11: #{fno3d_forward.15} parent=5 // pred_region
        %s164 = ssub.s32 %s14, 1
        // Predicated region
        $region13: #{fno3d_forward.15} parent=11 // pred_check
          %p165 = pneg %p61
        $region14: #{fno3d_forward.15} parent=11 // pred_check_branch
          %167 = sbr.rel (%p165) target = $region16
        $region15: #{fno3d_forward.15} parent=11 // pred_region
          _
        $region16: #{fno3d_forward.15} parent=11 // pred_fallthru
          _
        // Predicated region
        $region17: #{fno3d_forward.15} parent=11 // pred_check
          %p168 = pneg %p82
        $region18: #{fno3d_forward.15} parent=11 // pred_check_branch
          %170 = sbr.rel (%p168) target = $region20
        $region19: #{fno3d_forward.15} parent=11 // pred_region
          _
        $region20: #{fno3d_forward.15} parent=11 // pred_fallthru
          _
        // Predicated region
        $region21: #{fno3d_forward.15} parent=11 // pred_check
          %p171 = pneg %p103
        $region22: #{fno3d_forward.15} parent=11 // pred_check_branch
          %173 = sbr.rel (%p171) target = $region24
        $region23: #{fno3d_forward.15} parent=11 // pred_region
          _
        $region24: #{fno3d_forward.15} parent=11 // pred_fallthru
          _
        // Predicated region
        $region25: #{fno3d_forward.15} parent=11 // pred_check
          %p174 = pneg %p124
        $region26: #{fno3d_forward.15} parent=11 // pred_check_branch
          %176 = sbr.rel (%p174) target = $region28
        $region27: #{fno3d_forward.15} parent=11 // pred_region
          _
        $region28: #{fno3d_forward.15} parent=11 // pred_fallthru
          _
      $region12: #{fno3d_forward.15} parent=5 // pred_fallthru
        _
      %p177 = scmp.lt.s32.totalorder %s14, 2
      // Predicated region
      $region29: #{fno3d_forward.15} parent=5 // pred_check
        %p178 = pneg %p177
      $region30: #{fno3d_forward.15} parent=5 // pred_check_branch
        %180 = sbr.rel (%p178) target = $region32
      $region31: #{fno3d_forward.15} parent=5 // pred_region
        // Predicated region
        $region33: #{fno3d_forward.15} parent=31 // pred_check
          %p181 = pneg %p34
        $region34: #{fno3d_forward.15} parent=31 // pred_check_branch
          %183 = sbr.rel (%p181) target = $region36
        $region35: #{fno3d_forward.15} parent=31 // pred_region
          %s184 = smul.u32 8, %s14
          %p185 = scmp.lt.s32.totalorder %s184, 15
          %s186 = scalar_select %p185, %s184, 15
          %s187 = smul.addr %s186, 4
          %s188 = scalar_lea.vmem %s0, %s187
          %s189 = smul.u32 8, %s14
        $region36: #{fno3d_forward.15} parent=31 // pred_fallthru
          _
      $region32: #{fno3d_forward.15} parent=5 // pred_fallthru
        _
      %p190 = scmp.le.s32.totalorder 1, %s14
      %p191 = scmp.lt.s32.totalorder %s14, 3
      %p192 = pnand %p190, %p191
      %p193 = pneg %p192
      // Predicated region
      $region37: #{fno3d_forward.15} parent=5 // pred_check
        _
      $region38: #{fno3d_forward.15} parent=5 // pred_check_branch
        %195 = sbr.rel (%p192) target = $region40
      $region39: #{fno3d_forward.15} parent=5 // pred_region
        %s196 = ssub.s32 %s14, 1
        %s197 = smul.u32 8, %s19
        %p198 = scmp.lt.s32.totalorder %s197, 15
        %s199 = scalar_select %p198, %s197, 15
        %s200 = smul.addr %s199, 4
        %s201 = scalar_lea.vmem %s0, %s200
        %p202 = pneg %p40
        %p203 = pneg %p37
        %p204 = pneg %p61
        %p205 = pneg %p58
        %p206 = pneg %p82
        %p207 = pneg %p79
        %p208 = pneg %p103
        %p209 = pneg %p100
        %p210 = pneg %p124
        %p211 = pneg %p121
        %p212 = pneg %p150
        %p213 = pneg %p147
        %s214 = sand.u32 %s137, 1
        %s215 = scalar_lea.sflag [#allocation3], %s214
        %s216 = sand.u32 %s137, 1
        %s217 = smul.addr %s216, 64
        %s218 = scalar_lea.vmem [#allocation2], %s217
        %s219 = smul.u32 8, %s19
        %p220 = scmp.lt.s32.totalorder %s219, 15
        %s221 = scalar_select %p220, %s219, 15
        %s222 = smul.addr %s221, 4
        %s223 = scalar_lea.vmem %s0, %s222
        %s224 = smul.u32 8, %s19
        %s225 = smul.u32 8, %s19
        %v227 = vld [vmem:[%s223] sm:$0xf]
        %v228 = vld [vmem:[%s223 + $0x4] sm:$0xf]
        %v229 = vld [vmem:[%s223 + $0x8] sm:$0xf]
        %v230 = vld [vmem:[%s223 + $0xc] sm:$0xf]
        %v231 = vld [vmem:[%s223 + $0x10] sm:$0xf]
        %v232 = vld [vmem:[%s223 + $0x14] sm:$0xf]
        %v233 = vld [vmem:[%s223 + $0x18] sm:$0xf]
        %v234 = vld [vmem:[%s223 + $0x1c] sm:$0xf]
        %v235 = vld [vmem:[%s1] sm:$0xff]
        %v236 = vld [vmem:[%s1 + $0x8] sm:$0xff]
        %v237 = vld [vmem:[%s1 + $0x10] sm:$0xff]
        %v238 = vld [vmem:[%s1 + $0x18] sm:$0xff]
        %v239 = vld [vmem:[%s1 + $0x20] sm:$0xff]
        %v240 = vld [vmem:[%s1 + $0x28] sm:$0xff]
        %v241 = vld [vmem:[%s1 + $0x30] sm:$0xff]
        %v242 = vld [vmem:[%s1 + $0x38] sm:$0xff]
        %v243 = vld [vmem:[%s1 + $0x40] sm:$0xff]
        %v244 = vld [vmem:[%s1 + $0x48] sm:$0xff]
        %v245 = vld [vmem:[%s1 + $0x50] sm:$0xff]
        %v246 = vld [vmem:[%s1 + $0x58] sm:$0xff]
        %v247 = vld [vmem:[%s1 + $0x60] sm:$0xff]
        %v248 = vld [vmem:[%s1 + $0x68] sm:$0xff]
        %v249 = vld [vmem:[%s1 + $0x70] sm:$0xff]
        %v250 = vld [vmem:[%s1 + $0x78] sm:$0xff]
        %v251 = vld [vmem:[%s1 + $0x80] sm:$0xff]
        %v252 = vld [vmem:[%s1 + $0x88] sm:$0xff]
        %v253 = vld [vmem:[%s1 + $0x90] sm:$0xff]
        %v254 = vld [vmem:[%s1 + $0x98] sm:$0xff]
        %v255 = vld [vmem:[%s1 + $0xa0] sm:$0xff]
        %v256 = vld [vmem:[%s1 + $0xa8] sm:$0xff]
        %v257 = vld [vmem:[%s1 + $0xb0] sm:$0xff]
        %v258 = vld [vmem:[%s1 + $0xb8] sm:$0xff]
        %v259 = vld [vmem:[%s1 + $0xc0] sm:$0xff]
        %v260 = vld [vmem:[%s1 + $0xc8] sm:$0xff]
        %v261 = vld [vmem:[%s1 + $0xd0] sm:$0xff]
        %v262 = vld [vmem:[%s1 + $0xd8] sm:$0xff]
        %v263 = vld [vmem:[%s1 + $0xe0] sm:$0xff]
        %v264 = vld [vmem:[%s1 + $0xe8] sm:$0xff]
        %v265 = vld [vmem:[%s1 + $0xf0] sm:$0xff]
        %v266 = vld [vmem:[%s1 + $0xf8] sm:$0xff]
        %v267 = vld [vmem:[%s2] sm:$0xf]
        %v269 = vlaneseq
        %v270 = vshrl.u32 %v269, 7
        %v271 = vsub.s32 0, %v270
        %v272 = vrot.slane %v267, %v271
        %v273 = vlaneseq
        %v274 = vshrl.u32 %v273, 7
        %v275 = vsub.s32 1, %v274
        %v276 = vrot.slane %v267, %v275
        %v277 = vlaneseq
        %v278 = vshrl.u32 %v277, 7
        %v279 = vsub.s32 2, %v278
        %v280 = vrot.slane %v267, %v279
        %v281 = vlaneseq
        %v282 = vshrl.u32 %v281, 7
        %v283 = vsub.s32 3, %v282
        %v284 = vrot.slane %v267, %v283
        %v297 = vunpack.c.l.b16 %v227
        %v298 = vunpack.c.l.b16 %v228
        %v299 = vunpack.c.l.b16 %v229
        %v300 = vunpack.c.l.b16 %v230
        %v301 = vunpack.c.l.b16 %v231
        %v302 = vunpack.c.l.b16 %v232
        %v303 = vunpack.c.l.b16 %v233
        %v304 = vunpack.c.l.b16 %v234
        %v305 = vpack.c.b16 %v298, %v297
        %v306 = vpack.c.b16 %v300, %v299
        %v307 = vpack.c.b16 %v302, %v301
        %v308 = vpack.c.b16 %v304, %v303
        %v345 = vunpack.c.l.b16 %v235
        %v346 = vunpack.c.h.b16 %v235
        %v347 = vunpack.c.l.b16 %v236
        %v348 = vunpack.c.h.b16 %v236
        %v349 = vunpack.c.l.b16 %v237
        %v350 = vunpack.c.h.b16 %v237
        %v351 = vunpack.c.l.b16 %v238
        %v352 = vunpack.c.h.b16 %v238
        %v353 = vunpack.c.l.b16 %v239
        %v354 = vunpack.c.h.b16 %v239
        %v355 = vunpack.c.l.b16 %v240
        %v356 = vunpack.c.h.b16 %v240
        %v357 = vunpack.c.l.b16 %v241
        %v358 = vunpack.c.h.b16 %v241
        %v359 = vunpack.c.l.b16 %v242
        %v360 = vunpack.c.h.b16 %v242
        %v361 = vunpack.c.l.b16 %v243
        %v362 = vunpack.c.h.b16 %v243
        %v363 = vunpack.c.l.b16 %v244
        %v364 = vunpack.c.h.b16 %v244
        %v365 = vunpack.c.l.b16 %v245
        %v366 = vunpack.c.h.b16 %v245
        %v367 = vunpack.c.l.b16 %v246
        %v368 = vunpack.c.h.b16 %v246
        %v369 = vunpack.c.l.b16 %v247
        %v370 = vunpack.c.h.b16 %v247
        %v371 = vunpack.c.l.b16 %v248
        %v372 = vunpack.c.h.b16 %v248
        %v373 = vunpack.c.l.b16 %v249
        %v374 = vunpack.c.h.b16 %v249
        %v375 = vunpack.c.l.b16 %v250
        %v376 = vunpack.c.h.b16 %v250
        %v377 = vunpack.c.l.b16 %v251
        %v378 = vunpack.c.h.b16 %v251
        %v379 = vunpack.c.l.b16 %v252
        %v380 = vunpack.c.h.b16 %v252
        %v381 = vunpack.c.l.b16 %v253
        %v382 = vunpack.c.h.b16 %v253
        %v383 = vunpack.c.l.b16 %v254
        %v384 = vunpack.c.h.b16 %v254
        %v385 = vunpack.c.l.b16 %v255
        %v386 = vunpack.c.h.b16 %v255
        %v387 = vunpack.c.l.b16 %v256
        %v388 = vunpack.c.h.b16 %v256
        %v389 = vunpack.c.l.b16 %v257
        %v390 = vunpack.c.h.b16 %v257
        %v391 = vunpack.c.l.b16 %v258
        %v392 = vunpack.c.h.b16 %v258
        %v393 = vunpack.c.l.b16 %v259
        %v394 = vunpack.c.h.b16 %v259
        %v395 = vunpack.c.l.b16 %v260
        %v396 = vunpack.c.h.b16 %v260
        %v397 = vunpack.c.l.b16 %v261
        %v398 = vunpack.c.h.b16 %v261
        %v399 = vunpack.c.l.b16 %v262
        %v400 = vunpack.c.h.b16 %v262
        %v401 = vunpack.c.l.b16 %v263
        %v402 = vunpack.c.h.b16 %v263
        %v403 = vunpack.c.l.b16 %v264
        %v404 = vunpack.c.h.b16 %v264
        %v405 = vunpack.c.l.b16 %v265
        %v406 = vunpack.c.h.b16 %v265
        %v407 = vunpack.c.l.b16 %v266
        %v408 = vunpack.c.h.b16 %v266
        %v409 = vpack.c.b16 %v349, %v345
        %v410 = vpack.c.b16 %v350, %v346
        %v411 = vpack.c.b16 %v351, %v347
        %v412 = vpack.c.b16 %v352, %v348
        %v413 = vpack.c.b16 %v357, %v353
        %v414 = vpack.c.b16 %v358, %v354
        %v415 = vpack.c.b16 %v359, %v355
        %v416 = vpack.c.b16 %v360, %v356
        %v417 = vpack.c.b16 %v365, %v361
        %v418 = vpack.c.b16 %v366, %v362
        %v419 = vpack.c.b16 %v367, %v363
        %v420 = vpack.c.b16 %v368, %v364
        %v421 = vpack.c.b16 %v373, %v369
        %v422 = vpack.c.b16 %v374, %v370
        %v423 = vpack.c.b16 %v375, %v371
        %v424 = vpack.c.b16 %v376, %v372
        %v425 = vpack.c.b16 %v381, %v377
        %v426 = vpack.c.b16 %v382, %v378
        %v427 = vpack.c.b16 %v383, %v379
        %v428 = vpack.c.b16 %v384, %v380
        %v429 = vpack.c.b16 %v389, %v385
        %v430 = vpack.c.b16 %v390, %v386
        %v431 = vpack.c.b16 %v391, %v387
        %v432 = vpack.c.b16 %v392, %v388
        %v433 = vpack.c.b16 %v397, %v393
        %v434 = vpack.c.b16 %v398, %v394
        %v435 = vpack.c.b16 %v399, %v395
        %v436 = vpack.c.b16 %v400, %v396
        %v437 = vpack.c.b16 %v405, %v401
        %v438 = vpack.c.b16 %v406, %v402
        %v439 = vpack.c.b16 %v407, %v403
        %v440 = vpack.c.b16 %v408, %v404
        %473 = vmatprep.subr.bf16.mxu0 %v410
        %474 = vmatpush1.bf16.msra.mxu0 %v409
        %475 = vmatprep.subr.bf16.mxu0 %v414
        %476 = vmatpush1.bf16.msra.mxu0 %v413
        %477 = vmatprep.subr.bf16.mxu0 %v418
        %478 = vmatpush1.bf16.msra.mxu0 %v417
        %479 = vmatprep.subr.bf16.mxu0 %v422
        %480 = vmatpush1.bf16.msra.mxu0 %v421
        %481 = vmatprep.subr.bf16.mxu0 %v426
        %482 = vmatpush1.bf16.msra.mxu0 %v425
        %483 = vmatprep.subr.bf16.mxu0 %v430
        %484 = vmatpush1.bf16.msra.mxu0 %v429
        %485 = vmatprep.subr.bf16.mxu0 %v434
        %486 = vmatpush1.bf16.msra.mxu0 %v433
        %487 = vmatprep.subr.bf16.mxu0 %v438
        %488 = vmatpush1.bf16.msra.mxu0 %v437
        %489 = vmatprep.subr.bf16.mxu0 0
        %490 = vmatpush1.bf16.msra.mxu0 0
        %491 = vmatprep.subr.bf16.mxu0 0
        %492 = vmatpush1.bf16.msra.mxu0 0
        %493 = vmatprep.subr.bf16.mxu0 0
        %494 = vmatpush1.bf16.msra.mxu0 0
        %495 = vmatprep.subr.bf16.mxu0 0
        %496 = vmatpush1.bf16.msra.mxu0 0
        %497 = vmatprep.subr.bf16.mxu0 0
        %498 = vmatpush1.bf16.msra.mxu0 0
        %499 = vmatprep.subr.bf16.mxu0 0
        %500 = vmatpush1.bf16.msra.mxu0 0
        %501 = vmatprep.subr.bf16.mxu0 0
        %502 = vmatpush1.bf16.msra.mxu0 0
        %503 = vmatprep.subr.bf16.mxu0 0
        %504 = vmatpush1.bf16.msra.mxu0 0
        %505 = vmatprep.mubr.bf16.mxu0 0
        %506 = vmatmul.mubr.bf16.gmra.mrb[0].mxu0 %v305
        %v507 = vpop.f32.mrb[0].mxu0
        %v508 = vadd.f32 %v272, %v507
        %v509 = vpop.f32.mrb[0].mxu0
        %v510 = vadd.f32 %v276, %v509
        %v511 = vpop.f32.mrb[0].mxu0
        %v512 = vadd.f32 %v272, %v511
        %v513 = vpop.f32.mrb[0].mxu0
        %v514 = vadd.f32 %v276, %v513
        %515 = vmatprep.mubr.bf16.mxu0 0
        %516 = vmatmul.mubr.bf16.gmra.mrb[0].mxu0 %v306
        %v517 = vpop.f32.mrb[0].mxu0
        %v518 = vadd.f32 %v272, %v517
        %v519 = vpop.f32.mrb[0].mxu0
        %v520 = vadd.f32 %v276, %v519
        %v521 = vpop.f32.mrb[0].mxu0
        %v522 = vadd.f32 %v272, %v521
        %v523 = vpop.f32.mrb[0].mxu0
        %v524 = vadd.f32 %v276, %v523
        %525 = vmatprep.mubr.bf16.mxu0 0
        %526 = vmatmul.mubr.bf16.gmra.mrb[0].mxu0 %v307
        %v527 = vpop.f32.mrb[0].mxu0
        %v528 = vadd.f32 %v272, %v527
        %v529 = vpop.f32.mrb[0].mxu0
        %v530 = vadd.f32 %v276, %v529
        %v531 = vpop.f32.mrb[0].mxu0
        %v532 = vadd.f32 %v272, %v531
        %v533 = vpop.f32.mrb[0].mxu0
        %v534 = vadd.f32 %v276, %v533
        %535 = vmatprep.mubr.bf16.mxu0 0
        %536 = vmatmul.mubr.bf16.gmra.mrb[0].mxu0 %v308
        %v537 = vpop.f32.mrb[0].mxu0
        %v538 = vadd.f32 %v272, %v537
        %v539 = vpop.f32.mrb[0].mxu0
        %v540 = vadd.f32 %v276, %v539
        %v541 = vpop.f32.mrb[0].mxu0
        %v542 = vadd.f32 %v272, %v541
        %v543 = vpop.f32.mrb[0].mxu0
        %v544 = vadd.f32 %v276, %v543
        %545 = vdwg.mxu0
        %546 = vmatprep.subr.bf16.mxu0 %v412
        %547 = vmatpush1.bf16.msra.mxu0 %v411
        %548 = vmatprep.subr.bf16.mxu0 %v416
        %549 = vmatpush1.bf16.msra.mxu0 %v415
        %550 = vmatprep.subr.bf16.mxu0 %v420
        %551 = vmatpush1.bf16.msra.mxu0 %v419
        %552 = vmatprep.subr.bf16.mxu0 %v424
        %553 = vmatpush1.bf16.msra.mxu0 %v423
        %554 = vmatprep.subr.bf16.mxu0 %v428
        %555 = vmatpush1.bf16.msra.mxu0 %v427
        %556 = vmatprep.subr.bf16.mxu0 %v432
        %557 = vmatpush1.bf16.msra.mxu0 %v431
        %558 = vmatprep.subr.bf16.mxu0 %v436
        %559 = vmatpush1.bf16.msra.mxu0 %v435
        %560 = vmatprep.subr.bf16.mxu0 %v440
        %561 = vmatpush1.bf16.msra.mxu0 %v439
        %562 = vmatprep.subr.bf16.mxu0 0
        %563 = vmatpush1.bf16.msra.mxu0 0
        %564 = vmatprep.subr.bf16.mxu0 0
        %565 = vmatpush1.bf16.msra.mxu0 0
        %566 = vmatprep.subr.bf16.mxu0 0
        %567 = vmatpush1.bf16.msra.mxu0 0
        %568 = vmatprep.subr.bf16.mxu0 0
        %569 = vmatpush1.bf16.msra.mxu0 0
        %570 = vmatprep.subr.bf16.mxu0 0
        %571 = vmatpush1.bf16.msra.mxu0 0
        %572 = vmatprep.subr.bf16.mxu0 0
        %573 = vmatpush1.bf16.msra.mxu0 0
        %574 = vmatprep.subr.bf16.mxu0 0
        %575 = vmatpush1.bf16.msra.mxu0 0
        %576 = vmatprep.subr.bf16.mxu0 0
        %577 = vmatpush1.bf16.msra.mxu0 0
        %578 = vmatprep.mubr.bf16.mxu0 0
        %579 = vmatmul.mubr.bf16.gmra.mrb[0].mxu0 %v305
        %v580 = vpop.f32.mrb[0].mxu0
        %v581 = vadd.f32 %v280, %v580
        %v582 = vpop.f32.mrb[0].mxu0
        %v583 = vadd.f32 %v284, %v582
        %v584 = vpop.f32.mrb[0].mxu0
        %v585 = vadd.f32 %v280, %v584
        %v586 = vpop.f32.mrb[0].mxu0
        %v587 = vadd.f32 %v284, %v586
        %588 = vmatprep.mubr.bf16.mxu0 0
        %589 = vmatmul.mubr.bf16.gmra.mrb[0].mxu0 %v306
        %v590 = vpop.f32.mrb[0].mxu0
        %v591 = vadd.f32 %v280, %v590
        %v592 = vpop.f32.mrb[0].mxu0
        %v593 = vadd.f32 %v284, %v592
        %v594 = vpop.f32.mrb[0].mxu0
        %v595 = vadd.f32 %v280, %v594
        %v596 = vpop.f32.mrb[0].mxu0
        %v597 = vadd.f32 %v284, %v596
        %598 = vmatprep.mubr.bf16.mxu0 0
        %599 = vmatmul.mubr.bf16.gmra.mrb[0].mxu0 %v307
        %v600 = vpop.f32.mrb[0].mxu0
        %v601 = vadd.f32 %v280, %v600
        %v602 = vpop.f32.mrb[0].mxu0
        %v603 = vadd.f32 %v284, %v602
        %v604 = vpop.f32.mrb[0].mxu0
        %v605 = vadd.f32 %v280, %v604
        %v606 = vpop.f32.mrb[0].mxu0
        %v607 = vadd.f32 %v284, %v606
        %608 = vmatprep.mubr.bf16.mxu0 0
        %609 = vmatmul.mubr.bf16.gmra.mrb[0].mxu0 %v308
        %v610 = vpop.f32.mrb[0].mxu0
        %v611 = vadd.f32 %v280, %v610
        %v612 = vpop.f32.mrb[0].mxu0
        %v613 = vadd.f32 %v284, %v612
        %v614 = vpop.f32.mrb[0].mxu0
        %v615 = vadd.f32 %v280, %v614
        %v616 = vpop.f32.mrb[0].mxu0
        %v617 = vadd.f32 %v284, %v616
        %618 = vdwg.mxu0
        %v619 = vmul.f32 %v508, 0.5
        %v620 = vmul.f32 %v510, 0.5
        %v621 = vmul.f32 %v581, 0.5
        %v622 = vmul.f32 %v583, 0.5
        %v623 = vmul.f32 %v512, 0.5
        %v624 = vmul.f32 %v514, 0.5
        %v625 = vmul.f32 %v585, 0.5
        %v626 = vmul.f32 %v587, 0.5
        %v627 = vmul.f32 %v518, 0.5
        %v628 = vmul.f32 %v520, 0.5
        %v629 = vmul.f32 %v591, 0.5
        %v630 = vmul.f32 %v593, 0.5
        %v631 = vmul.f32 %v522, 0.5
        %v632 = vmul.f32 %v524, 0.5
        %v633 = vmul.f32 %v595, 0.5
        %v634 = vmul.f32 %v597, 0.5
        %v635 = vmul.f32 %v528, 0.5
        %v636 = vmul.f32 %v530, 0.5
        %v637 = vmul.f32 %v601, 0.5
        %v638 = vmul.f32 %v603, 0.5
        %v639 = vmul.f32 %v532, 0.5
        %v640 = vmul.f32 %v534, 0.5
        %v641 = vmul.f32 %v605, 0.5
        %v642 = vmul.f32 %v607, 0.5
        %v643 = vmul.f32 %v538, 0.5
        %v644 = vmul.f32 %v540, 0.5
        %v645 = vmul.f32 %v611, 0.5
        %v646 = vmul.f32 %v613, 0.5
        %v647 = vmul.f32 %v542, 0.5
        %v648 = vmul.f32 %v544, 0.5
        %v649 = vmul.f32 %v615, 0.5
        %v650 = vmul.f32 %v617, 0.5
        %v651 = vmul.f32 %v508, 0.044715
        %v652 = vmul.f32 %v510, 0.044715
        %v653 = vmul.f32 %v581, 0.044715
        %v654 = vmul.f32 %v583, 0.044715
        %v655 = vmul.f32 %v512, 0.044715
        %v656 = vmul.f32 %v514, 0.044715
        %v657 = vmul.f32 %v585, 0.044715
        %v658 = vmul.f32 %v587, 0.044715
        %v659 = vmul.f32 %v518, 0.044715
        %v660 = vmul.f32 %v520, 0.044715
        %v661 = vmul.f32 %v591, 0.044715
        %v662 = vmul.f32 %v593, 0.044715
        %v663 = vmul.f32 %v522, 0.044715
        %v664 = vmul.f32 %v524, 0.044715
        %v665 = vmul.f32 %v595, 0.044715
        %v666 = vmul.f32 %v597, 0.044715
        %v667 = vmul.f32 %v528, 0.044715
        %v668 = vmul.f32 %v530, 0.044715
        %v669 = vmul.f32 %v601, 0.044715
        %v670 = vmul.f32 %v603, 0.044715
        %v671 = vmul.f32 %v532, 0.044715
        %v672 = vmul.f32 %v534, 0.044715
        %v673 = vmul.f32 %v605, 0.044715
        %v674 = vmul.f32 %v607, 0.044715
        %v675 = vmul.f32 %v538, 0.044715
        %v676 = vmul.f32 %v540, 0.044715
        %v677 = vmul.f32 %v611, 0.044715
        %v678 = vmul.f32 %v613, 0.044715
        %v679 = vmul.f32 %v542, 0.044715
        %v680 = vmul.f32 %v544, 0.044715
        %v681 = vmul.f32 %v615, 0.044715
        %v682 = vmul.f32 %v617, 0.044715
        %v683 = vmul.f32 %v651, %v508
        %v684 = vmul.f32 %v652, %v510
        %v685 = vmul.f32 %v653, %v581
        %v686 = vmul.f32 %v654, %v583
        %v687 = vmul.f32 %v655, %v512
        %v688 = vmul.f32 %v656, %v514
        %v689 = vmul.f32 %v657, %v585
        %v690 = vmul.f32 %v658, %v587
        %v691 = vmul.f32 %v659, %v518
        %v692 = vmul.f32 %v660, %v520
        %v693 = vmul.f32 %v661, %v591
        %v694 = vmul.f32 %v662, %v593
        %v695 = vmul.f32 %v663, %v522
        %v696 = vmul.f32 %v664, %v524
        %v697 = vmul.f32 %v665, %v595
        %v698 = vmul.f32 %v666, %v597
        %v699 = vmul.f32 %v667, %v528
        %v700 = vmul.f32 %v668, %v530
        %v701 = vmul.f32 %v669, %v601
        %v702 = vmul.f32 %v670, %v603
        %v703 = vmul.f32 %v671, %v532
        %v704 = vmul.f32 %v672, %v534
        %v705 = vmul.f32 %v673, %v605
        %v706 = vmul.f32 %v674, %v607
        %v707 = vmul.f32 %v675, %v538
        %v708 = vmul.f32 %v676, %v540
        %v709 = vmul.f32 %v677, %v611
        %v710 = vmul.f32 %v678, %v613
        %v711 = vmul.f32 %v679, %v542
        %v712 = vmul.f32 %v680, %v544
        %v713 = vmul.f32 %v681, %v615
        %v714 = vmul.f32 %v682, %v617
        %v715 = vmul.f32 %v683, %v508
        %v716 = vmul.f32 %v684, %v510
        %v717 = vmul.f32 %v685, %v581
        %v718 = vmul.f32 %v686, %v583
        %v719 = vmul.f32 %v687, %v512
        %v720 = vmul.f32 %v688, %v514
        %v721 = vmul.f32 %v689, %v585
        %v722 = vmul.f32 %v690, %v587
        %v723 = vmul.f32 %v691, %v518
        %v724 = vmul.f32 %v692, %v520
        %v725 = vmul.f32 %v693, %v591
        %v726 = vmul.f32 %v694, %v593
        %v727 = vmul.f32 %v695, %v522
        %v728 = vmul.f32 %v696, %v524
        %v729 = vmul.f32 %v697, %v595
        %v730 = vmul.f32 %v698, %v597
        %v731 = vmul.f32 %v699, %v528
        %v732 = vmul.f32 %v700, %v530
        %v733 = vmul.f32 %v701, %v601
        %v734 = vmul.f32 %v702, %v603
        %v735 = vmul.f32 %v703, %v532
        %v736 = vmul.f32 %v704, %v534
        %v737 = vmul.f32 %v705, %v605
        %v738 = vmul.f32 %v706, %v607
        %v739 = vmul.f32 %v707, %v538
        %v740 = vmul.f32 %v708, %v540
        %v741 = vmul.f32 %v709, %v611
        %v742 = vmul.f32 %v710, %v613
        %v743 = vmul.f32 %v711, %v542
        %v744 = vmul.f32 %v712, %v544
        %v745 = vmul.f32 %v713, %v615
        %v746 = vmul.f32 %v714, %v617
        %v747 = vadd.f32 %v508, %v715
        %v748 = vadd.f32 %v510, %v716
        %v749 = vadd.f32 %v581, %v717
        %v750 = vadd.f32 %v583, %v718
        %v751 = vadd.f32 %v512, %v719
        %v752 = vadd.f32 %v514, %v720
        %v753 = vadd.f32 %v585, %v721
        %v754 = vadd.f32 %v587, %v722
        %v755 = vadd.f32 %v518, %v723
        %v756 = vadd.f32 %v520, %v724
        %v757 = vadd.f32 %v591, %v725
        %v758 = vadd.f32 %v593, %v726
        %v759 = vadd.f32 %v522, %v727
        %v760 = vadd.f32 %v524, %v728
        %v761 = vadd.f32 %v595, %v729
        %v762 = vadd.f32 %v597, %v730
        %v763 = vadd.f32 %v528, %v731
        %v764 = vadd.f32 %v530, %v732
        %v765 = vadd.f32 %v601, %v733
        %v766 = vadd.f32 %v603, %v734
        %v767 = vadd.f32 %v532, %v735
        %v768 = vadd.f32 %v534, %v736
        %v769 = vadd.f32 %v605, %v737
        %v770 = vadd.f32 %v607, %v738
        %v771 = vadd.f32 %v538, %v739
        %v772 = vadd.f32 %v540, %v740
        %v773 = vadd.f32 %v611, %v741
        %v774 = vadd.f32 %v613, %v742
        %v775 = vadd.f32 %v542, %v743
        %v776 = vadd.f32 %v544, %v744
        %v777 = vadd.f32 %v615, %v745
        %v778 = vadd.f32 %v617, %v746
        %v779 = vmul.f32 %v747, 0.7978846
        %v780 = vmul.f32 %v748, 0.7978846
        %v781 = vmul.f32 %v749, 0.7978846
        %v782 = vmul.f32 %v750, 0.7978846
        %v783 = vmul.f32 %v751, 0.7978846
        %v784 = vmul.f32 %v752, 0.7978846
        %v785 = vmul.f32 %v753, 0.7978846
        %v786 = vmul.f32 %v754, 0.7978846
        %v787 = vmul.f32 %v755, 0.7978846
        %v788 = vmul.f32 %v756, 0.7978846
        %v789 = vmul.f32 %v757, 0.7978846
        %v790 = vmul.f32 %v758, 0.7978846
        %v791 = vmul.f32 %v759, 0.7978846
        %v792 = vmul.f32 %v760, 0.7978846
        %v793 = vmul.f32 %v761, 0.7978846
        %v794 = vmul.f32 %v762, 0.7978846
        %v795 = vmul.f32 %v763, 0.7978846
        %v796 = vmul.f32 %v764, 0.7978846
        %v797 = vmul.f32 %v765, 0.7978846
        %v798 = vmul.f32 %v766, 0.7978846
        %v799 = vmul.f32 %v767, 0.7978846
        %v800 = vmul.f32 %v768, 0.7978846
        %v801 = vmul.f32 %v769, 0.7978846
        %v802 = vmul.f32 %v770, 0.7978846
        %v803 = vmul.f32 %v771, 0.7978846
        %v804 = vmul.f32 %v772, 0.7978846
        %v805 = vmul.f32 %v773, 0.7978846
        %v806 = vmul.f32 %v774, 0.7978846
        %v807 = vmul.f32 %v775, 0.7978846
        %v808 = vmul.f32 %v776, 0.7978846
        %v809 = vmul.f32 %v777, 0.7978846
        %v810 = vmul.f32 %v778, 0.7978846
        %v811 = vtanh.pop %v779
        %v812 = vtanh.pop %v780
        %v813 = vtanh.pop %v781
        %v814 = vtanh.pop %v782
        %v815 = vtanh.pop %v783
        %v816 = vtanh.pop %v784
        %v817 = vtanh.pop %v785
        %v818 = vtanh.pop %v786
        %v819 = vtanh.pop %v787
        %v820 = vtanh.pop %v788
        %v821 = vtanh.pop %v789
        %v822 = vtanh.pop %v790
        %v823 = vtanh.pop %v791
        %v824 = vtanh.pop %v792
        %v825 = vtanh.pop %v793
        %v826 = vtanh.pop %v794
        %v827 = vtanh.pop %v795
        %v828 = vtanh.pop %v796
        %v829 = vtanh.pop %v797
        %v830 = vtanh.pop %v798
        %v831 = vtanh.pop %v799
        %v832 = vtanh.pop %v800
        %v833 = vtanh.pop %v801
        %v834 = vtanh.pop %v802
        %v835 = vtanh.pop %v803
        %v836 = vtanh.pop %v804
        %v837 = vtanh.pop %v805
        %v838 = vtanh.pop %v806
        %v839 = vtanh.pop %v807
        %v840 = vtanh.pop %v808
        %v841 = vtanh.pop %v809
        %v842 = vtanh.pop %v810
        %v843 = vadd.f32 %v811, 1.0
        %v844 = vadd.f32 %v812, 1.0
        %v845 = vadd.f32 %v813, 1.0
        %v846 = vadd.f32 %v814, 1.0
        %v847 = vadd.f32 %v815, 1.0
        %v848 = vadd.f32 %v816, 1.0
        %v849 = vadd.f32 %v817, 1.0
        %v850 = vadd.f32 %v818, 1.0
        %v851 = vadd.f32 %v819, 1.0
        %v852 = vadd.f32 %v820, 1.0
        %v853 = vadd.f32 %v821, 1.0
        %v854 = vadd.f32 %v822, 1.0
        %v855 = vadd.f32 %v823, 1.0
        %v856 = vadd.f32 %v824, 1.0
        %v857 = vadd.f32 %v825, 1.0
        %v858 = vadd.f32 %v826, 1.0
        %v859 = vadd.f32 %v827, 1.0
        %v860 = vadd.f32 %v828, 1.0
        %v861 = vadd.f32 %v829, 1.0
        %v862 = vadd.f32 %v830, 1.0
        %v863 = vadd.f32 %v831, 1.0
        %v864 = vadd.f32 %v832, 1.0
        %v865 = vadd.f32 %v833, 1.0
        %v866 = vadd.f32 %v834, 1.0
        %v867 = vadd.f32 %v835, 1.0
        %v868 = vadd.f32 %v836, 1.0
        %v869 = vadd.f32 %v837, 1.0
        %v870 = vadd.f32 %v838, 1.0
        %v871 = vadd.f32 %v839, 1.0
        %v872 = vadd.f32 %v840, 1.0
        %v873 = vadd.f32 %v841, 1.0
        %v874 = vadd.f32 %v842, 1.0
        %v875 = vmul.f32 %v619, %v843
        %v876 = vmul.f32 %v620, %v844
        %v877 = vmul.f32 %v621, %v845
        %v878 = vmul.f32 %v622, %v846
        %v879 = vmul.f32 %v623, %v847
        %v880 = vmul.f32 %v624, %v848
        %v881 = vmul.f32 %v625, %v849
        %v882 = vmul.f32 %v626, %v850
        %v883 = vmul.f32 %v627, %v851
        %v884 = vmul.f32 %v628, %v852
        %v885 = vmul.f32 %v629, %v853
        %v886 = vmul.f32 %v630, %v854
        %v887 = vmul.f32 %v631, %v855
        %v888 = vmul.f32 %v632, %v856
        %v889 = vmul.f32 %v633, %v857
        %v890 = vmul.f32 %v634, %v858
        %v891 = vmul.f32 %v635, %v859
        %v892 = vmul.f32 %v636, %v860
        %v893 = vmul.f32 %v637, %v861
        %v894 = vmul.f32 %v638, %v862
        %v895 = vmul.f32 %v639, %v863
        %v896 = vmul.f32 %v640, %v864
        %v897 = vmul.f32 %v641, %v865
        %v898 = vmul.f32 %v642, %v866
        %v899 = vmul.f32 %v643, %v867
        %v900 = vmul.f32 %v644, %v868
        %v901 = vmul.f32 %v645, %v869
        %v902 = vmul.f32 %v646, %v870
        %v903 = vmul.f32 %v647, %v871
        %v904 = vmul.f32 %v648, %v872
        %v905 = vmul.f32 %v649, %v873
        %v906 = vmul.f32 %v650, %v874
        %v907 = vpack.c.bf16 %v879, %v875
        %v908 = vpack.c.bf16 %v880, %v876
        %v909 = vpack.c.bf16 %v881, %v877
        %v910 = vpack.c.bf16 %v882, %v878
        %v911 = vpack.c.bf16 %v887, %v883
        %v912 = vpack.c.bf16 %v888, %v884
        %v913 = vpack.c.bf16 %v889, %v885
        %v914 = vpack.c.bf16 %v890, %v886
        %v915 = vpack.c.bf16 %v895, %v891
        %v916 = vpack.c.bf16 %v896, %v892
        %v917 = vpack.c.bf16 %v897, %v893
        %v918 = vpack.c.bf16 %v898, %v894
        %v919 = vpack.c.bf16 %v903, %v899
        %v920 = vpack.c.bf16 %v904, %v900
        %v921 = vpack.c.bf16 %v905, %v901
        %v922 = vpack.c.bf16 %v906, %v902
        %v923 = vld [vmem:[%s3] sm:$0xf]
        %v924 = vld [vmem:[%s3 + $0x4] sm:$0xf]
        %v925 = vld [vmem:[%s3 + $0x8] sm:$0xf]
        %v926 = vld [vmem:[%s3 + $0xc] sm:$0xf]
        %v927 = vld [vmem:[%s3 + $0x10] sm:$0xf]
        %v928 = vld [vmem:[%s3 + $0x14] sm:$0xf]
        %v929 = vld [vmem:[%s3 + $0x18] sm:$0xf]
        %v930 = vld [vmem:[%s3 + $0x1c] sm:$0xf]
        %v931 = vld [vmem:[%s3 + $0x20] sm:$0xf]
        %v932 = vld [vmem:[%s3 + $0x24] sm:$0xf]
        %v933 = vld [vmem:[%s3 + $0x28] sm:$0xf]
        %v934 = vld [vmem:[%s3 + $0x2c] sm:$0xf]
        %v935 = vld [vmem:[%s3 + $0x30] sm:$0xf]
        %v936 = vld [vmem:[%s3 + $0x34] sm:$0xf]
        %v937 = vld [vmem:[%s3 + $0x38] sm:$0xf]
        %v938 = vld [vmem:[%s3 + $0x3c] sm:$0xf]
        %v939 = vld [vmem:[%s3 + $0x40] sm:$0xf]
        %v940 = vld [vmem:[%s3 + $0x44] sm:$0xf]
        %v941 = vld [vmem:[%s3 + $0x48] sm:$0xf]
        %v942 = vld [vmem:[%s3 + $0x4c] sm:$0xf]
        %v943 = vld [vmem:[%s3 + $0x50] sm:$0xf]
        %v944 = vld [vmem:[%s3 + $0x54] sm:$0xf]
        %v945 = vld [vmem:[%s3 + $0x58] sm:$0xf]
        %v946 = vld [vmem:[%s3 + $0x5c] sm:$0xf]
        %v947 = vld [vmem:[%s3 + $0x60] sm:$0xf]
        %v948 = vld [vmem:[%s3 + $0x64] sm:$0xf]
        %v949 = vld [vmem:[%s3 + $0x68] sm:$0xf]
        %v950 = vld [vmem:[%s3 + $0x6c] sm:$0xf]
        %v951 = vld [vmem:[%s3 + $0x70] sm:$0xf]
        %v952 = vld [vmem:[%s3 + $0x74] sm:$0xf]
        %v953 = vld [vmem:[%s3 + $0x78] sm:$0xf]
        %v954 = vld [vmem:[%s3 + $0x7c] sm:$0xf]
        %v955 = vld [vmem:[%s3 + $0x80] sm:$0xf]
        %v956 = vld [vmem:[%s3 + $0x84] sm:$0xf]
        %v957 = vld [vmem:[%s3 + $0x88] sm:$0xf]
        %v958 = vld [vmem:[%s3 + $0x8c] sm:$0xf]
        %v959 = vld [vmem:[%s3 + $0x90] sm:$0xf]
        %v960 = vld [vmem:[%s3 + $0x94] sm:$0xf]
        %v961 = vld [vmem:[%s3 + $0x98] sm:$0xf]
        %v962 = vld [vmem:[%s3 + $0x9c] sm:$0xf]
        %v963 = vld [vmem:[%s3 + $0xa0] sm:$0xf]
        %v964 = vld [vmem:[%s3 + $0xa4] sm:$0xf]
        %v965 = vld [vmem:[%s3 + $0xa8] sm:$0xf]
        %v966 = vld [vmem:[%s3 + $0xac] sm:$0xf]
        %v967 = vld [vmem:[%s3 + $0xb0] sm:$0xf]
        %v968 = vld [vmem:[%s3 + $0xb4] sm:$0xf]
        %v969 = vld [vmem:[%s3 + $0xb8] sm:$0xf]
        %v970 = vld [vmem:[%s3 + $0xbc] sm:$0xf]
        %v971 = vld [vmem:[%s3 + $0xc0] sm:$0xf]
        %v972 = vld [vmem:[%s3 + $0xc4] sm:$0xf]
        %v973 = vld [vmem:[%s3 + $0xc8] sm:$0xf]
        %v974 = vld [vmem:[%s3 + $0xcc] sm:$0xf]
        %v975 = vld [vmem:[%s3 + $0xd0] sm:$0xf]
        %v976 = vld [vmem:[%s3 + $0xd4] sm:$0xf]
        %v977 = vld [vmem:[%s3 + $0xd8] sm:$0xf]
        %v978 = vld [vmem:[%s3 + $0xdc] sm:$0xf]
        %v979 = vld [vmem:[%s3 + $0xe0] sm:$0xf]
        %v980 = vld [vmem:[%s3 + $0xe4] sm:$0xf]
        %v981 = vld [vmem:[%s3 + $0xe8] sm:$0xf]
        %v982 = vld [vmem:[%s3 + $0xec] sm:$0xf]
        %v983 = vld [vmem:[%s3 + $0xf0] sm:$0xf]
        %v984 = vld [vmem:[%s3 + $0xf4] sm:$0xf]
        %v985 = vld [vmem:[%s3 + $0xf8] sm:$0xf]
        %v986 = vld [vmem:[%s3 + $0xfc] sm:$0xf]
        %v987 = vld [vmem:[%s4] sm:$0x1]
        %v989 = vlaneseq
        %v990 = vshrl.u32 %v989, 7
        %v991 = vsub.s32 0, %v990
        %v992 = vrot.slane %v987, %v991
        %v1058 = vunpack.c.l.b16 %v923
        %v1059 = vunpack.c.l.b16 %v924
        %v1060 = vunpack.c.l.b16 %v925
        %v1061 = vunpack.c.l.b16 %v926
        %v1062 = vunpack.c.l.b16 %v927
        %v1063 = vunpack.c.l.b16 %v928
        %v1064 = vunpack.c.l.b16 %v929
        %v1065 = vunpack.c.l.b16 %v930
        %v1066 = vunpack.c.l.b16 %v931
        %v1067 = vunpack.c.l.b16 %v932
        %v1068 = vunpack.c.l.b16 %v933
        %v1069 = vunpack.c.l.b16 %v934
        %v1070 = vunpack.c.l.b16 %v935
        %v1071 = vunpack.c.l.b16 %v936
        %v1072 = vunpack.c.l.b16 %v937
        %v1073 = vunpack.c.l.b16 %v938
        %v1074 = vunpack.c.l.b16 %v939
        %v1075 = vunpack.c.l.b16 %v940
        %v1076 = vunpack.c.l.b16 %v941
        %v1077 = vunpack.c.l.b16 %v942
        %v1078 = vunpack.c.l.b16 %v943
        %v1079 = vunpack.c.l.b16 %v944
        %v1080 = vunpack.c.l.b16 %v945
        %v1081 = vunpack.c.l.b16 %v946
        %v1082 = vunpack.c.l.b16 %v947
        %v1083 = vunpack.c.l.b16 %v948
        %v1084 = vunpack.c.l.b16 %v949
        %v1085 = vunpack.c.l.b16 %v950
        %v1086 = vunpack.c.l.b16 %v951
        %v1087 = vunpack.c.l.b16 %v952
        %v1088 = vunpack.c.l.b16 %v953
        %v1089 = vunpack.c.l.b16 %v954
        %v1090 = vunpack.c.l.b16 %v955
        %v1091 = vunpack.c.l.b16 %v956
        %v1092 = vunpack.c.l.b16 %v957
        %v1093 = vunpack.c.l.b16 %v958
        %v1094 = vunpack.c.l.b16 %v959
        %v1095 = vunpack.c.l.b16 %v960
        %v1096 = vunpack.c.l.b16 %v961
        %v1097 = vunpack.c.l.b16 %v962
        %v1098 = vunpack.c.l.b16 %v963
        %v1099 = vunpack.c.l.b16 %v964
        %v1100 = vunpack.c.l.b16 %v965
        %v1101 = vunpack.c.l.b16 %v966
        %v1102 = vunpack.c.l.b16 %v967
        %v1103 = vunpack.c.l.b16 %v968
        %v1104 = vunpack.c.l.b16 %v969
        %v1105 = vunpack.c.l.b16 %v970
        %v1106 = vunpack.c.l.b16 %v971
        %v1107 = vunpack.c.l.b16 %v972
        %v1108 = vunpack.c.l.b16 %v973
        %v1109 = vunpack.c.l.b16 %v974
        %v1110 = vunpack.c.l.b16 %v975
        %v1111 = vunpack.c.l.b16 %v976
        %v1112 = vunpack.c.l.b16 %v977
        %v1113 = vunpack.c.l.b16 %v978
        %v1114 = vunpack.c.l.b16 %v979
        %v1115 = vunpack.c.l.b16 %v980
        %v1116 = vunpack.c.l.b16 %v981
        %v1117 = vunpack.c.l.b16 %v982
        %v1118 = vunpack.c.l.b16 %v983
        %v1119 = vunpack.c.l.b16 %v984
        %v1120 = vunpack.c.l.b16 %v985
        %v1121 = vunpack.c.l.b16 %v986
        %v1122 = vpack.c.b16 %v1059, %v1058
        %v1123 = vpack.c.b16 %v1061, %v1060
        %v1124 = vpack.c.b16 %v1063, %v1062
        %v1125 = vpack.c.b16 %v1065, %v1064
        %v1126 = vpack.c.b16 %v1067, %v1066
        %v1127 = vpack.c.b16 %v1069, %v1068
        %v1128 = vpack.c.b16 %v1071, %v1070
        %v1129 = vpack.c.b16 %v1073, %v1072
        %v1130 = vpack.c.b16 %v1075, %v1074
        %v1131 = vpack.c.b16 %v1077, %v1076
        %v1132 = vpack.c.b16 %v1079, %v1078
        %v1133 = vpack.c.b16 %v1081, %v1080
        %v1134 = vpack.c.b16 %v1083, %v1082
        %v1135 = vpack.c.b16 %v1085, %v1084
        %v1136 = vpack.c.b16 %v1087, %v1086
        %v1137 = vpack.c.b16 %v1089, %v1088
        %v1138 = vpack.c.b16 %v1091, %v1090
        %v1139 = vpack.c.b16 %v1093, %v1092
        %v1140 = vpack.c.b16 %v1095, %v1094
        %v1141 = vpack.c.b16 %v1097, %v1096
        %v1142 = vpack.c.b16 %v1099, %v1098
        %v1143 = vpack.c.b16 %v1101, %v1100
        %v1144 = vpack.c.b16 %v1103, %v1102
        %v1145 = vpack.c.b16 %v1105, %v1104
        %v1146 = vpack.c.b16 %v1107, %v1106
        %v1147 = vpack.c.b16 %v1109, %v1108
        %v1148 = vpack.c.b16 %v1111, %v1110
        %v1149 = vpack.c.b16 %v1113, %v1112
        %v1150 = vpack.c.b16 %v1115, %v1114
        %v1151 = vpack.c.b16 %v1117, %v1116
        %v1152 = vpack.c.b16 %v1119, %v1118
        %v1153 = vpack.c.b16 %v1121, %v1120
        %1186 = vmatprep.subr.bf16.mxu0 0
        %1187 = vmatpush1.bf16.msra.mxu0 %v1122
        %1188 = vmatprep.subr.bf16.mxu0 0
        %1189 = vmatpush1.bf16.msra.mxu0 %v1123
        %1190 = vmatprep.subr.bf16.mxu0 0
        %1191 = vmatpush1.bf16.msra.mxu0 %v1124
        %1192 = vmatprep.subr.bf16.mxu0 0
        %1193 = vmatpush1.bf16.msra.mxu0 %v1125
        %1194 = vmatprep.subr.bf16.mxu0 0
        %1195 = vmatpush1.bf16.msra.mxu0 %v1126
        %1196 = vmatprep.subr.bf16.mxu0 0
        %1197 = vmatpush1.bf16.msra.mxu0 %v1127
        %1198 = vmatprep.subr.bf16.mxu0 0
        %1199 = vmatpush1.bf16.msra.mxu0 %v1128
        %1200 = vmatprep.subr.bf16.mxu0 0
        %1201 = vmatpush1.bf16.msra.mxu0 %v1129
        %1202 = vmatprep.subr.bf16.mxu0 0
        %1203 = vmatpush1.bf16.msra.mxu0 %v1130
        %1204 = vmatprep.subr.bf16.mxu0 0
        %1205 = vmatpush1.bf16.msra.mxu0 %v1131
        %1206 = vmatprep.subr.bf16.mxu0 0
        %1207 = vmatpush1.bf16.msra.mxu0 %v1132
        %1208 = vmatprep.subr.bf16.mxu0 0
        %1209 = vmatpush1.bf16.msra.mxu0 %v1133
        %1210 = vmatprep.subr.bf16.mxu0 0
        %1211 = vmatpush1.bf16.msra.mxu0 %v1134
        %1212 = vmatprep.subr.bf16.mxu0 0
        %1213 = vmatpush1.bf16.msra.mxu0 %v1135
        %1214 = vmatprep.subr.bf16.mxu0 0
        %1215 = vmatpush1.bf16.msra.mxu0 %v1136
        %1216 = vmatprep.subr.bf16.mxu0 0
        %1217 = vmatpush1.bf16.msra.mxu0 %v1137
        %1218 = vmatprep.mubr.bf16.mxu0 %v908
        %1219 = vmatmul.mubr.bf16.gmra.mrb[0].mxu0 %v907
        %v1220 = vpop.f32.mrb[0].mxu0
        %v1221 = vadd.f32 %v992, %v1220
        %v1222 = vpop.f32.mrb[0].mxu0
        %v1223 = vpop.f32.mrb[0].mxu0
        %v1224 = vadd.f32 %v992, %v1223
        %v1225 = vpop.f32.mrb[0].mxu0
        %1226 = vmatprep.mubr.bf16.mxu0 %v912
        %1227 = vmatmul.mubr.bf16.gmra.mrb[0].mxu0 %v911
        %v1228 = vpop.f32.mrb[0].mxu0
        %v1229 = vadd.f32 %v992, %v1228
        %v1230 = vpop.f32.mrb[0].mxu0
        %v1231 = vpop.f32.mrb[0].mxu0
        %v1232 = vadd.f32 %v992, %v1231
        %v1233 = vpop.f32.mrb[0].mxu0
        %1234 = vmatprep.mubr.bf16.mxu0 %v916
        %1235 = vmatmul.mubr.bf16.gmra.mrb[0].mxu0 %v915
        %v1236 = vpop.f32.mrb[0].mxu0
        %v1237 = vadd.f32 %v992, %v1236
        %v1238 = vpop.f32.mrb[0].mxu0
        %v1239 = vpop.f32.mrb[0].mxu0
        %v1240 = vadd.f32 %v992, %v1239
        %v1241 = vpop.f32.mrb[0].mxu0
        %1242 = vmatprep.mubr.bf16.mxu0 %v920
        %1243 = vmatmul.mubr.bf16.gmra.mrb[0].mxu0 %v919
        %v1244 = vpop.f32.mrb[0].mxu0
        %v1245 = vadd.f32 %v992, %v1244
        %v1246 = vpop.f32.mrb[0].mxu0
        %v1247 = vpop.f32.mrb[0].mxu0
        %v1248 = vadd.f32 %v992, %v1247
        %v1249 = vpop.f32.mrb[0].mxu0
        %1250 = vdwg.mxu0
        %1251 = vmatprep.subr.bf16.mxu0 0
        %1252 = vmatpush1.bf16.msra.mxu0 %v1138
        %1253 = vmatprep.subr.bf16.mxu0 0
        %1254 = vmatpush1.bf16.msra.mxu0 %v1139
        %1255 = vmatprep.subr.bf16.mxu0 0
        %1256 = vmatpush1.bf16.msra.mxu0 %v1140
        %1257 = vmatprep.subr.bf16.mxu0 0
        %1258 = vmatpush1.bf16.msra.mxu0 %v1141
        %1259 = vmatprep.subr.bf16.mxu0 0
        %1260 = vmatpush1.bf16.msra.mxu0 %v1142
        %1261 = vmatprep.subr.bf16.mxu0 0
        %1262 = vmatpush1.bf16.msra.mxu0 %v1143
        %1263 = vmatprep.subr.bf16.mxu0 0
        %1264 = vmatpush1.bf16.msra.mxu0 %v1144
        %1265 = vmatprep.subr.bf16.mxu0 0
        %1266 = vmatpush1.bf16.msra.mxu0 %v1145
        %1267 = vmatprep.subr.bf16.mxu0 0
        %1268 = vmatpush1.bf16.msra.mxu0 %v1146
        %1269 = vmatprep.subr.bf16.mxu0 0
        %1270 = vmatpush1.bf16.msra.mxu0 %v1147
        %1271 = vmatprep.subr.bf16.mxu0 0
        %1272 = vmatpush1.bf16.msra.mxu0 %v1148
        %1273 = vmatprep.subr.bf16.mxu0 0
        %1274 = vmatpush1.bf16.msra.mxu0 %v1149
        %1275 = vmatprep.subr.bf16.mxu0 0
        %1276 = vmatpush1.bf16.msra.mxu0 %v1150
        %1277 = vmatprep.subr.bf16.mxu0 0
        %1278 = vmatpush1.bf16.msra.mxu0 %v1151
        %1279 = vmatprep.subr.bf16.mxu0 0
        %1280 = vmatpush1.bf16.msra.mxu0 %v1152
        %1281 = vmatprep.subr.bf16.mxu0 0
        %1282 = vmatpush1.bf16.msra.mxu0 %v1153
        %1283 = vmatprep.mubr.bf16.mxu0 %v910
        %1284 = vmatmul.mubr.bf16.gmra.mrb[0].mxu0 %v909
        %v1285 = vpop.f32.mrb[0].mxu0
        %v1286 = vadd.f32 %v1221, %v1285
        %v1287 = vpop.f32.mrb[0].mxu0
        %v1288 = vpop.f32.mrb[0].mxu0
        %v1289 = vadd.f32 %v1224, %v1288
        %v1290 = vpop.f32.mrb[0].mxu0
        %1291 = vmatprep.mubr.bf16.mxu0 %v914
        %1292 = vmatmul.mubr.bf16.gmra.mrb[0].mxu0 %v913
        %v1293 = vpop.f32.mrb[0].mxu0
        %v1294 = vadd.f32 %v1229, %v1293
        %v1295 = vpop.f32.mrb[0].mxu0
        %v1296 = vpop.f32.mrb[0].mxu0
        %v1297 = vadd.f32 %v1232, %v1296
        %v1298 = vpop.f32.mrb[0].mxu0
        %1299 = vmatprep.mubr.bf16.mxu0 %v918
        %1300 = vmatmul.mubr.bf16.gmra.mrb[0].mxu0 %v917
        %v1301 = vpop.f32.mrb[0].mxu0
        %v1302 = vadd.f32 %v1237, %v1301
        %v1303 = vpop.f32.mrb[0].mxu0
        %v1304 = vpop.f32.mrb[0].mxu0
        %v1305 = vadd.f32 %v1240, %v1304
        %v1306 = vpop.f32.mrb[0].mxu0
        %1307 = vmatprep.mubr.bf16.mxu0 %v922
        %1308 = vmatmul.mubr.bf16.gmra.mrb[0].mxu0 %v921
        %v1309 = vpop.f32.mrb[0].mxu0
        %v1310 = vadd.f32 %v1245, %v1309
        %v1311 = vpop.f32.mrb[0].mxu0
        %v1312 = vpop.f32.mrb[0].mxu0
        %v1313 = vadd.f32 %v1248, %v1312
        %v1314 = vpop.f32.mrb[0].mxu0
        %1315 = vdwg.mxu0
        %vm1316 = vcmask 64512
        %1317 = vst.msk [vmem:[%s218] sm:$0xff] %vm1316, %v1286
        %1318 = vst.msk [vmem:[%s218 + $0x8] sm:$0xff] %vm1316, %v1289
        %1319 = vst.msk [vmem:[%s218 + $0x10] sm:$0xff] %vm1316, %v1294
        %1320 = vst.msk [vmem:[%s218 + $0x18] sm:$0xff] %vm1316, %v1297
        %1321 = vst.msk [vmem:[%s218 + $0x20] sm:$0xff] %vm1316, %v1302
        %1322 = vst.msk [vmem:[%s218 + $0x28] sm:$0xff] %vm1316, %v1305
        %1323 = vst.msk [vmem:[%s218 + $0x30] sm:$0xff] %vm1316, %v1310
        %1324 = vst.msk [vmem:[%s218 + $0x38] sm:$0xff] %vm1316, %v1313
        %s1325 = sand.u32 %s137, 1
        %s1326 = scalar_lea.sflag [#allocation3], %s1325
        %s1327 = sand.u32 %s137, 1
        %s1328 = smul.addr %s1327, 64
        %s1329 = scalar_lea.vmem [#allocation2], %s1328
        // Predicated region
        $region41: #{fno3d_forward.15} parent=39 // pred_check
          %p1330 = pneg %p147
        $region42: #{fno3d_forward.15} parent=39 // pred_check_branch
          %1332 = sbr.rel (%p1330) target = $region44
        $region43: #{fno3d_forward.15} parent=39 // pred_region
          %s1333 = smul.u32 8, %s19
          %s1335 = ssub.s32 1024, 1024
          %1336 = vsyncadd %s1326, %s1335
          %s1337 = smul.addr %s1333, 128
          %s1338 = scalar_lea.hbm %s5, %s1337
          %s1339 = sshll.u32 %s1329, 4
          %s1340 = int_to_ptr.vmem [resolvable:$true] %s1339
          %1345 = dma.vmem_to_hbm [thread:$0]  %s1340, 1024, %s1338, %s1326, 128, 128, 8
        $region44: #{fno3d_forward.15} parent=39 // pred_fallthru
          _
      $region40: #{fno3d_forward.15} parent=5 // pred_fallthru
        _
      %p1346 = scmp.le.s32.totalorder 2, %s14
      // Predicated region
      $region45: #{fno3d_forward.15} parent=5 // pred_check
        %p1347 = pneg %p1346
      $region46: #{fno3d_forward.15} parent=5 // pred_check_branch
        %1349 = sbr.rel (%p1347) target = $region48
      $region47: #{fno3d_forward.15} parent=5 // pred_region
        %s1350 = ssub.s32 %s14, 2
        // Predicated region
        $region49: #{fno3d_forward.15} parent=47 // pred_check
          %p1351 = pneg %p153
        $region50: #{fno3d_forward.15} parent=47 // pred_check_branch
          %1353 = sbr.rel (%p1351) target = $region52
        $region51: #{fno3d_forward.15} parent=47 // pred_region
          %s1354 = sand.u32 %s138, 1
          %s1355 = scalar_lea.sflag [#allocation3], %s1354
          %s1356 = sand.u32 %s138, 1
          %s1357 = smul.addr %s1356, 64
          %s1358 = scalar_lea.vmem [#allocation2], %s1357
          %1359 = dma.done %s1355, 1024
        $region52: #{fno3d_forward.15} parent=47 // pred_fallthru
          _
      $region48: #{fno3d_forward.15} parent=5 // pred_fallthru
        _
    $region6: #{fno3d_forward.15} parent=1 // loop_footer
      %s18 = sadd.s32 1, %s14
    $region7: #{fno3d_forward.15} parent=1 // loop_footer_branch
      %13 = sbr.rel target = $region3
    $region8: #{fno3d_forward.15} parent=1 // loop_exit
      _
    %1360 = vsyncpa [#allocation3], 1
    %s1361 = scalar_lea.sflag [#allocation3], 1
    %1362 = vsyncpa %s1361, 1

</llo_original>
